<compile_context>
chip_gen: v5e
topology: v5e:2x2
jax: 0.10.0
libtpu: 0.0.40
codegen_flags: <defaults>
</compile_context>

<pallas_src>
import numpy as np
import jax
import jax.numpy as jnp
from jax.experimental import pallas as pl
from jax.experimental.pallas import tpu as pltpu


# --------------------- one-time host-side parameter prep --------------------

def _halo(w):
    """Top/bottom zero-halo rows (multiple of 8 so the interior store is aligned)."""
    return ((w + 1 + 7) // 8) * 8


def _conv_w_prep(w):
    """torch Conv2d weight (C_out, C_in, 3, 3) -> (9, C_in, C_out), tap t = kh*3+kw."""
    c_out, c_in = w.shape[0], w.shape[1]
    return jnp.transpose(w, (2, 3, 1, 0)).reshape(9, c_in, c_out).astype(jnp.float32)


def _pool_selectors(h, w):
    """MaxPool2d(2) as 4 one-hot row-selection matrices: out = max_k sel[k] @ act."""
    m_in, m_out = h * w, (h // 2) * (w // 2)
    sel = np.zeros((4, m_out, m_in), np.float32)
    for i in range(2):
        for j in range(2):
            for hp in range(h // 2):
                for wp in range(w // 2):
                    ro = hp * (w // 2) + wp
                    ri = (2 * hp + i) * w + (2 * wp + j)
                    sel[i * 2 + j, ro, ri] = 1.0
    return jnp.asarray(sel)


def _fc_w_prep(wf, hf, wsp):
    """torch Linear weight (4, C*hf*wsp) with flatten order (c, h, w) ->
    (hf*wsp, C, 4) so logits = sum_p act4[p, :] @ wfc[p] (act4 rows ordered (h, w))."""
    out_dim = wf.shape[0]
    c = wf.shape[1] // (hf * wsp)
    w4 = wf.reshape(out_dim, c, hf, wsp)                       # (o, c, h, w)
    return jnp.transpose(w4, (2, 3, 1, 0)).reshape(hf * wsp, c, out_dim).astype(jnp.float32)


def prepare_params(params, h, w):
    """One-time repack of torch-layout tensors into kernel-friendly layouts."""
    (w1, b1, w2, b2, w3, b3, w4, b4, wf, bf) = params
    return (
        _conv_w_prep(w1), b1.reshape(1, -1).astype(jnp.float32), _pool_selectors(h, w),
        _conv_w_prep(w2), b2.reshape(1, -1).astype(jnp.float32), _pool_selectors(h // 2, w // 2),
        _conv_w_prep(w3), b3.reshape(1, -1).astype(jnp.float32), _pool_selectors(h // 4, w // 4),
        _conv_w_prep(w4), b4.reshape(1, -1).astype(jnp.float32),
        _fc_w_prep(wf, h // 8, w // 8), bf.reshape(1, -1).astype(jnp.float32),
    )


# ------------------------------ kernel pieces -------------------------------

def _leaky_relu(v):
    return jnp.maximum(v, 0.01 * v)   # nn.LeakyReLU default negative_slope=0.01


def _conv3x3(a, pad_ref, w_ref, b_ref, h, w):
    """'Same' 3x3 conv (stride 1, zero pad 1) on one sample.

    a:       (h*w, c_in) activation, rows ordered (h, w), channels in lanes.
    pad_ref: VMEM scratch (h*w + 2*halo, c_in): zero-padded copy of `a` so every
             tap is a static pl.ds row-window (im2col never leaves VMEM).
    w_ref:   (9, c_in, c_out) weights, tap t = kh*3 + kw.   b_ref: (1, c_out).
    """
    m = h * w
    halo = _halo(w)
    c_out = w_ref.shape[2]

    pad_ref[...] = jnp.zeros(pad_ref.shape, dtype=pad_ref.dtype)
    pad_ref[pl.ds(halo, m), :] = a

    col = jax.lax.broadcasted_iota(jnp.int32, (m, 1), 0) % w
    mask_l = jnp.where(col >= 1, 1.0, 0.0).astype(jnp.float32)      # reads w-1
    mask_r = jnp.where(col < w - 1, 1.0, 0.0).astype(jnp.float32)   # reads w+1

    acc = jnp.zeros((m, c_out), jnp.float32) + b_ref[...]
    for kh in range(3):
        for kw in range(3):
            dh, dw = kh - 1, kw - 1
            tap = pad_ref[pl.ds(halo + dh * w + dw, m), :]
            if dw == -1:
                tap = tap * mask_l
            elif dw == 1:
                tap = tap * mask_r
            acc = acc + jnp.dot(tap, w_ref[kh * 3 + kw],
                                preferred_element_type=jnp.float32)
    return acc


def _maxpool2(y, s_ref):
    """MaxPool2d(2) via 4 constant one-hot selection matmuls (no gather/reshape)."""
    p = jnp.dot(s_ref[0], y, preferred_element_type=jnp.float32)
    for k in range(1, 4):
        p = jnp.maximum(p, jnp.dot(s_ref[k], y, preferred_element_type=jnp.float32))
    return p


def _make_kernel(h, w):
    def kernel(x_ref,
               w1_ref, b1_ref, s1_ref,
               w2_ref, b2_ref, s2_ref,
               w3_ref, b3_ref, s3_ref,
               w4_ref, b4_ref,
               wf_ref, bf_ref,
               o_ref,
               pad1_ref, pad2_ref, pad3_ref, pad4_ref):
        a = x_ref[0]                                                    # (h*w, c_in)

        a = _leaky_relu(_maxpool2(_conv3x3(a, pad1_ref, w1_ref, b1_ref, h, w), s1_ref))
        a = _leaky_relu(_maxpool2(_conv3x3(a, pad2_ref, w2_ref, b2_ref, h // 2, w // 2), s2_ref))
        a = _leaky_relu(_maxpool2(_conv3x3(a, pad3_ref, w3_ref, b3_ref, h // 4, w // 4), s3_ref))
        a = _leaky_relu(_conv3x3(a, pad4_ref, w4_ref, b4_ref, h // 8, w // 8))   # (hw/64, 128)

        # Flatten + Linear: torch (c, h, w) flatten order already folded into wf_ref.
        logits = bf_ref[...]                                            # (1, 4)
        for p in range((h // 8) * (w // 8)):
            logits = logits + jnp.dot(a[p:p + 1, :], wf_ref[p],
                                      preferred_element_type=jnp.float32)
        o_ref[0] = logits
    return kernel


# --------------------------------- wrapper ----------------------------------

@jax.jit
def forward(x, prep):
    b, c_in, h, w = x.shape
    # NCHW -> per-sample (h*w, c_in): rows ordered (h, w), channels in lanes.
    x_rows = jnp.transpose(x, (0, 2, 3, 1)).reshape(b, h * w, c_in)
    args = (x_rows,) + tuple(prep)

    def const_spec(arr):
        nd = arr.ndim
        return pl.BlockSpec(arr.shape, lambda i, _nd=nd: (0,) * _nd)

    in_specs = [pl.BlockSpec((1, h * w, c_in), lambda i: (i, 0, 0))]
    in_specs += [const_spec(p) for p in prep]

    c1 = prep[0].shape[2]   # 16
    c2 = prep[3].shape[2]   # 32
    c3 = prep[6].shape[2]   # 64
    scratch = [
        pltpu.VMEM((h * w + 2 * _halo(w), c_in), jnp.float32),
        pltpu.VMEM(((h // 2) * (w // 2) + 2 * _halo(w // 2), c1), jnp.float32),
        pltpu.VMEM(((h // 4) * (w // 4) + 2 * _halo(w // 4), c2), jnp.float32),
        pltpu.VMEM(((h // 8) * (w // 8) + 2 * _halo(w // 8), c3), jnp.float32),
    ]

    out = pl.pallas_call(
        _make_kernel(h, w),
        out_shape=jax.ShapeDtypeStruct((b, 1, 4), jnp.float32),
        grid=(b,),
        in_specs=in_specs,
        out_specs=pl.BlockSpec((1, 1, 4), lambda i: (i, 0, 0)),
        scratch_shapes=scratch,
        compiler_params=pltpu.CompilerParams(
            dimension_semantics=("parallel",)),
    )(*args)
    return out.reshape(b, 4)


# ------------------------------ pure-JAX reference --------------------------

def reference(x, params):
    (w1, b1, w2, b2, w3, b3, w4, b4, wf, bf) = params

    def conv(t, wt, bt):
        y = jax.lax.conv_general_dilated(
            t, wt, window_strides=(1, 1), padding=((1, 1), (1, 1)),
            dimension_numbers=("NCHW", "OIHW", "NCHW"))
        return y + bt.reshape(1, -1, 1, 1)

    def pool(t):
        bb, cc, hh, ww = t.shape
        return t.reshape(bb, cc, hh // 2, 2, ww // 2, 2).max(axis=(3, 5))

    def act(t):
        return jnp.where(t > 0, t, 0.01 * t)

    y = act(pool(conv(x, w1, b1)))
    y = act(pool(conv(y, w2, b2)))
    y = act(pool(conv(y, w3, b3)))
    y = act(conv(y, w4, b4))
    flat = y.reshape(x.shape[0], -1)
    return flat @ wf.T + bf


# ----------------------------------- main ------------------------------------

if __name__ == "__main__":
    B, C_IN, H, W = 2, 4, 16, 16
    key = jax.random.PRNGKey(0)
    ks = jax.random.split(key, 11)

    x = jax.random.normal(ks[0], (B, C_IN, H, W), dtype=jnp.float32)

    def init(k, shape, scale):
        return scale * jax.random.normal(k, shape, dtype=jnp.float32)

    # torch-layout parameters (Conv2d / Linear defaults have bias=True).
    params = (
        init(ks[1], (16, C_IN, 3, 3), 0.15), init(ks[2], (16,), 0.1),
        init(ks[3], (32, 16, 3, 3), 0.08),   init(ks[4], (32,), 0.1),
        init(ks[5], (64, 32, 3, 3), 0.06),   init(ks[6], (64,), 0.1),
        init(ks[7], (128, 64, 3, 3), 0.04),  init(ks[8], (128,), 0.1),
        init(ks[9], (4, (H // 8) * (W // 8) * 128), 0.05), init(ks[10], (4,), 0.1),
    )
    # NOTE: loss_fn / optimizer in FullConvNet.__init__ are training-only state;
    # forward() does not use them.

    prep = prepare_params(params, H, W)     # one-time weight repack (hoisted out of forward)

    out = jax.block_until_ready(forward(x, prep))
    ref = jax.block_until_ready(reference(x, params))

    assert out.shape == (B, 4), out.shape
    max_err = float(jnp.max(jnp.abs(out - ref)))
    assert jnp.allclose(out, ref, atol=1e-3, rtol=1e-3), f"max abs diff {max_err}"

    print("KERNEL_OK")
</pallas_src>

<mosaic_0001>
module attributes {stable_mosaic.version = 11 : i64} {
  func.func @kernel(%arg0: i32, %arg1: memref<1x256x4xf32, #tpu.memory_space<vmem>>, %arg2: memref<9x4x16xf32, #tpu.memory_space<vmem>>, %arg3: memref<1x16xf32, #tpu.memory_space<vmem>>, %arg4: memref<4x64x256xf32, #tpu.memory_space<vmem>>, %arg5: memref<9x16x32xf32, #tpu.memory_space<vmem>>, %arg6: memref<1x32xf32, #tpu.memory_space<vmem>>, %arg7: memref<4x16x64xf32, #tpu.memory_space<vmem>>, %arg8: memref<9x32x64xf32, #tpu.memory_space<vmem>>, %arg9: memref<1x64xf32, #tpu.memory_space<vmem>>, %arg10: memref<4x4x16xf32, #tpu.memory_space<vmem>>, %arg11: memref<9x64x128xf32, #tpu.memory_space<vmem>>, %arg12: memref<1x128xf32, #tpu.memory_space<vmem>>, %arg13: memref<4x128x4xf32, #tpu.memory_space<vmem>>, %arg14: memref<1x4xf32, #tpu.memory_space<vmem>>, %arg15: memref<1x1x4xf32, #tpu.memory_space<vmem>>, %arg16: memref<304x4xf32, #tpu.memory_space<vmem>>, %arg17: memref<96x16xf32, #tpu.memory_space<vmem>>, %arg18: memref<32x32xf32, #tpu.memory_space<vmem>>, %arg19: memref<20x64xf32, #tpu.memory_space<vmem>>) attributes {dimension_semantics = [#tpu.dimension_semantics<parallel>], iteration_bounds = array<i64: 2>, scalar_prefetch = 0 : i64, scratch_operands = 4 : i64, tpu.core_type = #tpu.core_type<tc>, window_params = [{transform_indices = @transform_0, window_bounds = array<i64: 1, 256, 4>}, {pipeline_mode = #tpu.pipeline_mode<synchronous>, transform_indices = @transform_1, window_bounds = array<i64: 9, 4, 16>}, {pipeline_mode = #tpu.pipeline_mode<synchronous>, transform_indices = @transform_2, window_bounds = array<i64: 1, 16>}, {pipeline_mode = #tpu.pipeline_mode<synchronous>, transform_indices = @transform_3, window_bounds = array<i64: 4, 64, 256>}, {pipeline_mode = #tpu.pipeline_mode<synchronous>, transform_indices = @transform_4, window_bounds = array<i64: 9, 16, 32>}, {pipeline_mode = #tpu.pipeline_mode<synchronous>, transform_indices = @transform_5, window_bounds = array<i64: 1, 32>}, {pipeline_mode = #tpu.pipeline_mode<synchronous>, transform_indices = @transform_6, window_bounds = array<i64: 4, 16, 64>}, {pipeline_mode = #tpu.pipeline_mode<synchronous>, transform_indices = @transform_7, window_bounds = array<i64: 9, 32, 64>}, {pipeline_mode = #tpu.pipeline_mode<synchronous>, transform_indices = @transform_8, window_bounds = array<i64: 1, 64>}, {pipeline_mode = #tpu.pipeline_mode<synchronous>, transform_indices = @transform_9, window_bounds = array<i64: 4, 4, 16>}, {pipeline_mode = #tpu.pipeline_mode<synchronous>, transform_indices = @transform_10, window_bounds = array<i64: 9, 64, 128>}, {pipeline_mode = #tpu.pipeline_mode<synchronous>, transform_indices = @transform_11, window_bounds = array<i64: 1, 128>}, {pipeline_mode = #tpu.pipeline_mode<synchronous>, transform_indices = @transform_12, window_bounds = array<i64: 4, 128, 4>}, {pipeline_mode = #tpu.pipeline_mode<synchronous>, transform_indices = @transform_13, window_bounds = array<i64: 1, 4>}, {transform_indices = @transform_14, window_bounds = array<i64: 1, 1, 4>}]} {
    %c0 = arith.constant 0 : index
    %c0_0 = arith.constant 0 : index
    %c0_1 = arith.constant 0 : index
    %0 = vector.load %arg1[%c0, %c0_0, %c0_1] : memref<1x256x4xf32, #tpu.memory_space<vmem>>, vector<1x256x4xf32>
    %1 = vector.shape_cast %0 : vector<1x256x4xf32> to vector<256x4xf32>
    %cst = arith.constant 0.000000e+00 : f32
    %2 = vector.broadcast %cst : f32 to vector<304x4xf32>
    %c0_2 = arith.constant 0 : index
    %c0_3 = arith.constant 0 : index
    %3 = vector.load %arg16[%c0_2, %c0_3] : memref<304x4xf32, #tpu.memory_space<vmem>>, vector<304x4xf32>
    tpu.vector_store %arg16[%c0_2, %c0_3], %2 {strides = array<i32>} : memref<304x4xf32, #tpu.memory_space<vmem>>, vector<304x4xf32>,
    %c24 = arith.constant 24 : index
    %c0_4 = arith.constant 0 : index
    %4 = vector.load %arg16[%c24, %c0_4] : memref<304x4xf32, #tpu.memory_space<vmem>>, vector<256x4xf32>
    tpu.vector_store %arg16[%c24, %c0_4], %1 {strides = array<i32>} : memref<304x4xf32, #tpu.memory_space<vmem>>, vector<256x4xf32>,
    %5 = tpu.iota {dimensions = array<i32: 0>} : vector<256x1xi32>
    %c16_i32 = arith.constant 16 : i32
    %c0_i32 = arith.constant 0 : i32
    %6 = arith.cmpi eq, %c16_i32, %c0_i32 : i32
    %c1_i32 = arith.constant 1 : i32
    %7 = arith.select %6, %c1_i32, %c16_i32 : i32
    %8 = vector.broadcast %7 : i32 to vector<256x1xi32>
    %9 = arith.remsi %5, %8 : vector<256x1xi32>
    %c0_i32_5 = arith.constant 0 : i32
    %10 = vector.broadcast %c0_i32_5 : i32 to vector<256x1xi32>
    %11 = arith.cmpi ne, %9, %10 : vector<256x1xi32>
    %c0_i32_6 = arith.constant 0 : i32
    %12 = vector.broadcast %c0_i32_6 : i32 to vector<256x1xi32>
    %13 = arith.cmpi slt, %9, %12 : vector<256x1xi32>
    %c0_i32_7 = arith.constant 0 : i32
    %14 = arith.cmpi slt, %7, %c0_i32_7 : i32
    %15 = vector.broadcast %14 : i1 to vector<256x1xi1>
    %16 = vector.broadcast %15 : vector<256x1xi1> to vector<256x1xi1>
    %17 = arith.xori %13, %16 : vector<256x1xi1>
    %18 = arith.andi %17, %11 : vector<256x1xi1>
    %19 = vector.broadcast %7 : i32 to vector<256x1xi32>
    %20 = arith.addi %9, %19 : vector<256x1xi32>
    %21 = arith.select %18, %20, %9 : vector<256x1xi1>, vector<256x1xi32>
    %c1_i32_8 = arith.constant 1 : i32
    %22 = vector.broadcast %c1_i32_8 : i32 to vector<256x1xi32>
    %23 = arith.cmpi sge, %21, %22 : vector<256x1xi32>
    %cst_9 = arith.constant 1.000000e+00 : f32
    %cst_10 = arith.constant 0.000000e+00 : f32
    %24 = vector.broadcast %cst_9 : f32 to vector<256x1xf32>
    %25 = vector.broadcast %cst_10 : f32 to vector<256x1xf32>
    %26 = arith.select %23, %24, %25 : vector<256x1xi1>, vector<256x1xf32>
    %c15_i32 = arith.constant 15 : i32
    %27 = vector.broadcast %c15_i32 : i32 to vector<256x1xi32>
    %28 = arith.cmpi slt, %21, %27 : vector<256x1xi32>
    %cst_11 = arith.constant 1.000000e+00 : f32
    %cst_12 = arith.constant 0.000000e+00 : f32
    %29 = vector.broadcast %cst_11 : f32 to vector<256x1xf32>
    %30 = vector.broadcast %cst_12 : f32 to vector<256x1xf32>
    %31 = arith.select %28, %29, %30 : vector<256x1xi1>, vector<256x1xf32>
    %cst_13 = arith.constant 0.000000e+00 : f32
    %32 = vector.broadcast %cst_13 : f32 to vector<256x16xf32>
    %c0_14 = arith.constant 0 : index
    %c0_15 = arith.constant 0 : index
    %33 = vector.load %arg3[%c0_14, %c0_15] : memref<1x16xf32, #tpu.memory_space<vmem>>, vector<1x16xf32>
    %34 = vector.broadcast %33 : vector<1x16xf32> to vector<256x16xf32>
    %35 = arith.addf %32, %34 : vector<256x16xf32>
    %c7 = arith.constant 7 : index
    %c0_16 = arith.constant 0 : index
    %36 = vector.load %arg16[%c7, %c0_16] : memref<304x4xf32, #tpu.memory_space<vmem>>, vector<256x4xf32>
    %37 = vector.broadcast %26 : vector<256x1xf32> to vector<256x4xf32>
    %38 = arith.mulf %36, %37 : vector<256x4xf32>
    %c0_17 = arith.constant 0 : index
    %c0_18 = arith.constant 0 : index
    %c0_19 = arith.constant 0 : index
    %39 = vector.load %arg2[%c0_17, %c0_18, %c0_19] : memref<9x4x16xf32, #tpu.memory_space<vmem>>, vector<1x4x16xf32>
    %40 = vector.shape_cast %39 : vector<1x4x16xf32> to vector<4x16xf32>
    %cst_20 = arith.constant dense<0.000000e+00> : vector<256x16xf32>
    %41 = tpu.matmul %38, %40, %cst_20 {dimension_numbers = #tpu.dot_dimension_numbers<[1], [0], [0], [1], [0, 0, 1, 1], [], []>} : vector<256x4xf32>, vector<4x16xf32>, vector<256x16xf32> -> vector<256x16xf32>
    %42 = arith.addf %35, %41 : vector<256x16xf32>
    %c8 = arith.constant 8 : index
    %c0_21 = arith.constant 0 : index
    %43 = vector.load %arg16[%c8, %c0_21] : memref<304x4xf32, #tpu.memory_space<vmem>>, vector<256x4xf32>
    %c1 = arith.constant 1 : index
    %c0_22 = arith.constant 0 : index
    %c0_23 = arith.constant 0 : index
    %44 = vector.load %arg2[%c1, %c0_22, %c0_23] : memref<9x4x16xf32, #tpu.memory_space<vmem>>, vector<1x4x16xf32>
    %45 = vector.shape_cast %44 : vector<1x4x16xf32> to vector<4x16xf32>
    %cst_24 = arith.constant dense<0.000000e+00> : vector<256x16xf32>
    %46 = tpu.matmul %43, %45, %cst_24 {dimension_numbers = #tpu.dot_dimension_numbers<[1], [0], [0], [1], [0, 0, 1, 1], [], []>} : vector<256x4xf32>, vector<4x16xf32>, vector<256x16xf32> -> vector<256x16xf32>
    %47 = arith.addf %42, %46 : vector<256x16xf32>
    %c9 = arith.constant 9 : index
    %c0_25 = arith.constant 0 : index
    %48 = vector.load %arg16[%c9, %c0_25] : memref<304x4xf32, #tpu.memory_space<vmem>>, vector<256x4xf32>
    %49 = vector.broadcast %31 : vector<256x1xf32> to vector<256x4xf32>
    %50 = arith.mulf %48, %49 : vector<256x4xf32>
    %c2 = arith.constant 2 : index
    %c0_26 = arith.constant 0 : index
    %c0_27 = arith.constant 0 : index
    %51 = vector.load %arg2[%c2, %c0_26, %c0_27] : memref<9x4x16xf32, #tpu.memory_space<vmem>>, vector<1x4x16xf32>
    %52 = vector.shape_cast %51 : vector<1x4x16xf32> to vector<4x16xf32>
    %cst_28 = arith.constant dense<0.000000e+00> : vector<256x16xf32>
    %53 = tpu.matmul %50, %52, %cst_28 {dimension_numbers = #tpu.dot_dimension_numbers<[1], [0], [0], [1], [0, 0, 1, 1], [], []>} : vector<256x4xf32>, vector<4x16xf32>, vector<256x16xf32> -> vector<256x16xf32>
    %54 = arith.addf %47, %53 : vector<256x16xf32>
    %c23 = arith.constant 23 : index
    %c0_29 = arith.constant 0 : index
    %55 = vector.load %arg16[%c23, %c0_29] : memref<304x4xf32, #tpu.memory_space<vmem>>, vector<256x4xf32>
    %56 = vector.broadcast %26 : vector<256x1xf32> to vector<256x4xf32>
    %57 = arith.mulf %55, %56 : vector<256x4xf32>
    %c3 = arith.constant 3 : index
    %c0_30 = arith.constant 0 : index
    %c0_31 = arith.constant 0 : index
    %58 = vector.load %arg2[%c3, %c0_30, %c0_31] : memref<9x4x16xf32, #tpu.memory_space<vmem>>, vector<1x4x16xf32>
    %59 = vector.shape_cast %58 : vector<1x4x16xf32> to vector<4x16xf32>
    %cst_32 = arith.constant dense<0.000000e+00> : vector<256x16xf32>
    %60 = tpu.matmul %57, %59, %cst_32 {dimension_numbers = #tpu.dot_dimension_numbers<[1], [0], [0], [1], [0, 0, 1, 1], [], []>} : vector<256x4xf32>, vector<4x16xf32>, vector<256x16xf32> -> vector<256x16xf32>
    %61 = arith.addf %54, %60 : vector<256x16xf32>
    %c24_33 = arith.constant 24 : index
    %c0_34 = arith.constant 0 : index
    %62 = vector.load %arg16[%c24_33, %c0_34] : memref<304x4xf32, #tpu.memory_space<vmem>>, vector<256x4xf32>
    %c4 = arith.constant 4 : index
    %c0_35 = arith.constant 0 : index
    %c0_36 = arith.constant 0 : index
    %63 = vector.load %arg2[%c4, %c0_35, %c0_36] : memref<9x4x16xf32, #tpu.memory_space<vmem>>, vector<1x4x16xf32>
    %64 = vector.shape_cast %63 : vector<1x4x16xf32> to vector<4x16xf32>
    %cst_37 = arith.constant dense<0.000000e+00> : vector<256x16xf32>
    %65 = tpu.matmul %62, %64, %cst_37 {dimension_numbers = #tpu.dot_dimension_numbers<[1], [0], [0], [1], [0, 0, 1, 1], [], []>} : vector<256x4xf32>, vector<4x16xf32>, vector<256x16xf32> -> vector<256x16xf32>
    %66 = arith.addf %61, %65 : vector<256x16xf32>
    %c25 = arith.constant 25 : index
    %c0_38 = arith.constant 0 : index
    %67 = vector.load %arg16[%c25, %c0_38] : memref<304x4xf32, #tpu.memory_space<vmem>>, vector<256x4xf32>
    %68 = vector.broadcast %31 : vector<256x1xf32> to vector<256x4xf32>
    %69 = arith.mulf %67, %68 : vector<256x4xf32>
    %c5 = arith.constant 5 : index
    %c0_39 = arith.constant 0 : index
    %c0_40 = arith.constant 0 : index
    %70 = vector.load %arg2[%c5, %c0_39, %c0_40] : memref<9x4x16xf32, #tpu.memory_space<vmem>>, vector<1x4x16xf32>
    %71 = vector.shape_cast %70 : vector<1x4x16xf32> to vector<4x16xf32>
    %cst_41 = arith.constant dense<0.000000e+00> : vector<256x16xf32>
    %72 = tpu.matmul %69, %71, %cst_41 {dimension_numbers = #tpu.dot_dimension_numbers<[1], [0], [0], [1], [0, 0, 1, 1], [], []>} : vector<256x4xf32>, vector<4x16xf32>, vector<256x16xf32> -> vector<256x16xf32>
    %73 = arith.addf %66, %72 : vector<256x16xf32>
    %c39 = arith.constant 39 : index
    %c0_42 = arith.constant 0 : index
    %74 = vector.load %arg16[%c39, %c0_42] : memref<304x4xf32, #tpu.memory_space<vmem>>, vector<256x4xf32>
    %75 = vector.broadcast %26 : vector<256x1xf32> to vector<256x4xf32>
    %76 = arith.mulf %74, %75 : vector<256x4xf32>
    %c6 = arith.constant 6 : index
    %c0_43 = arith.constant 0 : index
    %c0_44 = arith.constant 0 : index
    %77 = vector.load %arg2[%c6, %c0_43, %c0_44] : memref<9x4x16xf32, #tpu.memory_space<vmem>>, vector<1x4x16xf32>
    %78 = vector.shape_cast %77 : vector<1x4x16xf32> to vector<4x16xf32>
    %cst_45 = arith.constant dense<0.000000e+00> : vector<256x16xf32>
    %79 = tpu.matmul %76, %78, %cst_45 {dimension_numbers = #tpu.dot_dimension_numbers<[1], [0], [0], [1], [0, 0, 1, 1], [], []>} : vector<256x4xf32>, vector<4x16xf32>, vector<256x16xf32> -> vector<256x16xf32>
    %80 = arith.addf %73, %79 : vector<256x16xf32>
    %c40 = arith.constant 40 : index
    %c0_46 = arith.constant 0 : index
    %81 = vector.load %arg16[%c40, %c0_46] : memref<304x4xf32, #tpu.memory_space<vmem>>, vector<256x4xf32>
    %c7_47 = arith.constant 7 : index
    %c0_48 = arith.constant 0 : index
    %c0_49 = arith.constant 0 : index
    %82 = vector.load %arg2[%c7_47, %c0_48, %c0_49] : memref<9x4x16xf32, #tpu.memory_space<vmem>>, vector<1x4x16xf32>
    %83 = vector.shape_cast %82 : vector<1x4x16xf32> to vector<4x16xf32>
    %cst_50 = arith.constant dense<0.000000e+00> : vector<256x16xf32>
    %84 = tpu.matmul %81, %83, %cst_50 {dimension_numbers = #tpu.dot_dimension_numbers<[1], [0], [0], [1], [0, 0, 1, 1], [], []>} : vector<256x4xf32>, vector<4x16xf32>, vector<256x16xf32> -> vector<256x16xf32>
    %85 = arith.addf %80, %84 : vector<256x16xf32>
    %c41 = arith.constant 41 : index
    %c0_51 = arith.constant 0 : index
    %86 = vector.load %arg16[%c41, %c0_51] : memref<304x4xf32, #tpu.memory_space<vmem>>, vector<256x4xf32>
    %87 = vector.broadcast %31 : vector<256x1xf32> to vector<256x4xf32>
    %88 = arith.mulf %86, %87 : vector<256x4xf32>
    %c8_52 = arith.constant 8 : index
    %c0_53 = arith.constant 0 : index
    %c0_54 = arith.constant 0 : index
    %89 = vector.load %arg2[%c8_52, %c0_53, %c0_54] : memref<9x4x16xf32, #tpu.memory_space<vmem>>, vector<1x4x16xf32>
    %90 = vector.shape_cast %89 : vector<1x4x16xf32> to vector<4x16xf32>
    %cst_55 = arith.constant dense<0.000000e+00> : vector<256x16xf32>
    %91 = tpu.matmul %88, %90, %cst_55 {dimension_numbers = #tpu.dot_dimension_numbers<[1], [0], [0], [1], [0, 0, 1, 1], [], []>} : vector<256x4xf32>, vector<4x16xf32>, vector<256x16xf32> -> vector<256x16xf32>
    %92 = arith.addf %85, %91 : vector<256x16xf32>
    %c0_56 = arith.constant 0 : index
    %c0_57 = arith.constant 0 : index
    %c0_58 = arith.constant 0 : index
    %93 = vector.load %arg4[%c0_56, %c0_57, %c0_58] : memref<4x64x256xf32, #tpu.memory_space<vmem>>, vector<1x64x256xf32>
    %94 = vector.shape_cast %93 : vector<1x64x256xf32> to vector<64x256xf32>
    %cst_59 = arith.constant dense<0.000000e+00> : vector<64x16xf32>
    %95 = tpu.matmul %94, %92, %cst_59 {dimension_numbers = #tpu.dot_dimension_numbers<[1], [0], [0], [1], [0, 0, 1, 1], [], []>} : vector<64x256xf32>, vector<256x16xf32>, vector<64x16xf32> -> vector<64x16xf32>
    %c1_60 = arith.constant 1 : index
    %c0_61 = arith.constant 0 : index
    %c0_62 = arith.constant 0 : index
    %96 = vector.load %arg4[%c1_60, %c0_61, %c0_62] : memref<4x64x256xf32, #tpu.memory_space<vmem>>, vector<1x64x256xf32>
    %97 = vector.shape_cast %96 : vector<1x64x256xf32> to vector<64x256xf32>
    %cst_63 = arith.constant dense<0.000000e+00> : vector<64x16xf32>
    %98 = tpu.matmul %97, %92, %cst_63 {dimension_numbers = #tpu.dot_dimension_numbers<[1], [0], [0], [1], [0, 0, 1, 1], [], []>} : vector<64x256xf32>, vector<256x16xf32>, vector<64x16xf32> -> vector<64x16xf32>
    %99 = arith.maximumf %95, %98 : vector<64x16xf32>
    %c2_64 = arith.constant 2 : index
    %c0_65 = arith.constant 0 : index
    %c0_66 = arith.constant 0 : index
    %100 = vector.load %arg4[%c2_64, %c0_65, %c0_66] : memref<4x64x256xf32, #tpu.memory_space<vmem>>, vector<1x64x256xf32>
    %101 = vector.shape_cast %100 : vector<1x64x256xf32> to vector<64x256xf32>
    %cst_67 = arith.constant dense<0.000000e+00> : vector<64x16xf32>
    %102 = tpu.matmul %101, %92, %cst_67 {dimension_numbers = #tpu.dot_dimension_numbers<[1], [0], [0], [1], [0, 0, 1, 1], [], []>} : vector<64x256xf32>, vector<256x16xf32>, vector<64x16xf32> -> vector<64x16xf32>
    %103 = arith.maximumf %99, %102 : vector<64x16xf32>
    %c3_68 = arith.constant 3 : index
    %c0_69 = arith.constant 0 : index
    %c0_70 = arith.constant 0 : index
    %104 = vector.load %arg4[%c3_68, %c0_69, %c0_70] : memref<4x64x256xf32, #tpu.memory_space<vmem>>, vector<1x64x256xf32>
    %105 = vector.shape_cast %104 : vector<1x64x256xf32> to vector<64x256xf32>
    %cst_71 = arith.constant dense<0.000000e+00> : vector<64x16xf32>
    %106 = tpu.matmul %105, %92, %cst_71 {dimension_numbers = #tpu.dot_dimension_numbers<[1], [0], [0], [1], [0, 0, 1, 1], [], []>} : vector<64x256xf32>, vector<256x16xf32>, vector<64x16xf32> -> vector<64x16xf32>
    %107 = arith.maximumf %103, %106 : vector<64x16xf32>
    %cst_72 = arith.constant 0.00999999977 : f32
    %108 = vector.broadcast %cst_72 : f32 to vector<64x16xf32>
    %109 = arith.mulf %108, %107 : vector<64x16xf32>
    %110 = arith.maximumf %107, %109 : vector<64x16xf32>
    %cst_73 = arith.constant 0.000000e+00 : f32
    %111 = vector.broadcast %cst_73 : f32 to vector<96x16xf32>
    %c0_74 = arith.constant 0 : index
    %c0_75 = arith.constant 0 : index
    %112 = vector.load %arg17[%c0_74, %c0_75] : memref<96x16xf32, #tpu.memory_space<vmem>>, vector<96x16xf32>
    tpu.vector_store %arg17[%c0_74, %c0_75], %111 {strides = array<i32>} : memref<96x16xf32, #tpu.memory_space<vmem>>, vector<96x16xf32>,
    %c16 = arith.constant 16 : index
    %c0_76 = arith.constant 0 : index
    %113 = vector.load %arg17[%c16, %c0_76] : memref<96x16xf32, #tpu.memory_space<vmem>>, vector<64x16xf32>
    tpu.vector_store %arg17[%c16, %c0_76], %110 {strides = array<i32>} : memref<96x16xf32, #tpu.memory_space<vmem>>, vector<64x16xf32>,
    %114 = tpu.iota {dimensions = array<i32: 0>} : vector<64x1xi32>
    %c8_i32 = arith.constant 8 : i32
    %c0_i32_77 = arith.constant 0 : i32
    %115 = arith.cmpi eq, %c8_i32, %c0_i32_77 : i32
    %c1_i32_78 = arith.constant 1 : i32
    %116 = arith.select %115, %c1_i32_78, %c8_i32 : i32
    %117 = vector.broadcast %116 : i32 to vector<64x1xi32>
    %118 = arith.remsi %114, %117 : vector<64x1xi32>
    %c0_i32_79 = arith.constant 0 : i32
    %119 = vector.broadcast %c0_i32_79 : i32 to vector<64x1xi32>
    %120 = arith.cmpi ne, %118, %119 : vector<64x1xi32>
    %c0_i32_80 = arith.constant 0 : i32
    %121 = vector.broadcast %c0_i32_80 : i32 to vector<64x1xi32>
    %122 = arith.cmpi slt, %118, %121 : vector<64x1xi32>
    %c0_i32_81 = arith.constant 0 : i32
    %123 = arith.cmpi slt, %116, %c0_i32_81 : i32
    %124 = vector.broadcast %123 : i1 to vector<64x1xi1>
    %125 = vector.broadcast %124 : vector<64x1xi1> to vector<64x1xi1>
    %126 = arith.xori %122, %125 : vector<64x1xi1>
    %127 = arith.andi %126, %120 : vector<64x1xi1>
    %128 = vector.broadcast %116 : i32 to vector<64x1xi32>
    %129 = arith.addi %118, %128 : vector<64x1xi32>
    %130 = arith.select %127, %129, %118 : vector<64x1xi1>, vector<64x1xi32>
    %c1_i32_82 = arith.constant 1 : i32
    %131 = vector.broadcast %c1_i32_82 : i32 to vector<64x1xi32>
    %132 = arith.cmpi sge, %130, %131 : vector<64x1xi32>
    %cst_83 = arith.constant 1.000000e+00 : f32
    %cst_84 = arith.constant 0.000000e+00 : f32
    %133 = vector.broadcast %cst_83 : f32 to vector<64x1xf32>
    %134 = vector.broadcast %cst_84 : f32 to vector<64x1xf32>
    %135 = arith.select %132, %133, %134 : vector<64x1xi1>, vector<64x1xf32>
    %c7_i32 = arith.constant 7 : i32
    %136 = vector.broadcast %c7_i32 : i32 to vector<64x1xi32>
    %137 = arith.cmpi slt, %130, %136 : vector<64x1xi32>
    %cst_85 = arith.constant 1.000000e+00 : f32
    %cst_86 = arith.constant 0.000000e+00 : f32
    %138 = vector.broadcast %cst_85 : f32 to vector<64x1xf32>
    %139 = vector.broadcast %cst_86 : f32 to vector<64x1xf32>
    %140 = arith.select %137, %138, %139 : vector<64x1xi1>, vector<64x1xf32>
    %cst_87 = arith.constant 0.000000e+00 : f32
    %141 = vector.broadcast %cst_87 : f32 to vector<64x32xf32>
    %c0_88 = arith.constant 0 : index
    %c0_89 = arith.constant 0 : index
    %142 = vector.load %arg6[%c0_88, %c0_89] : memref<1x32xf32, #tpu.memory_space<vmem>>, vector<1x32xf32>
    %143 = vector.broadcast %142 : vector<1x32xf32> to vector<64x32xf32>
    %144 = arith.addf %141, %143 : vector<64x32xf32>
    %c7_90 = arith.constant 7 : index
    %c0_91 = arith.constant 0 : index
    %145 = vector.load %arg17[%c7_90, %c0_91] : memref<96x16xf32, #tpu.memory_space<vmem>>, vector<64x16xf32>
    %146 = vector.broadcast %135 : vector<64x1xf32> to vector<64x16xf32>
    %147 = arith.mulf %145, %146 : vector<64x16xf32>
    %c0_92 = arith.constant 0 : index
    %c0_93 = arith.constant 0 : index
    %c0_94 = arith.constant 0 : index
    %148 = vector.load %arg5[%c0_92, %c0_93, %c0_94] : memref<9x16x32xf32, #tpu.memory_space<vmem>>, vector<1x16x32xf32>
    %149 = vector.shape_cast %148 : vector<1x16x32xf32> to vector<16x32xf32>
    %cst_95 = arith.constant dense<0.000000e+00> : vector<64x32xf32>
    %150 = tpu.matmul %147, %149, %cst_95 {dimension_numbers = #tpu.dot_dimension_numbers<[1], [0], [0], [1], [0, 0, 1, 1], [], []>} : vector<64x16xf32>, vector<16x32xf32>, vector<64x32xf32> -> vector<64x32xf32>
    %151 = arith.addf %144, %150 : vector<64x32xf32>
    %c8_96 = arith.constant 8 : index
    %c0_97 = arith.constant 0 : index
    %152 = vector.load %arg17[%c8_96, %c0_97] : memref<96x16xf32, #tpu.memory_space<vmem>>, vector<64x16xf32>
    %c1_98 = arith.constant 1 : index
    %c0_99 = arith.constant 0 : index
    %c0_100 = arith.constant 0 : index
    %153 = vector.load %arg5[%c1_98, %c0_99, %c0_100] : memref<9x16x32xf32, #tpu.memory_space<vmem>>, vector<1x16x32xf32>
    %154 = vector.shape_cast %153 : vector<1x16x32xf32> to vector<16x32xf32>
    %cst_101 = arith.constant dense<0.000000e+00> : vector<64x32xf32>
    %155 = tpu.matmul %152, %154, %cst_101 {dimension_numbers = #tpu.dot_dimension_numbers<[1], [0], [0], [1], [0, 0, 1, 1], [], []>} : vector<64x16xf32>, vector<16x32xf32>, vector<64x32xf32> -> vector<64x32xf32>
    %156 = arith.addf %151, %155 : vector<64x32xf32>
    %c9_102 = arith.constant 9 : index
    %c0_103 = arith.constant 0 : index
    %157 = vector.load %arg17[%c9_102, %c0_103] : memref<96x16xf32, #tpu.memory_space<vmem>>, vector<64x16xf32>
    %158 = vector.broadcast %140 : vector<64x1xf32> to vector<64x16xf32>
    %159 = arith.mulf %157, %158 : vector<64x16xf32>
    %c2_104 = arith.constant 2 : index
    %c0_105 = arith.constant 0 : index
    %c0_106 = arith.constant 0 : index
    %160 = vector.load %arg5[%c2_104, %c0_105, %c0_106] : memref<9x16x32xf32, #tpu.memory_space<vmem>>, vector<1x16x32xf32>
    %161 = vector.shape_cast %160 : vector<1x16x32xf32> to vector<16x32xf32>
    %cst_107 = arith.constant dense<0.000000e+00> : vector<64x32xf32>
    %162 = tpu.matmul %159, %161, %cst_107 {dimension_numbers = #tpu.dot_dimension_numbers<[1], [0], [0], [1], [0, 0, 1, 1], [], []>} : vector<64x16xf32>, vector<16x32xf32>, vector<64x32xf32> -> vector<64x32xf32>
    %163 = arith.addf %156, %162 : vector<64x32xf32>
    %c15 = arith.constant 15 : index
    %c0_108 = arith.constant 0 : index
    %164 = vector.load %arg17[%c15, %c0_108] : memref<96x16xf32, #tpu.memory_space<vmem>>, vector<64x16xf32>
    %165 = vector.broadcast %135 : vector<64x1xf32> to vector<64x16xf32>
    %166 = arith.mulf %164, %165 : vector<64x16xf32>
    %c3_109 = arith.constant 3 : index
    %c0_110 = arith.constant 0 : index
    %c0_111 = arith.constant 0 : index
    %167 = vector.load %arg5[%c3_109, %c0_110, %c0_111] : memref<9x16x32xf32, #tpu.memory_space<vmem>>, vector<1x16x32xf32>
    %168 = vector.shape_cast %167 : vector<1x16x32xf32> to vector<16x32xf32>
    %cst_112 = arith.constant dense<0.000000e+00> : vector<64x32xf32>
    %169 = tpu.matmul %166, %168, %cst_112 {dimension_numbers = #tpu.dot_dimension_numbers<[1], [0], [0], [1], [0, 0, 1, 1], [], []>} : vector<64x16xf32>, vector<16x32xf32>, vector<64x32xf32> -> vector<64x32xf32>
    %170 = arith.addf %163, %169 : vector<64x32xf32>
    %c16_113 = arith.constant 16 : index
    %c0_114 = arith.constant 0 : index
    %171 = vector.load %arg17[%c16_113, %c0_114] : memref<96x16xf32, #tpu.memory_space<vmem>>, vector<64x16xf32>
    %c4_115 = arith.constant 4 : index
    %c0_116 = arith.constant 0 : index
    %c0_117 = arith.constant 0 : index
    %172 = vector.load %arg5[%c4_115, %c0_116, %c0_117] : memref<9x16x32xf32, #tpu.memory_space<vmem>>, vector<1x16x32xf32>
    %173 = vector.shape_cast %172 : vector<1x16x32xf32> to vector<16x32xf32>
    %cst_118 = arith.constant dense<0.000000e+00> : vector<64x32xf32>
    %174 = tpu.matmul %171, %173, %cst_118 {dimension_numbers = #tpu.dot_dimension_numbers<[1], [0], [0], [1], [0, 0, 1, 1], [], []>} : vector<64x16xf32>, vector<16x32xf32>, vector<64x32xf32> -> vector<64x32xf32>
    %175 = arith.addf %170, %174 : vector<64x32xf32>
    %c17 = arith.constant 17 : index
    %c0_119 = arith.constant 0 : index
    %176 = vector.load %arg17[%c17, %c0_119] : memref<96x16xf32, #tpu.memory_space<vmem>>, vector<64x16xf32>
    %177 = vector.broadcast %140 : vector<64x1xf32> to vector<64x16xf32>
    %178 = arith.mulf %176, %177 : vector<64x16xf32>
    %c5_120 = arith.constant 5 : index
    %c0_121 = arith.constant 0 : index
    %c0_122 = arith.constant 0 : index
    %179 = vector.load %arg5[%c5_120, %c0_121, %c0_122] : memref<9x16x32xf32, #tpu.memory_space<vmem>>, vector<1x16x32xf32>
    %180 = vector.shape_cast %179 : vector<1x16x32xf32> to vector<16x32xf32>
    %cst_123 = arith.constant dense<0.000000e+00> : vector<64x32xf32>
    %181 = tpu.matmul %178, %180, %cst_123 {dimension_numbers = #tpu.dot_dimension_numbers<[1], [0], [0], [1], [0, 0, 1, 1], [], []>} : vector<64x16xf32>, vector<16x32xf32>, vector<64x32xf32> -> vector<64x32xf32>
    %182 = arith.addf %175, %181 : vector<64x32xf32>
    %c23_124 = arith.constant 23 : index
    %c0_125 = arith.constant 0 : index
    %183 = vector.load %arg17[%c23_124, %c0_125] : memref<96x16xf32, #tpu.memory_space<vmem>>, vector<64x16xf32>
    %184 = vector.broadcast %135 : vector<64x1xf32> to vector<64x16xf32>
    %185 = arith.mulf %183, %184 : vector<64x16xf32>
    %c6_126 = arith.constant 6 : index
    %c0_127 = arith.constant 0 : index
    %c0_128 = arith.constant 0 : index
    %186 = vector.load %arg5[%c6_126, %c0_127, %c0_128] : memref<9x16x32xf32, #tpu.memory_space<vmem>>, vector<1x16x32xf32>
    %187 = vector.shape_cast %186 : vector<1x16x32xf32> to vector<16x32xf32>
    %cst_129 = arith.constant dense<0.000000e+00> : vector<64x32xf32>
    %188 = tpu.matmul %185, %187, %cst_129 {dimension_numbers = #tpu.dot_dimension_numbers<[1], [0], [0], [1], [0, 0, 1, 1], [], []>} : vector<64x16xf32>, vector<16x32xf32>, vector<64x32xf32> -> vector<64x32xf32>
    %189 = arith.addf %182, %188 : vector<64x32xf32>
    %c24_130 = arith.constant 24 : index
    %c0_131 = arith.constant 0 : index
    %190 = vector.load %arg17[%c24_130, %c0_131] : memref<96x16xf32, #tpu.memory_space<vmem>>, vector<64x16xf32>
    %c7_132 = arith.constant 7 : index
    %c0_133 = arith.constant 0 : index
    %c0_134 = arith.constant 0 : index
    %191 = vector.load %arg5[%c7_132, %c0_133, %c0_134] : memref<9x16x32xf32, #tpu.memory_space<vmem>>, vector<1x16x32xf32>
    %192 = vector.shape_cast %191 : vector<1x16x32xf32> to vector<16x32xf32>
    %cst_135 = arith.constant dense<0.000000e+00> : vector<64x32xf32>
    %193 = tpu.matmul %190, %192, %cst_135 {dimension_numbers = #tpu.dot_dimension_numbers<[1], [0], [0], [1], [0, 0, 1, 1], [], []>} : vector<64x16xf32>, vector<16x32xf32>, vector<64x32xf32> -> vector<64x32xf32>
    %194 = arith.addf %189, %193 : vector<64x32xf32>
    %c25_136 = arith.constant 25 : index
    %c0_137 = arith.constant 0 : index
    %195 = vector.load %arg17[%c25_136, %c0_137] : memref<96x16xf32, #tpu.memory_space<vmem>>, vector<64x16xf32>
    %196 = vector.broadcast %140 : vector<64x1xf32> to vector<64x16xf32>
    %197 = arith.mulf %195, %196 : vector<64x16xf32>
    %c8_138 = arith.constant 8 : index
    %c0_139 = arith.constant 0 : index
    %c0_140 = arith.constant 0 : index
    %198 = vector.load %arg5[%c8_138, %c0_139, %c0_140] : memref<9x16x32xf32, #tpu.memory_space<vmem>>, vector<1x16x32xf32>
    %199 = vector.shape_cast %198 : vector<1x16x32xf32> to vector<16x32xf32>
    %cst_141 = arith.constant dense<0.000000e+00> : vector<64x32xf32>
    %200 = tpu.matmul %197, %199, %cst_141 {dimension_numbers = #tpu.dot_dimension_numbers<[1], [0], [0], [1], [0, 0, 1, 1], [], []>} : vector<64x16xf32>, vector<16x32xf32>, vector<64x32xf32> -> vector<64x32xf32>
    %201 = arith.addf %194, %200 : vector<64x32xf32>
    %c0_142 = arith.constant 0 : index
    %c0_143 = arith.constant 0 : index
    %c0_144 = arith.constant 0 : index
    %202 = vector.load %arg7[%c0_142, %c0_143, %c0_144] : memref<4x16x64xf32, #tpu.memory_space<vmem>>, vector<1x16x64xf32>
    %203 = vector.shape_cast %202 : vector<1x16x64xf32> to vector<16x64xf32>
    %cst_145 = arith.constant dense<0.000000e+00> : vector<16x32xf32>
    %204 = tpu.matmul %203, %201, %cst_145 {dimension_numbers = #tpu.dot_dimension_numbers<[1], [0], [0], [1], [0, 0, 1, 1], [], []>} : vector<16x64xf32>, vector<64x32xf32>, vector<16x32xf32> -> vector<16x32xf32>
    %c1_146 = arith.constant 1 : index
    %c0_147 = arith.constant 0 : index
    %c0_148 = arith.constant 0 : index
    %205 = vector.load %arg7[%c1_146, %c0_147, %c0_148] : memref<4x16x64xf32, #tpu.memory_space<vmem>>, vector<1x16x64xf32>
    %206 = vector.shape_cast %205 : vector<1x16x64xf32> to vector<16x64xf32>
    %cst_149 = arith.constant dense<0.000000e+00> : vector<16x32xf32>
    %207 = tpu.matmul %206, %201, %cst_149 {dimension_numbers = #tpu.dot_dimension_numbers<[1], [0], [0], [1], [0, 0, 1, 1], [], []>} : vector<16x64xf32>, vector<64x32xf32>, vector<16x32xf32> -> vector<16x32xf32>
    %208 = arith.maximumf %204, %207 : vector<16x32xf32>
    %c2_150 = arith.constant 2 : index
    %c0_151 = arith.constant 0 : index
    %c0_152 = arith.constant 0 : index
    %209 = vector.load %arg7[%c2_150, %c0_151, %c0_152] : memref<4x16x64xf32, #tpu.memory_space<vmem>>, vector<1x16x64xf32>
    %210 = vector.shape_cast %209 : vector<1x16x64xf32> to vector<16x64xf32>
    %cst_153 = arith.constant dense<0.000000e+00> : vector<16x32xf32>
    %211 = tpu.matmul %210, %201, %cst_153 {dimension_numbers = #tpu.dot_dimension_numbers<[1], [0], [0], [1], [0, 0, 1, 1], [], []>} : vector<16x64xf32>, vector<64x32xf32>, vector<16x32xf32> -> vector<16x32xf32>
    %212 = arith.maximumf %208, %211 : vector<16x32xf32>
    %c3_154 = arith.constant 3 : index
    %c0_155 = arith.constant 0 : index
    %c0_156 = arith.constant 0 : index
    %213 = vector.load %arg7[%c3_154, %c0_155, %c0_156] : memref<4x16x64xf32, #tpu.memory_space<vmem>>, vector<1x16x64xf32>
    %214 = vector.shape_cast %213 : vector<1x16x64xf32> to vector<16x64xf32>
    %cst_157 = arith.constant dense<0.000000e+00> : vector<16x32xf32>
    %215 = tpu.matmul %214, %201, %cst_157 {dimension_numbers = #tpu.dot_dimension_numbers<[1], [0], [0], [1], [0, 0, 1, 1], [], []>} : vector<16x64xf32>, vector<64x32xf32>, vector<16x32xf32> -> vector<16x32xf32>
    %216 = arith.maximumf %212, %215 : vector<16x32xf32>
    %cst_158 = arith.constant 0.00999999977 : f32
    %217 = vector.broadcast %cst_158 : f32 to vector<16x32xf32>
    %218 = arith.mulf %217, %216 : vector<16x32xf32>
    %219 = arith.maximumf %216, %218 : vector<16x32xf32>
    %cst_159 = arith.constant 0.000000e+00 : f32
    %220 = vector.broadcast %cst_159 : f32 to vector<32x32xf32>
    %c0_160 = arith.constant 0 : index
    %c0_161 = arith.constant 0 : index
    %221 = vector.load %arg18[%c0_160, %c0_161] : memref<32x32xf32, #tpu.memory_space<vmem>>, vector<32x32xf32>
    tpu.vector_store %arg18[%c0_160, %c0_161], %220 {strides = array<i32>} : memref<32x32xf32, #tpu.memory_space<vmem>>, vector<32x32xf32>,
    %c8_162 = arith.constant 8 : index
    %c0_163 = arith.constant 0 : index
    %222 = vector.load %arg18[%c8_162, %c0_163] : memref<32x32xf32, #tpu.memory_space<vmem>>, vector<16x32xf32>
    tpu.vector_store %arg18[%c8_162, %c0_163], %219 {strides = array<i32>} : memref<32x32xf32, #tpu.memory_space<vmem>>, vector<16x32xf32>,
    %223 = tpu.iota {dimensions = array<i32: 0>} : vector<16x1xi32>
    %c4_i32 = arith.constant 4 : i32
    %c0_i32_164 = arith.constant 0 : i32
    %224 = arith.cmpi eq, %c4_i32, %c0_i32_164 : i32
    %c1_i32_165 = arith.constant 1 : i32
    %225 = arith.select %224, %c1_i32_165, %c4_i32 : i32
    %226 = vector.broadcast %225 : i32 to vector<16x1xi32>
    %227 = arith.remsi %223, %226 : vector<16x1xi32>
    %c0_i32_166 = arith.constant 0 : i32
    %228 = vector.broadcast %c0_i32_166 : i32 to vector<16x1xi32>
    %229 = arith.cmpi ne, %227, %228 : vector<16x1xi32>
    %c0_i32_167 = arith.constant 0 : i32
    %230 = vector.broadcast %c0_i32_167 : i32 to vector<16x1xi32>
    %231 = arith.cmpi slt, %227, %230 : vector<16x1xi32>
    %c0_i32_168 = arith.constant 0 : i32
    %232 = arith.cmpi slt, %225, %c0_i32_168 : i32
    %233 = vector.broadcast %232 : i1 to vector<16x1xi1>
    %234 = vector.broadcast %233 : vector<16x1xi1> to vector<16x1xi1>
    %235 = arith.xori %231, %234 : vector<16x1xi1>
    %236 = arith.andi %235, %229 : vector<16x1xi1>
    %237 = vector.broadcast %225 : i32 to vector<16x1xi32>
    %238 = arith.addi %227, %237 : vector<16x1xi32>
    %239 = arith.select %236, %238, %227 : vector<16x1xi1>, vector<16x1xi32>
    %c1_i32_169 = arith.constant 1 : i32
    %240 = vector.broadcast %c1_i32_169 : i32 to vector<16x1xi32>
    %241 = arith.cmpi sge, %239, %240 : vector<16x1xi32>
    %cst_170 = arith.constant 1.000000e+00 : f32
    %cst_171 = arith.constant 0.000000e+00 : f32
    %242 = vector.broadcast %cst_170 : f32 to vector<16x1xf32>
    %243 = vector.broadcast %cst_171 : f32 to vector<16x1xf32>
    %244 = arith.select %241, %242, %243 : vector<16x1xi1>, vector<16x1xf32>
    %c3_i32 = arith.constant 3 : i32
    %245 = vector.broadcast %c3_i32 : i32 to vector<16x1xi32>
    %246 = arith.cmpi slt, %239, %245 : vector<16x1xi32>
    %cst_172 = arith.constant 1.000000e+00 : f32
    %cst_173 = arith.constant 0.000000e+00 : f32
    %247 = vector.broadcast %cst_172 : f32 to vector<16x1xf32>
    %248 = vector.broadcast %cst_173 : f32 to vector<16x1xf32>
    %249 = arith.select %246, %247, %248 : vector<16x1xi1>, vector<16x1xf32>
    %cst_174 = arith.constant 0.000000e+00 : f32
    %250 = vector.broadcast %cst_174 : f32 to vector<16x64xf32>
    %c0_175 = arith.constant 0 : index
    %c0_176 = arith.constant 0 : index
    %251 = vector.load %arg9[%c0_175, %c0_176] : memref<1x64xf32, #tpu.memory_space<vmem>>, vector<1x64xf32>
    %252 = vector.broadcast %251 : vector<1x64xf32> to vector<16x64xf32>
    %253 = arith.addf %250, %252 : vector<16x64xf32>
    %c3_177 = arith.constant 3 : index
    %c0_178 = arith.constant 0 : index
    %254 = vector.load %arg18[%c3_177, %c0_178] : memref<32x32xf32, #tpu.memory_space<vmem>>, vector<16x32xf32>
    %255 = vector.broadcast %244 : vector<16x1xf32> to vector<16x32xf32>
    %256 = arith.mulf %254, %255 : vector<16x32xf32>
    %c0_179 = arith.constant 0 : index
    %c0_180 = arith.constant 0 : index
    %c0_181 = arith.constant 0 : index
    %257 = vector.load %arg8[%c0_179, %c0_180, %c0_181] : memref<9x32x64xf32, #tpu.memory_space<vmem>>, vector<1x32x64xf32>
    %258 = vector.shape_cast %257 : vector<1x32x64xf32> to vector<32x64xf32>
    %cst_182 = arith.constant dense<0.000000e+00> : vector<16x64xf32>
    %259 = tpu.matmul %256, %258, %cst_182 {dimension_numbers = #tpu.dot_dimension_numbers<[1], [0], [0], [1], [0, 0, 1, 1], [], []>} : vector<16x32xf32>, vector<32x64xf32>, vector<16x64xf32> -> vector<16x64xf32>
    %260 = arith.addf %253, %259 : vector<16x64xf32>
    %c4_183 = arith.constant 4 : index
    %c0_184 = arith.constant 0 : index
    %261 = vector.load %arg18[%c4_183, %c0_184] : memref<32x32xf32, #tpu.memory_space<vmem>>, vector<16x32xf32>
    %c1_185 = arith.constant 1 : index
    %c0_186 = arith.constant 0 : index
    %c0_187 = arith.constant 0 : index
    %262 = vector.load %arg8[%c1_185, %c0_186, %c0_187] : memref<9x32x64xf32, #tpu.memory_space<vmem>>, vector<1x32x64xf32>
    %263 = vector.shape_cast %262 : vector<1x32x64xf32> to vector<32x64xf32>
    %cst_188 = arith.constant dense<0.000000e+00> : vector<16x64xf32>
    %264 = tpu.matmul %261, %263, %cst_188 {dimension_numbers = #tpu.dot_dimension_numbers<[1], [0], [0], [1], [0, 0, 1, 1], [], []>} : vector<16x32xf32>, vector<32x64xf32>, vector<16x64xf32> -> vector<16x64xf32>
    %265 = arith.addf %260, %264 : vector<16x64xf32>
    %c5_189 = arith.constant 5 : index
    %c0_190 = arith.constant 0 : index
    %266 = vector.load %arg18[%c5_189, %c0_190] : memref<32x32xf32, #tpu.memory_space<vmem>>, vector<16x32xf32>
    %267 = vector.broadcast %249 : vector<16x1xf32> to vector<16x32xf32>
    %268 = arith.mulf %266, %267 : vector<16x32xf32>
    %c2_191 = arith.constant 2 : index
    %c0_192 = arith.constant 0 : index
    %c0_193 = arith.constant 0 : index
    %269 = vector.load %arg8[%c2_191, %c0_192, %c0_193] : memref<9x32x64xf32, #tpu.memory_space<vmem>>, vector<1x32x64xf32>
    %270 = vector.shape_cast %269 : vector<1x32x64xf32> to vector<32x64xf32>
    %cst_194 = arith.constant dense<0.000000e+00> : vector<16x64xf32>
    %271 = tpu.matmul %268, %270, %cst_194 {dimension_numbers = #tpu.dot_dimension_numbers<[1], [0], [0], [1], [0, 0, 1, 1], [], []>} : vector<16x32xf32>, vector<32x64xf32>, vector<16x64xf32> -> vector<16x64xf32>
    %272 = arith.addf %265, %271 : vector<16x64xf32>
    %c7_195 = arith.constant 7 : index
    %c0_196 = arith.constant 0 : index
    %273 = vector.load %arg18[%c7_195, %c0_196] : memref<32x32xf32, #tpu.memory_space<vmem>>, vector<16x32xf32>
    %274 = vector.broadcast %244 : vector<16x1xf32> to vector<16x32xf32>
    %275 = arith.mulf %273, %274 : vector<16x32xf32>
    %c3_197 = arith.constant 3 : index
    %c0_198 = arith.constant 0 : index
    %c0_199 = arith.constant 0 : index
    %276 = vector.load %arg8[%c3_197, %c0_198, %c0_199] : memref<9x32x64xf32, #tpu.memory_space<vmem>>, vector<1x32x64xf32>
    %277 = vector.shape_cast %276 : vector<1x32x64xf32> to vector<32x64xf32>
    %cst_200 = arith.constant dense<0.000000e+00> : vector<16x64xf32>
    %278 = tpu.matmul %275, %277, %cst_200 {dimension_numbers = #tpu.dot_dimension_numbers<[1], [0], [0], [1], [0, 0, 1, 1], [], []>} : vector<16x32xf32>, vector<32x64xf32>, vector<16x64xf32> -> vector<16x64xf32>
    %279 = arith.addf %272, %278 : vector<16x64xf32>
    %c8_201 = arith.constant 8 : index
    %c0_202 = arith.constant 0 : index
    %280 = vector.load %arg18[%c8_201, %c0_202] : memref<32x32xf32, #tpu.memory_space<vmem>>, vector<16x32xf32>
    %c4_203 = arith.constant 4 : index
    %c0_204 = arith.constant 0 : index
    %c0_205 = arith.constant 0 : index
    %281 = vector.load %arg8[%c4_203, %c0_204, %c0_205] : memref<9x32x64xf32, #tpu.memory_space<vmem>>, vector<1x32x64xf32>
    %282 = vector.shape_cast %281 : vector<1x32x64xf32> to vector<32x64xf32>
    %cst_206 = arith.constant dense<0.000000e+00> : vector<16x64xf32>
    %283 = tpu.matmul %280, %282, %cst_206 {dimension_numbers = #tpu.dot_dimension_numbers<[1], [0], [0], [1], [0, 0, 1, 1], [], []>} : vector<16x32xf32>, vector<32x64xf32>, vector<16x64xf32> -> vector<16x64xf32>
    %284 = arith.addf %279, %283 : vector<16x64xf32>
    %c9_207 = arith.constant 9 : index
    %c0_208 = arith.constant 0 : index
    %285 = vector.load %arg18[%c9_207, %c0_208] : memref<32x32xf32, #tpu.memory_space<vmem>>, vector<16x32xf32>
    %286 = vector.broadcast %249 : vector<16x1xf32> to vector<16x32xf32>
    %287 = arith.mulf %285, %286 : vector<16x32xf32>
    %c5_209 = arith.constant 5 : index
    %c0_210 = arith.constant 0 : index
    %c0_211 = arith.constant 0 : index
    %288 = vector.load %arg8[%c5_209, %c0_210, %c0_211] : memref<9x32x64xf32, #tpu.memory_space<vmem>>, vector<1x32x64xf32>
    %289 = vector.shape_cast %288 : vector<1x32x64xf32> to vector<32x64xf32>
    %cst_212 = arith.constant dense<0.000000e+00> : vector<16x64xf32>
    %290 = tpu.matmul %287, %289, %cst_212 {dimension_numbers = #tpu.dot_dimension_numbers<[1], [0], [0], [1], [0, 0, 1, 1], [], []>} : vector<16x32xf32>, vector<32x64xf32>, vector<16x64xf32> -> vector<16x64xf32>
    %291 = arith.addf %284, %290 : vector<16x64xf32>
    %c11 = arith.constant 11 : index
    %c0_213 = arith.constant 0 : index
    %292 = vector.load %arg18[%c11, %c0_213] : memref<32x32xf32, #tpu.memory_space<vmem>>, vector<16x32xf32>
    %293 = vector.broadcast %244 : vector<16x1xf32> to vector<16x32xf32>
    %294 = arith.mulf %292, %293 : vector<16x32xf32>
    %c6_214 = arith.constant 6 : index
    %c0_215 = arith.constant 0 : index
    %c0_216 = arith.constant 0 : index
    %295 = vector.load %arg8[%c6_214, %c0_215, %c0_216] : memref<9x32x64xf32, #tpu.memory_space<vmem>>, vector<1x32x64xf32>
    %296 = vector.shape_cast %295 : vector<1x32x64xf32> to vector<32x64xf32>
    %cst_217 = arith.constant dense<0.000000e+00> : vector<16x64xf32>
    %297 = tpu.matmul %294, %296, %cst_217 {dimension_numbers = #tpu.dot_dimension_numbers<[1], [0], [0], [1], [0, 0, 1, 1], [], []>} : vector<16x32xf32>, vector<32x64xf32>, vector<16x64xf32> -> vector<16x64xf32>
    %298 = arith.addf %291, %297 : vector<16x64xf32>
    %c12 = arith.constant 12 : index
    %c0_218 = arith.constant 0 : index
    %299 = vector.load %arg18[%c12, %c0_218] : memref<32x32xf32, #tpu.memory_space<vmem>>, vector<16x32xf32>
    %c7_219 = arith.constant 7 : index
    %c0_220 = arith.constant 0 : index
    %c0_221 = arith.constant 0 : index
    %300 = vector.load %arg8[%c7_219, %c0_220, %c0_221] : memref<9x32x64xf32, #tpu.memory_space<vmem>>, vector<1x32x64xf32>
    %301 = vector.shape_cast %300 : vector<1x32x64xf32> to vector<32x64xf32>
    %cst_222 = arith.constant dense<0.000000e+00> : vector<16x64xf32>
    %302 = tpu.matmul %299, %301, %cst_222 {dimension_numbers = #tpu.dot_dimension_numbers<[1], [0], [0], [1], [0, 0, 1, 1], [], []>} : vector<16x32xf32>, vector<32x64xf32>, vector<16x64xf32> -> vector<16x64xf32>
    %303 = arith.addf %298, %302 : vector<16x64xf32>
    %c13 = arith.constant 13 : index
    %c0_223 = arith.constant 0 : index
    %304 = vector.load %arg18[%c13, %c0_223] : memref<32x32xf32, #tpu.memory_space<vmem>>, vector<16x32xf32>
    %305 = vector.broadcast %249 : vector<16x1xf32> to vector<16x32xf32>
    %306 = arith.mulf %304, %305 : vector<16x32xf32>
    %c8_224 = arith.constant 8 : index
    %c0_225 = arith.constant 0 : index
    %c0_226 = arith.constant 0 : index
    %307 = vector.load %arg8[%c8_224, %c0_225, %c0_226] : memref<9x32x64xf32, #tpu.memory_space<vmem>>, vector<1x32x64xf32>
    %308 = vector.shape_cast %307 : vector<1x32x64xf32> to vector<32x64xf32>
    %cst_227 = arith.constant dense<0.000000e+00> : vector<16x64xf32>
    %309 = tpu.matmul %306, %308, %cst_227 {dimension_numbers = #tpu.dot_dimension_numbers<[1], [0], [0], [1], [0, 0, 1, 1], [], []>} : vector<16x32xf32>, vector<32x64xf32>, vector<16x64xf32> -> vector<16x64xf32>
    %310 = arith.addf %303, %309 : vector<16x64xf32>
    %c0_228 = arith.constant 0 : index
    %c0_229 = arith.constant 0 : index
    %c0_230 = arith.constant 0 : index
    %311 = vector.load %arg10[%c0_228, %c0_229, %c0_230] : memref<4x4x16xf32, #tpu.memory_space<vmem>>, vector<1x4x16xf32>
    %312 = vector.shape_cast %311 : vector<1x4x16xf32> to vector<4x16xf32>
    %cst_231 = arith.constant dense<0.000000e+00> : vector<4x64xf32>
    %313 = tpu.matmul %312, %310, %cst_231 {dimension_numbers = #tpu.dot_dimension_numbers<[1], [0], [0], [1], [0, 0, 1, 1], [], []>} : vector<4x16xf32>, vector<16x64xf32>, vector<4x64xf32> -> vector<4x64xf32>
    %c1_232 = arith.constant 1 : index
    %c0_233 = arith.constant 0 : index
    %c0_234 = arith.constant 0 : index
    %314 = vector.load %arg10[%c1_232, %c0_233, %c0_234] : memref<4x4x16xf32, #tpu.memory_space<vmem>>, vector<1x4x16xf32>
    %315 = vector.shape_cast %314 : vector<1x4x16xf32> to vector<4x16xf32>
    %cst_235 = arith.constant dense<0.000000e+00> : vector<4x64xf32>
    %316 = tpu.matmul %315, %310, %cst_235 {dimension_numbers = #tpu.dot_dimension_numbers<[1], [0], [0], [1], [0, 0, 1, 1], [], []>} : vector<4x16xf32>, vector<16x64xf32>, vector<4x64xf32> -> vector<4x64xf32>
    %317 = arith.maximumf %313, %316 : vector<4x64xf32>
    %c2_236 = arith.constant 2 : index
    %c0_237 = arith.constant 0 : index
    %c0_238 = arith.constant 0 : index
    %318 = vector.load %arg10[%c2_236, %c0_237, %c0_238] : memref<4x4x16xf32, #tpu.memory_space<vmem>>, vector<1x4x16xf32>
    %319 = vector.shape_cast %318 : vector<1x4x16xf32> to vector<4x16xf32>
    %cst_239 = arith.constant dense<0.000000e+00> : vector<4x64xf32>
    %320 = tpu.matmul %319, %310, %cst_239 {dimension_numbers = #tpu.dot_dimension_numbers<[1], [0], [0], [1], [0, 0, 1, 1], [], []>} : vector<4x16xf32>, vector<16x64xf32>, vector<4x64xf32> -> vector<4x64xf32>
    %321 = arith.maximumf %317, %320 : vector<4x64xf32>
    %c3_240 = arith.constant 3 : index
    %c0_241 = arith.constant 0 : index
    %c0_242 = arith.constant 0 : index
    %322 = vector.load %arg10[%c3_240, %c0_241, %c0_242] : memref<4x4x16xf32, #tpu.memory_space<vmem>>, vector<1x4x16xf32>
    %323 = vector.shape_cast %322 : vector<1x4x16xf32> to vector<4x16xf32>
    %cst_243 = arith.constant dense<0.000000e+00> : vector<4x64xf32>
    %324 = tpu.matmul %323, %310, %cst_243 {dimension_numbers = #tpu.dot_dimension_numbers<[1], [0], [0], [1], [0, 0, 1, 1], [], []>} : vector<4x16xf32>, vector<16x64xf32>, vector<4x64xf32> -> vector<4x64xf32>
    %325 = arith.maximumf %321, %324 : vector<4x64xf32>
    %cst_244 = arith.constant 0.00999999977 : f32
    %326 = vector.broadcast %cst_244 : f32 to vector<4x64xf32>
    %327 = arith.mulf %326, %325 : vector<4x64xf32>
    %328 = arith.maximumf %325, %327 : vector<4x64xf32>
    %cst_245 = arith.constant 0.000000e+00 : f32
    %329 = vector.broadcast %cst_245 : f32 to vector<20x64xf32>
    %c0_246 = arith.constant 0 : index
    %c0_247 = arith.constant 0 : index
    %330 = vector.load %arg19[%c0_246, %c0_247] : memref<20x64xf32, #tpu.memory_space<vmem>>, vector<20x64xf32>
    tpu.vector_store %arg19[%c0_246, %c0_247], %329 {strides = array<i32>} : memref<20x64xf32, #tpu.memory_space<vmem>>, vector<20x64xf32>,
    %c8_248 = arith.constant 8 : index
    %c0_249 = arith.constant 0 : index
    %331 = vector.load %arg19[%c8_248, %c0_249] : memref<20x64xf32, #tpu.memory_space<vmem>>, vector<4x64xf32>
    tpu.vector_store %arg19[%c8_248, %c0_249], %328 {strides = array<i32>} : memref<20x64xf32, #tpu.memory_space<vmem>>, vector<4x64xf32>,
    %332 = tpu.iota {dimensions = array<i32: 0>} : vector<4x1xi32>
    %c2_i32 = arith.constant 2 : i32
    %c0_i32_250 = arith.constant 0 : i32
    %333 = arith.cmpi eq, %c2_i32, %c0_i32_250 : i32
    %c1_i32_251 = arith.constant 1 : i32
    %334 = arith.select %333, %c1_i32_251, %c2_i32 : i32
    %335 = vector.broadcast %334 : i32 to vector<4x1xi32>
    %336 = arith.remsi %332, %335 : vector<4x1xi32>
    %c0_i32_252 = arith.constant 0 : i32
    %337 = vector.broadcast %c0_i32_252 : i32 to vector<4x1xi32>
    %338 = arith.cmpi ne, %336, %337 : vector<4x1xi32>
    %c0_i32_253 = arith.constant 0 : i32
    %339 = vector.broadcast %c0_i32_253 : i32 to vector<4x1xi32>
    %340 = arith.cmpi slt, %336, %339 : vector<4x1xi32>
    %c0_i32_254 = arith.constant 0 : i32
    %341 = arith.cmpi slt, %334, %c0_i32_254 : i32
    %342 = vector.broadcast %341 : i1 to vector<4x1xi1>
    %343 = vector.broadcast %342 : vector<4x1xi1> to vector<4x1xi1>
    %344 = arith.xori %340, %343 : vector<4x1xi1>
    %345 = arith.andi %344, %338 : vector<4x1xi1>
    %346 = vector.broadcast %334 : i32 to vector<4x1xi32>
    %347 = arith.addi %336, %346 : vector<4x1xi32>
    %348 = arith.select %345, %347, %336 : vector<4x1xi1>, vector<4x1xi32>
    %c1_i32_255 = arith.constant 1 : i32
    %349 = vector.broadcast %c1_i32_255 : i32 to vector<4x1xi32>
    %350 = arith.cmpi sge, %348, %349 : vector<4x1xi32>
    %cst_256 = arith.constant 1.000000e+00 : f32
    %cst_257 = arith.constant 0.000000e+00 : f32
    %351 = vector.broadcast %cst_256 : f32 to vector<4x1xf32>
    %352 = vector.broadcast %cst_257 : f32 to vector<4x1xf32>
    %353 = arith.select %350, %351, %352 : vector<4x1xi1>, vector<4x1xf32>
    %c1_i32_258 = arith.constant 1 : i32
    %354 = vector.broadcast %c1_i32_258 : i32 to vector<4x1xi32>
    %355 = arith.cmpi slt, %348, %354 : vector<4x1xi32>
    %cst_259 = arith.constant 1.000000e+00 : f32
    %cst_260 = arith.constant 0.000000e+00 : f32
    %356 = vector.broadcast %cst_259 : f32 to vector<4x1xf32>
    %357 = vector.broadcast %cst_260 : f32 to vector<4x1xf32>
    %358 = arith.select %355, %356, %357 : vector<4x1xi1>, vector<4x1xf32>
    %cst_261 = arith.constant 0.000000e+00 : f32
    %359 = vector.broadcast %cst_261 : f32 to vector<4x128xf32>
    %c0_262 = arith.constant 0 : index
    %c0_263 = arith.constant 0 : index
    %360 = vector.load %arg12[%c0_262, %c0_263] : memref<1x128xf32, #tpu.memory_space<vmem>>, vector<1x128xf32>
    %361 = vector.broadcast %360 : vector<1x128xf32> to vector<4x128xf32>
    %362 = arith.addf %359, %361 : vector<4x128xf32>
    %c5_264 = arith.constant 5 : index
    %c0_265 = arith.constant 0 : index
    %363 = vector.load %arg19[%c5_264, %c0_265] : memref<20x64xf32, #tpu.memory_space<vmem>>, vector<4x64xf32>
    %364 = vector.broadcast %353 : vector<4x1xf32> to vector<4x64xf32>
    %365 = arith.mulf %363, %364 : vector<4x64xf32>
    %c0_266 = arith.constant 0 : index
    %c0_267 = arith.constant 0 : index
    %c0_268 = arith.constant 0 : index
    %366 = vector.load %arg11[%c0_266, %c0_267, %c0_268] : memref<9x64x128xf32, #tpu.memory_space<vmem>>, vector<1x64x128xf32>
    %367 = vector.shape_cast %366 : vector<1x64x128xf32> to vector<64x128xf32>
    %cst_269 = arith.constant dense<0.000000e+00> : vector<4x128xf32>
    %368 = tpu.matmul %365, %367, %cst_269 {dimension_numbers = #tpu.dot_dimension_numbers<[1], [0], [0], [1], [0, 0, 1, 1], [], []>} : vector<4x64xf32>, vector<64x128xf32>, vector<4x128xf32> -> vector<4x128xf32>
    %369 = arith.addf %362, %368 : vector<4x128xf32>
    %c6_270 = arith.constant 6 : index
    %c0_271 = arith.constant 0 : index
    %370 = vector.load %arg19[%c6_270, %c0_271] : memref<20x64xf32, #tpu.memory_space<vmem>>, vector<4x64xf32>
    %c1_272 = arith.constant 1 : index
    %c0_273 = arith.constant 0 : index
    %c0_274 = arith.constant 0 : index
    %371 = vector.load %arg11[%c1_272, %c0_273, %c0_274] : memref<9x64x128xf32, #tpu.memory_space<vmem>>, vector<1x64x128xf32>
    %372 = vector.shape_cast %371 : vector<1x64x128xf32> to vector<64x128xf32>
    %cst_275 = arith.constant dense<0.000000e+00> : vector<4x128xf32>
    %373 = tpu.matmul %370, %372, %cst_275 {dimension_numbers = #tpu.dot_dimension_numbers<[1], [0], [0], [1], [0, 0, 1, 1], [], []>} : vector<4x64xf32>, vector<64x128xf32>, vector<4x128xf32> -> vector<4x128xf32>
    %374 = arith.addf %369, %373 : vector<4x128xf32>
    %c7_276 = arith.constant 7 : index
    %c0_277 = arith.constant 0 : index
    %375 = vector.load %arg19[%c7_276, %c0_277] : memref<20x64xf32, #tpu.memory_space<vmem>>, vector<4x64xf32>
    %376 = vector.broadcast %358 : vector<4x1xf32> to vector<4x64xf32>
    %377 = arith.mulf %375, %376 : vector<4x64xf32>
    %c2_278 = arith.constant 2 : index
    %c0_279 = arith.constant 0 : index
    %c0_280 = arith.constant 0 : index
    %378 = vector.load %arg11[%c2_278, %c0_279, %c0_280] : memref<9x64x128xf32, #tpu.memory_space<vmem>>, vector<1x64x128xf32>
    %379 = vector.shape_cast %378 : vector<1x64x128xf32> to vector<64x128xf32>
    %cst_281 = arith.constant dense<0.000000e+00> : vector<4x128xf32>
    %380 = tpu.matmul %377, %379, %cst_281 {dimension_numbers = #tpu.dot_dimension_numbers<[1], [0], [0], [1], [0, 0, 1, 1], [], []>} : vector<4x64xf32>, vector<64x128xf32>, vector<4x128xf32> -> vector<4x128xf32>
    %381 = arith.addf %374, %380 : vector<4x128xf32>
    %c7_282 = arith.constant 7 : index
    %c0_283 = arith.constant 0 : index
    %382 = vector.load %arg19[%c7_282, %c0_283] : memref<20x64xf32, #tpu.memory_space<vmem>>, vector<4x64xf32>
    %383 = vector.broadcast %353 : vector<4x1xf32> to vector<4x64xf32>
    %384 = arith.mulf %382, %383 : vector<4x64xf32>
    %c3_284 = arith.constant 3 : index
    %c0_285 = arith.constant 0 : index
    %c0_286 = arith.constant 0 : index
    %385 = vector.load %arg11[%c3_284, %c0_285, %c0_286] : memref<9x64x128xf32, #tpu.memory_space<vmem>>, vector<1x64x128xf32>
    %386 = vector.shape_cast %385 : vector<1x64x128xf32> to vector<64x128xf32>
    %cst_287 = arith.constant dense<0.000000e+00> : vector<4x128xf32>
    %387 = tpu.matmul %384, %386, %cst_287 {dimension_numbers = #tpu.dot_dimension_numbers<[1], [0], [0], [1], [0, 0, 1, 1], [], []>} : vector<4x64xf32>, vector<64x128xf32>, vector<4x128xf32> -> vector<4x128xf32>
    %388 = arith.addf %381, %387 : vector<4x128xf32>
    %c8_288 = arith.constant 8 : index
    %c0_289 = arith.constant 0 : index
    %389 = vector.load %arg19[%c8_288, %c0_289] : memref<20x64xf32, #tpu.memory_space<vmem>>, vector<4x64xf32>
    %c4_290 = arith.constant 4 : index
    %c0_291 = arith.constant 0 : index
    %c0_292 = arith.constant 0 : index
    %390 = vector.load %arg11[%c4_290, %c0_291, %c0_292] : memref<9x64x128xf32, #tpu.memory_space<vmem>>, vector<1x64x128xf32>
    %391 = vector.shape_cast %390 : vector<1x64x128xf32> to vector<64x128xf32>
    %cst_293 = arith.constant dense<0.000000e+00> : vector<4x128xf32>
    %392 = tpu.matmul %389, %391, %cst_293 {dimension_numbers = #tpu.dot_dimension_numbers<[1], [0], [0], [1], [0, 0, 1, 1], [], []>} : vector<4x64xf32>, vector<64x128xf32>, vector<4x128xf32> -> vector<4x128xf32>
    %393 = arith.addf %388, %392 : vector<4x128xf32>
    %c9_294 = arith.constant 9 : index
    %c0_295 = arith.constant 0 : index
    %394 = vector.load %arg19[%c9_294, %c0_295] : memref<20x64xf32, #tpu.memory_space<vmem>>, vector<4x64xf32>
    %395 = vector.broadcast %358 : vector<4x1xf32> to vector<4x64xf32>
    %396 = arith.mulf %394, %395 : vector<4x64xf32>
    %c5_296 = arith.constant 5 : index
    %c0_297 = arith.constant 0 : index
    %c0_298 = arith.constant 0 : index
    %397 = vector.load %arg11[%c5_296, %c0_297, %c0_298] : memref<9x64x128xf32, #tpu.memory_space<vmem>>, vector<1x64x128xf32>
    %398 = vector.shape_cast %397 : vector<1x64x128xf32> to vector<64x128xf32>
    %cst_299 = arith.constant dense<0.000000e+00> : vector<4x128xf32>
    %399 = tpu.matmul %396, %398, %cst_299 {dimension_numbers = #tpu.dot_dimension_numbers<[1], [0], [0], [1], [0, 0, 1, 1], [], []>} : vector<4x64xf32>, vector<64x128xf32>, vector<4x128xf32> -> vector<4x128xf32>
    %400 = arith.addf %393, %399 : vector<4x128xf32>
    %c9_300 = arith.constant 9 : index
    %c0_301 = arith.constant 0 : index
    %401 = vector.load %arg19[%c9_300, %c0_301] : memref<20x64xf32, #tpu.memory_space<vmem>>, vector<4x64xf32>
    %402 = vector.broadcast %353 : vector<4x1xf32> to vector<4x64xf32>
    %403 = arith.mulf %401, %402 : vector<4x64xf32>
    %c6_302 = arith.constant 6 : index
    %c0_303 = arith.constant 0 : index
    %c0_304 = arith.constant 0 : index
    %404 = vector.load %arg11[%c6_302, %c0_303, %c0_304] : memref<9x64x128xf32, #tpu.memory_space<vmem>>, vector<1x64x128xf32>
    %405 = vector.shape_cast %404 : vector<1x64x128xf32> to vector<64x128xf32>
    %cst_305 = arith.constant dense<0.000000e+00> : vector<4x128xf32>
    %406 = tpu.matmul %403, %405, %cst_305 {dimension_numbers = #tpu.dot_dimension_numbers<[1], [0], [0], [1], [0, 0, 1, 1], [], []>} : vector<4x64xf32>, vector<64x128xf32>, vector<4x128xf32> -> vector<4x128xf32>
    %407 = arith.addf %400, %406 : vector<4x128xf32>
    %c10 = arith.constant 10 : index
    %c0_306 = arith.constant 0 : index
    %408 = vector.load %arg19[%c10, %c0_306] : memref<20x64xf32, #tpu.memory_space<vmem>>, vector<4x64xf32>
    %c7_307 = arith.constant 7 : index
    %c0_308 = arith.constant 0 : index
    %c0_309 = arith.constant 0 : index
    %409 = vector.load %arg11[%c7_307, %c0_308, %c0_309] : memref<9x64x128xf32, #tpu.memory_space<vmem>>, vector<1x64x128xf32>
    %410 = vector.shape_cast %409 : vector<1x64x128xf32> to vector<64x128xf32>
    %cst_310 = arith.constant dense<0.000000e+00> : vector<4x128xf32>
    %411 = tpu.matmul %408, %410, %cst_310 {dimension_numbers = #tpu.dot_dimension_numbers<[1], [0], [0], [1], [0, 0, 1, 1], [], []>} : vector<4x64xf32>, vector<64x128xf32>, vector<4x128xf32> -> vector<4x128xf32>
    %412 = arith.addf %407, %411 : vector<4x128xf32>
    %c11_311 = arith.constant 11 : index
    %c0_312 = arith.constant 0 : index
    %413 = vector.load %arg19[%c11_311, %c0_312] : memref<20x64xf32, #tpu.memory_space<vmem>>, vector<4x64xf32>
    %414 = vector.broadcast %358 : vector<4x1xf32> to vector<4x64xf32>
    %415 = arith.mulf %413, %414 : vector<4x64xf32>
    %c8_313 = arith.constant 8 : index
    %c0_314 = arith.constant 0 : index
    %c0_315 = arith.constant 0 : index
    %416 = vector.load %arg11[%c8_313, %c0_314, %c0_315] : memref<9x64x128xf32, #tpu.memory_space<vmem>>, vector<1x64x128xf32>
    %417 = vector.shape_cast %416 : vector<1x64x128xf32> to vector<64x128xf32>
    %cst_316 = arith.constant dense<0.000000e+00> : vector<4x128xf32>
    %418 = tpu.matmul %415, %417, %cst_316 {dimension_numbers = #tpu.dot_dimension_numbers<[1], [0], [0], [1], [0, 0, 1, 1], [], []>} : vector<4x64xf32>, vector<64x128xf32>, vector<4x128xf32> -> vector<4x128xf32>
    %419 = arith.addf %412, %418 : vector<4x128xf32>
    %cst_317 = arith.constant 0.00999999977 : f32
    %420 = vector.broadcast %cst_317 : f32 to vector<4x128xf32>
    %421 = arith.mulf %420, %419 : vector<4x128xf32>
    %422 = arith.maximumf %419, %421 : vector<4x128xf32>
    %c0_318 = arith.constant 0 : index
    %c0_319 = arith.constant 0 : index
    %423 = vector.load %arg14[%c0_318, %c0_319] : memref<1x4xf32, #tpu.memory_space<vmem>>, vector<1x4xf32>
    %424 = vector.extract_strided_slice %422 {offsets = [0, 0], sizes = [1, 128], strides = [1, 1]} : vector<4x128xf32> to vector<1x128xf32>
    %c0_320 = arith.constant 0 : index
    %c0_321 = arith.constant 0 : index
    %c0_322 = arith.constant 0 : index
    %425 = vector.load %arg13[%c0_320, %c0_321, %c0_322] : memref<4x128x4xf32, #tpu.memory_space<vmem>>, vector<1x128x4xf32>
    %426 = vector.shape_cast %425 : vector<1x128x4xf32> to vector<128x4xf32>
    %cst_323 = arith.constant dense<0.000000e+00> : vector<1x4xf32>
    %427 = tpu.matmul %424, %426, %cst_323 {dimension_numbers = #tpu.dot_dimension_numbers<[1], [0], [0], [1], [0, 0, 1, 1], [], []>} : vector<1x128xf32>, vector<128x4xf32>, vector<1x4xf32> -> vector<1x4xf32>
    %428 = arith.addf %423, %427 : vector<1x4xf32>
    %429 = vector.extract_strided_slice %422 {offsets = [1, 0], sizes = [1, 128], strides = [1, 1]} : vector<4x128xf32> to vector<1x128xf32>
    %c1_324 = arith.constant 1 : index
    %c0_325 = arith.constant 0 : index
    %c0_326 = arith.constant 0 : index
    %430 = vector.load %arg13[%c1_324, %c0_325, %c0_326] : memref<4x128x4xf32, #tpu.memory_space<vmem>>, vector<1x128x4xf32>
    %431 = vector.shape_cast %430 : vector<1x128x4xf32> to vector<128x4xf32>
    %cst_327 = arith.constant dense<0.000000e+00> : vector<1x4xf32>
    %432 = tpu.matmul %429, %431, %cst_327 {dimension_numbers = #tpu.dot_dimension_numbers<[1], [0], [0], [1], [0, 0, 1, 1], [], []>} : vector<1x128xf32>, vector<128x4xf32>, vector<1x4xf32> -> vector<1x4xf32>
    %433 = arith.addf %428, %432 : vector<1x4xf32>
    %434 = vector.extract_strided_slice %422 {offsets = [2, 0], sizes = [1, 128], strides = [1, 1]} : vector<4x128xf32> to vector<1x128xf32>
    %c2_328 = arith.constant 2 : index
    %c0_329 = arith.constant 0 : index
    %c0_330 = arith.constant 0 : index
    %435 = vector.load %arg13[%c2_328, %c0_329, %c0_330] : memref<4x128x4xf32, #tpu.memory_space<vmem>>, vector<1x128x4xf32>
    %436 = vector.shape_cast %435 : vector<1x128x4xf32> to vector<128x4xf32>
    %cst_331 = arith.constant dense<0.000000e+00> : vector<1x4xf32>
    %437 = tpu.matmul %434, %436, %cst_331 {dimension_numbers = #tpu.dot_dimension_numbers<[1], [0], [0], [1], [0, 0, 1, 1], [], []>} : vector<1x128xf32>, vector<128x4xf32>, vector<1x4xf32> -> vector<1x4xf32>
    %438 = arith.addf %433, %437 : vector<1x4xf32>
    %439 = vector.extract_strided_slice %422 {offsets = [3, 0], sizes = [1, 128], strides = [1, 1]} : vector<4x128xf32> to vector<1x128xf32>
    %c3_332 = arith.constant 3 : index
    %c0_333 = arith.constant 0 : index
    %c0_334 = arith.constant 0 : index
    %440 = vector.load %arg13[%c3_332, %c0_333, %c0_334] : memref<4x128x4xf32, #tpu.memory_space<vmem>>, vector<1x128x4xf32>
    %441 = vector.shape_cast %440 : vector<1x128x4xf32> to vector<128x4xf32>
    %cst_335 = arith.constant dense<0.000000e+00> : vector<1x4xf32>
    %442 = tpu.matmul %439, %441, %cst_335 {dimension_numbers = #tpu.dot_dimension_numbers<[1], [0], [0], [1], [0, 0, 1, 1], [], []>} : vector<1x128xf32>, vector<128x4xf32>, vector<1x4xf32> -> vector<1x4xf32>
    %443 = arith.addf %438, %442 : vector<1x4xf32>
    %c0_336 = arith.constant 0 : index
    %c0_337 = arith.constant 0 : index
    %c0_338 = arith.constant 0 : index
    %444 = vector.load %arg15[%c0_336, %c0_337, %c0_338] : memref<1x1x4xf32, #tpu.memory_space<vmem>>, vector<1x1x4xf32>
    %445 = vector.shape_cast %444 : vector<1x1x4xf32> to vector<1x4xf32>
    %446 = vector.shape_cast %443 : vector<1x4xf32> to vector<1x1x4xf32>
    tpu.vector_store %arg15[%c0_336, %c0_337, %c0_338], %446 {strides = array<i32>} : memref<1x1x4xf32, #tpu.memory_space<vmem>>, vector<1x1x4xf32>,
    return
  }
  func.func @transform_0(%arg0: i32) -> (i32, i32, i32) {
    %c0_i32 = arith.constant 0 : i32
    %c0_i32_0 = arith.constant 0 : i32
    %c0_i32_1 = arith.constant 0 : i32
    return %arg0, %c0_i32, %c0_i32_0 : i32, i32, i32
  }
  func.func @transform_1(%arg0: i32) -> (i32, i32, i32) {
    %c0_i32 = arith.constant 0 : i32
    %c0_i32_0 = arith.constant 0 : i32
    %c0_i32_1 = arith.constant 0 : i32
    %c0_i32_2 = arith.constant 0 : i32
    return %c0_i32, %c0_i32_0, %c0_i32_1 : i32, i32, i32
  }
  func.func @transform_2(%arg0: i32) -> (i32, i32) {
    %c0_i32 = arith.constant 0 : i32
    %c0_i32_0 = arith.constant 0 : i32
    %c0_i32_1 = arith.constant 0 : i32
    return %c0_i32, %c0_i32_0 : i32, i32
  }
  func.func @transform_3(%arg0: i32) -> (i32, i32, i32) {
    %c0_i32 = arith.constant 0 : i32
    %c0_i32_0 = arith.constant 0 : i32
    %c0_i32_1 = arith.constant 0 : i32
    %c0_i32_2 = arith.constant 0 : i32
    return %c0_i32, %c0_i32_0, %c0_i32_1 : i32, i32, i32
  }
  func.func @transform_4(%arg0: i32) -> (i32, i32, i32) {
    %c0_i32 = arith.constant 0 : i32
    %c0_i32_0 = arith.constant 0 : i32
    %c0_i32_1 = arith.constant 0 : i32
    %c0_i32_2 = arith.constant 0 : i32
    return %c0_i32, %c0_i32_0, %c0_i32_1 : i32, i32, i32
  }
  func.func @transform_5(%arg0: i32) -> (i32, i32) {
    %c0_i32 = arith.constant 0 : i32
    %c0_i32_0 = arith.constant 0 : i32
    %c0_i32_1 = arith.constant 0 : i32
    return %c0_i32, %c0_i32_0 : i32, i32
  }
  func.func @transform_6(%arg0: i32) -> (i32, i32, i32) {
    %c0_i32 = arith.constant 0 : i32
    %c0_i32_0 = arith.constant 0 : i32
    %c0_i32_1 = arith.constant 0 : i32
    %c0_i32_2 = arith.constant 0 : i32
    return %c0_i32, %c0_i32_0, %c0_i32_1 : i32, i32, i32
  }
  func.func @transform_7(%arg0: i32) -> (i32, i32, i32) {
    %c0_i32 = arith.constant 0 : i32
    %c0_i32_0 = arith.constant 0 : i32
    %c0_i32_1 = arith.constant 0 : i32
    %c0_i32_2 = arith.constant 0 : i32
    return %c0_i32, %c0_i32_0, %c0_i32_1 : i32, i32, i32
  }
  func.func @transform_8(%arg0: i32) -> (i32, i32) {
    %c0_i32 = arith.constant 0 : i32
    %c0_i32_0 = arith.constant 0 : i32
    %c0_i32_1 = arith.constant 0 : i32
    return %c0_i32, %c0_i32_0 : i32, i32
  }
  func.func @transform_9(%arg0: i32) -> (i32, i32, i32) {
    %c0_i32 = arith.constant 0 : i32
    %c0_i32_0 = arith.constant 0 : i32
    %c0_i32_1 = arith.constant 0 : i32
    %c0_i32_2 = arith.constant 0 : i32
    return %c0_i32, %c0_i32_0, %c0_i32_1 : i32, i32, i32
  }
  func.func @transform_10(%arg0: i32) -> (i32, i32, i32) {
    %c0_i32 = arith.constant 0 : i32
    %c0_i32_0 = arith.constant 0 : i32
    %c0_i32_1 = arith.constant 0 : i32
    %c0_i32_2 = arith.constant 0 : i32
    return %c0_i32, %c0_i32_0, %c0_i32_1 : i32, i32, i32
  }
  func.func @transform_11(%arg0: i32) -> (i32, i32) {
    %c0_i32 = arith.constant 0 : i32
    %c0_i32_0 = arith.constant 0 : i32
    %c0_i32_1 = arith.constant 0 : i32
    return %c0_i32, %c0_i32_0 : i32, i32
  }
  func.func @transform_12(%arg0: i32) -> (i32, i32, i32) {
    %c0_i32 = arith.constant 0 : i32
    %c0_i32_0 = arith.constant 0 : i32
    %c0_i32_1 = arith.constant 0 : i32
    %c0_i32_2 = arith.constant 0 : i32
    return %c0_i32, %c0_i32_0, %c0_i32_1 : i32, i32, i32
  }
  func.func @transform_13(%arg0: i32) -> (i32, i32) {
    %c0_i32 = arith.constant 0 : i32
    %c0_i32_0 = arith.constant 0 : i32
    %c0_i32_1 = arith.constant 0 : i32
    return %c0_i32, %c0_i32_0 : i32, i32
  }
  func.func @transform_14(%arg0: i32) -> (i32, i32, i32) {
    %c0_i32 = arith.constant 0 : i32
    %c0_i32_0 = arith.constant 0 : i32
    %c0_i32_1 = arith.constant 0 : i32
    return %arg0, %c0_i32, %c0_i32_0 : i32, i32, i32
  }
}

</mosaic_0001>

<llo_original>
// kernel: forward.1
$region0: #{forward.1}
  #allocation0 [shape = 'u32[]', space=smem, size = 0x4, offset = 0x4, fixed_abs, tag = 'smem constant byte address 0x4 - core index']
  #allocation1 [shape = 'u32[72,128]{1,0:T(1,128)}', space=vmem, size = 0x9000, scoped, tag = 'internal scratch']
  #allocation2 [shape = 'f32[304,4]{1,0:T(8,128)}', space=vmem, size = 0x26000, scoped, tag = 'scratch operand']
  #allocation3 [shape = 'f32[96,16]{1,0:T(8,128)}', space=vmem, size = 0xc000, scoped, tag = 'scratch operand']
  #allocation4 [shape = 'f32[32,32]{1,0:T(8,128)}', space=vmem, size = 0x4000, scoped, tag = 'scratch operand']
  #allocation5 [shape = 'f32[20,64]{1,0:T(8,128)}', space=vmem, size = 0x3000, scoped, tag = 'scratch operand']
  %s0 = inlined_call_operand.vmem [shape: f32[2,256,4], index: 0, kind: input, shape index: {}]
  %s1 = inlined_call_operand.hbm [shape: f32[9,4,16], index: 1, kind: input, shape index: {}]
  %s2 = inlined_call_operand.hbm [shape: f32[1,16], index: 2, kind: input, shape index: {}]
  %s3 = inlined_call_operand.vmem [shape: f32[4,64,256], index: 3, kind: input, shape index: {}]
  %s4 = inlined_call_operand.hbm [shape: f32[9,16,32], index: 4, kind: input, shape index: {}]
  %s5 = inlined_call_operand.hbm [shape: f32[1,32], index: 5, kind: input, shape index: {}]
  %s6 = inlined_call_operand.vmem [shape: f32[4,16,64], index: 6, kind: input, shape index: {}]
  %s7 = inlined_call_operand.hbm [shape: f32[9,32,64], index: 7, kind: input, shape index: {}]
  %s8 = inlined_call_operand.hbm [shape: f32[1,64], index: 8, kind: input, shape index: {}]
  %s9 = inlined_call_operand.hbm [shape: f32[4,4,16], index: 9, kind: input, shape index: {}]
  %s10 = inlined_call_operand.vmem [shape: f32[9,64,128], index: 10, kind: input, shape index: {}]
  %s11 = inlined_call_operand.hbm [shape: f32[1,128], index: 11, kind: input, shape index: {}]
  %s12 = inlined_call_operand.vmem [shape: f32[4,128,4], index: 12, kind: input, shape index: {}]
  %s13 = inlined_call_operand.vmem [shape: f32[1,4], index: 13, kind: input, shape index: {}]
  %s14 = inlined_call_operand.hbm [shape: f32[2,1,4], index: 14, kind: output, shape index: {}]
  %s15 = sld [smem:[#allocation0]]
  $region121: #{forward.1} parent=0
    _
  %s17 = ssub.s32 1, %s15
  %s18 = scalar_select 0, %s17, %s15
  $region1: #{forward.1} parent=0
    #allocation6 [shape = 'u8[18432]{0}', space=vmem, size = 0x4800, scoped, tag = 'input window, operand 1, single buffered']
    #allocation7 [shape = 's32[2]{0}', space=sflag, size = 0x8, scoped, tag = 'scoped memory for forward.1']
    #allocation8 [shape = 's32[2]{0}', space=sflag, size = 0x8, scoped, tag = 'scoped memory for forward.1']
    #allocation9 [shape = 'u8[512]{0}', space=vmem, size = 0x400, scoped, tag = 'input window, operand 2, single buffered']
    #allocation10 [shape = 's32[1]{0}', space=sflag, size = 0x4, scoped, tag = 'scoped memory for forward.1']
    #allocation11 [shape = 'u8[73728]{0}', space=vmem, size = 0x12000, scoped, tag = 'input window, operand 4, single buffered']
    #allocation12 [shape = 'u8[512]{0}', space=vmem, size = 0x400, scoped, tag = 'input window, operand 5, single buffered']
    #allocation13 [shape = 's32[1]{0}', space=sflag, size = 0x4, scoped, tag = 'scoped memory for forward.1']
    #allocation14 [shape = 'u8[147456]{0}', space=vmem, size = 0x24000, scoped, tag = 'input window, operand 7, single buffered']
    #allocation15 [shape = 'u8[512]{0}', space=vmem, size = 0x400, scoped, tag = 'input window, operand 8, single buffered']
    #allocation16 [shape = 's32[1]{0}', space=sflag, size = 0x4, scoped, tag = 'scoped memory for forward.1']
    #allocation17 [shape = 'u8[8192]{0}', space=vmem, size = 0x2000, scoped, tag = 'input window, operand 9, single buffered']
    #allocation18 [shape = 'u8[512]{0}', space=vmem, size = 0x400, scoped, tag = 'input window, operand 11, single buffered']
    #allocation19 [shape = 's32[1]{0}', space=sflag, size = 0x4, scoped, tag = 'scoped memory for forward.1']
    #allocation20 [shape = 'u8[1024]{0}', space=vmem, size = 0x400, scoped, tag = 'output window, operand 0']
    %19 = vsyncpa [#allocation7], 0
    %20 = vsyncpa [#allocation10], 0
    %21 = vsyncpa [#allocation13], 0
    %22 = vsyncpa [#allocation16], 0
    %23 = vsyncpa [#allocation19], 0
    %24 = vsyncpa [#allocation8], 0
    %s25 = scalar_lea.sflag [#allocation8], 1
    %26 = vsyncpa %s25, 0
    loop: start=0, step=1, limit=4
    $region2: #{forward.1} parent=1 // loop_pre_header
      _
    $region3: #{forward.1} parent=1 // loop_header
      %s28 = sphi 0, %s32
      %p29 = scmp.ge.s32.totalorder %s28, 4
      %s38 = sphi 0, %s40
      %s41 = sphi 0, %s38
      %s42 = sphi 0, %s41
      %s58 = sphi 0, %s42
      %s62 = sphi 0, %s62
      %s64 = sphi 0, %s62
      %s65 = sphi 0, %s64
      %s79 = sphi 0, %s65
      %s83 = sphi 0, %s83
      %s85 = sphi 0, %s83
      %s86 = sphi 0, %s85
      %s100 = sphi 0, %s86
      %s104 = sphi 0, %s104
      %s106 = sphi 0, %s104
      %s107 = sphi 0, %s106
      %s121 = sphi 0, %s107
      %s125 = sphi 0, %s125
      %s127 = sphi 0, %s125
      %s128 = sphi 0, %s127
      %s142 = sphi 0, %s128
      %s146 = sphi 0, %s146
      %s148 = sphi 0, %s146
      %s149 = sphi 0, %s148
      %s163 = sphi 0, %s149
      %s167 = sphi 0, %s167
      %s169 = sphi 0, %s167
      %s170 = sphi 0, %s169
      %s184 = sphi 0, %s170
      %s188 = sphi 0, %s188
      %s190 = sphi 0, %s188
      %s191 = sphi 0, %s190
      %s205 = sphi 0, %s191
      %s209 = sphi 0, %s209
      %s211 = sphi 0, %s209
      %s212 = sphi 0, %s211
      %s226 = sphi 0, %s212
      %s230 = sphi 0, %s230
      %s232 = sphi 0, %s230
      %s233 = sphi 0, %s232
      %s247 = sphi 0, %s233
      %s251 = sphi 0, %s251
      %s253 = sphi 0, %s251
      %s254 = sphi 0, %s253
      %s268 = sphi 0, %s254
      %s272 = sphi 0, %s272
      %s274 = sphi 0, %s272
      %s275 = sphi 0, %s274
      %s289 = sphi 0, %s275
      %s293 = sphi 0, %s293
      %s295 = sphi 0, %s293
      %s296 = sphi 0, %s295
      %s310 = sphi 0, %s296
      %s314 = sphi 0, %s314
      %s316 = sphi 0, %s314
      %s317 = sphi 0, %s316
      %s331 = sphi 0, %s317
      %s337 = sphi 0, %s339
      %s340 = sphi 0, %s337
      %s341 = sphi 0, %s340
      %s357 = sphi 0, %s341
    $region4: #{forward.1} parent=1 // loop_header_branch
      %31 = sbr.rel (%p29) target = $region8
    $region5: #{forward.1} parent=1 // loop_body
      %s33 = ssub.s32 %s28, 1
      %s34 = ssub.s32 %s28, 2
      %s35 = sadd.s32 %s28, 1
      %s36 = ssub.s32 %s28, %s35
      %p37 = scmp.eq.s32.totalorder %s36, 0
      %s39 = sadd.s32 %s38, 1
      %s40 = scalar_select %p37, %s38, %s39
      %p43 = pneg %p37
      %p44 = scmp.eq.s32.totalorder %s28, 1
      %p45 = por %p43, %p44
      %p46 = scmp.ne.s32.totalorder %s38, %s41
      %p47 = scmp.eq.s32.totalorder %s28, 0
      %p48 = por %p46, %p47
      %p49 = scmp.ne.s32.totalorder %s38, %s41
      %p50 = scmp.eq.s32.totalorder %s33, 1
      %p51 = por %p49, %p50
      %p52 = scmp.ne.s32.totalorder %s41, %s42
      %p53 = scmp.eq.s32.totalorder %s33, 0
      %p54 = por %p52, %p53
      %p55 = scmp.ne.s32.totalorder %s41, %s42
      %p56 = scmp.eq.s32.totalorder %s34, 1
      %p57 = por %p55, %p56
      %p59 = scmp.ne.s32.totalorder %s42, %s58
      %p60 = scmp.eq.s32.totalorder %s34, 0
      %p61 = por %p59, %p60
      %s63 = sadd.s32 %s62, 1
      %p66 = scmp.eq.s32.totalorder %s28, 1
      %p67 = scmp.ne.s32.totalorder %s62, %s64
      %p68 = scmp.eq.s32.totalorder %s28, 0
      %p69 = por %p67, %p68
      %p70 = scmp.ne.s32.totalorder %s62, %s64
      %p71 = scmp.eq.s32.totalorder %s33, 1
      %p72 = por %p70, %p71
      %p73 = scmp.ne.s32.totalorder %s64, %s65
      %p74 = scmp.eq.s32.totalorder %s33, 0
      %p75 = por %p73, %p74
      %p76 = scmp.ne.s32.totalorder %s64, %s65
      %p77 = scmp.eq.s32.totalorder %s34, 1
      %p78 = por %p76, %p77
      %p80 = scmp.ne.s32.totalorder %s65, %s79
      %p81 = scmp.eq.s32.totalorder %s34, 0
      %p82 = por %p80, %p81
      %s84 = sadd.s32 %s83, 1
      %p87 = scmp.eq.s32.totalorder %s28, 1
      %p88 = scmp.ne.s32.totalorder %s83, %s85
      %p89 = scmp.eq.s32.totalorder %s28, 0
      %p90 = por %p88, %p89
      %p91 = scmp.ne.s32.totalorder %s83, %s85
      %p92 = scmp.eq.s32.totalorder %s33, 1
      %p93 = por %p91, %p92
      %p94 = scmp.ne.s32.totalorder %s85, %s86
      %p95 = scmp.eq.s32.totalorder %s33, 0
      %p96 = por %p94, %p95
      %p97 = scmp.ne.s32.totalorder %s85, %s86
      %p98 = scmp.eq.s32.totalorder %s34, 1
      %p99 = por %p97, %p98
      %p101 = scmp.ne.s32.totalorder %s86, %s100
      %p102 = scmp.eq.s32.totalorder %s34, 0
      %p103 = por %p101, %p102
      %s105 = sadd.s32 %s104, 1
      %p108 = scmp.eq.s32.totalorder %s28, 1
      %p109 = scmp.ne.s32.totalorder %s104, %s106
      %p110 = scmp.eq.s32.totalorder %s28, 0
      %p111 = por %p109, %p110
      %p112 = scmp.ne.s32.totalorder %s104, %s106
      %p113 = scmp.eq.s32.totalorder %s33, 1
      %p114 = por %p112, %p113
      %p115 = scmp.ne.s32.totalorder %s106, %s107
      %p116 = scmp.eq.s32.totalorder %s33, 0
      %p117 = por %p115, %p116
      %p118 = scmp.ne.s32.totalorder %s106, %s107
      %p119 = scmp.eq.s32.totalorder %s34, 1
      %p120 = por %p118, %p119
      %p122 = scmp.ne.s32.totalorder %s107, %s121
      %p123 = scmp.eq.s32.totalorder %s34, 0
      %p124 = por %p122, %p123
      %s126 = sadd.s32 %s125, 1
      %p129 = scmp.eq.s32.totalorder %s28, 1
      %p130 = scmp.ne.s32.totalorder %s125, %s127
      %p131 = scmp.eq.s32.totalorder %s28, 0
      %p132 = por %p130, %p131
      %p133 = scmp.ne.s32.totalorder %s125, %s127
      %p134 = scmp.eq.s32.totalorder %s33, 1
      %p135 = por %p133, %p134
      %p136 = scmp.ne.s32.totalorder %s127, %s128
      %p137 = scmp.eq.s32.totalorder %s33, 0
      %p138 = por %p136, %p137
      %p139 = scmp.ne.s32.totalorder %s127, %s128
      %p140 = scmp.eq.s32.totalorder %s34, 1
      %p141 = por %p139, %p140
      %p143 = scmp.ne.s32.totalorder %s128, %s142
      %p144 = scmp.eq.s32.totalorder %s34, 0
      %p145 = por %p143, %p144
      %s147 = sadd.s32 %s146, 1
      %p150 = scmp.eq.s32.totalorder %s28, 1
      %p151 = scmp.ne.s32.totalorder %s146, %s148
      %p152 = scmp.eq.s32.totalorder %s28, 0
      %p153 = por %p151, %p152
      %p154 = scmp.ne.s32.totalorder %s146, %s148
      %p155 = scmp.eq.s32.totalorder %s33, 1
      %p156 = por %p154, %p155
      %p157 = scmp.ne.s32.totalorder %s148, %s149
      %p158 = scmp.eq.s32.totalorder %s33, 0
      %p159 = por %p157, %p158
      %p160 = scmp.ne.s32.totalorder %s148, %s149
      %p161 = scmp.eq.s32.totalorder %s34, 1
      %p162 = por %p160, %p161
      %p164 = scmp.ne.s32.totalorder %s149, %s163
      %p165 = scmp.eq.s32.totalorder %s34, 0
      %p166 = por %p164, %p165
      %s168 = sadd.s32 %s167, 1
      %p171 = scmp.eq.s32.totalorder %s28, 1
      %p172 = scmp.ne.s32.totalorder %s167, %s169
      %p173 = scmp.eq.s32.totalorder %s28, 0
      %p174 = por %p172, %p173
      %p175 = scmp.ne.s32.totalorder %s167, %s169
      %p176 = scmp.eq.s32.totalorder %s33, 1
      %p177 = por %p175, %p176
      %p178 = scmp.ne.s32.totalorder %s169, %s170
      %p179 = scmp.eq.s32.totalorder %s33, 0
      %p180 = por %p178, %p179
      %p181 = scmp.ne.s32.totalorder %s169, %s170
      %p182 = scmp.eq.s32.totalorder %s34, 1
      %p183 = por %p181, %p182
      %p185 = scmp.ne.s32.totalorder %s170, %s184
      %p186 = scmp.eq.s32.totalorder %s34, 0
      %p187 = por %p185, %p186
      %s189 = sadd.s32 %s188, 1
      %p192 = scmp.eq.s32.totalorder %s28, 1
      %p193 = scmp.ne.s32.totalorder %s188, %s190
      %p194 = scmp.eq.s32.totalorder %s28, 0
      %p195 = por %p193, %p194
      %p196 = scmp.ne.s32.totalorder %s188, %s190
      %p197 = scmp.eq.s32.totalorder %s33, 1
      %p198 = por %p196, %p197
      %p199 = scmp.ne.s32.totalorder %s190, %s191
      %p200 = scmp.eq.s32.totalorder %s33, 0
      %p201 = por %p199, %p200
      %p202 = scmp.ne.s32.totalorder %s190, %s191
      %p203 = scmp.eq.s32.totalorder %s34, 1
      %p204 = por %p202, %p203
      %p206 = scmp.ne.s32.totalorder %s191, %s205
      %p207 = scmp.eq.s32.totalorder %s34, 0
      %p208 = por %p206, %p207
      %s210 = sadd.s32 %s209, 1
      %p213 = scmp.eq.s32.totalorder %s28, 1
      %p214 = scmp.ne.s32.totalorder %s209, %s211
      %p215 = scmp.eq.s32.totalorder %s28, 0
      %p216 = por %p214, %p215
      %p217 = scmp.ne.s32.totalorder %s209, %s211
      %p218 = scmp.eq.s32.totalorder %s33, 1
      %p219 = por %p217, %p218
      %p220 = scmp.ne.s32.totalorder %s211, %s212
      %p221 = scmp.eq.s32.totalorder %s33, 0
      %p222 = por %p220, %p221
      %p223 = scmp.ne.s32.totalorder %s211, %s212
      %p224 = scmp.eq.s32.totalorder %s34, 1
      %p225 = por %p223, %p224
      %p227 = scmp.ne.s32.totalorder %s212, %s226
      %p228 = scmp.eq.s32.totalorder %s34, 0
      %p229 = por %p227, %p228
      %s231 = sadd.s32 %s230, 1
      %p234 = scmp.eq.s32.totalorder %s28, 1
      %p235 = scmp.ne.s32.totalorder %s230, %s232
      %p236 = scmp.eq.s32.totalorder %s28, 0
      %p237 = por %p235, %p236
      %p238 = scmp.ne.s32.totalorder %s230, %s232
      %p239 = scmp.eq.s32.totalorder %s33, 1
      %p240 = por %p238, %p239
      %p241 = scmp.ne.s32.totalorder %s232, %s233
      %p242 = scmp.eq.s32.totalorder %s33, 0
      %p243 = por %p241, %p242
      %p244 = scmp.ne.s32.totalorder %s232, %s233
      %p245 = scmp.eq.s32.totalorder %s34, 1
      %p246 = por %p244, %p245
      %p248 = scmp.ne.s32.totalorder %s233, %s247
      %p249 = scmp.eq.s32.totalorder %s34, 0
      %p250 = por %p248, %p249
      %s252 = sadd.s32 %s251, 1
      %p255 = scmp.eq.s32.totalorder %s28, 1
      %p256 = scmp.ne.s32.totalorder %s251, %s253
      %p257 = scmp.eq.s32.totalorder %s28, 0
      %p258 = por %p256, %p257
      %p259 = scmp.ne.s32.totalorder %s251, %s253
      %p260 = scmp.eq.s32.totalorder %s33, 1
      %p261 = por %p259, %p260
      %p262 = scmp.ne.s32.totalorder %s253, %s254
      %p263 = scmp.eq.s32.totalorder %s33, 0
      %p264 = por %p262, %p263
      %p265 = scmp.ne.s32.totalorder %s253, %s254
      %p266 = scmp.eq.s32.totalorder %s34, 1
      %p267 = por %p265, %p266
      %p269 = scmp.ne.s32.totalorder %s254, %s268
      %p270 = scmp.eq.s32.totalorder %s34, 0
      %p271 = por %p269, %p270
      %s273 = sadd.s32 %s272, 1
      %p276 = scmp.eq.s32.totalorder %s28, 1
      %p277 = scmp.ne.s32.totalorder %s272, %s274
      %p278 = scmp.eq.s32.totalorder %s28, 0
      %p279 = por %p277, %p278
      %p280 = scmp.ne.s32.totalorder %s272, %s274
      %p281 = scmp.eq.s32.totalorder %s33, 1
      %p282 = por %p280, %p281
      %p283 = scmp.ne.s32.totalorder %s274, %s275
      %p284 = scmp.eq.s32.totalorder %s33, 0
      %p285 = por %p283, %p284
      %p286 = scmp.ne.s32.totalorder %s274, %s275
      %p287 = scmp.eq.s32.totalorder %s34, 1
      %p288 = por %p286, %p287
      %p290 = scmp.ne.s32.totalorder %s275, %s289
      %p291 = scmp.eq.s32.totalorder %s34, 0
      %p292 = por %p290, %p291
      %s294 = sadd.s32 %s293, 1
      %p297 = scmp.eq.s32.totalorder %s28, 1
      %p298 = scmp.ne.s32.totalorder %s293, %s295
      %p299 = scmp.eq.s32.totalorder %s28, 0
      %p300 = por %p298, %p299
      %p301 = scmp.ne.s32.totalorder %s293, %s295
      %p302 = scmp.eq.s32.totalorder %s33, 1
      %p303 = por %p301, %p302
      %p304 = scmp.ne.s32.totalorder %s295, %s296
      %p305 = scmp.eq.s32.totalorder %s33, 0
      %p306 = por %p304, %p305
      %p307 = scmp.ne.s32.totalorder %s295, %s296
      %p308 = scmp.eq.s32.totalorder %s34, 1
      %p309 = por %p307, %p308
      %p311 = scmp.ne.s32.totalorder %s296, %s310
      %p312 = scmp.eq.s32.totalorder %s34, 0
      %p313 = por %p311, %p312
      %s315 = sadd.s32 %s314, 1
      %p318 = scmp.eq.s32.totalorder %s28, 1
      %p319 = scmp.ne.s32.totalorder %s314, %s316
      %p320 = scmp.eq.s32.totalorder %s28, 0
      %p321 = por %p319, %p320
      %p322 = scmp.ne.s32.totalorder %s314, %s316
      %p323 = scmp.eq.s32.totalorder %s33, 1
      %p324 = por %p322, %p323
      %p325 = scmp.ne.s32.totalorder %s316, %s317
      %p326 = scmp.eq.s32.totalorder %s33, 0
      %p327 = por %p325, %p326
      %p328 = scmp.ne.s32.totalorder %s316, %s317
      %p329 = scmp.eq.s32.totalorder %s34, 1
      %p330 = por %p328, %p329
      %p332 = scmp.ne.s32.totalorder %s317, %s331
      %p333 = scmp.eq.s32.totalorder %s34, 0
      %p334 = por %p332, %p333
      %s335 = ssub.s32 %s28, %s35
      %p336 = scmp.eq.s32.totalorder %s335, 0
      %s338 = sadd.s32 %s337, 1
      %s339 = scalar_select %p336, %s337, %s338
      %p342 = pneg %p336
      %p343 = scmp.eq.s32.totalorder %s28, 1
      %p344 = por %p342, %p343
      %p345 = scmp.ne.s32.totalorder %s337, %s340
      %p346 = scmp.eq.s32.totalorder %s28, 0
      %p347 = por %p345, %p346
      %p348 = scmp.ne.s32.totalorder %s337, %s340
      %p349 = scmp.eq.s32.totalorder %s33, 1
      %p350 = por %p348, %p349
      %p351 = scmp.ne.s32.totalorder %s340, %s341
      %p352 = scmp.eq.s32.totalorder %s33, 0
      %p353 = por %p351, %p352
      %p354 = scmp.ne.s32.totalorder %s340, %s341
      %p355 = scmp.eq.s32.totalorder %s34, 1
      %p356 = por %p354, %p355
      %p358 = scmp.ne.s32.totalorder %s341, %s357
      %p359 = scmp.eq.s32.totalorder %s34, 0
      %p360 = por %p358, %p359
      %p361 = scmp.le.s32.totalorder 1, %s28
      %p362 = scmp.lt.s32.totalorder %s28, 3
      %p363 = pnand %p361, %p362
      %p364 = pneg %p363
      // Predicated region
      $region9: #{forward.1} parent=5 // pred_check
        _
      $region10: #{forward.1} parent=5 // pred_check_branch
        %366 = sbr.rel (%p363) target = $region12
      $region11: #{forward.1} parent=5 // pred_region
        %s367 = ssub.s32 %s28, 1
        // Predicated region
        $region13: #{forward.1} parent=11 // pred_check
          %p368 = pneg %p75
        $region14: #{forward.1} parent=11 // pred_check_branch
          %370 = sbr.rel (%p368) target = $region16
        $region15: #{forward.1} parent=11 // pred_region
          %372 = vsyncadd [#allocation7], 0
          %s373 = sshll.u32 %s1, 4
          %s374 = int_to_ptr.hbm [resolvable:$true] %s373
          %s375 = sshll.u32 [#allocation6], 4
          %s376 = int_to_ptr.vmem [resolvable:$true] %s375
          %381 = dma.hbm_to_vmem [thread:$0]  %s374, 576, %s376, [#allocation7], 64, 64, 4
        $region16: #{forward.1} parent=11 // pred_fallthru
          _
        // Predicated region
        $region17: #{forward.1} parent=11 // pred_check
          %p382 = pneg %p96
        $region18: #{forward.1} parent=11 // pred_check_branch
          %384 = sbr.rel (%p382) target = $region20
        $region19: #{forward.1} parent=11 // pred_region
          %386 = vsyncadd [#allocation10], 0
          %s388 = sshll.u32 %s2, 4
          %s389 = int_to_ptr.hbm [resolvable:$true] %s388
          %s390 = sshll.u32 [#allocation9], 4
          %s391 = int_to_ptr.vmem [resolvable:$true] %s390
          %393 = dma.hbm_to_vmem [thread:$0]  %s389, 16, %s391, [#allocation10]
        $region20: #{forward.1} parent=11 // pred_fallthru
          _
        // Predicated region
        $region21: #{forward.1} parent=11 // pred_check
          %p394 = pneg %p117
        $region22: #{forward.1} parent=11 // pred_check_branch
          %396 = sbr.rel (%p394) target = $region24
        $region23: #{forward.1} parent=11 // pred_region
          _
        $region24: #{forward.1} parent=11 // pred_fallthru
          _
        // Predicated region
        $region25: #{forward.1} parent=11 // pred_check
          %p397 = pneg %p138
        $region26: #{forward.1} parent=11 // pred_check_branch
          %399 = sbr.rel (%p397) target = $region28
        $region27: #{forward.1} parent=11 // pred_region
          %401 = vsyncadd [#allocation10], 0
          %s402 = sshll.u32 %s4, 4
          %s403 = int_to_ptr.hbm [resolvable:$true] %s402
          %s404 = sshll.u32 [#allocation11], 4
          %s405 = int_to_ptr.vmem [resolvable:$true] %s404
          %410 = dma.hbm_to_vmem [thread:$0]  %s403, 2304, %s405, [#allocation10], 128, 128, 8
        $region28: #{forward.1} parent=11 // pred_fallthru
          _
        // Predicated region
        $region29: #{forward.1} parent=11 // pred_check
          %p411 = pneg %p159
        $region30: #{forward.1} parent=11 // pred_check_branch
          %413 = sbr.rel (%p411) target = $region32
        $region31: #{forward.1} parent=11 // pred_region
          %415 = vsyncadd [#allocation13], 0
          %s417 = sshll.u32 %s5, 4
          %s418 = int_to_ptr.hbm [resolvable:$true] %s417
          %s419 = sshll.u32 [#allocation12], 4
          %s420 = int_to_ptr.vmem [resolvable:$true] %s419
          %422 = dma.hbm_to_vmem [thread:$0]  %s418, 16, %s420, [#allocation13]
        $region32: #{forward.1} parent=11 // pred_fallthru
          _
        // Predicated region
        $region33: #{forward.1} parent=11 // pred_check
          %p423 = pneg %p180
        $region34: #{forward.1} parent=11 // pred_check_branch
          %425 = sbr.rel (%p423) target = $region36
        $region35: #{forward.1} parent=11 // pred_region
          _
        $region36: #{forward.1} parent=11 // pred_fallthru
          _
        // Predicated region
        $region37: #{forward.1} parent=11 // pred_check
          %p426 = pneg %p201
        $region38: #{forward.1} parent=11 // pred_check_branch
          %428 = sbr.rel (%p426) target = $region40
        $region39: #{forward.1} parent=11 // pred_region
          %430 = vsyncadd [#allocation13], 0
          %s431 = sshll.u32 %s7, 4
          %s432 = int_to_ptr.hbm [resolvable:$true] %s431
          %s433 = sshll.u32 [#allocation14], 4
          %s434 = int_to_ptr.vmem [resolvable:$true] %s433
          %439 = dma.hbm_to_vmem [thread:$0]  %s432, 4608, %s434, [#allocation13], 128, 128, 8
        $region40: #{forward.1} parent=11 // pred_fallthru
          _
        // Predicated region
        $region41: #{forward.1} parent=11 // pred_check
          %p440 = pneg %p222
        $region42: #{forward.1} parent=11 // pred_check_branch
          %442 = sbr.rel (%p440) target = $region44
        $region43: #{forward.1} parent=11 // pred_region
          %444 = vsyncadd [#allocation16], 0
          %s446 = sshll.u32 %s8, 4
          %s447 = int_to_ptr.hbm [resolvable:$true] %s446
          %s448 = sshll.u32 [#allocation15], 4
          %s449 = int_to_ptr.vmem [resolvable:$true] %s448
          %451 = dma.hbm_to_vmem [thread:$0]  %s447, 16, %s449, [#allocation16]
        $region44: #{forward.1} parent=11 // pred_fallthru
          _
        // Predicated region
        $region45: #{forward.1} parent=11 // pred_check
          %p452 = pneg %p243
        $region46: #{forward.1} parent=11 // pred_check_branch
          %454 = sbr.rel (%p452) target = $region48
        $region47: #{forward.1} parent=11 // pred_region
          %456 = vsyncadd [#allocation16], 0
          %s457 = sshll.u32 %s9, 4
          %s458 = int_to_ptr.hbm [resolvable:$true] %s457
          %s459 = sshll.u32 [#allocation17], 4
          %s460 = int_to_ptr.vmem [resolvable:$true] %s459
          %465 = dma.hbm_to_vmem [thread:$0]  %s458, 256, %s460, [#allocation16], 64, 64, 4
        $region48: #{forward.1} parent=11 // pred_fallthru
          _
        // Predicated region
        $region49: #{forward.1} parent=11 // pred_check
          %p466 = pneg %p264
        $region50: #{forward.1} parent=11 // pred_check_branch
          %468 = sbr.rel (%p466) target = $region52
        $region51: #{forward.1} parent=11 // pred_region
          _
        $region52: #{forward.1} parent=11 // pred_fallthru
          _
        // Predicated region
        $region53: #{forward.1} parent=11 // pred_check
          %p469 = pneg %p285
        $region54: #{forward.1} parent=11 // pred_check_branch
          %471 = sbr.rel (%p469) target = $region56
        $region55: #{forward.1} parent=11 // pred_region
          %473 = vsyncadd [#allocation19], 0
          %s475 = sshll.u32 %s11, 4
          %s476 = int_to_ptr.hbm [resolvable:$true] %s475
          %s477 = sshll.u32 [#allocation18], 4
          %s478 = int_to_ptr.vmem [resolvable:$true] %s477
          %480 = dma.hbm_to_vmem [thread:$0]  %s476, 16, %s478, [#allocation19]
        $region56: #{forward.1} parent=11 // pred_fallthru
          _
        // Predicated region
        $region57: #{forward.1} parent=11 // pred_check
          %p481 = pneg %p306
        $region58: #{forward.1} parent=11 // pred_check_branch
          %483 = sbr.rel (%p481) target = $region60
        $region59: #{forward.1} parent=11 // pred_region
          _
        $region60: #{forward.1} parent=11 // pred_fallthru
          _
        // Predicated region
        $region61: #{forward.1} parent=11 // pred_check
          %p484 = pneg %p327
        $region62: #{forward.1} parent=11 // pred_check_branch
          %486 = sbr.rel (%p484) target = $region64
        $region63: #{forward.1} parent=11 // pred_region
          _
        $region64: #{forward.1} parent=11 // pred_fallthru
          _
      $region12: #{forward.1} parent=5 // pred_fallthru
        _
      %p487 = scmp.lt.s32.totalorder %s28, 2
      // Predicated region
      $region65: #{forward.1} parent=5 // pred_check
        %p488 = pneg %p487
      $region66: #{forward.1} parent=5 // pred_check_branch
        %490 = sbr.rel (%p488) target = $region68
      $region67: #{forward.1} parent=5 // pred_region
        // Predicated region
        $region69: #{forward.1} parent=67 // pred_check
          %p491 = pneg %p48
        $region70: #{forward.1} parent=67 // pred_check_branch
          %493 = sbr.rel (%p491) target = $region72
        $region71: #{forward.1} parent=67 // pred_region
          %p494 = scmp.lt.s32.totalorder %s28, 1
          %s495 = scalar_select %p494, %s28, 1
          %s496 = smul.addr %s495, 32
          %s497 = smul.addr %s496, 8
          %s498 = scalar_lea.vmem %s0, %s497
        $region72: #{forward.1} parent=67 // pred_fallthru
          _
      $region68: #{forward.1} parent=5 // pred_fallthru
        _
      %p499 = scmp.le.s32.totalorder 1, %s28
      %p500 = scmp.lt.s32.totalorder %s28, 3
      %p501 = pnand %p499, %p500
      %p502 = pneg %p501
      // Predicated region
      $region73: #{forward.1} parent=5 // pred_check
        _
      $region74: #{forward.1} parent=5 // pred_check_branch
        %504 = sbr.rel (%p501) target = $region76
      $region75: #{forward.1} parent=5 // pred_region
        %s505 = ssub.s32 %s28, 1
        // Predicated region
        $region77: #{forward.1} parent=75 // pred_check
          %p506 = pneg %p75
        $region78: #{forward.1} parent=75 // pred_check_branch
          %508 = sbr.rel (%p506) target = $region80
        $region79: #{forward.1} parent=75 // pred_region
          %510 = dma.done [#allocation7], 576
        $region80: #{forward.1} parent=75 // pred_fallthru
          _
        // Predicated region
        $region81: #{forward.1} parent=75 // pred_check
          %p511 = pneg %p96
        $region82: #{forward.1} parent=75 // pred_check_branch
          %513 = sbr.rel (%p511) target = $region84
        $region83: #{forward.1} parent=75 // pred_region
          %515 = dma.done [#allocation10], 16
        $region84: #{forward.1} parent=75 // pred_fallthru
          _
        // Predicated region
        $region85: #{forward.1} parent=75 // pred_check
          %p516 = pneg %p138
        $region86: #{forward.1} parent=75 // pred_check_branch
          %518 = sbr.rel (%p516) target = $region88
        $region87: #{forward.1} parent=75 // pred_region
          %520 = dma.done [#allocation10], 2304
        $region88: #{forward.1} parent=75 // pred_fallthru
          _
        // Predicated region
        $region89: #{forward.1} parent=75 // pred_check
          %p521 = pneg %p159
        $region90: #{forward.1} parent=75 // pred_check_branch
          %523 = sbr.rel (%p521) target = $region92
        $region91: #{forward.1} parent=75 // pred_region
          %525 = dma.done [#allocation13], 16
        $region92: #{forward.1} parent=75 // pred_fallthru
          _
        // Predicated region
        $region93: #{forward.1} parent=75 // pred_check
          %p526 = pneg %p201
        $region94: #{forward.1} parent=75 // pred_check_branch
          %528 = sbr.rel (%p526) target = $region96
        $region95: #{forward.1} parent=75 // pred_region
          %530 = dma.done [#allocation13], 4608
        $region96: #{forward.1} parent=75 // pred_fallthru
          _
        // Predicated region
        $region97: #{forward.1} parent=75 // pred_check
          %p531 = pneg %p222
        $region98: #{forward.1} parent=75 // pred_check_branch
          %533 = sbr.rel (%p531) target = $region100
        $region99: #{forward.1} parent=75 // pred_region
          %535 = dma.done [#allocation16], 16
        $region100: #{forward.1} parent=75 // pred_fallthru
          _
        // Predicated region
        $region101: #{forward.1} parent=75 // pred_check
          %p536 = pneg %p243
        $region102: #{forward.1} parent=75 // pred_check_branch
          %538 = sbr.rel (%p536) target = $region104
        $region103: #{forward.1} parent=75 // pred_region
          %540 = dma.done [#allocation16], 256
        $region104: #{forward.1} parent=75 // pred_fallthru
          _
        // Predicated region
        $region105: #{forward.1} parent=75 // pred_check
          %p541 = pneg %p285
        $region106: #{forward.1} parent=75 // pred_check_branch
          %543 = sbr.rel (%p541) target = $region108
        $region107: #{forward.1} parent=75 // pred_region
          %545 = dma.done [#allocation19], 16
        $region108: #{forward.1} parent=75 // pred_fallthru
          _
        %p546 = scmp.lt.s32.totalorder %s33, 1
        %s547 = scalar_select %p546, %s33, 1
        %s548 = smul.addr %s547, 32
        %s549 = smul.addr %s548, 8
        %s550 = scalar_lea.vmem %s0, %s549
        %p551 = pneg %p54
        %p552 = pneg %p51
        %p553 = pneg %p75
        %p554 = pneg %p72
        %p555 = pneg %p96
        %p556 = pneg %p93
        %p557 = pneg %p117
        %p558 = pneg %p114
        %p559 = pneg %p138
        %p560 = pneg %p135
        %p561 = pneg %p159
        %p562 = pneg %p156
        %p563 = pneg %p180
        %p564 = pneg %p177
        %p565 = pneg %p201
        %p566 = pneg %p198
        %p567 = pneg %p222
        %p568 = pneg %p219
        %p569 = pneg %p243
        %p570 = pneg %p240
        %p571 = pneg %p264
        %p572 = pneg %p261
        %p573 = pneg %p285
        %p574 = pneg %p282
        %p575 = pneg %p306
        %p576 = pneg %p303
        %p577 = pneg %p327
        %p578 = pneg %p324
        %p579 = pneg %p353
        %p580 = pneg %p350
        %s581 = sand.u32 %s340, 1
        %s582 = scalar_lea.sflag [#allocation8], %s581
        %s583 = sand.u32 %s340, 1
        %s584 = scalar_lea.vmem [#allocation20], %s583
        %p585 = scmp.lt.s32.totalorder %s33, 1
        %s586 = scalar_select %p585, %s33, 1
        %s587 = smul.addr %s586, 32
        %s588 = smul.addr %s587, 8
        %s589 = scalar_lea.vmem %s0, %s588
        %v590 = vld [vmem:[%s589] sm:$0xff]
        %v591 = vld [vmem:[%s589 + $0x8] sm:$0xff]
        %v592 = vld [vmem:[%s589 + $0x10] sm:$0xff]
        %v593 = vld [vmem:[%s589 + $0x18] sm:$0xff]
        %v594 = vld [vmem:[%s589 + $0x20] sm:$0xff]
        %v595 = vld [vmem:[%s589 + $0x28] sm:$0xff]
        %v596 = vld [vmem:[%s589 + $0x30] sm:$0xff]
        %v597 = vld [vmem:[%s589 + $0x38] sm:$0xff]
        %v598 = vld [vmem:[%s589 + $0x40] sm:$0xff]
        %v599 = vld [vmem:[%s589 + $0x48] sm:$0xff]
        %v600 = vld [vmem:[%s589 + $0x50] sm:$0xff]
        %v601 = vld [vmem:[%s589 + $0x58] sm:$0xff]
        %v602 = vld [vmem:[%s589 + $0x60] sm:$0xff]
        %v603 = vld [vmem:[%s589 + $0x68] sm:$0xff]
        %v604 = vld [vmem:[%s589 + $0x70] sm:$0xff]
        %v605 = vld [vmem:[%s589 + $0x78] sm:$0xff]
        %v606 = vld [vmem:[%s589 + $0x80] sm:$0xff]
        %v607 = vld [vmem:[%s589 + $0x88] sm:$0xff]
        %v608 = vld [vmem:[%s589 + $0x90] sm:$0xff]
        %v609 = vld [vmem:[%s589 + $0x98] sm:$0xff]
        %v610 = vld [vmem:[%s589 + $0xa0] sm:$0xff]
        %v611 = vld [vmem:[%s589 + $0xa8] sm:$0xff]
        %v612 = vld [vmem:[%s589 + $0xb0] sm:$0xff]
        %v613 = vld [vmem:[%s589 + $0xb8] sm:$0xff]
        %v614 = vld [vmem:[%s589 + $0xc0] sm:$0xff]
        %v615 = vld [vmem:[%s589 + $0xc8] sm:$0xff]
        %v616 = vld [vmem:[%s589 + $0xd0] sm:$0xff]
        %v617 = vld [vmem:[%s589 + $0xd8] sm:$0xff]
        %v618 = vld [vmem:[%s589 + $0xe0] sm:$0xff]
        %v619 = vld [vmem:[%s589 + $0xe8] sm:$0xff]
        %v620 = vld [vmem:[%s589 + $0xf0] sm:$0xff]
        %v621 = vld [vmem:[%s589 + $0xf8] sm:$0xff]
        %vm622 = vcmask 31744
        %623 = vst.msk [vmem:[#allocation2] sm:$0xff] %vm622, 0.0
        %624 = vst.msk [vmem:[#allocation2 + $0x8] sm:$0xff] %vm622, 0.0
        %625 = vst.msk [vmem:[#allocation2 + $0x10] sm:$0xff] %vm622, 0.0
        %626 = vst.msk [vmem:[#allocation2 + $0x18] sm:$0xff] %vm622, 0.0
        %627 = vst.msk [vmem:[#allocation2 + $0x20] sm:$0xff] %vm622, 0.0
        %628 = vst.msk [vmem:[#allocation2 + $0x28] sm:$0xff] %vm622, 0.0
        %629 = vst.msk [vmem:[#allocation2 + $0x30] sm:$0xff] %vm622, 0.0
        %630 = vst.msk [vmem:[#allocation2 + $0x38] sm:$0xff] %vm622, 0.0
        %631 = vst.msk [vmem:[#allocation2 + $0x40] sm:$0xff] %vm622, 0.0
        %632 = vst.msk [vmem:[#allocation2 + $0x48] sm:$0xff] %vm622, 0.0
        %633 = vst.msk [vmem:[#allocation2 + $0x50] sm:$0xff] %vm622, 0.0
        %634 = vst.msk [vmem:[#allocation2 + $0x58] sm:$0xff] %vm622, 0.0
        %635 = vst.msk [vmem:[#allocation2 + $0x60] sm:$0xff] %vm622, 0.0
        %636 = vst.msk [vmem:[#allocation2 + $0x68] sm:$0xff] %vm622, 0.0
        %637 = vst.msk [vmem:[#allocation2 + $0x70] sm:$0xff] %vm622, 0.0
        %638 = vst.msk [vmem:[#allocation2 + $0x78] sm:$0xff] %vm622, 0.0
        %639 = vst.msk [vmem:[#allocation2 + $0x80] sm:$0xff] %vm622, 0.0
        %640 = vst.msk [vmem:[#allocation2 + $0x88] sm:$0xff] %vm622, 0.0
        %641 = vst.msk [vmem:[#allocation2 + $0x90] sm:$0xff] %vm622, 0.0
        %642 = vst.msk [vmem:[#allocation2 + $0x98] sm:$0xff] %vm622, 0.0
        %643 = vst.msk [vmem:[#allocation2 + $0xa0] sm:$0xff] %vm622, 0.0
        %644 = vst.msk [vmem:[#allocation2 + $0xa8] sm:$0xff] %vm622, 0.0
        %645 = vst.msk [vmem:[#allocation2 + $0xb0] sm:$0xff] %vm622, 0.0
        %646 = vst.msk [vmem:[#allocation2 + $0xb8] sm:$0xff] %vm622, 0.0
        %647 = vst.msk [vmem:[#allocation2 + $0xc0] sm:$0xff] %vm622, 0.0
        %648 = vst.msk [vmem:[#allocation2 + $0xc8] sm:$0xff] %vm622, 0.0
        %649 = vst.msk [vmem:[#allocation2 + $0xd0] sm:$0xff] %vm622, 0.0
        %650 = vst.msk [vmem:[#allocation2 + $0xd8] sm:$0xff] %vm622, 0.0
        %651 = vst.msk [vmem:[#allocation2 + $0xe0] sm:$0xff] %vm622, 0.0
        %652 = vst.msk [vmem:[#allocation2 + $0xe8] sm:$0xff] %vm622, 0.0
        %653 = vst.msk [vmem:[#allocation2 + $0xf0] sm:$0xff] %vm622, 0.0
        %654 = vst.msk [vmem:[#allocation2 + $0xf8] sm:$0xff] %vm622, 0.0
        %655 = vst.msk [vmem:[#allocation2 + $0x100] sm:$0xff] %vm622, 0.0
        %656 = vst.msk [vmem:[#allocation2 + $0x108] sm:$0xff] %vm622, 0.0
        %657 = vst.msk [vmem:[#allocation2 + $0x110] sm:$0xff] %vm622, 0.0
        %658 = vst.msk [vmem:[#allocation2 + $0x118] sm:$0xff] %vm622, 0.0
        %659 = vst.msk [vmem:[#allocation2 + $0x120] sm:$0xff] %vm622, 0.0
        %660 = vst.msk [vmem:[#allocation2 + $0x128] sm:$0xff] %vm622, 0.0
        %661 = vst.msk [vmem:[#allocation2 + $0x18] sm:$0xff] %vm622, %v590
        %662 = vst.msk [vmem:[#allocation2 + $0x20] sm:$0xff] %vm622, %v591
        %663 = vst.msk [vmem:[#allocation2 + $0x28] sm:$0xff] %vm622, %v592
        %664 = vst.msk [vmem:[#allocation2 + $0x30] sm:$0xff] %vm622, %v593
        %665 = vst.msk [vmem:[#allocation2 + $0x38] sm:$0xff] %vm622, %v594
        %666 = vst.msk [vmem:[#allocation2 + $0x40] sm:$0xff] %vm622, %v595
        %667 = vst.msk [vmem:[#allocation2 + $0x48] sm:$0xff] %vm622, %v596
        %668 = vst.msk [vmem:[#allocation2 + $0x50] sm:$0xff] %vm622, %v597
        %669 = vst.msk [vmem:[#allocation2 + $0x58] sm:$0xff] %vm622, %v598
        %670 = vst.msk [vmem:[#allocation2 + $0x60] sm:$0xff] %vm622, %v599
        %671 = vst.msk [vmem:[#allocation2 + $0x68] sm:$0xff] %vm622, %v600
        %672 = vst.msk [vmem:[#allocation2 + $0x70] sm:$0xff] %vm622, %v601
        %673 = vst.msk [vmem:[#allocation2 + $0x78] sm:$0xff] %vm622, %v602
        %674 = vst.msk [vmem:[#allocation2 + $0x80] sm:$0xff] %vm622, %v603
        %675 = vst.msk [vmem:[#allocation2 + $0x88] sm:$0xff] %vm622, %v604
        %676 = vst.msk [vmem:[#allocation2 + $0x90] sm:$0xff] %vm622, %v605
        %677 = vst.msk [vmem:[#allocation2 + $0x98] sm:$0xff] %vm622, %v606
        %678 = vst.msk [vmem:[#allocation2 + $0xa0] sm:$0xff] %vm622, %v607
        %679 = vst.msk [vmem:[#allocation2 + $0xa8] sm:$0xff] %vm622, %v608
        %680 = vst.msk [vmem:[#allocation2 + $0xb0] sm:$0xff] %vm622, %v609
        %681 = vst.msk [vmem:[#allocation2 + $0xb8] sm:$0xff] %vm622, %v610
        %682 = vst.msk [vmem:[#allocation2 + $0xc0] sm:$0xff] %vm622, %v611
        %683 = vst.msk [vmem:[#allocation2 + $0xc8] sm:$0xff] %vm622, %v612
        %684 = vst.msk [vmem:[#allocation2 + $0xd0] sm:$0xff] %vm622, %v613
        %685 = vst.msk [vmem:[#allocation2 + $0xd8] sm:$0xff] %vm622, %v614
        %686 = vst.msk [vmem:[#allocation2 + $0xe0] sm:$0xff] %vm622, %v615
        %687 = vst.msk [vmem:[#allocation2 + $0xe8] sm:$0xff] %vm622, %v616
        %688 = vst.msk [vmem:[#allocation2 + $0xf0] sm:$0xff] %vm622, %v617
        %689 = vst.msk [vmem:[#allocation2 + $0xf8] sm:$0xff] %vm622, %v618
        %690 = vst.msk [vmem:[#allocation2 + $0x100] sm:$0xff] %vm622, %v619
        %691 = vst.msk [vmem:[#allocation2 + $0x108] sm:$0xff] %vm622, %v620
        %692 = vst.msk [vmem:[#allocation2 + $0x110] sm:$0xff] %vm622, %v621
        %v693 = vlaneseq
        %v694 = vshrl.u32 %v693, 7
        %v695 = vadd.s32 %v694, 8
        %v696 = vadd.s32 %v694, 16
        %v697 = vadd.s32 %v694, 24
        %v698 = vadd.s32 %v694, 32
        %v699 = vadd.s32 %v694, 40
        %v700 = vadd.s32 %v694, 48
        %v701 = vadd.s32 %v694, 56
        %v702 = vadd.s32 %v694, 64
        %v703 = vadd.s32 %v694, 72
        %v704 = vadd.s32 %v694, 80
        %v705 = vadd.s32 %v694, 88
        %v706 = vadd.s32 %v694, 96
        %v707 = vadd.s32 %v694, 104
        %v708 = vadd.s32 %v694, 112
        %v709 = vadd.s32 %v694, 120
        %v710 = vadd.s32 %v694, 128
        %v711 = vadd.s32 %v694, 136
        %v712 = vadd.s32 %v694, 144
        %v713 = vadd.s32 %v694, 152
        %v714 = vadd.s32 %v694, 160
        %v715 = vadd.s32 %v694, 168
        %v716 = vadd.s32 %v694, 176
        %v717 = vadd.s32 %v694, 184
        %v718 = vadd.s32 %v694, 192
        %v719 = vadd.s32 %v694, 200
        %v720 = vadd.s32 %v694, 208
        %v721 = vadd.s32 %v694, 216
        %v722 = vadd.s32 %v694, 224
        %v723 = vadd.s32 %v694, 232
        %v724 = vadd.s32 %v694, 240
        %v725 = vadd.s32 %v694, 248
        %vm726 = vcmp.lt.s32.totalorder %v694, 0
        %v727 = vsub.s32 0, %v694
        %v728 = vsel %vm726, %v727, %v694
        %v729 = vshrl.u32 %v728, 4
        %v730 = vand.u32 %v728, 15
        %v731 = vsub.s32 0, %v730
        %v732 = vsel %vm726, %v731, %v730
        %vm733 = vcmp.lt.s32.totalorder %v695, 0
        %v734 = vsub.s32 0, %v695
        %v735 = vsel %vm733, %v734, %v695
        %v736 = vshrl.u32 %v735, 4
        %v737 = vand.u32 %v735, 15
        %v738 = vsub.s32 0, %v737
        %v739 = vsel %vm733, %v738, %v737
        %vm740 = vcmp.lt.s32.totalorder %v696, 0
        %v741 = vsub.s32 0, %v696
        %v742 = vsel %vm740, %v741, %v696
        %v743 = vshrl.u32 %v742, 4
        %v744 = vand.u32 %v742, 15
        %v745 = vsub.s32 0, %v744
        %v746 = vsel %vm740, %v745, %v744
        %vm747 = vcmp.lt.s32.totalorder %v697, 0
        %v748 = vsub.s32 0, %v697
        %v749 = vsel %vm747, %v748, %v697
        %v750 = vshrl.u32 %v749, 4
        %v751 = vand.u32 %v749, 15
        %v752 = vsub.s32 0, %v751
        %v753 = vsel %vm747, %v752, %v751
        %vm754 = vcmp.lt.s32.totalorder %v698, 0
        %v755 = vsub.s32 0, %v698
        %v756 = vsel %vm754, %v755, %v698
        %v757 = vshrl.u32 %v756, 4
        %v758 = vand.u32 %v756, 15
        %v759 = vsub.s32 0, %v758
        %v760 = vsel %vm754, %v759, %v758
        %vm761 = vcmp.lt.s32.totalorder %v699, 0
        %v762 = vsub.s32 0, %v699
        %v763 = vsel %vm761, %v762, %v699
        %v764 = vshrl.u32 %v763, 4
        %v765 = vand.u32 %v763, 15
        %v766 = vsub.s32 0, %v765
        %v767 = vsel %vm761, %v766, %v765
        %vm768 = vcmp.lt.s32.totalorder %v700, 0
        %v769 = vsub.s32 0, %v700
        %v770 = vsel %vm768, %v769, %v700
        %v771 = vshrl.u32 %v770, 4
        %v772 = vand.u32 %v770, 15
        %v773 = vsub.s32 0, %v772
        %v774 = vsel %vm768, %v773, %v772
        %vm775 = vcmp.lt.s32.totalorder %v701, 0
        %v776 = vsub.s32 0, %v701
        %v777 = vsel %vm775, %v776, %v701
        %v778 = vshrl.u32 %v777, 4
        %v779 = vand.u32 %v777, 15
        %v780 = vsub.s32 0, %v779
        %v781 = vsel %vm775, %v780, %v779
        %vm782 = vcmp.lt.s32.totalorder %v702, 0
        %v783 = vsub.s32 0, %v702
        %v784 = vsel %vm782, %v783, %v702
        %v785 = vshrl.u32 %v784, 4
        %v786 = vand.u32 %v784, 15
        %v787 = vsub.s32 0, %v786
        %v788 = vsel %vm782, %v787, %v786
        %vm789 = vcmp.lt.s32.totalorder %v703, 0
        %v790 = vsub.s32 0, %v703
        %v791 = vsel %vm789, %v790, %v703
        %v792 = vshrl.u32 %v791, 4
        %v793 = vand.u32 %v791, 15
        %v794 = vsub.s32 0, %v793
        %v795 = vsel %vm789, %v794, %v793
        %vm796 = vcmp.lt.s32.totalorder %v704, 0
        %v797 = vsub.s32 0, %v704
        %v798 = vsel %vm796, %v797, %v704
        %v799 = vshrl.u32 %v798, 4
        %v800 = vand.u32 %v798, 15
        %v801 = vsub.s32 0, %v800
        %v802 = vsel %vm796, %v801, %v800
        %vm803 = vcmp.lt.s32.totalorder %v705, 0
        %v804 = vsub.s32 0, %v705
        %v805 = vsel %vm803, %v804, %v705
        %v806 = vshrl.u32 %v805, 4
        %v807 = vand.u32 %v805, 15
        %v808 = vsub.s32 0, %v807
        %v809 = vsel %vm803, %v808, %v807
        %vm810 = vcmp.lt.s32.totalorder %v706, 0
        %v811 = vsub.s32 0, %v706
        %v812 = vsel %vm810, %v811, %v706
        %v813 = vshrl.u32 %v812, 4
        %v814 = vand.u32 %v812, 15
        %v815 = vsub.s32 0, %v814
        %v816 = vsel %vm810, %v815, %v814
        %vm817 = vcmp.lt.s32.totalorder %v707, 0
        %v818 = vsub.s32 0, %v707
        %v819 = vsel %vm817, %v818, %v707
        %v820 = vshrl.u32 %v819, 4
        %v821 = vand.u32 %v819, 15
        %v822 = vsub.s32 0, %v821
        %v823 = vsel %vm817, %v822, %v821
        %vm824 = vcmp.lt.s32.totalorder %v708, 0
        %v825 = vsub.s32 0, %v708
        %v826 = vsel %vm824, %v825, %v708
        %v827 = vshrl.u32 %v826, 4
        %v828 = vand.u32 %v826, 15
        %v829 = vsub.s32 0, %v828
        %v830 = vsel %vm824, %v829, %v828
        %vm831 = vcmp.lt.s32.totalorder %v709, 0
        %v832 = vsub.s32 0, %v709
        %v833 = vsel %vm831, %v832, %v709
        %v834 = vshrl.u32 %v833, 4
        %v835 = vand.u32 %v833, 15
        %v836 = vsub.s32 0, %v835
        %v837 = vsel %vm831, %v836, %v835
        %vm838 = vcmp.lt.s32.totalorder %v710, 0
        %v839 = vsub.s32 0, %v710
        %v840 = vsel %vm838, %v839, %v710
        %v841 = vshrl.u32 %v840, 4
        %v842 = vand.u32 %v840, 15
        %v843 = vsub.s32 0, %v842
        %v844 = vsel %vm838, %v843, %v842
        %vm845 = vcmp.lt.s32.totalorder %v711, 0
        %v846 = vsub.s32 0, %v711
        %v847 = vsel %vm845, %v846, %v711
        %v848 = vshrl.u32 %v847, 4
        %v849 = vand.u32 %v847, 15
        %v850 = vsub.s32 0, %v849
        %v851 = vsel %vm845, %v850, %v849
        %vm852 = vcmp.lt.s32.totalorder %v712, 0
        %v853 = vsub.s32 0, %v712
        %v854 = vsel %vm852, %v853, %v712
        %v855 = vshrl.u32 %v854, 4
        %v856 = vand.u32 %v854, 15
        %v857 = vsub.s32 0, %v856
        %v858 = vsel %vm852, %v857, %v856
        %vm859 = vcmp.lt.s32.totalorder %v713, 0
        %v860 = vsub.s32 0, %v713
        %v861 = vsel %vm859, %v860, %v713
        %v862 = vshrl.u32 %v861, 4
        %v863 = vand.u32 %v861, 15
        %v864 = vsub.s32 0, %v863
        %v865 = vsel %vm859, %v864, %v863
        %vm866 = vcmp.lt.s32.totalorder %v714, 0
        %v867 = vsub.s32 0, %v714
        %v868 = vsel %vm866, %v867, %v714
        %v869 = vshrl.u32 %v868, 4
        %v870 = vand.u32 %v868, 15
        %v871 = vsub.s32 0, %v870
        %v872 = vsel %vm866, %v871, %v870
        %vm873 = vcmp.lt.s32.totalorder %v715, 0
        %v874 = vsub.s32 0, %v715
        %v875 = vsel %vm873, %v874, %v715
        %v876 = vshrl.u32 %v875, 4
        %v877 = vand.u32 %v875, 15
        %v878 = vsub.s32 0, %v877
        %v879 = vsel %vm873, %v878, %v877
        %vm880 = vcmp.lt.s32.totalorder %v716, 0
        %v881 = vsub.s32 0, %v716
        %v882 = vsel %vm880, %v881, %v716
        %v883 = vshrl.u32 %v882, 4
        %v884 = vand.u32 %v882, 15
        %v885 = vsub.s32 0, %v884
        %v886 = vsel %vm880, %v885, %v884
        %vm887 = vcmp.lt.s32.totalorder %v717, 0
        %v888 = vsub.s32 0, %v717
        %v889 = vsel %vm887, %v888, %v717
        %v890 = vshrl.u32 %v889, 4
        %v891 = vand.u32 %v889, 15
        %v892 = vsub.s32 0, %v891
        %v893 = vsel %vm887, %v892, %v891
        %vm894 = vcmp.lt.s32.totalorder %v718, 0
        %v895 = vsub.s32 0, %v718
        %v896 = vsel %vm894, %v895, %v718
        %v897 = vshrl.u32 %v896, 4
        %v898 = vand.u32 %v896, 15
        %v899 = vsub.s32 0, %v898
        %v900 = vsel %vm894, %v899, %v898
        %vm901 = vcmp.lt.s32.totalorder %v719, 0
        %v902 = vsub.s32 0, %v719
        %v903 = vsel %vm901, %v902, %v719
        %v904 = vshrl.u32 %v903, 4
        %v905 = vand.u32 %v903, 15
        %v906 = vsub.s32 0, %v905
        %v907 = vsel %vm901, %v906, %v905
        %vm908 = vcmp.lt.s32.totalorder %v720, 0
        %v909 = vsub.s32 0, %v720
        %v910 = vsel %vm908, %v909, %v720
        %v911 = vshrl.u32 %v910, 4
        %v912 = vand.u32 %v910, 15
        %v913 = vsub.s32 0, %v912
        %v914 = vsel %vm908, %v913, %v912
        %vm915 = vcmp.lt.s32.totalorder %v721, 0
        %v916 = vsub.s32 0, %v721
        %v917 = vsel %vm915, %v916, %v721
        %v918 = vshrl.u32 %v917, 4
        %v919 = vand.u32 %v917, 15
        %v920 = vsub.s32 0, %v919
        %v921 = vsel %vm915, %v920, %v919
        %vm922 = vcmp.lt.s32.totalorder %v722, 0
        %v923 = vsub.s32 0, %v722
        %v924 = vsel %vm922, %v923, %v722
        %v925 = vshrl.u32 %v924, 4
        %v926 = vand.u32 %v924, 15
        %v927 = vsub.s32 0, %v926
        %v928 = vsel %vm922, %v927, %v926
        %vm929 = vcmp.lt.s32.totalorder %v723, 0
        %v930 = vsub.s32 0, %v723
        %v931 = vsel %vm929, %v930, %v723
        %v932 = vshrl.u32 %v931, 4
        %v933 = vand.u32 %v931, 15
        %v934 = vsub.s32 0, %v933
        %v935 = vsel %vm929, %v934, %v933
        %vm936 = vcmp.lt.s32.totalorder %v724, 0
        %v937 = vsub.s32 0, %v724
        %v938 = vsel %vm936, %v937, %v724
        %v939 = vshrl.u32 %v938, 4
        %v940 = vand.u32 %v938, 15
        %v941 = vsub.s32 0, %v940
        %v942 = vsel %vm936, %v941, %v940
        %vm943 = vcmp.lt.s32.totalorder %v725, 0
        %v944 = vsub.s32 0, %v725
        %v945 = vsel %vm943, %v944, %v725
        %v946 = vshrl.u32 %v945, 4
        %v947 = vand.u32 %v945, 15
        %v948 = vsub.s32 0, %v947
        %v949 = vsel %vm943, %v948, %v947
        %vm950 = vcmp.ne.s32.totalorder %v732, 0
        %vm951 = vcmp.ne.s32.totalorder %v739, 0
        %vm952 = vcmp.ne.s32.totalorder %v746, 0
        %vm953 = vcmp.ne.s32.totalorder %v753, 0
        %vm954 = vcmp.ne.s32.totalorder %v760, 0
        %vm955 = vcmp.ne.s32.totalorder %v767, 0
        %vm956 = vcmp.ne.s32.totalorder %v774, 0
        %vm957 = vcmp.ne.s32.totalorder %v781, 0
        %vm958 = vcmp.ne.s32.totalorder %v788, 0
        %vm959 = vcmp.ne.s32.totalorder %v795, 0
        %vm960 = vcmp.ne.s32.totalorder %v802, 0
        %vm961 = vcmp.ne.s32.totalorder %v809, 0
        %vm962 = vcmp.ne.s32.totalorder %v816, 0
        %vm963 = vcmp.ne.s32.totalorder %v823, 0
        %vm964 = vcmp.ne.s32.totalorder %v830, 0
        %vm965 = vcmp.ne.s32.totalorder %v837, 0
        %vm966 = vcmp.ne.s32.totalorder %v844, 0
        %vm967 = vcmp.ne.s32.totalorder %v851, 0
        %vm968 = vcmp.ne.s32.totalorder %v858, 0
        %vm969 = vcmp.ne.s32.totalorder %v865, 0
        %vm970 = vcmp.ne.s32.totalorder %v872, 0
        %vm971 = vcmp.ne.s32.totalorder %v879, 0
        %vm972 = vcmp.ne.s32.totalorder %v886, 0
        %vm973 = vcmp.ne.s32.totalorder %v893, 0
        %vm974 = vcmp.ne.s32.totalorder %v900, 0
        %vm975 = vcmp.ne.s32.totalorder %v907, 0
        %vm976 = vcmp.ne.s32.totalorder %v914, 0
        %vm977 = vcmp.ne.s32.totalorder %v921, 0
        %vm978 = vcmp.ne.s32.totalorder %v928, 0
        %vm979 = vcmp.ne.s32.totalorder %v935, 0
        %vm980 = vcmp.ne.s32.totalorder %v942, 0
        %vm981 = vcmp.ne.s32.totalorder %v949, 0
        %vm982 = vcmp.lt.s32.totalorder %v732, 0
        %vm983 = vcmp.lt.s32.totalorder %v739, 0
        %vm984 = vcmp.lt.s32.totalorder %v746, 0
        %vm985 = vcmp.lt.s32.totalorder %v753, 0
        %vm986 = vcmp.lt.s32.totalorder %v760, 0
        %vm987 = vcmp.lt.s32.totalorder %v767, 0
        %vm988 = vcmp.lt.s32.totalorder %v774, 0
        %vm989 = vcmp.lt.s32.totalorder %v781, 0
        %vm990 = vcmp.lt.s32.totalorder %v788, 0
        %vm991 = vcmp.lt.s32.totalorder %v795, 0
        %vm992 = vcmp.lt.s32.totalorder %v802, 0
        %vm993 = vcmp.lt.s32.totalorder %v809, 0
        %vm994 = vcmp.lt.s32.totalorder %v816, 0
        %vm995 = vcmp.lt.s32.totalorder %v823, 0
        %vm996 = vcmp.lt.s32.totalorder %v830, 0
        %vm997 = vcmp.lt.s32.totalorder %v837, 0
        %vm998 = vcmp.lt.s32.totalorder %v844, 0
        %vm999 = vcmp.lt.s32.totalorder %v851, 0
        %vm1000 = vcmp.lt.s32.totalorder %v858, 0
        %vm1001 = vcmp.lt.s32.totalorder %v865, 0
        %vm1002 = vcmp.lt.s32.totalorder %v872, 0
        %vm1003 = vcmp.lt.s32.totalorder %v879, 0
        %vm1004 = vcmp.lt.s32.totalorder %v886, 0
        %vm1005 = vcmp.lt.s32.totalorder %v893, 0
        %vm1006 = vcmp.lt.s32.totalorder %v900, 0
        %vm1007 = vcmp.lt.s32.totalorder %v907, 0
        %vm1008 = vcmp.lt.s32.totalorder %v914, 0
        %vm1009 = vcmp.lt.s32.totalorder %v921, 0
        %vm1010 = vcmp.lt.s32.totalorder %v928, 0
        %vm1011 = vcmp.lt.s32.totalorder %v935, 0
        %vm1012 = vcmp.lt.s32.totalorder %v942, 0
        %vm1013 = vcmp.lt.s32.totalorder %v949, 0
        %vm1014 = vmand %vm982, %vm950
        %vm1015 = vmand %vm983, %vm951
        %vm1016 = vmand %vm984, %vm952
        %vm1017 = vmand %vm985, %vm953
        %vm1018 = vmand %vm986, %vm954
        %vm1019 = vmand %vm987, %vm955
        %vm1020 = vmand %vm988, %vm956
        %vm1021 = vmand %vm989, %vm957
        %vm1022 = vmand %vm990, %vm958
        %vm1023 = vmand %vm991, %vm959
        %vm1024 = vmand %vm992, %vm960
        %vm1025 = vmand %vm993, %vm961
        %vm1026 = vmand %vm994, %vm962
        %vm1027 = vmand %vm995, %vm963
        %vm1028 = vmand %vm996, %vm964
        %vm1029 = vmand %vm997, %vm965
        %vm1030 = vmand %vm998, %vm966
        %vm1031 = vmand %vm999, %vm967
        %vm1032 = vmand %vm1000, %vm968
        %vm1033 = vmand %vm1001, %vm969
        %vm1034 = vmand %vm1002, %vm970
        %vm1035 = vmand %vm1003, %vm971
        %vm1036 = vmand %vm1004, %vm972
        %vm1037 = vmand %vm1005, %vm973
        %vm1038 = vmand %vm1006, %vm974
        %vm1039 = vmand %vm1007, %vm975
        %vm1040 = vmand %vm1008, %vm976
        %vm1041 = vmand %vm1009, %vm977
        %vm1042 = vmand %vm1010, %vm978
        %vm1043 = vmand %vm1011, %vm979
        %vm1044 = vmand %vm1012, %vm980
        %vm1045 = vmand %vm1013, %vm981
        %v1046 = vadd.s32 %v732, 16
        %v1047 = vadd.s32 %v739, 16
        %v1048 = vadd.s32 %v746, 16
        %v1049 = vadd.s32 %v753, 16
        %v1050 = vadd.s32 %v760, 16
        %v1051 = vadd.s32 %v767, 16
        %v1052 = vadd.s32 %v774, 16
        %v1053 = vadd.s32 %v781, 16
        %v1054 = vadd.s32 %v788, 16
        %v1055 = vadd.s32 %v795, 16
        %v1056 = vadd.s32 %v802, 16
        %v1057 = vadd.s32 %v809, 16
        %v1058 = vadd.s32 %v816, 16
        %v1059 = vadd.s32 %v823, 16
        %v1060 = vadd.s32 %v830, 16
        %v1061 = vadd.s32 %v837, 16
        %v1062 = vadd.s32 %v844, 16
        %v1063 = vadd.s32 %v851, 16
        %v1064 = vadd.s32 %v858, 16
        %v1065 = vadd.s32 %v865, 16
        %v1066 = vadd.s32 %v872, 16
        %v1067 = vadd.s32 %v879, 16
        %v1068 = vadd.s32 %v886, 16
        %v1069 = vadd.s32 %v893, 16
        %v1070 = vadd.s32 %v900, 16
        %v1071 = vadd.s32 %v907, 16
        %v1072 = vadd.s32 %v914, 16
        %v1073 = vadd.s32 %v921, 16
        %v1074 = vadd.s32 %v928, 16
        %v1075 = vadd.s32 %v935, 16
        %v1076 = vadd.s32 %v942, 16
        %v1077 = vadd.s32 %v949, 16
        %v1078 = vsel %vm1014, %v1046, %v732
        %v1079 = vsel %vm1015, %v1047, %v739
        %v1080 = vsel %vm1016, %v1048, %v746
        %v1081 = vsel %vm1017, %v1049, %v753
        %v1082 = vsel %vm1018, %v1050, %v760
        %v1083 = vsel %vm1019, %v1051, %v767
        %v1084 = vsel %vm1020, %v1052, %v774
        %v1085 = vsel %vm1021, %v1053, %v781
        %v1086 = vsel %vm1022, %v1054, %v788
        %v1087 = vsel %vm1023, %v1055, %v795
        %v1088 = vsel %vm1024, %v1056, %v802
        %v1089 = vsel %vm1025, %v1057, %v809
        %v1090 = vsel %vm1026, %v1058, %v816
        %v1091 = vsel %vm1027, %v1059, %v823
        %v1092 = vsel %vm1028, %v1060, %v830
        %v1093 = vsel %vm1029, %v1061, %v837
        %v1094 = vsel %vm1030, %v1062, %v844
        %v1095 = vsel %vm1031, %v1063, %v851
        %v1096 = vsel %vm1032, %v1064, %v858
        %v1097 = vsel %vm1033, %v1065, %v865
        %v1098 = vsel %vm1034, %v1066, %v872
        %v1099 = vsel %vm1035, %v1067, %v879
        %v1100 = vsel %vm1036, %v1068, %v886
        %v1101 = vsel %vm1037, %v1069, %v893
        %v1102 = vsel %vm1038, %v1070, %v900
        %v1103 = vsel %vm1039, %v1071, %v907
        %v1104 = vsel %vm1040, %v1072, %v914
        %v1105 = vsel %vm1041, %v1073, %v921
        %v1106 = vsel %vm1042, %v1074, %v928
        %v1107 = vsel %vm1043, %v1075, %v935
        %v1108 = vsel %vm1044, %v1076, %v942
        %v1109 = vsel %vm1045, %v1077, %v949
        %vm1110 = vcmp.ge.s32.totalorder %v1078, 1
        %vm1111 = vcmp.ge.s32.totalorder %v1079, 1
        %vm1112 = vcmp.ge.s32.totalorder %v1080, 1
        %vm1113 = vcmp.ge.s32.totalorder %v1081, 1
        %vm1114 = vcmp.ge.s32.totalorder %v1082, 1
        %vm1115 = vcmp.ge.s32.totalorder %v1083, 1
        %vm1116 = vcmp.ge.s32.totalorder %v1084, 1
        %vm1117 = vcmp.ge.s32.totalorder %v1085, 1
        %vm1118 = vcmp.ge.s32.totalorder %v1086, 1
        %vm1119 = vcmp.ge.s32.totalorder %v1087, 1
        %vm1120 = vcmp.ge.s32.totalorder %v1088, 1
        %vm1121 = vcmp.ge.s32.totalorder %v1089, 1
        %vm1122 = vcmp.ge.s32.totalorder %v1090, 1
        %vm1123 = vcmp.ge.s32.totalorder %v1091, 1
        %vm1124 = vcmp.ge.s32.totalorder %v1092, 1
        %vm1125 = vcmp.ge.s32.totalorder %v1093, 1
        %vm1126 = vcmp.ge.s32.totalorder %v1094, 1
        %vm1127 = vcmp.ge.s32.totalorder %v1095, 1
        %vm1128 = vcmp.ge.s32.totalorder %v1096, 1
        %vm1129 = vcmp.ge.s32.totalorder %v1097, 1
        %vm1130 = vcmp.ge.s32.totalorder %v1098, 1
        %vm1131 = vcmp.ge.s32.totalorder %v1099, 1
        %vm1132 = vcmp.ge.s32.totalorder %v1100, 1
        %vm1133 = vcmp.ge.s32.totalorder %v1101, 1
        %vm1134 = vcmp.ge.s32.totalorder %v1102, 1
        %vm1135 = vcmp.ge.s32.totalorder %v1103, 1
        %vm1136 = vcmp.ge.s32.totalorder %v1104, 1
        %vm1137 = vcmp.ge.s32.totalorder %v1105, 1
        %vm1138 = vcmp.ge.s32.totalorder %v1106, 1
        %vm1139 = vcmp.ge.s32.totalorder %v1107, 1
        %vm1140 = vcmp.ge.s32.totalorder %v1108, 1
        %vm1141 = vcmp.ge.s32.totalorder %v1109, 1
        %v1142 = vsel %vm1110, 1.0, 0.0
        %v1143 = vsel %vm1111, 1.0, 0.0
        %v1144 = vsel %vm1112, 1.0, 0.0
        %v1145 = vsel %vm1113, 1.0, 0.0
        %v1146 = vsel %vm1114, 1.0, 0.0
        %v1147 = vsel %vm1115, 1.0, 0.0
        %v1148 = vsel %vm1116, 1.0, 0.0
        %v1149 = vsel %vm1117, 1.0, 0.0
        %v1150 = vsel %vm1118, 1.0, 0.0
        %v1151 = vsel %vm1119, 1.0, 0.0
        %v1152 = vsel %vm1120, 1.0, 0.0
        %v1153 = vsel %vm1121, 1.0, 0.0
        %v1154 = vsel %vm1122, 1.0, 0.0
        %v1155 = vsel %vm1123, 1.0, 0.0
        %v1156 = vsel %vm1124, 1.0, 0.0
        %v1157 = vsel %vm1125, 1.0, 0.0
        %v1158 = vsel %vm1126, 1.0, 0.0
        %v1159 = vsel %vm1127, 1.0, 0.0
        %v1160 = vsel %vm1128, 1.0, 0.0
        %v1161 = vsel %vm1129, 1.0, 0.0
        %v1162 = vsel %vm1130, 1.0, 0.0
        %v1163 = vsel %vm1131, 1.0, 0.0
        %v1164 = vsel %vm1132, 1.0, 0.0
        %v1165 = vsel %vm1133, 1.0, 0.0
        %v1166 = vsel %vm1134, 1.0, 0.0
        %v1167 = vsel %vm1135, 1.0, 0.0
        %v1168 = vsel %vm1136, 1.0, 0.0
        %v1169 = vsel %vm1137, 1.0, 0.0
        %v1170 = vsel %vm1138, 1.0, 0.0
        %v1171 = vsel %vm1139, 1.0, 0.0
        %v1172 = vsel %vm1140, 1.0, 0.0
        %v1173 = vsel %vm1141, 1.0, 0.0
        %vm1174 = vcmp.lt.s32.totalorder %v1078, 15
        %vm1175 = vcmp.lt.s32.totalorder %v1079, 15
        %vm1176 = vcmp.lt.s32.totalorder %v1080, 15
        %vm1177 = vcmp.lt.s32.totalorder %v1081, 15
        %vm1178 = vcmp.lt.s32.totalorder %v1082, 15
        %vm1179 = vcmp.lt.s32.totalorder %v1083, 15
        %vm1180 = vcmp.lt.s32.totalorder %v1084, 15
        %vm1181 = vcmp.lt.s32.totalorder %v1085, 15
        %vm1182 = vcmp.lt.s32.totalorder %v1086, 15
        %vm1183 = vcmp.lt.s32.totalorder %v1087, 15
        %vm1184 = vcmp.lt.s32.totalorder %v1088, 15
        %vm1185 = vcmp.lt.s32.totalorder %v1089, 15
        %vm1186 = vcmp.lt.s32.totalorder %v1090, 15
        %vm1187 = vcmp.lt.s32.totalorder %v1091, 15
        %vm1188 = vcmp.lt.s32.totalorder %v1092, 15
        %vm1189 = vcmp.lt.s32.totalorder %v1093, 15
        %vm1190 = vcmp.lt.s32.totalorder %v1094, 15
        %vm1191 = vcmp.lt.s32.totalorder %v1095, 15
        %vm1192 = vcmp.lt.s32.totalorder %v1096, 15
        %vm1193 = vcmp.lt.s32.totalorder %v1097, 15
        %vm1194 = vcmp.lt.s32.totalorder %v1098, 15
        %vm1195 = vcmp.lt.s32.totalorder %v1099, 15
        %vm1196 = vcmp.lt.s32.totalorder %v1100, 15
        %vm1197 = vcmp.lt.s32.totalorder %v1101, 15
        %vm1198 = vcmp.lt.s32.totalorder %v1102, 15
        %vm1199 = vcmp.lt.s32.totalorder %v1103, 15
        %vm1200 = vcmp.lt.s32.totalorder %v1104, 15
        %vm1201 = vcmp.lt.s32.totalorder %v1105, 15
        %vm1202 = vcmp.lt.s32.totalorder %v1106, 15
        %vm1203 = vcmp.lt.s32.totalorder %v1107, 15
        %vm1204 = vcmp.lt.s32.totalorder %v1108, 15
        %vm1205 = vcmp.lt.s32.totalorder %v1109, 15
        %v1206 = vsel %vm1174, 1.0, 0.0
        %v1207 = vsel %vm1175, 1.0, 0.0
        %v1208 = vsel %vm1176, 1.0, 0.0
        %v1209 = vsel %vm1177, 1.0, 0.0
        %v1210 = vsel %vm1178, 1.0, 0.0
        %v1211 = vsel %vm1179, 1.0, 0.0
        %v1212 = vsel %vm1180, 1.0, 0.0
        %v1213 = vsel %vm1181, 1.0, 0.0
        %v1214 = vsel %vm1182, 1.0, 0.0
        %v1215 = vsel %vm1183, 1.0, 0.0
        %v1216 = vsel %vm1184, 1.0, 0.0
        %v1217 = vsel %vm1185, 1.0, 0.0
        %v1218 = vsel %vm1186, 1.0, 0.0
        %v1219 = vsel %vm1187, 1.0, 0.0
        %v1220 = vsel %vm1188, 1.0, 0.0
        %v1221 = vsel %vm1189, 1.0, 0.0
        %v1222 = vsel %vm1190, 1.0, 0.0
        %v1223 = vsel %vm1191, 1.0, 0.0
        %v1224 = vsel %vm1192, 1.0, 0.0
        %v1225 = vsel %vm1193, 1.0, 0.0
        %v1226 = vsel %vm1194, 1.0, 0.0
        %v1227 = vsel %vm1195, 1.0, 0.0
        %v1228 = vsel %vm1196, 1.0, 0.0
        %v1229 = vsel %vm1197, 1.0, 0.0
        %v1230 = vsel %vm1198, 1.0, 0.0
        %v1231 = vsel %vm1199, 1.0, 0.0
        %v1232 = vsel %vm1200, 1.0, 0.0
        %v1233 = vsel %vm1201, 1.0, 0.0
        %v1234 = vsel %vm1202, 1.0, 0.0
        %v1235 = vsel %vm1203, 1.0, 0.0
        %v1236 = vsel %vm1204, 1.0, 0.0
        %v1237 = vsel %vm1205, 1.0, 0.0
        %v1238 = vld [vmem:[#allocation9] sm:$0x1]
        %v1240 = vperm.slane %v1238, 0
        %v1242 = vadd.f32 %v1240, 0.0
        %v1243 = vld [vmem:[#allocation2 + $0x7] sm:$0xff]
        %v1244 = vld [vmem:[#allocation2 + $0xf] sm:$0xff]
        %v1245 = vld [vmem:[#allocation2 + $0x17] sm:$0xff]
        %v1246 = vld [vmem:[#allocation2 + $0x1f] sm:$0xff]
        %v1247 = vld [vmem:[#allocation2 + $0x27] sm:$0xff]
        %v1248 = vld [vmem:[#allocation2 + $0x2f] sm:$0xff]
        %v1249 = vld [vmem:[#allocation2 + $0x37] sm:$0xff]
        %v1250 = vld [vmem:[#allocation2 + $0x3f] sm:$0xff]
        %v1251 = vld [vmem:[#allocation2 + $0x47] sm:$0xff]
        %v1252 = vld [vmem:[#allocation2 + $0x4f] sm:$0xff]
        %v1253 = vld [vmem:[#allocation2 + $0x57] sm:$0xff]
        %v1254 = vld [vmem:[#allocation2 + $0x5f] sm:$0xff]
        %v1255 = vld [vmem:[#allocation2 + $0x67] sm:$0xff]
        %v1256 = vld [vmem:[#allocation2 + $0x6f] sm:$0xff]
        %v1257 = vld [vmem:[#allocation2 + $0x77] sm:$0xff]
        %v1258 = vld [vmem:[#allocation2 + $0x7f] sm:$0xff]
        %v1259 = vld [vmem:[#allocation2 + $0x87] sm:$0xff]
        %v1260 = vld [vmem:[#allocation2 + $0x8f] sm:$0xff]
        %v1261 = vld [vmem:[#allocation2 + $0x97] sm:$0xff]
        %v1262 = vld [vmem:[#allocation2 + $0x9f] sm:$0xff]
        %v1263 = vld [vmem:[#allocation2 + $0xa7] sm:$0xff]
        %v1264 = vld [vmem:[#allocation2 + $0xaf] sm:$0xff]
        %v1265 = vld [vmem:[#allocation2 + $0xb7] sm:$0xff]
        %v1266 = vld [vmem:[#allocation2 + $0xbf] sm:$0xff]
        %v1267 = vld [vmem:[#allocation2 + $0xc7] sm:$0xff]
        %v1268 = vld [vmem:[#allocation2 + $0xcf] sm:$0xff]
        %v1269 = vld [vmem:[#allocation2 + $0xd7] sm:$0xff]
        %v1270 = vld [vmem:[#allocation2 + $0xdf] sm:$0xff]
        %v1271 = vld [vmem:[#allocation2 + $0xe7] sm:$0xff]
        %v1272 = vld [vmem:[#allocation2 + $0xef] sm:$0xff]
        %v1273 = vld [vmem:[#allocation2 + $0xf7] sm:$0xff]
        %v1274 = vld [vmem:[#allocation2 + $0xff] sm:$0xff]
        %v1275 = vmul.f32 %v1243, %v1142
        %v1276 = vmul.f32 %v1244, %v1143
        %v1277 = vmul.f32 %v1245, %v1144
        %v1278 = vmul.f32 %v1246, %v1145
        %v1279 = vmul.f32 %v1247, %v1146
        %v1280 = vmul.f32 %v1248, %v1147
        %v1281 = vmul.f32 %v1249, %v1148
        %v1282 = vmul.f32 %v1250, %v1149
        %v1283 = vmul.f32 %v1251, %v1150
        %v1284 = vmul.f32 %v1252, %v1151
        %v1285 = vmul.f32 %v1253, %v1152
        %v1286 = vmul.f32 %v1254, %v1153
        %v1287 = vmul.f32 %v1255, %v1154
        %v1288 = vmul.f32 %v1256, %v1155
        %v1289 = vmul.f32 %v1257, %v1156
        %v1290 = vmul.f32 %v1258, %v1157
        %v1291 = vmul.f32 %v1259, %v1158
        %v1292 = vmul.f32 %v1260, %v1159
        %v1293 = vmul.f32 %v1261, %v1160
        %v1294 = vmul.f32 %v1262, %v1161
        %v1295 = vmul.f32 %v1263, %v1162
        %v1296 = vmul.f32 %v1264, %v1163
        %v1297 = vmul.f32 %v1265, %v1164
        %v1298 = vmul.f32 %v1266, %v1165
        %v1299 = vmul.f32 %v1267, %v1166
        %v1300 = vmul.f32 %v1268, %v1167
        %v1301 = vmul.f32 %v1269, %v1168
        %v1302 = vmul.f32 %v1270, %v1169
        %v1303 = vmul.f32 %v1271, %v1170
        %v1304 = vmul.f32 %v1272, %v1171
        %v1305 = vmul.f32 %v1273, %v1172
        %v1306 = vmul.f32 %v1274, %v1173
        %v1307 = vld [vmem:[#allocation6] sm:$0xf]
        %v1309 = vsel %vm622, %v1275, 0
        %v1312 = vsel %vm622, %v1276, 0
        %v1315 = vsel %vm622, %v1277, 0
        %v1318 = vsel %vm622, %v1278, 0
        %v1321 = vsel %vm622, %v1279, 0
        %v1324 = vsel %vm622, %v1280, 0
        %v1327 = vsel %vm622, %v1281, 0
        %v1330 = vsel %vm622, %v1282, 0
        %v1333 = vsel %vm622, %v1283, 0
        %v1336 = vsel %vm622, %v1284, 0
        %v1339 = vsel %vm622, %v1285, 0
        %v1342 = vsel %vm622, %v1286, 0
        %v1345 = vsel %vm622, %v1287, 0
        %v1348 = vsel %vm622, %v1288, 0
        %v1351 = vsel %vm622, %v1289, 0
        %v1354 = vsel %vm622, %v1290, 0
        %v1357 = vsel %vm622, %v1291, 0
        %v1360 = vsel %vm622, %v1292, 0
        %v1363 = vsel %vm622, %v1293, 0
        %v1366 = vsel %vm622, %v1294, 0
        %v1369 = vsel %vm622, %v1295, 0
        %v1372 = vsel %vm622, %v1296, 0
        %v1375 = vsel %vm622, %v1297, 0
        %v1378 = vsel %vm622, %v1298, 0
        %v1381 = vsel %vm622, %v1299, 0
        %v1384 = vsel %vm622, %v1300, 0
        %v1387 = vsel %vm622, %v1301, 0
        %v1390 = vsel %vm622, %v1302, 0
        %v1393 = vsel %vm622, %v1303, 0
        %v1396 = vsel %vm622, %v1304, 0
        %v1399 = vsel %vm622, %v1305, 0
        %v1402 = vsel %vm622, %v1306, 0
        %vm1404 = vcmask 1043456
        %v1406 = vsel %vm1404, %v1307, 0
        %1408 = vmatpush.msra.mxu0 0.0
        %1409 = vmatpush.msra.mxu0 0.0
        %1410 = vmatpush.msra.mxu0 0.0
        %1411 = vmatpush.msra.mxu0 0.0
        %1412 = vmatpush.msra.mxu0 0.0
        %1413 = vmatpush.msra.mxu0 0.0
        %1414 = vmatpush.msra.mxu0 0.0
        %1415 = vmatpush.msra.mxu0 0.0
        %1416 = vmatpush.msra.mxu0 0.0
        %1417 = vmatpush.msra.mxu0 0.0
        %1418 = vmatpush.msra.mxu0 0.0
        %1419 = vmatpush.msra.mxu0 0.0
        %1420 = vmatpush.msra.mxu0 0.0
        %1421 = vmatpush.msra.mxu0 0.0
        %1422 = vmatpush.msra.mxu0 0.0
        %1423 = vmatpush.msra.mxu0 %v1406
        %1424 = vmatmul.f32.gmra.mxu0 %v1309
        %v1425 = vpop.f32.mrf.mxu0
        %v1426 = vadd.f32 0.0, %v1425
        %1427 = vmatmul.f32.gmra.mxu0 %v1312
        %v1428 = vpop.f32.mrf.mxu0
        %v1429 = vadd.f32 0.0, %v1428
        %1430 = vmatmul.f32.gmra.mxu0 %v1315
        %v1431 = vpop.f32.mrf.mxu0
        %v1432 = vadd.f32 0.0, %v1431
        %1433 = vmatmul.f32.gmra.mxu0 %v1318
        %v1434 = vpop.f32.mrf.mxu0
        %v1435 = vadd.f32 0.0, %v1434
        %1436 = vmatmul.f32.gmra.mxu0 %v1321
        %v1437 = vpop.f32.mrf.mxu0
        %v1438 = vadd.f32 0.0, %v1437
        %1439 = vmatmul.f32.gmra.mxu0 %v1324
        %v1440 = vpop.f32.mrf.mxu0
        %v1441 = vadd.f32 0.0, %v1440
        %1442 = vmatmul.f32.gmra.mxu0 %v1327
        %v1443 = vpop.f32.mrf.mxu0
        %v1444 = vadd.f32 0.0, %v1443
        %1445 = vmatmul.f32.gmra.mxu0 %v1330
        %v1446 = vpop.f32.mrf.mxu0
        %v1447 = vadd.f32 0.0, %v1446
        %1448 = vmatmul.f32.gmra.mxu0 %v1333
        %v1449 = vpop.f32.mrf.mxu0
        %v1450 = vadd.f32 0.0, %v1449
        %1451 = vmatmul.f32.gmra.mxu0 %v1336
        %v1452 = vpop.f32.mrf.mxu0
        %v1453 = vadd.f32 0.0, %v1452
        %1454 = vmatmul.f32.gmra.mxu0 %v1339
        %v1455 = vpop.f32.mrf.mxu0
        %v1456 = vadd.f32 0.0, %v1455
        %1457 = vmatmul.f32.gmra.mxu0 %v1342
        %v1458 = vpop.f32.mrf.mxu0
        %v1459 = vadd.f32 0.0, %v1458
        %1460 = vmatmul.f32.gmra.mxu0 %v1345
        %v1461 = vpop.f32.mrf.mxu0
        %v1462 = vadd.f32 0.0, %v1461
        %1463 = vmatmul.f32.gmra.mxu0 %v1348
        %v1464 = vpop.f32.mrf.mxu0
        %v1465 = vadd.f32 0.0, %v1464
        %1466 = vmatmul.f32.gmra.mxu0 %v1351
        %v1467 = vpop.f32.mrf.mxu0
        %v1468 = vadd.f32 0.0, %v1467
        %1469 = vmatmul.f32.gmra.mxu0 %v1354
        %v1470 = vpop.f32.mrf.mxu0
        %v1471 = vadd.f32 0.0, %v1470
        %1472 = vmatmul.f32.gmra.mxu0 %v1357
        %v1473 = vpop.f32.mrf.mxu0
        %v1474 = vadd.f32 0.0, %v1473
        %1475 = vmatmul.f32.gmra.mxu0 %v1360
        %v1476 = vpop.f32.mrf.mxu0
        %v1477 = vadd.f32 0.0, %v1476
        %1478 = vmatmul.f32.gmra.mxu0 %v1363
        %v1479 = vpop.f32.mrf.mxu0
        %v1480 = vadd.f32 0.0, %v1479
        %1481 = vmatmul.f32.gmra.mxu0 %v1366
        %v1482 = vpop.f32.mrf.mxu0
        %v1483 = vadd.f32 0.0, %v1482
        %1484 = vmatmul.f32.gmra.mxu0 %v1369
        %v1485 = vpop.f32.mrf.mxu0
        %v1486 = vadd.f32 0.0, %v1485
        %1487 = vmatmul.f32.gmra.mxu0 %v1372
        %v1488 = vpop.f32.mrf.mxu0
        %v1489 = vadd.f32 0.0, %v1488
        %1490 = vmatmul.f32.gmra.mxu0 %v1375
        %v1491 = vpop.f32.mrf.mxu0
        %v1492 = vadd.f32 0.0, %v1491
        %1493 = vmatmul.f32.gmra.mxu0 %v1378
        %v1494 = vpop.f32.mrf.mxu0
        %v1495 = vadd.f32 0.0, %v1494
        %1496 = vmatmul.f32.gmra.mxu0 %v1381
        %v1497 = vpop.f32.mrf.mxu0
        %v1498 = vadd.f32 0.0, %v1497
        %1499 = vmatmul.f32.gmra.mxu0 %v1384
        %v1500 = vpop.f32.mrf.mxu0
        %v1501 = vadd.f32 0.0, %v1500
        %1502 = vmatmul.f32.gmra.mxu0 %v1387
        %v1503 = vpop.f32.mrf.mxu0
        %v1504 = vadd.f32 0.0, %v1503
        %1505 = vmatmul.f32.gmra.mxu0 %v1390
        %v1506 = vpop.f32.mrf.mxu0
        %v1507 = vadd.f32 0.0, %v1506
        %1508 = vmatmul.f32.gmra.mxu0 %v1393
        %v1509 = vpop.f32.mrf.mxu0
        %v1510 = vadd.f32 0.0, %v1509
        %1511 = vmatmul.f32.gmra.mxu0 %v1396
        %v1512 = vpop.f32.mrf.mxu0
        %v1513 = vadd.f32 0.0, %v1512
        %1514 = vmatmul.f32.gmra.mxu0 %v1399
        %v1515 = vpop.f32.mrf.mxu0
        %v1516 = vadd.f32 0.0, %v1515
        %1517 = vmatmul.f32.gmra.mxu0 %v1402
        %v1518 = vpop.f32.mrf.mxu0
        %v1519 = vadd.f32 0.0, %v1518
        %1520 = vdwg.mxu0
        %v1521 = vadd.f32 %v1242, %v1426
        %v1522 = vadd.f32 %v1242, %v1429
        %v1523 = vadd.f32 %v1242, %v1432
        %v1524 = vadd.f32 %v1242, %v1435
        %v1525 = vadd.f32 %v1242, %v1438
        %v1526 = vadd.f32 %v1242, %v1441
        %v1527 = vadd.f32 %v1242, %v1444
        %v1528 = vadd.f32 %v1242, %v1447
        %v1529 = vadd.f32 %v1242, %v1450
        %v1530 = vadd.f32 %v1242, %v1453
        %v1531 = vadd.f32 %v1242, %v1456
        %v1532 = vadd.f32 %v1242, %v1459
        %v1533 = vadd.f32 %v1242, %v1462
        %v1534 = vadd.f32 %v1242, %v1465
        %v1535 = vadd.f32 %v1242, %v1468
        %v1536 = vadd.f32 %v1242, %v1471
        %v1537 = vadd.f32 %v1242, %v1474
        %v1538 = vadd.f32 %v1242, %v1477
        %v1539 = vadd.f32 %v1242, %v1480
        %v1540 = vadd.f32 %v1242, %v1483
        %v1541 = vadd.f32 %v1242, %v1486
        %v1542 = vadd.f32 %v1242, %v1489
        %v1543 = vadd.f32 %v1242, %v1492
        %v1544 = vadd.f32 %v1242, %v1495
        %v1545 = vadd.f32 %v1242, %v1498
        %v1546 = vadd.f32 %v1242, %v1501
        %v1547 = vadd.f32 %v1242, %v1504
        %v1548 = vadd.f32 %v1242, %v1507
        %v1549 = vadd.f32 %v1242, %v1510
        %v1550 = vadd.f32 %v1242, %v1513
        %v1551 = vadd.f32 %v1242, %v1516
        %v1552 = vadd.f32 %v1242, %v1519
        %v1553 = vld [vmem:[#allocation2 + $0x8] sm:$0xff]
        %v1554 = vld [vmem:[#allocation2 + $0x10] sm:$0xff]
        %v1555 = vld [vmem:[#allocation2 + $0x18] sm:$0xff]
        %v1556 = vld [vmem:[#allocation2 + $0x20] sm:$0xff]
        %v1557 = vld [vmem:[#allocation2 + $0x28] sm:$0xff]
        %v1558 = vld [vmem:[#allocation2 + $0x30] sm:$0xff]
        %v1559 = vld [vmem:[#allocation2 + $0x38] sm:$0xff]
        %v1560 = vld [vmem:[#allocation2 + $0x40] sm:$0xff]
        %v1561 = vld [vmem:[#allocation2 + $0x48] sm:$0xff]
        %v1562 = vld [vmem:[#allocation2 + $0x50] sm:$0xff]
        %v1563 = vld [vmem:[#allocation2 + $0x58] sm:$0xff]
        %v1564 = vld [vmem:[#allocation2 + $0x60] sm:$0xff]
        %v1565 = vld [vmem:[#allocation2 + $0x68] sm:$0xff]
        %v1566 = vld [vmem:[#allocation2 + $0x70] sm:$0xff]
        %v1567 = vld [vmem:[#allocation2 + $0x78] sm:$0xff]
        %v1568 = vld [vmem:[#allocation2 + $0x80] sm:$0xff]
        %v1569 = vld [vmem:[#allocation2 + $0x88] sm:$0xff]
        %v1570 = vld [vmem:[#allocation2 + $0x90] sm:$0xff]
        %v1571 = vld [vmem:[#allocation2 + $0x98] sm:$0xff]
        %v1572 = vld [vmem:[#allocation2 + $0xa0] sm:$0xff]
        %v1573 = vld [vmem:[#allocation2 + $0xa8] sm:$0xff]
        %v1574 = vld [vmem:[#allocation2 + $0xb0] sm:$0xff]
        %v1575 = vld [vmem:[#allocation2 + $0xb8] sm:$0xff]
        %v1576 = vld [vmem:[#allocation2 + $0xc0] sm:$0xff]
        %v1577 = vld [vmem:[#allocation2 + $0xc8] sm:$0xff]
        %v1578 = vld [vmem:[#allocation2 + $0xd0] sm:$0xff]
        %v1579 = vld [vmem:[#allocation2 + $0xd8] sm:$0xff]
        %v1580 = vld [vmem:[#allocation2 + $0xe0] sm:$0xff]
        %v1581 = vld [vmem:[#allocation2 + $0xe8] sm:$0xff]
        %v1582 = vld [vmem:[#allocation2 + $0xf0] sm:$0xff]
        %v1583 = vld [vmem:[#allocation2 + $0xf8] sm:$0xff]
        %v1584 = vld [vmem:[#allocation2 + $0x100] sm:$0xff]
        %s1585 = scalar_lea.vmem [#allocation6], 4
        %v1586 = vld [vmem:[%s1585] sm:$0xf]
        %v1588 = vsel %vm622, %v1553, 0
        %v1591 = vsel %vm622, %v1554, 0
        %v1594 = vsel %vm622, %v1555, 0
        %v1597 = vsel %vm622, %v1556, 0
        %v1600 = vsel %vm622, %v1557, 0
        %v1603 = vsel %vm622, %v1558, 0
        %v1606 = vsel %vm622, %v1559, 0
        %v1609 = vsel %vm622, %v1560, 0
        %v1612 = vsel %vm622, %v1561, 0
        %v1615 = vsel %vm622, %v1562, 0
        %v1618 = vsel %vm622, %v1563, 0
        %v1621 = vsel %vm622, %v1564, 0
        %v1624 = vsel %vm622, %v1565, 0
        %v1627 = vsel %vm622, %v1566, 0
        %v1630 = vsel %vm622, %v1567, 0
        %v1633 = vsel %vm622, %v1568, 0
        %v1636 = vsel %vm622, %v1569, 0
        %v1639 = vsel %vm622, %v1570, 0
        %v1642 = vsel %vm622, %v1571, 0
        %v1645 = vsel %vm622, %v1572, 0
        %v1648 = vsel %vm622, %v1573, 0
        %v1651 = vsel %vm622, %v1574, 0
        %v1654 = vsel %vm622, %v1575, 0
        %v1657 = vsel %vm622, %v1576, 0
        %v1660 = vsel %vm622, %v1577, 0
        %v1663 = vsel %vm622, %v1578, 0
        %v1666 = vsel %vm622, %v1579, 0
        %v1669 = vsel %vm622, %v1580, 0
        %v1672 = vsel %vm622, %v1581, 0
        %v1675 = vsel %vm622, %v1582, 0
        %v1678 = vsel %vm622, %v1583, 0
        %v1681 = vsel %vm622, %v1584, 0
        %v1684 = vsel %vm1404, %v1586, 0
        %1686 = vmatpush.msra.mxu0 0.0
        %1687 = vmatpush.msra.mxu0 0.0
        %1688 = vmatpush.msra.mxu0 0.0
        %1689 = vmatpush.msra.mxu0 0.0
        %1690 = vmatpush.msra.mxu0 0.0
        %1691 = vmatpush.msra.mxu0 0.0
        %1692 = vmatpush.msra.mxu0 0.0
        %1693 = vmatpush.msra.mxu0 0.0
        %1694 = vmatpush.msra.mxu0 0.0
        %1695 = vmatpush.msra.mxu0 0.0
        %1696 = vmatpush.msra.mxu0 0.0
        %1697 = vmatpush.msra.mxu0 0.0
        %1698 = vmatpush.msra.mxu0 0.0
        %1699 = vmatpush.msra.mxu0 0.0
        %1700 = vmatpush.msra.mxu0 0.0
        %1701 = vmatpush.msra.mxu0 %v1684
        %1702 = vmatmul.f32.gmra.mxu0 %v1588
        %v1703 = vpop.f32.mrf.mxu0
        %v1704 = vadd.f32 0.0, %v1703
        %1705 = vmatmul.f32.gmra.mxu0 %v1591
        %v1706 = vpop.f32.mrf.mxu0
        %v1707 = vadd.f32 0.0, %v1706
        %1708 = vmatmul.f32.gmra.mxu0 %v1594
        %v1709 = vpop.f32.mrf.mxu0
        %v1710 = vadd.f32 0.0, %v1709
        %1711 = vmatmul.f32.gmra.mxu0 %v1597
        %v1712 = vpop.f32.mrf.mxu0
        %v1713 = vadd.f32 0.0, %v1712
        %1714 = vmatmul.f32.gmra.mxu0 %v1600
        %v1715 = vpop.f32.mrf.mxu0
        %v1716 = vadd.f32 0.0, %v1715
        %1717 = vmatmul.f32.gmra.mxu0 %v1603
        %v1718 = vpop.f32.mrf.mxu0
        %v1719 = vadd.f32 0.0, %v1718
        %1720 = vmatmul.f32.gmra.mxu0 %v1606
        %v1721 = vpop.f32.mrf.mxu0
        %v1722 = vadd.f32 0.0, %v1721
        %1723 = vmatmul.f32.gmra.mxu0 %v1609
        %v1724 = vpop.f32.mrf.mxu0
        %v1725 = vadd.f32 0.0, %v1724
        %1726 = vmatmul.f32.gmra.mxu0 %v1612
        %v1727 = vpop.f32.mrf.mxu0
        %v1728 = vadd.f32 0.0, %v1727
        %1729 = vmatmul.f32.gmra.mxu0 %v1615
        %v1730 = vpop.f32.mrf.mxu0
        %v1731 = vadd.f32 0.0, %v1730
        %1732 = vmatmul.f32.gmra.mxu0 %v1618
        %v1733 = vpop.f32.mrf.mxu0
        %v1734 = vadd.f32 0.0, %v1733
        %1735 = vmatmul.f32.gmra.mxu0 %v1621
        %v1736 = vpop.f32.mrf.mxu0
        %v1737 = vadd.f32 0.0, %v1736
        %1738 = vmatmul.f32.gmra.mxu0 %v1624
        %v1739 = vpop.f32.mrf.mxu0
        %v1740 = vadd.f32 0.0, %v1739
        %1741 = vmatmul.f32.gmra.mxu0 %v1627
        %v1742 = vpop.f32.mrf.mxu0
        %v1743 = vadd.f32 0.0, %v1742
        %1744 = vmatmul.f32.gmra.mxu0 %v1630
        %v1745 = vpop.f32.mrf.mxu0
        %v1746 = vadd.f32 0.0, %v1745
        %1747 = vmatmul.f32.gmra.mxu0 %v1633
        %v1748 = vpop.f32.mrf.mxu0
        %v1749 = vadd.f32 0.0, %v1748
        %1750 = vmatmul.f32.gmra.mxu0 %v1636
        %v1751 = vpop.f32.mrf.mxu0
        %v1752 = vadd.f32 0.0, %v1751
        %1753 = vmatmul.f32.gmra.mxu0 %v1639
        %v1754 = vpop.f32.mrf.mxu0
        %v1755 = vadd.f32 0.0, %v1754
        %1756 = vmatmul.f32.gmra.mxu0 %v1642
        %v1757 = vpop.f32.mrf.mxu0
        %v1758 = vadd.f32 0.0, %v1757
        %1759 = vmatmul.f32.gmra.mxu0 %v1645
        %v1760 = vpop.f32.mrf.mxu0
        %v1761 = vadd.f32 0.0, %v1760
        %1762 = vmatmul.f32.gmra.mxu0 %v1648
        %v1763 = vpop.f32.mrf.mxu0
        %v1764 = vadd.f32 0.0, %v1763
        %1765 = vmatmul.f32.gmra.mxu0 %v1651
        %v1766 = vpop.f32.mrf.mxu0
        %v1767 = vadd.f32 0.0, %v1766
        %1768 = vmatmul.f32.gmra.mxu0 %v1654
        %v1769 = vpop.f32.mrf.mxu0
        %v1770 = vadd.f32 0.0, %v1769
        %1771 = vmatmul.f32.gmra.mxu0 %v1657
        %v1772 = vpop.f32.mrf.mxu0
        %v1773 = vadd.f32 0.0, %v1772
        %1774 = vmatmul.f32.gmra.mxu0 %v1660
        %v1775 = vpop.f32.mrf.mxu0
        %v1776 = vadd.f32 0.0, %v1775
        %1777 = vmatmul.f32.gmra.mxu0 %v1663
        %v1778 = vpop.f32.mrf.mxu0
        %v1779 = vadd.f32 0.0, %v1778
        %1780 = vmatmul.f32.gmra.mxu0 %v1666
        %v1781 = vpop.f32.mrf.mxu0
        %v1782 = vadd.f32 0.0, %v1781
        %1783 = vmatmul.f32.gmra.mxu0 %v1669
        %v1784 = vpop.f32.mrf.mxu0
        %v1785 = vadd.f32 0.0, %v1784
        %1786 = vmatmul.f32.gmra.mxu0 %v1672
        %v1787 = vpop.f32.mrf.mxu0
        %v1788 = vadd.f32 0.0, %v1787
        %1789 = vmatmul.f32.gmra.mxu0 %v1675
        %v1790 = vpop.f32.mrf.mxu0
        %v1791 = vadd.f32 0.0, %v1790
        %1792 = vmatmul.f32.gmra.mxu0 %v1678
        %v1793 = vpop.f32.mrf.mxu0
        %v1794 = vadd.f32 0.0, %v1793
        %1795 = vmatmul.f32.gmra.mxu0 %v1681
        %v1796 = vpop.f32.mrf.mxu0
        %v1797 = vadd.f32 0.0, %v1796
        %1798 = vdwg.mxu0
        %v1799 = vadd.f32 %v1521, %v1704
        %v1800 = vadd.f32 %v1522, %v1707
        %v1801 = vadd.f32 %v1523, %v1710
        %v1802 = vadd.f32 %v1524, %v1713
        %v1803 = vadd.f32 %v1525, %v1716
        %v1804 = vadd.f32 %v1526, %v1719
        %v1805 = vadd.f32 %v1527, %v1722
        %v1806 = vadd.f32 %v1528, %v1725
        %v1807 = vadd.f32 %v1529, %v1728
        %v1808 = vadd.f32 %v1530, %v1731
        %v1809 = vadd.f32 %v1531, %v1734
        %v1810 = vadd.f32 %v1532, %v1737
        %v1811 = vadd.f32 %v1533, %v1740
        %v1812 = vadd.f32 %v1534, %v1743
        %v1813 = vadd.f32 %v1535, %v1746
        %v1814 = vadd.f32 %v1536, %v1749
        %v1815 = vadd.f32 %v1537, %v1752
        %v1816 = vadd.f32 %v1538, %v1755
        %v1817 = vadd.f32 %v1539, %v1758
        %v1818 = vadd.f32 %v1540, %v1761
        %v1819 = vadd.f32 %v1541, %v1764
        %v1820 = vadd.f32 %v1542, %v1767
        %v1821 = vadd.f32 %v1543, %v1770
        %v1822 = vadd.f32 %v1544, %v1773
        %v1823 = vadd.f32 %v1545, %v1776
        %v1824 = vadd.f32 %v1546, %v1779
        %v1825 = vadd.f32 %v1547, %v1782
        %v1826 = vadd.f32 %v1548, %v1785
        %v1827 = vadd.f32 %v1549, %v1788
        %v1828 = vadd.f32 %v1550, %v1791
        %v1829 = vadd.f32 %v1551, %v1794
        %v1830 = vadd.f32 %v1552, %v1797
        %v1831 = vld [vmem:[#allocation2 + $0x9] sm:$0xff]
        %v1832 = vld [vmem:[#allocation2 + $0x11] sm:$0xff]
        %v1833 = vld [vmem:[#allocation2 + $0x19] sm:$0xff]
        %v1834 = vld [vmem:[#allocation2 + $0x21] sm:$0xff]
        %v1835 = vld [vmem:[#allocation2 + $0x29] sm:$0xff]
        %v1836 = vld [vmem:[#allocation2 + $0x31] sm:$0xff]
        %v1837 = vld [vmem:[#allocation2 + $0x39] sm:$0xff]
        %v1838 = vld [vmem:[#allocation2 + $0x41] sm:$0xff]
        %v1839 = vld [vmem:[#allocation2 + $0x49] sm:$0xff]
        %v1840 = vld [vmem:[#allocation2 + $0x51] sm:$0xff]
        %v1841 = vld [vmem:[#allocation2 + $0x59] sm:$0xff]
        %v1842 = vld [vmem:[#allocation2 + $0x61] sm:$0xff]
        %v1843 = vld [vmem:[#allocation2 + $0x69] sm:$0xff]
        %v1844 = vld [vmem:[#allocation2 + $0x71] sm:$0xff]
        %v1845 = vld [vmem:[#allocation2 + $0x79] sm:$0xff]
        %v1846 = vld [vmem:[#allocation2 + $0x81] sm:$0xff]
        %v1847 = vld [vmem:[#allocation2 + $0x89] sm:$0xff]
        %v1848 = vld [vmem:[#allocation2 + $0x91] sm:$0xff]
        %v1849 = vld [vmem:[#allocation2 + $0x99] sm:$0xff]
        %v1850 = vld [vmem:[#allocation2 + $0xa1] sm:$0xff]
        %v1851 = vld [vmem:[#allocation2 + $0xa9] sm:$0xff]
        %v1852 = vld [vmem:[#allocation2 + $0xb1] sm:$0xff]
        %v1853 = vld [vmem:[#allocation2 + $0xb9] sm:$0xff]
        %v1854 = vld [vmem:[#allocation2 + $0xc1] sm:$0xff]
        %v1855 = vld [vmem:[#allocation2 + $0xc9] sm:$0xff]
        %v1856 = vld [vmem:[#allocation2 + $0xd1] sm:$0xff]
        %v1857 = vld [vmem:[#allocation2 + $0xd9] sm:$0xff]
        %v1858 = vld [vmem:[#allocation2 + $0xe1] sm:$0xff]
        %v1859 = vld [vmem:[#allocation2 + $0xe9] sm:$0xff]
        %v1860 = vld [vmem:[#allocation2 + $0xf1] sm:$0xff]
        %v1861 = vld [vmem:[#allocation2 + $0xf9] sm:$0xff]
        %v1862 = vld [vmem:[#allocation2 + $0x101] sm:$0xff]
        %v1863 = vmul.f32 %v1831, %v1206
        %v1864 = vmul.f32 %v1832, %v1207
        %v1865 = vmul.f32 %v1833, %v1208
        %v1866 = vmul.f32 %v1834, %v1209
        %v1867 = vmul.f32 %v1835, %v1210
        %v1868 = vmul.f32 %v1836, %v1211
        %v1869 = vmul.f32 %v1837, %v1212
        %v1870 = vmul.f32 %v1838, %v1213
        %v1871 = vmul.f32 %v1839, %v1214
        %v1872 = vmul.f32 %v1840, %v1215
        %v1873 = vmul.f32 %v1841, %v1216
        %v1874 = vmul.f32 %v1842, %v1217
        %v1875 = vmul.f32 %v1843, %v1218
        %v1876 = vmul.f32 %v1844, %v1219
        %v1877 = vmul.f32 %v1845, %v1220
        %v1878 = vmul.f32 %v1846, %v1221
        %v1879 = vmul.f32 %v1847, %v1222
        %v1880 = vmul.f32 %v1848, %v1223
        %v1881 = vmul.f32 %v1849, %v1224
        %v1882 = vmul.f32 %v1850, %v1225
        %v1883 = vmul.f32 %v1851, %v1226
        %v1884 = vmul.f32 %v1852, %v1227
        %v1885 = vmul.f32 %v1853, %v1228
        %v1886 = vmul.f32 %v1854, %v1229
        %v1887 = vmul.f32 %v1855, %v1230
        %v1888 = vmul.f32 %v1856, %v1231
        %v1889 = vmul.f32 %v1857, %v1232
        %v1890 = vmul.f32 %v1858, %v1233
        %v1891 = vmul.f32 %v1859, %v1234
        %v1892 = vmul.f32 %v1860, %v1235
        %v1893 = vmul.f32 %v1861, %v1236
        %v1894 = vmul.f32 %v1862, %v1237
        %s1895 = scalar_lea.vmem [#allocation6], 8
        %v1896 = vld [vmem:[%s1895] sm:$0xf]
        %v1898 = vsel %vm622, %v1863, 0
        %v1901 = vsel %vm622, %v1864, 0
        %v1904 = vsel %vm622, %v1865, 0
        %v1907 = vsel %vm622, %v1866, 0
        %v1910 = vsel %vm622, %v1867, 0
        %v1913 = vsel %vm622, %v1868, 0
        %v1916 = vsel %vm622, %v1869, 0
        %v1919 = vsel %vm622, %v1870, 0
        %v1922 = vsel %vm622, %v1871, 0
        %v1925 = vsel %vm622, %v1872, 0
        %v1928 = vsel %vm622, %v1873, 0
        %v1931 = vsel %vm622, %v1874, 0
        %v1934 = vsel %vm622, %v1875, 0
        %v1937 = vsel %vm622, %v1876, 0
        %v1940 = vsel %vm622, %v1877, 0
        %v1943 = vsel %vm622, %v1878, 0
        %v1946 = vsel %vm622, %v1879, 0
        %v1949 = vsel %vm622, %v1880, 0
        %v1952 = vsel %vm622, %v1881, 0
        %v1955 = vsel %vm622, %v1882, 0
        %v1958 = vsel %vm622, %v1883, 0
        %v1961 = vsel %vm622, %v1884, 0
        %v1964 = vsel %vm622, %v1885, 0
        %v1967 = vsel %vm622, %v1886, 0
        %v1970 = vsel %vm622, %v1887, 0
        %v1973 = vsel %vm622, %v1888, 0
        %v1976 = vsel %vm622, %v1889, 0
        %v1979 = vsel %vm622, %v1890, 0
        %v1982 = vsel %vm622, %v1891, 0
        %v1985 = vsel %vm622, %v1892, 0
        %v1988 = vsel %vm622, %v1893, 0
        %v1991 = vsel %vm622, %v1894, 0
        %v1994 = vsel %vm1404, %v1896, 0
        %1996 = vmatpush.msra.mxu0 0.0
        %1997 = vmatpush.msra.mxu0 0.0
        %1998 = vmatpush.msra.mxu0 0.0
        %1999 = vmatpush.msra.mxu0 0.0
        %2000 = vmatpush.msra.mxu0 0.0
        %2001 = vmatpush.msra.mxu0 0.0
        %2002 = vmatpush.msra.mxu0 0.0
        %2003 = vmatpush.msra.mxu0 0.0
        %2004 = vmatpush.msra.mxu0 0.0
        %2005 = vmatpush.msra.mxu0 0.0
        %2006 = vmatpush.msra.mxu0 0.0
        %2007 = vmatpush.msra.mxu0 0.0
        %2008 = vmatpush.msra.mxu0 0.0
        %2009 = vmatpush.msra.mxu0 0.0
        %2010 = vmatpush.msra.mxu0 0.0
        %2011 = vmatpush.msra.mxu0 %v1994
        %2012 = vmatmul.f32.gmra.mxu0 %v1898
        %v2013 = vpop.f32.mrf.mxu0
        %v2014 = vadd.f32 0.0, %v2013
        %2015 = vmatmul.f32.gmra.mxu0 %v1901
        %v2016 = vpop.f32.mrf.mxu0
        %v2017 = vadd.f32 0.0, %v2016
        %2018 = vmatmul.f32.gmra.mxu0 %v1904
        %v2019 = vpop.f32.mrf.mxu0
        %v2020 = vadd.f32 0.0, %v2019
        %2021 = vmatmul.f32.gmra.mxu0 %v1907
        %v2022 = vpop.f32.mrf.mxu0
        %v2023 = vadd.f32 0.0, %v2022
        %2024 = vmatmul.f32.gmra.mxu0 %v1910
        %v2025 = vpop.f32.mrf.mxu0
        %v2026 = vadd.f32 0.0, %v2025
        %2027 = vmatmul.f32.gmra.mxu0 %v1913
        %v2028 = vpop.f32.mrf.mxu0
        %v2029 = vadd.f32 0.0, %v2028
        %2030 = vmatmul.f32.gmra.mxu0 %v1916
        %v2031 = vpop.f32.mrf.mxu0
        %v2032 = vadd.f32 0.0, %v2031
        %2033 = vmatmul.f32.gmra.mxu0 %v1919
        %v2034 = vpop.f32.mrf.mxu0
        %v2035 = vadd.f32 0.0, %v2034
        %2036 = vmatmul.f32.gmra.mxu0 %v1922
        %v2037 = vpop.f32.mrf.mxu0
        %v2038 = vadd.f32 0.0, %v2037
        %2039 = vmatmul.f32.gmra.mxu0 %v1925
        %v2040 = vpop.f32.mrf.mxu0
        %v2041 = vadd.f32 0.0, %v2040
        %2042 = vmatmul.f32.gmra.mxu0 %v1928
        %v2043 = vpop.f32.mrf.mxu0
        %v2044 = vadd.f32 0.0, %v2043
        %2045 = vmatmul.f32.gmra.mxu0 %v1931
        %v2046 = vpop.f32.mrf.mxu0
        %v2047 = vadd.f32 0.0, %v2046
        %2048 = vmatmul.f32.gmra.mxu0 %v1934
        %v2049 = vpop.f32.mrf.mxu0
        %v2050 = vadd.f32 0.0, %v2049
        %2051 = vmatmul.f32.gmra.mxu0 %v1937
        %v2052 = vpop.f32.mrf.mxu0
        %v2053 = vadd.f32 0.0, %v2052
        %2054 = vmatmul.f32.gmra.mxu0 %v1940
        %v2055 = vpop.f32.mrf.mxu0
        %v2056 = vadd.f32 0.0, %v2055
        %2057 = vmatmul.f32.gmra.mxu0 %v1943
        %v2058 = vpop.f32.mrf.mxu0
        %v2059 = vadd.f32 0.0, %v2058
        %2060 = vmatmul.f32.gmra.mxu0 %v1946
        %v2061 = vpop.f32.mrf.mxu0
        %v2062 = vadd.f32 0.0, %v2061
        %2063 = vmatmul.f32.gmra.mxu0 %v1949
        %v2064 = vpop.f32.mrf.mxu0
        %v2065 = vadd.f32 0.0, %v2064
        %2066 = vmatmul.f32.gmra.mxu0 %v1952
        %v2067 = vpop.f32.mrf.mxu0
        %v2068 = vadd.f32 0.0, %v2067
        %2069 = vmatmul.f32.gmra.mxu0 %v1955
        %v2070 = vpop.f32.mrf.mxu0
        %v2071 = vadd.f32 0.0, %v2070
        %2072 = vmatmul.f32.gmra.mxu0 %v1958
        %v2073 = vpop.f32.mrf.mxu0
        %v2074 = vadd.f32 0.0, %v2073
        %2075 = vmatmul.f32.gmra.mxu0 %v1961
        %v2076 = vpop.f32.mrf.mxu0
        %v2077 = vadd.f32 0.0, %v2076
        %2078 = vmatmul.f32.gmra.mxu0 %v1964
        %v2079 = vpop.f32.mrf.mxu0
        %v2080 = vadd.f32 0.0, %v2079
        %2081 = vmatmul.f32.gmra.mxu0 %v1967
        %v2082 = vpop.f32.mrf.mxu0
        %v2083 = vadd.f32 0.0, %v2082
        %2084 = vmatmul.f32.gmra.mxu0 %v1970
        %v2085 = vpop.f32.mrf.mxu0
        %v2086 = vadd.f32 0.0, %v2085
        %2087 = vmatmul.f32.gmra.mxu0 %v1973
        %v2088 = vpop.f32.mrf.mxu0
        %v2089 = vadd.f32 0.0, %v2088
        %2090 = vmatmul.f32.gmra.mxu0 %v1976
        %v2091 = vpop.f32.mrf.mxu0
        %v2092 = vadd.f32 0.0, %v2091
        %2093 = vmatmul.f32.gmra.mxu0 %v1979
        %v2094 = vpop.f32.mrf.mxu0
        %v2095 = vadd.f32 0.0, %v2094
        %2096 = vmatmul.f32.gmra.mxu0 %v1982
        %v2097 = vpop.f32.mrf.mxu0
        %v2098 = vadd.f32 0.0, %v2097
        %2099 = vmatmul.f32.gmra.mxu0 %v1985
        %v2100 = vpop.f32.mrf.mxu0
        %v2101 = vadd.f32 0.0, %v2100
        %2102 = vmatmul.f32.gmra.mxu0 %v1988
        %v2103 = vpop.f32.mrf.mxu0
        %v2104 = vadd.f32 0.0, %v2103
        %2105 = vmatmul.f32.gmra.mxu0 %v1991
        %v2106 = vpop.f32.mrf.mxu0
        %v2107 = vadd.f32 0.0, %v2106
        %2108 = vdwg.mxu0
        %v2109 = vadd.f32 %v1799, %v2014
        %v2110 = vadd.f32 %v1800, %v2017
        %v2111 = vadd.f32 %v1801, %v2020
        %v2112 = vadd.f32 %v1802, %v2023
        %v2113 = vadd.f32 %v1803, %v2026
        %v2114 = vadd.f32 %v1804, %v2029
        %v2115 = vadd.f32 %v1805, %v2032
        %v2116 = vadd.f32 %v1806, %v2035
        %v2117 = vadd.f32 %v1807, %v2038
        %v2118 = vadd.f32 %v1808, %v2041
        %v2119 = vadd.f32 %v1809, %v2044
        %v2120 = vadd.f32 %v1810, %v2047
        %v2121 = vadd.f32 %v1811, %v2050
        %v2122 = vadd.f32 %v1812, %v2053
        %v2123 = vadd.f32 %v1813, %v2056
        %v2124 = vadd.f32 %v1814, %v2059
        %v2125 = vadd.f32 %v1815, %v2062
        %v2126 = vadd.f32 %v1816, %v2065
        %v2127 = vadd.f32 %v1817, %v2068
        %v2128 = vadd.f32 %v1818, %v2071
        %v2129 = vadd.f32 %v1819, %v2074
        %v2130 = vadd.f32 %v1820, %v2077
        %v2131 = vadd.f32 %v1821, %v2080
        %v2132 = vadd.f32 %v1822, %v2083
        %v2133 = vadd.f32 %v1823, %v2086
        %v2134 = vadd.f32 %v1824, %v2089
        %v2135 = vadd.f32 %v1825, %v2092
        %v2136 = vadd.f32 %v1826, %v2095
        %v2137 = vadd.f32 %v1827, %v2098
        %v2138 = vadd.f32 %v1828, %v2101
        %v2139 = vadd.f32 %v1829, %v2104
        %v2140 = vadd.f32 %v1830, %v2107
        %v2141 = vld [vmem:[#allocation2 + $0x17] sm:$0xff]
        %v2142 = vld [vmem:[#allocation2 + $0x1f] sm:$0xff]
        %v2143 = vld [vmem:[#allocation2 + $0x27] sm:$0xff]
        %v2144 = vld [vmem:[#allocation2 + $0x2f] sm:$0xff]
        %v2145 = vld [vmem:[#allocation2 + $0x37] sm:$0xff]
        %v2146 = vld [vmem:[#allocation2 + $0x3f] sm:$0xff]
        %v2147 = vld [vmem:[#allocation2 + $0x47] sm:$0xff]
        %v2148 = vld [vmem:[#allocation2 + $0x4f] sm:$0xff]
        %v2149 = vld [vmem:[#allocation2 + $0x57] sm:$0xff]
        %v2150 = vld [vmem:[#allocation2 + $0x5f] sm:$0xff]
        %v2151 = vld [vmem:[#allocation2 + $0x67] sm:$0xff]
        %v2152 = vld [vmem:[#allocation2 + $0x6f] sm:$0xff]
        %v2153 = vld [vmem:[#allocation2 + $0x77] sm:$0xff]
        %v2154 = vld [vmem:[#allocation2 + $0x7f] sm:$0xff]
        %v2155 = vld [vmem:[#allocation2 + $0x87] sm:$0xff]
        %v2156 = vld [vmem:[#allocation2 + $0x8f] sm:$0xff]
        %v2157 = vld [vmem:[#allocation2 + $0x97] sm:$0xff]
        %v2158 = vld [vmem:[#allocation2 + $0x9f] sm:$0xff]
        %v2159 = vld [vmem:[#allocation2 + $0xa7] sm:$0xff]
        %v2160 = vld [vmem:[#allocation2 + $0xaf] sm:$0xff]
        %v2161 = vld [vmem:[#allocation2 + $0xb7] sm:$0xff]
        %v2162 = vld [vmem:[#allocation2 + $0xbf] sm:$0xff]
        %v2163 = vld [vmem:[#allocation2 + $0xc7] sm:$0xff]
        %v2164 = vld [vmem:[#allocation2 + $0xcf] sm:$0xff]
        %v2165 = vld [vmem:[#allocation2 + $0xd7] sm:$0xff]
        %v2166 = vld [vmem:[#allocation2 + $0xdf] sm:$0xff]
        %v2167 = vld [vmem:[#allocation2 + $0xe7] sm:$0xff]
        %v2168 = vld [vmem:[#allocation2 + $0xef] sm:$0xff]
        %v2169 = vld [vmem:[#allocation2 + $0xf7] sm:$0xff]
        %v2170 = vld [vmem:[#allocation2 + $0xff] sm:$0xff]
        %v2171 = vld [vmem:[#allocation2 + $0x107] sm:$0xff]
        %v2172 = vld [vmem:[#allocation2 + $0x10f] sm:$0xff]
        %v2173 = vmul.f32 %v2141, %v1142
        %v2174 = vmul.f32 %v2142, %v1143
        %v2175 = vmul.f32 %v2143, %v1144
        %v2176 = vmul.f32 %v2144, %v1145
        %v2177 = vmul.f32 %v2145, %v1146
        %v2178 = vmul.f32 %v2146, %v1147
        %v2179 = vmul.f32 %v2147, %v1148
        %v2180 = vmul.f32 %v2148, %v1149
        %v2181 = vmul.f32 %v2149, %v1150
        %v2182 = vmul.f32 %v2150, %v1151
        %v2183 = vmul.f32 %v2151, %v1152
        %v2184 = vmul.f32 %v2152, %v1153
        %v2185 = vmul.f32 %v2153, %v1154
        %v2186 = vmul.f32 %v2154, %v1155
        %v2187 = vmul.f32 %v2155, %v1156
        %v2188 = vmul.f32 %v2156, %v1157
        %v2189 = vmul.f32 %v2157, %v1158
        %v2190 = vmul.f32 %v2158, %v1159
        %v2191 = vmul.f32 %v2159, %v1160
        %v2192 = vmul.f32 %v2160, %v1161
        %v2193 = vmul.f32 %v2161, %v1162
        %v2194 = vmul.f32 %v2162, %v1163
        %v2195 = vmul.f32 %v2163, %v1164
        %v2196 = vmul.f32 %v2164, %v1165
        %v2197 = vmul.f32 %v2165, %v1166
        %v2198 = vmul.f32 %v2166, %v1167
        %v2199 = vmul.f32 %v2167, %v1168
        %v2200 = vmul.f32 %v2168, %v1169
        %v2201 = vmul.f32 %v2169, %v1170
        %v2202 = vmul.f32 %v2170, %v1171
        %v2203 = vmul.f32 %v2171, %v1172
        %v2204 = vmul.f32 %v2172, %v1173
        %s2205 = scalar_lea.vmem [#allocation6], 12
        %v2206 = vld [vmem:[%s2205] sm:$0xf]
        %v2208 = vsel %vm622, %v2173, 0
        %v2211 = vsel %vm622, %v2174, 0
        %v2214 = vsel %vm622, %v2175, 0
        %v2217 = vsel %vm622, %v2176, 0
        %v2220 = vsel %vm622, %v2177, 0
        %v2223 = vsel %vm622, %v2178, 0
        %v2226 = vsel %vm622, %v2179, 0
        %v2229 = vsel %vm622, %v2180, 0
        %v2232 = vsel %vm622, %v2181, 0
        %v2235 = vsel %vm622, %v2182, 0
        %v2238 = vsel %vm622, %v2183, 0
        %v2241 = vsel %vm622, %v2184, 0
        %v2244 = vsel %vm622, %v2185, 0
        %v2247 = vsel %vm622, %v2186, 0
        %v2250 = vsel %vm622, %v2187, 0
        %v2253 = vsel %vm622, %v2188, 0
        %v2256 = vsel %vm622, %v2189, 0
        %v2259 = vsel %vm622, %v2190, 0
        %v2262 = vsel %vm622, %v2191, 0
        %v2265 = vsel %vm622, %v2192, 0
        %v2268 = vsel %vm622, %v2193, 0
        %v2271 = vsel %vm622, %v2194, 0
        %v2274 = vsel %vm622, %v2195, 0
        %v2277 = vsel %vm622, %v2196, 0
        %v2280 = vsel %vm622, %v2197, 0
        %v2283 = vsel %vm622, %v2198, 0
        %v2286 = vsel %vm622, %v2199, 0
        %v2289 = vsel %vm622, %v2200, 0
        %v2292 = vsel %vm622, %v2201, 0
        %v2295 = vsel %vm622, %v2202, 0
        %v2298 = vsel %vm622, %v2203, 0
        %v2301 = vsel %vm622, %v2204, 0
        %v2304 = vsel %vm1404, %v2206, 0
        %2306 = vmatpush.msra.mxu0 0.0
        %2307 = vmatpush.msra.mxu0 0.0
        %2308 = vmatpush.msra.mxu0 0.0
        %2309 = vmatpush.msra.mxu0 0.0
        %2310 = vmatpush.msra.mxu0 0.0
        %2311 = vmatpush.msra.mxu0 0.0
        %2312 = vmatpush.msra.mxu0 0.0
        %2313 = vmatpush.msra.mxu0 0.0
        %2314 = vmatpush.msra.mxu0 0.0
        %2315 = vmatpush.msra.mxu0 0.0
        %2316 = vmatpush.msra.mxu0 0.0
        %2317 = vmatpush.msra.mxu0 0.0
        %2318 = vmatpush.msra.mxu0 0.0
        %2319 = vmatpush.msra.mxu0 0.0
        %2320 = vmatpush.msra.mxu0 0.0
        %2321 = vmatpush.msra.mxu0 %v2304
        %2322 = vmatmul.f32.gmra.mxu0 %v2208
        %v2323 = vpop.f32.mrf.mxu0
        %v2324 = vadd.f32 0.0, %v2323
        %2325 = vmatmul.f32.gmra.mxu0 %v2211
        %v2326 = vpop.f32.mrf.mxu0
        %v2327 = vadd.f32 0.0, %v2326
        %2328 = vmatmul.f32.gmra.mxu0 %v2214
        %v2329 = vpop.f32.mrf.mxu0
        %v2330 = vadd.f32 0.0, %v2329
        %2331 = vmatmul.f32.gmra.mxu0 %v2217
        %v2332 = vpop.f32.mrf.mxu0
        %v2333 = vadd.f32 0.0, %v2332
        %2334 = vmatmul.f32.gmra.mxu0 %v2220
        %v2335 = vpop.f32.mrf.mxu0
        %v2336 = vadd.f32 0.0, %v2335
        %2337 = vmatmul.f32.gmra.mxu0 %v2223
        %v2338 = vpop.f32.mrf.mxu0
        %v2339 = vadd.f32 0.0, %v2338
        %2340 = vmatmul.f32.gmra.mxu0 %v2226
        %v2341 = vpop.f32.mrf.mxu0
        %v2342 = vadd.f32 0.0, %v2341
        %2343 = vmatmul.f32.gmra.mxu0 %v2229
        %v2344 = vpop.f32.mrf.mxu0
        %v2345 = vadd.f32 0.0, %v2344
        %2346 = vmatmul.f32.gmra.mxu0 %v2232
        %v2347 = vpop.f32.mrf.mxu0
        %v2348 = vadd.f32 0.0, %v2347
        %2349 = vmatmul.f32.gmra.mxu0 %v2235
        %v2350 = vpop.f32.mrf.mxu0
        %v2351 = vadd.f32 0.0, %v2350
        %2352 = vmatmul.f32.gmra.mxu0 %v2238
        %v2353 = vpop.f32.mrf.mxu0
        %v2354 = vadd.f32 0.0, %v2353
        %2355 = vmatmul.f32.gmra.mxu0 %v2241
        %v2356 = vpop.f32.mrf.mxu0
        %v2357 = vadd.f32 0.0, %v2356
        %2358 = vmatmul.f32.gmra.mxu0 %v2244
        %v2359 = vpop.f32.mrf.mxu0
        %v2360 = vadd.f32 0.0, %v2359
        %2361 = vmatmul.f32.gmra.mxu0 %v2247
        %v2362 = vpop.f32.mrf.mxu0
        %v2363 = vadd.f32 0.0, %v2362
        %2364 = vmatmul.f32.gmra.mxu0 %v2250
        %v2365 = vpop.f32.mrf.mxu0
        %v2366 = vadd.f32 0.0, %v2365
        %2367 = vmatmul.f32.gmra.mxu0 %v2253
        %v2368 = vpop.f32.mrf.mxu0
        %v2369 = vadd.f32 0.0, %v2368
        %2370 = vmatmul.f32.gmra.mxu0 %v2256
        %v2371 = vpop.f32.mrf.mxu0
        %v2372 = vadd.f32 0.0, %v2371
        %2373 = vmatmul.f32.gmra.mxu0 %v2259
        %v2374 = vpop.f32.mrf.mxu0
        %v2375 = vadd.f32 0.0, %v2374
        %2376 = vmatmul.f32.gmra.mxu0 %v2262
        %v2377 = vpop.f32.mrf.mxu0
        %v2378 = vadd.f32 0.0, %v2377
        %2379 = vmatmul.f32.gmra.mxu0 %v2265
        %v2380 = vpop.f32.mrf.mxu0
        %v2381 = vadd.f32 0.0, %v2380
        %2382 = vmatmul.f32.gmra.mxu0 %v2268
        %v2383 = vpop.f32.mrf.mxu0
        %v2384 = vadd.f32 0.0, %v2383
        %2385 = vmatmul.f32.gmra.mxu0 %v2271
        %v2386 = vpop.f32.mrf.mxu0
        %v2387 = vadd.f32 0.0, %v2386
        %2388 = vmatmul.f32.gmra.mxu0 %v2274
        %v2389 = vpop.f32.mrf.mxu0
        %v2390 = vadd.f32 0.0, %v2389
        %2391 = vmatmul.f32.gmra.mxu0 %v2277
        %v2392 = vpop.f32.mrf.mxu0
        %v2393 = vadd.f32 0.0, %v2392
        %2394 = vmatmul.f32.gmra.mxu0 %v2280
        %v2395 = vpop.f32.mrf.mxu0
        %v2396 = vadd.f32 0.0, %v2395
        %2397 = vmatmul.f32.gmra.mxu0 %v2283
        %v2398 = vpop.f32.mrf.mxu0
        %v2399 = vadd.f32 0.0, %v2398
        %2400 = vmatmul.f32.gmra.mxu0 %v2286
        %v2401 = vpop.f32.mrf.mxu0
        %v2402 = vadd.f32 0.0, %v2401
        %2403 = vmatmul.f32.gmra.mxu0 %v2289
        %v2404 = vpop.f32.mrf.mxu0
        %v2405 = vadd.f32 0.0, %v2404
        %2406 = vmatmul.f32.gmra.mxu0 %v2292
        %v2407 = vpop.f32.mrf.mxu0
        %v2408 = vadd.f32 0.0, %v2407
        %2409 = vmatmul.f32.gmra.mxu0 %v2295
        %v2410 = vpop.f32.mrf.mxu0
        %v2411 = vadd.f32 0.0, %v2410
        %2412 = vmatmul.f32.gmra.mxu0 %v2298
        %v2413 = vpop.f32.mrf.mxu0
        %v2414 = vadd.f32 0.0, %v2413
        %2415 = vmatmul.f32.gmra.mxu0 %v2301
        %v2416 = vpop.f32.mrf.mxu0
        %v2417 = vadd.f32 0.0, %v2416
        %2418 = vdwg.mxu0
        %v2419 = vadd.f32 %v2109, %v2324
        %v2420 = vadd.f32 %v2110, %v2327
        %v2421 = vadd.f32 %v2111, %v2330
        %v2422 = vadd.f32 %v2112, %v2333
        %v2423 = vadd.f32 %v2113, %v2336
        %v2424 = vadd.f32 %v2114, %v2339
        %v2425 = vadd.f32 %v2115, %v2342
        %v2426 = vadd.f32 %v2116, %v2345
        %v2427 = vadd.f32 %v2117, %v2348
        %v2428 = vadd.f32 %v2118, %v2351
        %v2429 = vadd.f32 %v2119, %v2354
        %v2430 = vadd.f32 %v2120, %v2357
        %v2431 = vadd.f32 %v2121, %v2360
        %v2432 = vadd.f32 %v2122, %v2363
        %v2433 = vadd.f32 %v2123, %v2366
        %v2434 = vadd.f32 %v2124, %v2369
        %v2435 = vadd.f32 %v2125, %v2372
        %v2436 = vadd.f32 %v2126, %v2375
        %v2437 = vadd.f32 %v2127, %v2378
        %v2438 = vadd.f32 %v2128, %v2381
        %v2439 = vadd.f32 %v2129, %v2384
        %v2440 = vadd.f32 %v2130, %v2387
        %v2441 = vadd.f32 %v2131, %v2390
        %v2442 = vadd.f32 %v2132, %v2393
        %v2443 = vadd.f32 %v2133, %v2396
        %v2444 = vadd.f32 %v2134, %v2399
        %v2445 = vadd.f32 %v2135, %v2402
        %v2446 = vadd.f32 %v2136, %v2405
        %v2447 = vadd.f32 %v2137, %v2408
        %v2448 = vadd.f32 %v2138, %v2411
        %v2449 = vadd.f32 %v2139, %v2414
        %v2450 = vadd.f32 %v2140, %v2417
        %v2451 = vld [vmem:[#allocation2 + $0x18] sm:$0xff]
        %v2452 = vld [vmem:[#allocation2 + $0x20] sm:$0xff]
        %v2453 = vld [vmem:[#allocation2 + $0x28] sm:$0xff]
        %v2454 = vld [vmem:[#allocation2 + $0x30] sm:$0xff]
        %v2455 = vld [vmem:[#allocation2 + $0x38] sm:$0xff]
        %v2456 = vld [vmem:[#allocation2 + $0x40] sm:$0xff]
        %v2457 = vld [vmem:[#allocation2 + $0x48] sm:$0xff]
        %v2458 = vld [vmem:[#allocation2 + $0x50] sm:$0xff]
        %v2459 = vld [vmem:[#allocation2 + $0x58] sm:$0xff]
        %v2460 = vld [vmem:[#allocation2 + $0x60] sm:$0xff]
        %v2461 = vld [vmem:[#allocation2 + $0x68] sm:$0xff]
        %v2462 = vld [vmem:[#allocation2 + $0x70] sm:$0xff]
        %v2463 = vld [vmem:[#allocation2 + $0x78] sm:$0xff]
        %v2464 = vld [vmem:[#allocation2 + $0x80] sm:$0xff]
        %v2465 = vld [vmem:[#allocation2 + $0x88] sm:$0xff]
        %v2466 = vld [vmem:[#allocation2 + $0x90] sm:$0xff]
        %v2467 = vld [vmem:[#allocation2 + $0x98] sm:$0xff]
        %v2468 = vld [vmem:[#allocation2 + $0xa0] sm:$0xff]
        %v2469 = vld [vmem:[#allocation2 + $0xa8] sm:$0xff]
        %v2470 = vld [vmem:[#allocation2 + $0xb0] sm:$0xff]
        %v2471 = vld [vmem:[#allocation2 + $0xb8] sm:$0xff]
        %v2472 = vld [vmem:[#allocation2 + $0xc0] sm:$0xff]
        %v2473 = vld [vmem:[#allocation2 + $0xc8] sm:$0xff]
        %v2474 = vld [vmem:[#allocation2 + $0xd0] sm:$0xff]
        %v2475 = vld [vmem:[#allocation2 + $0xd8] sm:$0xff]
        %v2476 = vld [vmem:[#allocation2 + $0xe0] sm:$0xff]
        %v2477 = vld [vmem:[#allocation2 + $0xe8] sm:$0xff]
        %v2478 = vld [vmem:[#allocation2 + $0xf0] sm:$0xff]
        %v2479 = vld [vmem:[#allocation2 + $0xf8] sm:$0xff]
        %v2480 = vld [vmem:[#allocation2 + $0x100] sm:$0xff]
        %v2481 = vld [vmem:[#allocation2 + $0x108] sm:$0xff]
        %v2482 = vld [vmem:[#allocation2 + $0x110] sm:$0xff]
        %s2483 = scalar_lea.vmem [#allocation6], 16
        %v2484 = vld [vmem:[%s2483] sm:$0xf]
        %v2486 = vsel %vm622, %v2451, 0
        %v2489 = vsel %vm622, %v2452, 0
        %v2492 = vsel %vm622, %v2453, 0
        %v2495 = vsel %vm622, %v2454, 0
        %v2498 = vsel %vm622, %v2455, 0
        %v2501 = vsel %vm622, %v2456, 0
        %v2504 = vsel %vm622, %v2457, 0
        %v2507 = vsel %vm622, %v2458, 0
        %v2510 = vsel %vm622, %v2459, 0
        %v2513 = vsel %vm622, %v2460, 0
        %v2516 = vsel %vm622, %v2461, 0
        %v2519 = vsel %vm622, %v2462, 0
        %v2522 = vsel %vm622, %v2463, 0
        %v2525 = vsel %vm622, %v2464, 0
        %v2528 = vsel %vm622, %v2465, 0
        %v2531 = vsel %vm622, %v2466, 0
        %v2534 = vsel %vm622, %v2467, 0
        %v2537 = vsel %vm622, %v2468, 0
        %v2540 = vsel %vm622, %v2469, 0
        %v2543 = vsel %vm622, %v2470, 0
        %v2546 = vsel %vm622, %v2471, 0
        %v2549 = vsel %vm622, %v2472, 0
        %v2552 = vsel %vm622, %v2473, 0
        %v2555 = vsel %vm622, %v2474, 0
        %v2558 = vsel %vm622, %v2475, 0
        %v2561 = vsel %vm622, %v2476, 0
        %v2564 = vsel %vm622, %v2477, 0
        %v2567 = vsel %vm622, %v2478, 0
        %v2570 = vsel %vm622, %v2479, 0
        %v2573 = vsel %vm622, %v2480, 0
        %v2576 = vsel %vm622, %v2481, 0
        %v2579 = vsel %vm622, %v2482, 0
        %v2582 = vsel %vm1404, %v2484, 0
        %2584 = vmatpush.msra.mxu0 0.0
        %2585 = vmatpush.msra.mxu0 0.0
        %2586 = vmatpush.msra.mxu0 0.0
        %2587 = vmatpush.msra.mxu0 0.0
        %2588 = vmatpush.msra.mxu0 0.0
        %2589 = vmatpush.msra.mxu0 0.0
        %2590 = vmatpush.msra.mxu0 0.0
        %2591 = vmatpush.msra.mxu0 0.0
        %2592 = vmatpush.msra.mxu0 0.0
        %2593 = vmatpush.msra.mxu0 0.0
        %2594 = vmatpush.msra.mxu0 0.0
        %2595 = vmatpush.msra.mxu0 0.0
        %2596 = vmatpush.msra.mxu0 0.0
        %2597 = vmatpush.msra.mxu0 0.0
        %2598 = vmatpush.msra.mxu0 0.0
        %2599 = vmatpush.msra.mxu0 %v2582
        %2600 = vmatmul.f32.gmra.mxu0 %v2486
        %v2601 = vpop.f32.mrf.mxu0
        %v2602 = vadd.f32 0.0, %v2601
        %2603 = vmatmul.f32.gmra.mxu0 %v2489
        %v2604 = vpop.f32.mrf.mxu0
        %v2605 = vadd.f32 0.0, %v2604
        %2606 = vmatmul.f32.gmra.mxu0 %v2492
        %v2607 = vpop.f32.mrf.mxu0
        %v2608 = vadd.f32 0.0, %v2607
        %2609 = vmatmul.f32.gmra.mxu0 %v2495
        %v2610 = vpop.f32.mrf.mxu0
        %v2611 = vadd.f32 0.0, %v2610
        %2612 = vmatmul.f32.gmra.mxu0 %v2498
        %v2613 = vpop.f32.mrf.mxu0
        %v2614 = vadd.f32 0.0, %v2613
        %2615 = vmatmul.f32.gmra.mxu0 %v2501
        %v2616 = vpop.f32.mrf.mxu0
        %v2617 = vadd.f32 0.0, %v2616
        %2618 = vmatmul.f32.gmra.mxu0 %v2504
        %v2619 = vpop.f32.mrf.mxu0
        %v2620 = vadd.f32 0.0, %v2619
        %2621 = vmatmul.f32.gmra.mxu0 %v2507
        %v2622 = vpop.f32.mrf.mxu0
        %v2623 = vadd.f32 0.0, %v2622
        %2624 = vmatmul.f32.gmra.mxu0 %v2510
        %v2625 = vpop.f32.mrf.mxu0
        %v2626 = vadd.f32 0.0, %v2625
        %2627 = vmatmul.f32.gmra.mxu0 %v2513
        %v2628 = vpop.f32.mrf.mxu0
        %v2629 = vadd.f32 0.0, %v2628
        %2630 = vmatmul.f32.gmra.mxu0 %v2516
        %v2631 = vpop.f32.mrf.mxu0
        %v2632 = vadd.f32 0.0, %v2631
        %2633 = vmatmul.f32.gmra.mxu0 %v2519
        %v2634 = vpop.f32.mrf.mxu0
        %v2635 = vadd.f32 0.0, %v2634
        %2636 = vmatmul.f32.gmra.mxu0 %v2522
        %v2637 = vpop.f32.mrf.mxu0
        %v2638 = vadd.f32 0.0, %v2637
        %2639 = vmatmul.f32.gmra.mxu0 %v2525
        %v2640 = vpop.f32.mrf.mxu0
        %v2641 = vadd.f32 0.0, %v2640
        %2642 = vmatmul.f32.gmra.mxu0 %v2528
        %v2643 = vpop.f32.mrf.mxu0
        %v2644 = vadd.f32 0.0, %v2643
        %2645 = vmatmul.f32.gmra.mxu0 %v2531
        %v2646 = vpop.f32.mrf.mxu0
        %v2647 = vadd.f32 0.0, %v2646
        %2648 = vmatmul.f32.gmra.mxu0 %v2534
        %v2649 = vpop.f32.mrf.mxu0
        %v2650 = vadd.f32 0.0, %v2649
        %2651 = vmatmul.f32.gmra.mxu0 %v2537
        %v2652 = vpop.f32.mrf.mxu0
        %v2653 = vadd.f32 0.0, %v2652
        %2654 = vmatmul.f32.gmra.mxu0 %v2540
        %v2655 = vpop.f32.mrf.mxu0
        %v2656 = vadd.f32 0.0, %v2655
        %2657 = vmatmul.f32.gmra.mxu0 %v2543
        %v2658 = vpop.f32.mrf.mxu0
        %v2659 = vadd.f32 0.0, %v2658
        %2660 = vmatmul.f32.gmra.mxu0 %v2546
        %v2661 = vpop.f32.mrf.mxu0
        %v2662 = vadd.f32 0.0, %v2661
        %2663 = vmatmul.f32.gmra.mxu0 %v2549
        %v2664 = vpop.f32.mrf.mxu0
        %v2665 = vadd.f32 0.0, %v2664
        %2666 = vmatmul.f32.gmra.mxu0 %v2552
        %v2667 = vpop.f32.mrf.mxu0
        %v2668 = vadd.f32 0.0, %v2667
        %2669 = vmatmul.f32.gmra.mxu0 %v2555
        %v2670 = vpop.f32.mrf.mxu0
        %v2671 = vadd.f32 0.0, %v2670
        %2672 = vmatmul.f32.gmra.mxu0 %v2558
        %v2673 = vpop.f32.mrf.mxu0
        %v2674 = vadd.f32 0.0, %v2673
        %2675 = vmatmul.f32.gmra.mxu0 %v2561
        %v2676 = vpop.f32.mrf.mxu0
        %v2677 = vadd.f32 0.0, %v2676
        %2678 = vmatmul.f32.gmra.mxu0 %v2564
        %v2679 = vpop.f32.mrf.mxu0
        %v2680 = vadd.f32 0.0, %v2679
        %2681 = vmatmul.f32.gmra.mxu0 %v2567
        %v2682 = vpop.f32.mrf.mxu0
        %v2683 = vadd.f32 0.0, %v2682
        %2684 = vmatmul.f32.gmra.mxu0 %v2570
        %v2685 = vpop.f32.mrf.mxu0
        %v2686 = vadd.f32 0.0, %v2685
        %2687 = vmatmul.f32.gmra.mxu0 %v2573
        %v2688 = vpop.f32.mrf.mxu0
        %v2689 = vadd.f32 0.0, %v2688
        %2690 = vmatmul.f32.gmra.mxu0 %v2576
        %v2691 = vpop.f32.mrf.mxu0
        %v2692 = vadd.f32 0.0, %v2691
        %2693 = vmatmul.f32.gmra.mxu0 %v2579
        %v2694 = vpop.f32.mrf.mxu0
        %v2695 = vadd.f32 0.0, %v2694
        %2696 = vdwg.mxu0
        %v2697 = vadd.f32 %v2419, %v2602
        %v2698 = vadd.f32 %v2420, %v2605
        %v2699 = vadd.f32 %v2421, %v2608
        %v2700 = vadd.f32 %v2422, %v2611
        %v2701 = vadd.f32 %v2423, %v2614
        %v2702 = vadd.f32 %v2424, %v2617
        %v2703 = vadd.f32 %v2425, %v2620
        %v2704 = vadd.f32 %v2426, %v2623
        %v2705 = vadd.f32 %v2427, %v2626
        %v2706 = vadd.f32 %v2428, %v2629
        %v2707 = vadd.f32 %v2429, %v2632
        %v2708 = vadd.f32 %v2430, %v2635
        %v2709 = vadd.f32 %v2431, %v2638
        %v2710 = vadd.f32 %v2432, %v2641
        %v2711 = vadd.f32 %v2433, %v2644
        %v2712 = vadd.f32 %v2434, %v2647
        %v2713 = vadd.f32 %v2435, %v2650
        %v2714 = vadd.f32 %v2436, %v2653
        %v2715 = vadd.f32 %v2437, %v2656
        %v2716 = vadd.f32 %v2438, %v2659
        %v2717 = vadd.f32 %v2439, %v2662
        %v2718 = vadd.f32 %v2440, %v2665
        %v2719 = vadd.f32 %v2441, %v2668
        %v2720 = vadd.f32 %v2442, %v2671
        %v2721 = vadd.f32 %v2443, %v2674
        %v2722 = vadd.f32 %v2444, %v2677
        %v2723 = vadd.f32 %v2445, %v2680
        %v2724 = vadd.f32 %v2446, %v2683
        %v2725 = vadd.f32 %v2447, %v2686
        %v2726 = vadd.f32 %v2448, %v2689
        %v2727 = vadd.f32 %v2449, %v2692
        %v2728 = vadd.f32 %v2450, %v2695
        %v2729 = vld [vmem:[#allocation2 + $0x19] sm:$0xff]
        %v2730 = vld [vmem:[#allocation2 + $0x21] sm:$0xff]
        %v2731 = vld [vmem:[#allocation2 + $0x29] sm:$0xff]
        %v2732 = vld [vmem:[#allocation2 + $0x31] sm:$0xff]
        %v2733 = vld [vmem:[#allocation2 + $0x39] sm:$0xff]
        %v2734 = vld [vmem:[#allocation2 + $0x41] sm:$0xff]
        %v2735 = vld [vmem:[#allocation2 + $0x49] sm:$0xff]
        %v2736 = vld [vmem:[#allocation2 + $0x51] sm:$0xff]
        %v2737 = vld [vmem:[#allocation2 + $0x59] sm:$0xff]
        %v2738 = vld [vmem:[#allocation2 + $0x61] sm:$0xff]
        %v2739 = vld [vmem:[#allocation2 + $0x69] sm:$0xff]
        %v2740 = vld [vmem:[#allocation2 + $0x71] sm:$0xff]
        %v2741 = vld [vmem:[#allocation2 + $0x79] sm:$0xff]
        %v2742 = vld [vmem:[#allocation2 + $0x81] sm:$0xff]
        %v2743 = vld [vmem:[#allocation2 + $0x89] sm:$0xff]
        %v2744 = vld [vmem:[#allocation2 + $0x91] sm:$0xff]
        %v2745 = vld [vmem:[#allocation2 + $0x99] sm:$0xff]
        %v2746 = vld [vmem:[#allocation2 + $0xa1] sm:$0xff]
        %v2747 = vld [vmem:[#allocation2 + $0xa9] sm:$0xff]
        %v2748 = vld [vmem:[#allocation2 + $0xb1] sm:$0xff]
        %v2749 = vld [vmem:[#allocation2 + $0xb9] sm:$0xff]
        %v2750 = vld [vmem:[#allocation2 + $0xc1] sm:$0xff]
        %v2751 = vld [vmem:[#allocation2 + $0xc9] sm:$0xff]
        %v2752 = vld [vmem:[#allocation2 + $0xd1] sm:$0xff]
        %v2753 = vld [vmem:[#allocation2 + $0xd9] sm:$0xff]
        %v2754 = vld [vmem:[#allocation2 + $0xe1] sm:$0xff]
        %v2755 = vld [vmem:[#allocation2 + $0xe9] sm:$0xff]
        %v2756 = vld [vmem:[#allocation2 + $0xf1] sm:$0xff]
        %v2757 = vld [vmem:[#allocation2 + $0xf9] sm:$0xff]
        %v2758 = vld [vmem:[#allocation2 + $0x101] sm:$0xff]
        %v2759 = vld [vmem:[#allocation2 + $0x109] sm:$0xff]
        %v2760 = vld [vmem:[#allocation2 + $0x111] sm:$0xff]
        %v2761 = vmul.f32 %v2729, %v1206
        %v2762 = vmul.f32 %v2730, %v1207
        %v2763 = vmul.f32 %v2731, %v1208
        %v2764 = vmul.f32 %v2732, %v1209
        %v2765 = vmul.f32 %v2733, %v1210
        %v2766 = vmul.f32 %v2734, %v1211
        %v2767 = vmul.f32 %v2735, %v1212
        %v2768 = vmul.f32 %v2736, %v1213
        %v2769 = vmul.f32 %v2737, %v1214
        %v2770 = vmul.f32 %v2738, %v1215
        %v2771 = vmul.f32 %v2739, %v1216
        %v2772 = vmul.f32 %v2740, %v1217
        %v2773 = vmul.f32 %v2741, %v1218
        %v2774 = vmul.f32 %v2742, %v1219
        %v2775 = vmul.f32 %v2743, %v1220
        %v2776 = vmul.f32 %v2744, %v1221
        %v2777 = vmul.f32 %v2745, %v1222
        %v2778 = vmul.f32 %v2746, %v1223
        %v2779 = vmul.f32 %v2747, %v1224
        %v2780 = vmul.f32 %v2748, %v1225
        %v2781 = vmul.f32 %v2749, %v1226
        %v2782 = vmul.f32 %v2750, %v1227
        %v2783 = vmul.f32 %v2751, %v1228
        %v2784 = vmul.f32 %v2752, %v1229
        %v2785 = vmul.f32 %v2753, %v1230
        %v2786 = vmul.f32 %v2754, %v1231
        %v2787 = vmul.f32 %v2755, %v1232
        %v2788 = vmul.f32 %v2756, %v1233
        %v2789 = vmul.f32 %v2757, %v1234
        %v2790 = vmul.f32 %v2758, %v1235
        %v2791 = vmul.f32 %v2759, %v1236
        %v2792 = vmul.f32 %v2760, %v1237
        %s2793 = scalar_lea.vmem [#allocation6], 20
        %v2794 = vld [vmem:[%s2793] sm:$0xf]
        %v2796 = vsel %vm622, %v2761, 0
        %v2799 = vsel %vm622, %v2762, 0
        %v2802 = vsel %vm622, %v2763, 0
        %v2805 = vsel %vm622, %v2764, 0
        %v2808 = vsel %vm622, %v2765, 0
        %v2811 = vsel %vm622, %v2766, 0
        %v2814 = vsel %vm622, %v2767, 0
        %v2817 = vsel %vm622, %v2768, 0
        %v2820 = vsel %vm622, %v2769, 0
        %v2823 = vsel %vm622, %v2770, 0
        %v2826 = vsel %vm622, %v2771, 0
        %v2829 = vsel %vm622, %v2772, 0
        %v2832 = vsel %vm622, %v2773, 0
        %v2835 = vsel %vm622, %v2774, 0
        %v2838 = vsel %vm622, %v2775, 0
        %v2841 = vsel %vm622, %v2776, 0
        %v2844 = vsel %vm622, %v2777, 0
        %v2847 = vsel %vm622, %v2778, 0
        %v2850 = vsel %vm622, %v2779, 0
        %v2853 = vsel %vm622, %v2780, 0
        %v2856 = vsel %vm622, %v2781, 0
        %v2859 = vsel %vm622, %v2782, 0
        %v2862 = vsel %vm622, %v2783, 0
        %v2865 = vsel %vm622, %v2784, 0
        %v2868 = vsel %vm622, %v2785, 0
        %v2871 = vsel %vm622, %v2786, 0
        %v2874 = vsel %vm622, %v2787, 0
        %v2877 = vsel %vm622, %v2788, 0
        %v2880 = vsel %vm622, %v2789, 0
        %v2883 = vsel %vm622, %v2790, 0
        %v2886 = vsel %vm622, %v2791, 0
        %v2889 = vsel %vm622, %v2792, 0
        %v2892 = vsel %vm1404, %v2794, 0
        %2894 = vmatpush.msra.mxu0 0.0
        %2895 = vmatpush.msra.mxu0 0.0
        %2896 = vmatpush.msra.mxu0 0.0
        %2897 = vmatpush.msra.mxu0 0.0
        %2898 = vmatpush.msra.mxu0 0.0
        %2899 = vmatpush.msra.mxu0 0.0
        %2900 = vmatpush.msra.mxu0 0.0
        %2901 = vmatpush.msra.mxu0 0.0
        %2902 = vmatpush.msra.mxu0 0.0
        %2903 = vmatpush.msra.mxu0 0.0
        %2904 = vmatpush.msra.mxu0 0.0
        %2905 = vmatpush.msra.mxu0 0.0
        %2906 = vmatpush.msra.mxu0 0.0
        %2907 = vmatpush.msra.mxu0 0.0
        %2908 = vmatpush.msra.mxu0 0.0
        %2909 = vmatpush.msra.mxu0 %v2892
        %2910 = vmatmul.f32.gmra.mxu0 %v2796
        %v2911 = vpop.f32.mrf.mxu0
        %v2912 = vadd.f32 0.0, %v2911
        %2913 = vmatmul.f32.gmra.mxu0 %v2799
        %v2914 = vpop.f32.mrf.mxu0
        %v2915 = vadd.f32 0.0, %v2914
        %2916 = vmatmul.f32.gmra.mxu0 %v2802
        %v2917 = vpop.f32.mrf.mxu0
        %v2918 = vadd.f32 0.0, %v2917
        %2919 = vmatmul.f32.gmra.mxu0 %v2805
        %v2920 = vpop.f32.mrf.mxu0
        %v2921 = vadd.f32 0.0, %v2920
        %2922 = vmatmul.f32.gmra.mxu0 %v2808
        %v2923 = vpop.f32.mrf.mxu0
        %v2924 = vadd.f32 0.0, %v2923
        %2925 = vmatmul.f32.gmra.mxu0 %v2811
        %v2926 = vpop.f32.mrf.mxu0
        %v2927 = vadd.f32 0.0, %v2926
        %2928 = vmatmul.f32.gmra.mxu0 %v2814
        %v2929 = vpop.f32.mrf.mxu0
        %v2930 = vadd.f32 0.0, %v2929
        %2931 = vmatmul.f32.gmra.mxu0 %v2817
        %v2932 = vpop.f32.mrf.mxu0
        %v2933 = vadd.f32 0.0, %v2932
        %2934 = vmatmul.f32.gmra.mxu0 %v2820
        %v2935 = vpop.f32.mrf.mxu0
        %v2936 = vadd.f32 0.0, %v2935
        %2937 = vmatmul.f32.gmra.mxu0 %v2823
        %v2938 = vpop.f32.mrf.mxu0
        %v2939 = vadd.f32 0.0, %v2938
        %2940 = vmatmul.f32.gmra.mxu0 %v2826
        %v2941 = vpop.f32.mrf.mxu0
        %v2942 = vadd.f32 0.0, %v2941
        %2943 = vmatmul.f32.gmra.mxu0 %v2829
        %v2944 = vpop.f32.mrf.mxu0
        %v2945 = vadd.f32 0.0, %v2944
        %2946 = vmatmul.f32.gmra.mxu0 %v2832
        %v2947 = vpop.f32.mrf.mxu0
        %v2948 = vadd.f32 0.0, %v2947
        %2949 = vmatmul.f32.gmra.mxu0 %v2835
        %v2950 = vpop.f32.mrf.mxu0
        %v2951 = vadd.f32 0.0, %v2950
        %2952 = vmatmul.f32.gmra.mxu0 %v2838
        %v2953 = vpop.f32.mrf.mxu0
        %v2954 = vadd.f32 0.0, %v2953
        %2955 = vmatmul.f32.gmra.mxu0 %v2841
        %v2956 = vpop.f32.mrf.mxu0
        %v2957 = vadd.f32 0.0, %v2956
        %2958 = vmatmul.f32.gmra.mxu0 %v2844
        %v2959 = vpop.f32.mrf.mxu0
        %v2960 = vadd.f32 0.0, %v2959
        %2961 = vmatmul.f32.gmra.mxu0 %v2847
        %v2962 = vpop.f32.mrf.mxu0
        %v2963 = vadd.f32 0.0, %v2962
        %2964 = vmatmul.f32.gmra.mxu0 %v2850
        %v2965 = vpop.f32.mrf.mxu0
        %v2966 = vadd.f32 0.0, %v2965
        %2967 = vmatmul.f32.gmra.mxu0 %v2853
        %v2968 = vpop.f32.mrf.mxu0
        %v2969 = vadd.f32 0.0, %v2968
        %2970 = vmatmul.f32.gmra.mxu0 %v2856
        %v2971 = vpop.f32.mrf.mxu0
        %v2972 = vadd.f32 0.0, %v2971
        %2973 = vmatmul.f32.gmra.mxu0 %v2859
        %v2974 = vpop.f32.mrf.mxu0
        %v2975 = vadd.f32 0.0, %v2974
        %2976 = vmatmul.f32.gmra.mxu0 %v2862
        %v2977 = vpop.f32.mrf.mxu0
        %v2978 = vadd.f32 0.0, %v2977
        %2979 = vmatmul.f32.gmra.mxu0 %v2865
        %v2980 = vpop.f32.mrf.mxu0
        %v2981 = vadd.f32 0.0, %v2980
        %2982 = vmatmul.f32.gmra.mxu0 %v2868
        %v2983 = vpop.f32.mrf.mxu0
        %v2984 = vadd.f32 0.0, %v2983
        %2985 = vmatmul.f32.gmra.mxu0 %v2871
        %v2986 = vpop.f32.mrf.mxu0
        %v2987 = vadd.f32 0.0, %v2986
        %2988 = vmatmul.f32.gmra.mxu0 %v2874
        %v2989 = vpop.f32.mrf.mxu0
        %v2990 = vadd.f32 0.0, %v2989
        %2991 = vmatmul.f32.gmra.mxu0 %v2877
        %v2992 = vpop.f32.mrf.mxu0
        %v2993 = vadd.f32 0.0, %v2992
        %2994 = vmatmul.f32.gmra.mxu0 %v2880
        %v2995 = vpop.f32.mrf.mxu0
        %v2996 = vadd.f32 0.0, %v2995
        %2997 = vmatmul.f32.gmra.mxu0 %v2883
        %v2998 = vpop.f32.mrf.mxu0
        %v2999 = vadd.f32 0.0, %v2998
        %3000 = vmatmul.f32.gmra.mxu0 %v2886
        %v3001 = vpop.f32.mrf.mxu0
        %v3002 = vadd.f32 0.0, %v3001
        %3003 = vmatmul.f32.gmra.mxu0 %v2889
        %v3004 = vpop.f32.mrf.mxu0
        %v3005 = vadd.f32 0.0, %v3004
        %3006 = vdwg.mxu0
        %v3007 = vadd.f32 %v2697, %v2912
        %v3008 = vadd.f32 %v2698, %v2915
        %v3009 = vadd.f32 %v2699, %v2918
        %v3010 = vadd.f32 %v2700, %v2921
        %v3011 = vadd.f32 %v2701, %v2924
        %v3012 = vadd.f32 %v2702, %v2927
        %v3013 = vadd.f32 %v2703, %v2930
        %v3014 = vadd.f32 %v2704, %v2933
        %v3015 = vadd.f32 %v2705, %v2936
        %v3016 = vadd.f32 %v2706, %v2939
        %v3017 = vadd.f32 %v2707, %v2942
        %v3018 = vadd.f32 %v2708, %v2945
        %v3019 = vadd.f32 %v2709, %v2948
        %v3020 = vadd.f32 %v2710, %v2951
        %v3021 = vadd.f32 %v2711, %v2954
        %v3022 = vadd.f32 %v2712, %v2957
        %v3023 = vadd.f32 %v2713, %v2960
        %v3024 = vadd.f32 %v2714, %v2963
        %v3025 = vadd.f32 %v2715, %v2966
        %v3026 = vadd.f32 %v2716, %v2969
        %v3027 = vadd.f32 %v2717, %v2972
        %v3028 = vadd.f32 %v2718, %v2975
        %v3029 = vadd.f32 %v2719, %v2978
        %v3030 = vadd.f32 %v2720, %v2981
        %v3031 = vadd.f32 %v2721, %v2984
        %v3032 = vadd.f32 %v2722, %v2987
        %v3033 = vadd.f32 %v2723, %v2990
        %v3034 = vadd.f32 %v2724, %v2993
        %v3035 = vadd.f32 %v2725, %v2996
        %v3036 = vadd.f32 %v2726, %v2999
        %v3037 = vadd.f32 %v2727, %v3002
        %v3038 = vadd.f32 %v2728, %v3005
        %v3039 = vld [vmem:[#allocation2 + $0x27] sm:$0xff]
        %v3040 = vld [vmem:[#allocation2 + $0x2f] sm:$0xff]
        %v3041 = vld [vmem:[#allocation2 + $0x37] sm:$0xff]
        %v3042 = vld [vmem:[#allocation2 + $0x3f] sm:$0xff]
        %v3043 = vld [vmem:[#allocation2 + $0x47] sm:$0xff]
        %v3044 = vld [vmem:[#allocation2 + $0x4f] sm:$0xff]
        %v3045 = vld [vmem:[#allocation2 + $0x57] sm:$0xff]
        %v3046 = vld [vmem:[#allocation2 + $0x5f] sm:$0xff]
        %v3047 = vld [vmem:[#allocation2 + $0x67] sm:$0xff]
        %v3048 = vld [vmem:[#allocation2 + $0x6f] sm:$0xff]
        %v3049 = vld [vmem:[#allocation2 + $0x77] sm:$0xff]
        %v3050 = vld [vmem:[#allocation2 + $0x7f] sm:$0xff]
        %v3051 = vld [vmem:[#allocation2 + $0x87] sm:$0xff]
        %v3052 = vld [vmem:[#allocation2 + $0x8f] sm:$0xff]
        %v3053 = vld [vmem:[#allocation2 + $0x97] sm:$0xff]
        %v3054 = vld [vmem:[#allocation2 + $0x9f] sm:$0xff]
        %v3055 = vld [vmem:[#allocation2 + $0xa7] sm:$0xff]
        %v3056 = vld [vmem:[#allocation2 + $0xaf] sm:$0xff]
        %v3057 = vld [vmem:[#allocation2 + $0xb7] sm:$0xff]
        %v3058 = vld [vmem:[#allocation2 + $0xbf] sm:$0xff]
        %v3059 = vld [vmem:[#allocation2 + $0xc7] sm:$0xff]
        %v3060 = vld [vmem:[#allocation2 + $0xcf] sm:$0xff]
        %v3061 = vld [vmem:[#allocation2 + $0xd7] sm:$0xff]
        %v3062 = vld [vmem:[#allocation2 + $0xdf] sm:$0xff]
        %v3063 = vld [vmem:[#allocation2 + $0xe7] sm:$0xff]
        %v3064 = vld [vmem:[#allocation2 + $0xef] sm:$0xff]
        %v3065 = vld [vmem:[#allocation2 + $0xf7] sm:$0xff]
        %v3066 = vld [vmem:[#allocation2 + $0xff] sm:$0xff]
        %v3067 = vld [vmem:[#allocation2 + $0x107] sm:$0xff]
        %v3068 = vld [vmem:[#allocation2 + $0x10f] sm:$0xff]
        %v3069 = vld [vmem:[#allocation2 + $0x117] sm:$0xff]
        %v3070 = vld [vmem:[#allocation2 + $0x11f] sm:$0xff]
        %v3071 = vmul.f32 %v3039, %v1142
        %v3072 = vmul.f32 %v3040, %v1143
        %v3073 = vmul.f32 %v3041, %v1144
        %v3074 = vmul.f32 %v3042, %v1145
        %v3075 = vmul.f32 %v3043, %v1146
        %v3076 = vmul.f32 %v3044, %v1147
        %v3077 = vmul.f32 %v3045, %v1148
        %v3078 = vmul.f32 %v3046, %v1149
        %v3079 = vmul.f32 %v3047, %v1150
        %v3080 = vmul.f32 %v3048, %v1151
        %v3081 = vmul.f32 %v3049, %v1152
        %v3082 = vmul.f32 %v3050, %v1153
        %v3083 = vmul.f32 %v3051, %v1154
        %v3084 = vmul.f32 %v3052, %v1155
        %v3085 = vmul.f32 %v3053, %v1156
        %v3086 = vmul.f32 %v3054, %v1157
        %v3087 = vmul.f32 %v3055, %v1158
        %v3088 = vmul.f32 %v3056, %v1159
        %v3089 = vmul.f32 %v3057, %v1160
        %v3090 = vmul.f32 %v3058, %v1161
        %v3091 = vmul.f32 %v3059, %v1162
        %v3092 = vmul.f32 %v3060, %v1163
        %v3093 = vmul.f32 %v3061, %v1164
        %v3094 = vmul.f32 %v3062, %v1165
        %v3095 = vmul.f32 %v3063, %v1166
        %v3096 = vmul.f32 %v3064, %v1167
        %v3097 = vmul.f32 %v3065, %v1168
        %v3098 = vmul.f32 %v3066, %v1169
        %v3099 = vmul.f32 %v3067, %v1170
        %v3100 = vmul.f32 %v3068, %v1171
        %v3101 = vmul.f32 %v3069, %v1172
        %v3102 = vmul.f32 %v3070, %v1173
        %s3103 = scalar_lea.vmem [#allocation6], 24
        %v3104 = vld [vmem:[%s3103] sm:$0xf]
        %v3106 = vsel %vm622, %v3071, 0
        %v3109 = vsel %vm622, %v3072, 0
        %v3112 = vsel %vm622, %v3073, 0
        %v3115 = vsel %vm622, %v3074, 0
        %v3118 = vsel %vm622, %v3075, 0
        %v3121 = vsel %vm622, %v3076, 0
        %v3124 = vsel %vm622, %v3077, 0
        %v3127 = vsel %vm622, %v3078, 0
        %v3130 = vsel %vm622, %v3079, 0
        %v3133 = vsel %vm622, %v3080, 0
        %v3136 = vsel %vm622, %v3081, 0
        %v3139 = vsel %vm622, %v3082, 0
        %v3142 = vsel %vm622, %v3083, 0
        %v3145 = vsel %vm622, %v3084, 0
        %v3148 = vsel %vm622, %v3085, 0
        %v3151 = vsel %vm622, %v3086, 0
        %v3154 = vsel %vm622, %v3087, 0
        %v3157 = vsel %vm622, %v3088, 0
        %v3160 = vsel %vm622, %v3089, 0
        %v3163 = vsel %vm622, %v3090, 0
        %v3166 = vsel %vm622, %v3091, 0
        %v3169 = vsel %vm622, %v3092, 0
        %v3172 = vsel %vm622, %v3093, 0
        %v3175 = vsel %vm622, %v3094, 0
        %v3178 = vsel %vm622, %v3095, 0
        %v3181 = vsel %vm622, %v3096, 0
        %v3184 = vsel %vm622, %v3097, 0
        %v3187 = vsel %vm622, %v3098, 0
        %v3190 = vsel %vm622, %v3099, 0
        %v3193 = vsel %vm622, %v3100, 0
        %v3196 = vsel %vm622, %v3101, 0
        %v3199 = vsel %vm622, %v3102, 0
        %v3202 = vsel %vm1404, %v3104, 0
        %3204 = vmatpush.msra.mxu0 0.0
        %3205 = vmatpush.msra.mxu0 0.0
        %3206 = vmatpush.msra.mxu0 0.0
        %3207 = vmatpush.msra.mxu0 0.0
        %3208 = vmatpush.msra.mxu0 0.0
        %3209 = vmatpush.msra.mxu0 0.0
        %3210 = vmatpush.msra.mxu0 0.0
        %3211 = vmatpush.msra.mxu0 0.0
        %3212 = vmatpush.msra.mxu0 0.0
        %3213 = vmatpush.msra.mxu0 0.0
        %3214 = vmatpush.msra.mxu0 0.0
        %3215 = vmatpush.msra.mxu0 0.0
        %3216 = vmatpush.msra.mxu0 0.0
        %3217 = vmatpush.msra.mxu0 0.0
        %3218 = vmatpush.msra.mxu0 0.0
        %3219 = vmatpush.msra.mxu0 %v3202
        %3220 = vmatmul.f32.gmra.mxu0 %v3106
        %v3221 = vpop.f32.mrf.mxu0
        %v3222 = vadd.f32 0.0, %v3221
        %3223 = vmatmul.f32.gmra.mxu0 %v3109
        %v3224 = vpop.f32.mrf.mxu0
        %v3225 = vadd.f32 0.0, %v3224
        %3226 = vmatmul.f32.gmra.mxu0 %v3112
        %v3227 = vpop.f32.mrf.mxu0
        %v3228 = vadd.f32 0.0, %v3227
        %3229 = vmatmul.f32.gmra.mxu0 %v3115
        %v3230 = vpop.f32.mrf.mxu0
        %v3231 = vadd.f32 0.0, %v3230
        %3232 = vmatmul.f32.gmra.mxu0 %v3118
        %v3233 = vpop.f32.mrf.mxu0
        %v3234 = vadd.f32 0.0, %v3233
        %3235 = vmatmul.f32.gmra.mxu0 %v3121
        %v3236 = vpop.f32.mrf.mxu0
        %v3237 = vadd.f32 0.0, %v3236
        %3238 = vmatmul.f32.gmra.mxu0 %v3124
        %v3239 = vpop.f32.mrf.mxu0
        %v3240 = vadd.f32 0.0, %v3239
        %3241 = vmatmul.f32.gmra.mxu0 %v3127
        %v3242 = vpop.f32.mrf.mxu0
        %v3243 = vadd.f32 0.0, %v3242
        %3244 = vmatmul.f32.gmra.mxu0 %v3130
        %v3245 = vpop.f32.mrf.mxu0
        %v3246 = vadd.f32 0.0, %v3245
        %3247 = vmatmul.f32.gmra.mxu0 %v3133
        %v3248 = vpop.f32.mrf.mxu0
        %v3249 = vadd.f32 0.0, %v3248
        %3250 = vmatmul.f32.gmra.mxu0 %v3136
        %v3251 = vpop.f32.mrf.mxu0
        %v3252 = vadd.f32 0.0, %v3251
        %3253 = vmatmul.f32.gmra.mxu0 %v3139
        %v3254 = vpop.f32.mrf.mxu0
        %v3255 = vadd.f32 0.0, %v3254
        %3256 = vmatmul.f32.gmra.mxu0 %v3142
        %v3257 = vpop.f32.mrf.mxu0
        %v3258 = vadd.f32 0.0, %v3257
        %3259 = vmatmul.f32.gmra.mxu0 %v3145
        %v3260 = vpop.f32.mrf.mxu0
        %v3261 = vadd.f32 0.0, %v3260
        %3262 = vmatmul.f32.gmra.mxu0 %v3148
        %v3263 = vpop.f32.mrf.mxu0
        %v3264 = vadd.f32 0.0, %v3263
        %3265 = vmatmul.f32.gmra.mxu0 %v3151
        %v3266 = vpop.f32.mrf.mxu0
        %v3267 = vadd.f32 0.0, %v3266
        %3268 = vmatmul.f32.gmra.mxu0 %v3154
        %v3269 = vpop.f32.mrf.mxu0
        %v3270 = vadd.f32 0.0, %v3269
        %3271 = vmatmul.f32.gmra.mxu0 %v3157
        %v3272 = vpop.f32.mrf.mxu0
        %v3273 = vadd.f32 0.0, %v3272
        %3274 = vmatmul.f32.gmra.mxu0 %v3160
        %v3275 = vpop.f32.mrf.mxu0
        %v3276 = vadd.f32 0.0, %v3275
        %3277 = vmatmul.f32.gmra.mxu0 %v3163
        %v3278 = vpop.f32.mrf.mxu0
        %v3279 = vadd.f32 0.0, %v3278
        %3280 = vmatmul.f32.gmra.mxu0 %v3166
        %v3281 = vpop.f32.mrf.mxu0
        %v3282 = vadd.f32 0.0, %v3281
        %3283 = vmatmul.f32.gmra.mxu0 %v3169
        %v3284 = vpop.f32.mrf.mxu0
        %v3285 = vadd.f32 0.0, %v3284
        %3286 = vmatmul.f32.gmra.mxu0 %v3172
        %v3287 = vpop.f32.mrf.mxu0
        %v3288 = vadd.f32 0.0, %v3287
        %3289 = vmatmul.f32.gmra.mxu0 %v3175
        %v3290 = vpop.f32.mrf.mxu0
        %v3291 = vadd.f32 0.0, %v3290
        %3292 = vmatmul.f32.gmra.mxu0 %v3178
        %v3293 = vpop.f32.mrf.mxu0
        %v3294 = vadd.f32 0.0, %v3293
        %3295 = vmatmul.f32.gmra.mxu0 %v3181
        %v3296 = vpop.f32.mrf.mxu0
        %v3297 = vadd.f32 0.0, %v3296
        %3298 = vmatmul.f32.gmra.mxu0 %v3184
        %v3299 = vpop.f32.mrf.mxu0
        %v3300 = vadd.f32 0.0, %v3299
        %3301 = vmatmul.f32.gmra.mxu0 %v3187
        %v3302 = vpop.f32.mrf.mxu0
        %v3303 = vadd.f32 0.0, %v3302
        %3304 = vmatmul.f32.gmra.mxu0 %v3190
        %v3305 = vpop.f32.mrf.mxu0
        %v3306 = vadd.f32 0.0, %v3305
        %3307 = vmatmul.f32.gmra.mxu0 %v3193
        %v3308 = vpop.f32.mrf.mxu0
        %v3309 = vadd.f32 0.0, %v3308
        %3310 = vmatmul.f32.gmra.mxu0 %v3196
        %v3311 = vpop.f32.mrf.mxu0
        %v3312 = vadd.f32 0.0, %v3311
        %3313 = vmatmul.f32.gmra.mxu0 %v3199
        %v3314 = vpop.f32.mrf.mxu0
        %v3315 = vadd.f32 0.0, %v3314
        %3316 = vdwg.mxu0
        %v3317 = vadd.f32 %v3007, %v3222
        %v3318 = vadd.f32 %v3008, %v3225
        %v3319 = vadd.f32 %v3009, %v3228
        %v3320 = vadd.f32 %v3010, %v3231
        %v3321 = vadd.f32 %v3011, %v3234
        %v3322 = vadd.f32 %v3012, %v3237
        %v3323 = vadd.f32 %v3013, %v3240
        %v3324 = vadd.f32 %v3014, %v3243
        %v3325 = vadd.f32 %v3015, %v3246
        %v3326 = vadd.f32 %v3016, %v3249
        %v3327 = vadd.f32 %v3017, %v3252
        %v3328 = vadd.f32 %v3018, %v3255
        %v3329 = vadd.f32 %v3019, %v3258
        %v3330 = vadd.f32 %v3020, %v3261
        %v3331 = vadd.f32 %v3021, %v3264
        %v3332 = vadd.f32 %v3022, %v3267
        %v3333 = vadd.f32 %v3023, %v3270
        %v3334 = vadd.f32 %v3024, %v3273
        %v3335 = vadd.f32 %v3025, %v3276
        %v3336 = vadd.f32 %v3026, %v3279
        %v3337 = vadd.f32 %v3027, %v3282
        %v3338 = vadd.f32 %v3028, %v3285
        %v3339 = vadd.f32 %v3029, %v3288
        %v3340 = vadd.f32 %v3030, %v3291
        %v3341 = vadd.f32 %v3031, %v3294
        %v3342 = vadd.f32 %v3032, %v3297
        %v3343 = vadd.f32 %v3033, %v3300
        %v3344 = vadd.f32 %v3034, %v3303
        %v3345 = vadd.f32 %v3035, %v3306
        %v3346 = vadd.f32 %v3036, %v3309
        %v3347 = vadd.f32 %v3037, %v3312
        %v3348 = vadd.f32 %v3038, %v3315
        %v3349 = vld [vmem:[#allocation2 + $0x28] sm:$0xff]
        %v3350 = vld [vmem:[#allocation2 + $0x30] sm:$0xff]
        %v3351 = vld [vmem:[#allocation2 + $0x38] sm:$0xff]
        %v3352 = vld [vmem:[#allocation2 + $0x40] sm:$0xff]
        %v3353 = vld [vmem:[#allocation2 + $0x48] sm:$0xff]
        %v3354 = vld [vmem:[#allocation2 + $0x50] sm:$0xff]
        %v3355 = vld [vmem:[#allocation2 + $0x58] sm:$0xff]
        %v3356 = vld [vmem:[#allocation2 + $0x60] sm:$0xff]
        %v3357 = vld [vmem:[#allocation2 + $0x68] sm:$0xff]
        %v3358 = vld [vmem:[#allocation2 + $0x70] sm:$0xff]
        %v3359 = vld [vmem:[#allocation2 + $0x78] sm:$0xff]
        %v3360 = vld [vmem:[#allocation2 + $0x80] sm:$0xff]
        %v3361 = vld [vmem:[#allocation2 + $0x88] sm:$0xff]
        %v3362 = vld [vmem:[#allocation2 + $0x90] sm:$0xff]
        %v3363 = vld [vmem:[#allocation2 + $0x98] sm:$0xff]
        %v3364 = vld [vmem:[#allocation2 + $0xa0] sm:$0xff]
        %v3365 = vld [vmem:[#allocation2 + $0xa8] sm:$0xff]
        %v3366 = vld [vmem:[#allocation2 + $0xb0] sm:$0xff]
        %v3367 = vld [vmem:[#allocation2 + $0xb8] sm:$0xff]
        %v3368 = vld [vmem:[#allocation2 + $0xc0] sm:$0xff]
        %v3369 = vld [vmem:[#allocation2 + $0xc8] sm:$0xff]
        %v3370 = vld [vmem:[#allocation2 + $0xd0] sm:$0xff]
        %v3371 = vld [vmem:[#allocation2 + $0xd8] sm:$0xff]
        %v3372 = vld [vmem:[#allocation2 + $0xe0] sm:$0xff]
        %v3373 = vld [vmem:[#allocation2 + $0xe8] sm:$0xff]
        %v3374 = vld [vmem:[#allocation2 + $0xf0] sm:$0xff]
        %v3375 = vld [vmem:[#allocation2 + $0xf8] sm:$0xff]
        %v3376 = vld [vmem:[#allocation2 + $0x100] sm:$0xff]
        %v3377 = vld [vmem:[#allocation2 + $0x108] sm:$0xff]
        %v3378 = vld [vmem:[#allocation2 + $0x110] sm:$0xff]
        %v3379 = vld [vmem:[#allocation2 + $0x118] sm:$0xff]
        %v3380 = vld [vmem:[#allocation2 + $0x120] sm:$0xff]
        %s3381 = scalar_lea.vmem [#allocation6], 28
        %v3382 = vld [vmem:[%s3381] sm:$0xf]
        %v3384 = vsel %vm622, %v3349, 0
        %v3387 = vsel %vm622, %v3350, 0
        %v3390 = vsel %vm622, %v3351, 0
        %v3393 = vsel %vm622, %v3352, 0
        %v3396 = vsel %vm622, %v3353, 0
        %v3399 = vsel %vm622, %v3354, 0
        %v3402 = vsel %vm622, %v3355, 0
        %v3405 = vsel %vm622, %v3356, 0
        %v3408 = vsel %vm622, %v3357, 0
        %v3411 = vsel %vm622, %v3358, 0
        %v3414 = vsel %vm622, %v3359, 0
        %v3417 = vsel %vm622, %v3360, 0
        %v3420 = vsel %vm622, %v3361, 0
        %v3423 = vsel %vm622, %v3362, 0
        %v3426 = vsel %vm622, %v3363, 0
        %v3429 = vsel %vm622, %v3364, 0
        %v3432 = vsel %vm622, %v3365, 0
        %v3435 = vsel %vm622, %v3366, 0
        %v3438 = vsel %vm622, %v3367, 0
        %v3441 = vsel %vm622, %v3368, 0
        %v3444 = vsel %vm622, %v3369, 0
        %v3447 = vsel %vm622, %v3370, 0
        %v3450 = vsel %vm622, %v3371, 0
        %v3453 = vsel %vm622, %v3372, 0
        %v3456 = vsel %vm622, %v3373, 0
        %v3459 = vsel %vm622, %v3374, 0
        %v3462 = vsel %vm622, %v3375, 0
        %v3465 = vsel %vm622, %v3376, 0
        %v3468 = vsel %vm622, %v3377, 0
        %v3471 = vsel %vm622, %v3378, 0
        %v3474 = vsel %vm622, %v3379, 0
        %v3477 = vsel %vm622, %v3380, 0
        %v3480 = vsel %vm1404, %v3382, 0
        %3482 = vmatpush.msra.mxu0 0.0
        %3483 = vmatpush.msra.mxu0 0.0
        %3484 = vmatpush.msra.mxu0 0.0
        %3485 = vmatpush.msra.mxu0 0.0
        %3486 = vmatpush.msra.mxu0 0.0
        %3487 = vmatpush.msra.mxu0 0.0
        %3488 = vmatpush.msra.mxu0 0.0
        %3489 = vmatpush.msra.mxu0 0.0
        %3490 = vmatpush.msra.mxu0 0.0
        %3491 = vmatpush.msra.mxu0 0.0
        %3492 = vmatpush.msra.mxu0 0.0
        %3493 = vmatpush.msra.mxu0 0.0
        %3494 = vmatpush.msra.mxu0 0.0
        %3495 = vmatpush.msra.mxu0 0.0
        %3496 = vmatpush.msra.mxu0 0.0
        %3497 = vmatpush.msra.mxu0 %v3480
        %3498 = vmatmul.f32.gmra.mxu0 %v3384
        %v3499 = vpop.f32.mrf.mxu0
        %v3500 = vadd.f32 0.0, %v3499
        %3501 = vmatmul.f32.gmra.mxu0 %v3387
        %v3502 = vpop.f32.mrf.mxu0
        %v3503 = vadd.f32 0.0, %v3502
        %3504 = vmatmul.f32.gmra.mxu0 %v3390
        %v3505 = vpop.f32.mrf.mxu0
        %v3506 = vadd.f32 0.0, %v3505
        %3507 = vmatmul.f32.gmra.mxu0 %v3393
        %v3508 = vpop.f32.mrf.mxu0
        %v3509 = vadd.f32 0.0, %v3508
        %3510 = vmatmul.f32.gmra.mxu0 %v3396
        %v3511 = vpop.f32.mrf.mxu0
        %v3512 = vadd.f32 0.0, %v3511
        %3513 = vmatmul.f32.gmra.mxu0 %v3399
        %v3514 = vpop.f32.mrf.mxu0
        %v3515 = vadd.f32 0.0, %v3514
        %3516 = vmatmul.f32.gmra.mxu0 %v3402
        %v3517 = vpop.f32.mrf.mxu0
        %v3518 = vadd.f32 0.0, %v3517
        %3519 = vmatmul.f32.gmra.mxu0 %v3405
        %v3520 = vpop.f32.mrf.mxu0
        %v3521 = vadd.f32 0.0, %v3520
        %3522 = vmatmul.f32.gmra.mxu0 %v3408
        %v3523 = vpop.f32.mrf.mxu0
        %v3524 = vadd.f32 0.0, %v3523
        %3525 = vmatmul.f32.gmra.mxu0 %v3411
        %v3526 = vpop.f32.mrf.mxu0
        %v3527 = vadd.f32 0.0, %v3526
        %3528 = vmatmul.f32.gmra.mxu0 %v3414
        %v3529 = vpop.f32.mrf.mxu0
        %v3530 = vadd.f32 0.0, %v3529
        %3531 = vmatmul.f32.gmra.mxu0 %v3417
        %v3532 = vpop.f32.mrf.mxu0
        %v3533 = vadd.f32 0.0, %v3532
        %3534 = vmatmul.f32.gmra.mxu0 %v3420
        %v3535 = vpop.f32.mrf.mxu0
        %v3536 = vadd.f32 0.0, %v3535
        %3537 = vmatmul.f32.gmra.mxu0 %v3423
        %v3538 = vpop.f32.mrf.mxu0
        %v3539 = vadd.f32 0.0, %v3538
        %3540 = vmatmul.f32.gmra.mxu0 %v3426
        %v3541 = vpop.f32.mrf.mxu0
        %v3542 = vadd.f32 0.0, %v3541
        %3543 = vmatmul.f32.gmra.mxu0 %v3429
        %v3544 = vpop.f32.mrf.mxu0
        %v3545 = vadd.f32 0.0, %v3544
        %3546 = vmatmul.f32.gmra.mxu0 %v3432
        %v3547 = vpop.f32.mrf.mxu0
        %v3548 = vadd.f32 0.0, %v3547
        %3549 = vmatmul.f32.gmra.mxu0 %v3435
        %v3550 = vpop.f32.mrf.mxu0
        %v3551 = vadd.f32 0.0, %v3550
        %3552 = vmatmul.f32.gmra.mxu0 %v3438
        %v3553 = vpop.f32.mrf.mxu0
        %v3554 = vadd.f32 0.0, %v3553
        %3555 = vmatmul.f32.gmra.mxu0 %v3441
        %v3556 = vpop.f32.mrf.mxu0
        %v3557 = vadd.f32 0.0, %v3556
        %3558 = vmatmul.f32.gmra.mxu0 %v3444
        %v3559 = vpop.f32.mrf.mxu0
        %v3560 = vadd.f32 0.0, %v3559
        %3561 = vmatmul.f32.gmra.mxu0 %v3447
        %v3562 = vpop.f32.mrf.mxu0
        %v3563 = vadd.f32 0.0, %v3562
        %3564 = vmatmul.f32.gmra.mxu0 %v3450
        %v3565 = vpop.f32.mrf.mxu0
        %v3566 = vadd.f32 0.0, %v3565
        %3567 = vmatmul.f32.gmra.mxu0 %v3453
        %v3568 = vpop.f32.mrf.mxu0
        %v3569 = vadd.f32 0.0, %v3568
        %3570 = vmatmul.f32.gmra.mxu0 %v3456
        %v3571 = vpop.f32.mrf.mxu0
        %v3572 = vadd.f32 0.0, %v3571
        %3573 = vmatmul.f32.gmra.mxu0 %v3459
        %v3574 = vpop.f32.mrf.mxu0
        %v3575 = vadd.f32 0.0, %v3574
        %3576 = vmatmul.f32.gmra.mxu0 %v3462
        %v3577 = vpop.f32.mrf.mxu0
        %v3578 = vadd.f32 0.0, %v3577
        %3579 = vmatmul.f32.gmra.mxu0 %v3465
        %v3580 = vpop.f32.mrf.mxu0
        %v3581 = vadd.f32 0.0, %v3580
        %3582 = vmatmul.f32.gmra.mxu0 %v3468
        %v3583 = vpop.f32.mrf.mxu0
        %v3584 = vadd.f32 0.0, %v3583
        %3585 = vmatmul.f32.gmra.mxu0 %v3471
        %v3586 = vpop.f32.mrf.mxu0
        %v3587 = vadd.f32 0.0, %v3586
        %3588 = vmatmul.f32.gmra.mxu0 %v3474
        %v3589 = vpop.f32.mrf.mxu0
        %v3590 = vadd.f32 0.0, %v3589
        %3591 = vmatmul.f32.gmra.mxu0 %v3477
        %v3592 = vpop.f32.mrf.mxu0
        %v3593 = vadd.f32 0.0, %v3592
        %3594 = vdwg.mxu0
        %v3595 = vadd.f32 %v3317, %v3500
        %v3596 = vadd.f32 %v3318, %v3503
        %v3597 = vadd.f32 %v3319, %v3506
        %v3598 = vadd.f32 %v3320, %v3509
        %v3599 = vadd.f32 %v3321, %v3512
        %v3600 = vadd.f32 %v3322, %v3515
        %v3601 = vadd.f32 %v3323, %v3518
        %v3602 = vadd.f32 %v3324, %v3521
        %v3603 = vadd.f32 %v3325, %v3524
        %v3604 = vadd.f32 %v3326, %v3527
        %v3605 = vadd.f32 %v3327, %v3530
        %v3606 = vadd.f32 %v3328, %v3533
        %v3607 = vadd.f32 %v3329, %v3536
        %v3608 = vadd.f32 %v3330, %v3539
        %v3609 = vadd.f32 %v3331, %v3542
        %v3610 = vadd.f32 %v3332, %v3545
        %v3611 = vadd.f32 %v3333, %v3548
        %v3612 = vadd.f32 %v3334, %v3551
        %v3613 = vadd.f32 %v3335, %v3554
        %v3614 = vadd.f32 %v3336, %v3557
        %v3615 = vadd.f32 %v3337, %v3560
        %v3616 = vadd.f32 %v3338, %v3563
        %v3617 = vadd.f32 %v3339, %v3566
        %v3618 = vadd.f32 %v3340, %v3569
        %v3619 = vadd.f32 %v3341, %v3572
        %v3620 = vadd.f32 %v3342, %v3575
        %v3621 = vadd.f32 %v3343, %v3578
        %v3622 = vadd.f32 %v3344, %v3581
        %v3623 = vadd.f32 %v3345, %v3584
        %v3624 = vadd.f32 %v3346, %v3587
        %v3625 = vadd.f32 %v3347, %v3590
        %v3626 = vadd.f32 %v3348, %v3593
        %v3627 = vld [vmem:[#allocation2 + $0x29] sm:$0xff]
        %v3628 = vld [vmem:[#allocation2 + $0x31] sm:$0xff]
        %v3629 = vld [vmem:[#allocation2 + $0x39] sm:$0xff]
        %v3630 = vld [vmem:[#allocation2 + $0x41] sm:$0xff]
        %v3631 = vld [vmem:[#allocation2 + $0x49] sm:$0xff]
        %v3632 = vld [vmem:[#allocation2 + $0x51] sm:$0xff]
        %v3633 = vld [vmem:[#allocation2 + $0x59] sm:$0xff]
        %v3634 = vld [vmem:[#allocation2 + $0x61] sm:$0xff]
        %v3635 = vld [vmem:[#allocation2 + $0x69] sm:$0xff]
        %v3636 = vld [vmem:[#allocation2 + $0x71] sm:$0xff]
        %v3637 = vld [vmem:[#allocation2 + $0x79] sm:$0xff]
        %v3638 = vld [vmem:[#allocation2 + $0x81] sm:$0xff]
        %v3639 = vld [vmem:[#allocation2 + $0x89] sm:$0xff]
        %v3640 = vld [vmem:[#allocation2 + $0x91] sm:$0xff]
        %v3641 = vld [vmem:[#allocation2 + $0x99] sm:$0xff]
        %v3642 = vld [vmem:[#allocation2 + $0xa1] sm:$0xff]
        %v3643 = vld [vmem:[#allocation2 + $0xa9] sm:$0xff]
        %v3644 = vld [vmem:[#allocation2 + $0xb1] sm:$0xff]
        %v3645 = vld [vmem:[#allocation2 + $0xb9] sm:$0xff]
        %v3646 = vld [vmem:[#allocation2 + $0xc1] sm:$0xff]
        %v3647 = vld [vmem:[#allocation2 + $0xc9] sm:$0xff]
        %v3648 = vld [vmem:[#allocation2 + $0xd1] sm:$0xff]
        %v3649 = vld [vmem:[#allocation2 + $0xd9] sm:$0xff]
        %v3650 = vld [vmem:[#allocation2 + $0xe1] sm:$0xff]
        %v3651 = vld [vmem:[#allocation2 + $0xe9] sm:$0xff]
        %v3652 = vld [vmem:[#allocation2 + $0xf1] sm:$0xff]
        %v3653 = vld [vmem:[#allocation2 + $0xf9] sm:$0xff]
        %v3654 = vld [vmem:[#allocation2 + $0x101] sm:$0xff]
        %v3655 = vld [vmem:[#allocation2 + $0x109] sm:$0xff]
        %v3656 = vld [vmem:[#allocation2 + $0x111] sm:$0xff]
        %v3657 = vld [vmem:[#allocation2 + $0x119] sm:$0xff]
        %v3658 = vld [vmem:[#allocation2 + $0x121] sm:$0xff]
        %v3659 = vmul.f32 %v3627, %v1206
        %v3660 = vmul.f32 %v3628, %v1207
        %v3661 = vmul.f32 %v3629, %v1208
        %v3662 = vmul.f32 %v3630, %v1209
        %v3663 = vmul.f32 %v3631, %v1210
        %v3664 = vmul.f32 %v3632, %v1211
        %v3665 = vmul.f32 %v3633, %v1212
        %v3666 = vmul.f32 %v3634, %v1213
        %v3667 = vmul.f32 %v3635, %v1214
        %v3668 = vmul.f32 %v3636, %v1215
        %v3669 = vmul.f32 %v3637, %v1216
        %v3670 = vmul.f32 %v3638, %v1217
        %v3671 = vmul.f32 %v3639, %v1218
        %v3672 = vmul.f32 %v3640, %v1219
        %v3673 = vmul.f32 %v3641, %v1220
        %v3674 = vmul.f32 %v3642, %v1221
        %v3675 = vmul.f32 %v3643, %v1222
        %v3676 = vmul.f32 %v3644, %v1223
        %v3677 = vmul.f32 %v3645, %v1224
        %v3678 = vmul.f32 %v3646, %v1225
        %v3679 = vmul.f32 %v3647, %v1226
        %v3680 = vmul.f32 %v3648, %v1227
        %v3681 = vmul.f32 %v3649, %v1228
        %v3682 = vmul.f32 %v3650, %v1229
        %v3683 = vmul.f32 %v3651, %v1230
        %v3684 = vmul.f32 %v3652, %v1231
        %v3685 = vmul.f32 %v3653, %v1232
        %v3686 = vmul.f32 %v3654, %v1233
        %v3687 = vmul.f32 %v3655, %v1234
        %v3688 = vmul.f32 %v3656, %v1235
        %v3689 = vmul.f32 %v3657, %v1236
        %v3690 = vmul.f32 %v3658, %v1237
        %s3691 = scalar_lea.vmem [#allocation6], 32
        %v3692 = vld [vmem:[%s3691] sm:$0xf]
        %v3694 = vsel %vm622, %v3659, 0
        %v3697 = vsel %vm622, %v3660, 0
        %v3700 = vsel %vm622, %v3661, 0
        %v3703 = vsel %vm622, %v3662, 0
        %v3706 = vsel %vm622, %v3663, 0
        %v3709 = vsel %vm622, %v3664, 0
        %v3712 = vsel %vm622, %v3665, 0
        %v3715 = vsel %vm622, %v3666, 0
        %v3718 = vsel %vm622, %v3667, 0
        %v3721 = vsel %vm622, %v3668, 0
        %v3724 = vsel %vm622, %v3669, 0
        %v3727 = vsel %vm622, %v3670, 0
        %v3730 = vsel %vm622, %v3671, 0
        %v3733 = vsel %vm622, %v3672, 0
        %v3736 = vsel %vm622, %v3673, 0
        %v3739 = vsel %vm622, %v3674, 0
        %v3742 = vsel %vm622, %v3675, 0
        %v3745 = vsel %vm622, %v3676, 0
        %v3748 = vsel %vm622, %v3677, 0
        %v3751 = vsel %vm622, %v3678, 0
        %v3754 = vsel %vm622, %v3679, 0
        %v3757 = vsel %vm622, %v3680, 0
        %v3760 = vsel %vm622, %v3681, 0
        %v3763 = vsel %vm622, %v3682, 0
        %v3766 = vsel %vm622, %v3683, 0
        %v3769 = vsel %vm622, %v3684, 0
        %v3772 = vsel %vm622, %v3685, 0
        %v3775 = vsel %vm622, %v3686, 0
        %v3778 = vsel %vm622, %v3687, 0
        %v3781 = vsel %vm622, %v3688, 0
        %v3784 = vsel %vm622, %v3689, 0
        %v3787 = vsel %vm622, %v3690, 0
        %v3790 = vsel %vm1404, %v3692, 0
        %3792 = vmatpush.msra.mxu0 0.0
        %3793 = vmatpush.msra.mxu0 0.0
        %3794 = vmatpush.msra.mxu0 0.0
        %3795 = vmatpush.msra.mxu0 0.0
        %3796 = vmatpush.msra.mxu0 0.0
        %3797 = vmatpush.msra.mxu0 0.0
        %3798 = vmatpush.msra.mxu0 0.0
        %3799 = vmatpush.msra.mxu0 0.0
        %3800 = vmatpush.msra.mxu0 0.0
        %3801 = vmatpush.msra.mxu0 0.0
        %3802 = vmatpush.msra.mxu0 0.0
        %3803 = vmatpush.msra.mxu0 0.0
        %3804 = vmatpush.msra.mxu0 0.0
        %3805 = vmatpush.msra.mxu0 0.0
        %3806 = vmatpush.msra.mxu0 0.0
        %3807 = vmatpush.msra.mxu0 %v3790
        %3808 = vmatmul.f32.gmra.mxu0 %v3694
        %v3809 = vpop.f32.mrf.mxu0
        %v3810 = vadd.f32 0.0, %v3809
        %3811 = vmatmul.f32.gmra.mxu0 %v3697
        %v3812 = vpop.f32.mrf.mxu0
        %v3813 = vadd.f32 0.0, %v3812
        %3814 = vmatmul.f32.gmra.mxu0 %v3700
        %v3815 = vpop.f32.mrf.mxu0
        %v3816 = vadd.f32 0.0, %v3815
        %3817 = vmatmul.f32.gmra.mxu0 %v3703
        %v3818 = vpop.f32.mrf.mxu0
        %v3819 = vadd.f32 0.0, %v3818
        %3820 = vmatmul.f32.gmra.mxu0 %v3706
        %v3821 = vpop.f32.mrf.mxu0
        %v3822 = vadd.f32 0.0, %v3821
        %3823 = vmatmul.f32.gmra.mxu0 %v3709
        %v3824 = vpop.f32.mrf.mxu0
        %v3825 = vadd.f32 0.0, %v3824
        %3826 = vmatmul.f32.gmra.mxu0 %v3712
        %v3827 = vpop.f32.mrf.mxu0
        %v3828 = vadd.f32 0.0, %v3827
        %3829 = vmatmul.f32.gmra.mxu0 %v3715
        %v3830 = vpop.f32.mrf.mxu0
        %v3831 = vadd.f32 0.0, %v3830
        %3832 = vmatmul.f32.gmra.mxu0 %v3718
        %v3833 = vpop.f32.mrf.mxu0
        %v3834 = vadd.f32 0.0, %v3833
        %3835 = vmatmul.f32.gmra.mxu0 %v3721
        %v3836 = vpop.f32.mrf.mxu0
        %v3837 = vadd.f32 0.0, %v3836
        %3838 = vmatmul.f32.gmra.mxu0 %v3724
        %v3839 = vpop.f32.mrf.mxu0
        %v3840 = vadd.f32 0.0, %v3839
        %3841 = vmatmul.f32.gmra.mxu0 %v3727
        %v3842 = vpop.f32.mrf.mxu0
        %v3843 = vadd.f32 0.0, %v3842
        %3844 = vmatmul.f32.gmra.mxu0 %v3730
        %v3845 = vpop.f32.mrf.mxu0
        %v3846 = vadd.f32 0.0, %v3845
        %3847 = vmatmul.f32.gmra.mxu0 %v3733
        %v3848 = vpop.f32.mrf.mxu0
        %v3849 = vadd.f32 0.0, %v3848
        %3850 = vmatmul.f32.gmra.mxu0 %v3736
        %v3851 = vpop.f32.mrf.mxu0
        %v3852 = vadd.f32 0.0, %v3851
        %3853 = vmatmul.f32.gmra.mxu0 %v3739
        %v3854 = vpop.f32.mrf.mxu0
        %v3855 = vadd.f32 0.0, %v3854
        %3856 = vmatmul.f32.gmra.mxu0 %v3742
        %v3857 = vpop.f32.mrf.mxu0
        %v3858 = vadd.f32 0.0, %v3857
        %3859 = vmatmul.f32.gmra.mxu0 %v3745
        %v3860 = vpop.f32.mrf.mxu0
        %v3861 = vadd.f32 0.0, %v3860
        %3862 = vmatmul.f32.gmra.mxu0 %v3748
        %v3863 = vpop.f32.mrf.mxu0
        %v3864 = vadd.f32 0.0, %v3863
        %3865 = vmatmul.f32.gmra.mxu0 %v3751
        %v3866 = vpop.f32.mrf.mxu0
        %v3867 = vadd.f32 0.0, %v3866
        %3868 = vmatmul.f32.gmra.mxu0 %v3754
        %v3869 = vpop.f32.mrf.mxu0
        %v3870 = vadd.f32 0.0, %v3869
        %3871 = vmatmul.f32.gmra.mxu0 %v3757
        %v3872 = vpop.f32.mrf.mxu0
        %v3873 = vadd.f32 0.0, %v3872
        %3874 = vmatmul.f32.gmra.mxu0 %v3760
        %v3875 = vpop.f32.mrf.mxu0
        %v3876 = vadd.f32 0.0, %v3875
        %3877 = vmatmul.f32.gmra.mxu0 %v3763
        %v3878 = vpop.f32.mrf.mxu0
        %v3879 = vadd.f32 0.0, %v3878
        %3880 = vmatmul.f32.gmra.mxu0 %v3766
        %v3881 = vpop.f32.mrf.mxu0
        %v3882 = vadd.f32 0.0, %v3881
        %3883 = vmatmul.f32.gmra.mxu0 %v3769
        %v3884 = vpop.f32.mrf.mxu0
        %v3885 = vadd.f32 0.0, %v3884
        %3886 = vmatmul.f32.gmra.mxu0 %v3772
        %v3887 = vpop.f32.mrf.mxu0
        %v3888 = vadd.f32 0.0, %v3887
        %3889 = vmatmul.f32.gmra.mxu0 %v3775
        %v3890 = vpop.f32.mrf.mxu0
        %v3891 = vadd.f32 0.0, %v3890
        %3892 = vmatmul.f32.gmra.mxu0 %v3778
        %v3893 = vpop.f32.mrf.mxu0
        %v3894 = vadd.f32 0.0, %v3893
        %3895 = vmatmul.f32.gmra.mxu0 %v3781
        %v3896 = vpop.f32.mrf.mxu0
        %v3897 = vadd.f32 0.0, %v3896
        %3898 = vmatmul.f32.gmra.mxu0 %v3784
        %v3899 = vpop.f32.mrf.mxu0
        %v3900 = vadd.f32 0.0, %v3899
        %3901 = vmatmul.f32.gmra.mxu0 %v3787
        %v3902 = vpop.f32.mrf.mxu0
        %v3903 = vadd.f32 0.0, %v3902
        %3904 = vdwg.mxu0
        %v3905 = vadd.f32 %v3595, %v3810
        %v3906 = vadd.f32 %v3596, %v3813
        %v3907 = vadd.f32 %v3597, %v3816
        %v3908 = vadd.f32 %v3598, %v3819
        %v3909 = vadd.f32 %v3599, %v3822
        %v3910 = vadd.f32 %v3600, %v3825
        %v3911 = vadd.f32 %v3601, %v3828
        %v3912 = vadd.f32 %v3602, %v3831
        %v3913 = vadd.f32 %v3603, %v3834
        %v3914 = vadd.f32 %v3604, %v3837
        %v3915 = vadd.f32 %v3605, %v3840
        %v3916 = vadd.f32 %v3606, %v3843
        %v3917 = vadd.f32 %v3607, %v3846
        %v3918 = vadd.f32 %v3608, %v3849
        %v3919 = vadd.f32 %v3609, %v3852
        %v3920 = vadd.f32 %v3610, %v3855
        %v3921 = vadd.f32 %v3611, %v3858
        %v3922 = vadd.f32 %v3612, %v3861
        %v3923 = vadd.f32 %v3613, %v3864
        %v3924 = vadd.f32 %v3614, %v3867
        %v3925 = vadd.f32 %v3615, %v3870
        %v3926 = vadd.f32 %v3616, %v3873
        %v3927 = vadd.f32 %v3617, %v3876
        %v3928 = vadd.f32 %v3618, %v3879
        %v3929 = vadd.f32 %v3619, %v3882
        %v3930 = vadd.f32 %v3620, %v3885
        %v3931 = vadd.f32 %v3621, %v3888
        %v3932 = vadd.f32 %v3622, %v3891
        %v3933 = vadd.f32 %v3623, %v3894
        %v3934 = vadd.f32 %v3624, %v3897
        %v3935 = vadd.f32 %v3625, %v3900
        %v3936 = vadd.f32 %v3626, %v3903
        %v3937 = vld [vmem:[%s3] sm:$0xff]
        %v3938 = vld [vmem:[%s3 + $0x8] sm:$0xff]
        %v3939 = vld [vmem:[%s3 + $0x10] sm:$0xff]
        %v3940 = vld [vmem:[%s3 + $0x18] sm:$0xff]
        %v3941 = vld [vmem:[%s3 + $0x20] sm:$0xff]
        %v3942 = vld [vmem:[%s3 + $0x28] sm:$0xff]
        %v3943 = vld [vmem:[%s3 + $0x30] sm:$0xff]
        %v3944 = vld [vmem:[%s3 + $0x38] sm:$0xff]
        %v3945 = vld [vmem:[%s3 + $0x40] sm:$0xff]
        %v3946 = vld [vmem:[%s3 + $0x48] sm:$0xff]
        %v3947 = vld [vmem:[%s3 + $0x50] sm:$0xff]
        %v3948 = vld [vmem:[%s3 + $0x58] sm:$0xff]
        %v3949 = vld [vmem:[%s3 + $0x60] sm:$0xff]
        %v3950 = vld [vmem:[%s3 + $0x68] sm:$0xff]
        %v3951 = vld [vmem:[%s3 + $0x70] sm:$0xff]
        %v3952 = vld [vmem:[%s3 + $0x78] sm:$0xff]
        %3953 = vmatpush.msra.mxu0 %v3920
        %3954 = vmatpush.msra.mxu0 %v3919
        %3955 = vmatpush.msra.mxu0 %v3918
        %3956 = vmatpush.msra.mxu0 %v3917
        %3957 = vmatpush.msra.mxu0 %v3916
        %3958 = vmatpush.msra.mxu0 %v3915
        %3959 = vmatpush.msra.mxu0 %v3914
        %3960 = vmatpush.msra.mxu0 %v3913
        %3961 = vmatpush.msra.mxu0 %v3912
        %3962 = vmatpush.msra.mxu0 %v3911
        %3963 = vmatpush.msra.mxu0 %v3910
        %3964 = vmatpush.msra.mxu0 %v3909
        %3965 = vmatpush.msra.mxu0 %v3908
        %3966 = vmatpush.msra.mxu0 %v3907
        %3967 = vmatpush.msra.mxu0 %v3906
        %3968 = vmatpush.msra.mxu0 %v3905
        %3969 = vmatmul.f32.gmra.mxu0 %v3937
        %v3970 = vpop.f32.mrf.mxu0
        %v3971 = vadd.f32 0.0, %v3970
        %3972 = vmatmul.f32.gmra.mxu0 %v3939
        %v3973 = vpop.f32.mrf.mxu0
        %v3974 = vadd.f32 0.0, %v3973
        %3975 = vmatmul.f32.gmra.mxu0 %v3941
        %v3976 = vpop.f32.mrf.mxu0
        %v3977 = vadd.f32 0.0, %v3976
        %3978 = vmatmul.f32.gmra.mxu0 %v3943
        %v3979 = vpop.f32.mrf.mxu0
        %v3980 = vadd.f32 0.0, %v3979
        %3981 = vmatmul.f32.gmra.mxu0 %v3945
        %v3982 = vpop.f32.mrf.mxu0
        %v3983 = vadd.f32 0.0, %v3982
        %3984 = vmatmul.f32.gmra.mxu0 %v3947
        %v3985 = vpop.f32.mrf.mxu0
        %v3986 = vadd.f32 0.0, %v3985
        %3987 = vmatmul.f32.gmra.mxu0 %v3949
        %v3988 = vpop.f32.mrf.mxu0
        %v3989 = vadd.f32 0.0, %v3988
        %3990 = vmatmul.f32.gmra.mxu0 %v3951
        %v3991 = vpop.f32.mrf.mxu0
        %v3992 = vadd.f32 0.0, %v3991
        %3993 = vdwg.mxu0
        %3994 = vmatpush.msra.mxu0 %v3936
        %3995 = vmatpush.msra.mxu0 %v3935
        %3996 = vmatpush.msra.mxu0 %v3934
        %3997 = vmatpush.msra.mxu0 %v3933
        %3998 = vmatpush.msra.mxu0 %v3932
        %3999 = vmatpush.msra.mxu0 %v3931
        %4000 = vmatpush.msra.mxu0 %v3930
        %4001 = vmatpush.msra.mxu0 %v3929
        %4002 = vmatpush.msra.mxu0 %v3928
        %4003 = vmatpush.msra.mxu0 %v3927
        %4004 = vmatpush.msra.mxu0 %v3926
        %4005 = vmatpush.msra.mxu0 %v3925
        %4006 = vmatpush.msra.mxu0 %v3924
        %4007 = vmatpush.msra.mxu0 %v3923
        %4008 = vmatpush.msra.mxu0 %v3922
        %4009 = vmatpush.msra.mxu0 %v3921
        %4010 = vmatmul.f32.gmra.mxu0 %v3938
        %v4011 = vpop.f32.mrf.mxu0
        %v4012 = vadd.f32 %v3971, %v4011
        %4013 = vmatmul.f32.gmra.mxu0 %v3940
        %v4014 = vpop.f32.mrf.mxu0
        %v4015 = vadd.f32 %v3974, %v4014
        %4016 = vmatmul.f32.gmra.mxu0 %v3942
        %v4017 = vpop.f32.mrf.mxu0
        %v4018 = vadd.f32 %v3977, %v4017
        %4019 = vmatmul.f32.gmra.mxu0 %v3944
        %v4020 = vpop.f32.mrf.mxu0
        %v4021 = vadd.f32 %v3980, %v4020
        %4022 = vmatmul.f32.gmra.mxu0 %v3946
        %v4023 = vpop.f32.mrf.mxu0
        %v4024 = vadd.f32 %v3983, %v4023
        %4025 = vmatmul.f32.gmra.mxu0 %v3948
        %v4026 = vpop.f32.mrf.mxu0
        %v4027 = vadd.f32 %v3986, %v4026
        %4028 = vmatmul.f32.gmra.mxu0 %v3950
        %v4029 = vpop.f32.mrf.mxu0
        %v4030 = vadd.f32 %v3989, %v4029
        %4031 = vmatmul.f32.gmra.mxu0 %v3952
        %v4032 = vpop.f32.mrf.mxu0
        %v4033 = vadd.f32 %v3992, %v4032
        %4034 = vdwg.mxu0
        %s4035 = scalar_lea.vmem %s3, 128
        %v4036 = vld [vmem:[%s4035] sm:$0xff]
        %v4037 = vld [vmem:[%s4035 + $0x8] sm:$0xff]
        %v4038 = vld [vmem:[%s4035 + $0x10] sm:$0xff]
        %v4039 = vld [vmem:[%s4035 + $0x18] sm:$0xff]
        %v4040 = vld [vmem:[%s4035 + $0x20] sm:$0xff]
        %v4041 = vld [vmem:[%s4035 + $0x28] sm:$0xff]
        %v4042 = vld [vmem:[%s4035 + $0x30] sm:$0xff]
        %v4043 = vld [vmem:[%s4035 + $0x38] sm:$0xff]
        %v4044 = vld [vmem:[%s4035 + $0x40] sm:$0xff]
        %v4045 = vld [vmem:[%s4035 + $0x48] sm:$0xff]
        %v4046 = vld [vmem:[%s4035 + $0x50] sm:$0xff]
        %v4047 = vld [vmem:[%s4035 + $0x58] sm:$0xff]
        %v4048 = vld [vmem:[%s4035 + $0x60] sm:$0xff]
        %v4049 = vld [vmem:[%s4035 + $0x68] sm:$0xff]
        %v4050 = vld [vmem:[%s4035 + $0x70] sm:$0xff]
        %v4051 = vld [vmem:[%s4035 + $0x78] sm:$0xff]
        %4052 = vmatpush.msra.mxu0 %v3920
        %4053 = vmatpush.msra.mxu0 %v3919
        %4054 = vmatpush.msra.mxu0 %v3918
        %4055 = vmatpush.msra.mxu0 %v3917
        %4056 = vmatpush.msra.mxu0 %v3916
        %4057 = vmatpush.msra.mxu0 %v3915
        %4058 = vmatpush.msra.mxu0 %v3914
        %4059 = vmatpush.msra.mxu0 %v3913
        %4060 = vmatpush.msra.mxu0 %v3912
        %4061 = vmatpush.msra.mxu0 %v3911
        %4062 = vmatpush.msra.mxu0 %v3910
        %4063 = vmatpush.msra.mxu0 %v3909
        %4064 = vmatpush.msra.mxu0 %v3908
        %4065 = vmatpush.msra.mxu0 %v3907
        %4066 = vmatpush.msra.mxu0 %v3906
        %4067 = vmatpush.msra.mxu0 %v3905
        %4068 = vmatmul.f32.gmra.mxu0 %v4036
        %v4069 = vpop.f32.mrf.mxu0
        %v4070 = vadd.f32 0.0, %v4069
        %4071 = vmatmul.f32.gmra.mxu0 %v4038
        %v4072 = vpop.f32.mrf.mxu0
        %v4073 = vadd.f32 0.0, %v4072
        %4074 = vmatmul.f32.gmra.mxu0 %v4040
        %v4075 = vpop.f32.mrf.mxu0
        %v4076 = vadd.f32 0.0, %v4075
        %4077 = vmatmul.f32.gmra.mxu0 %v4042
        %v4078 = vpop.f32.mrf.mxu0
        %v4079 = vadd.f32 0.0, %v4078
        %4080 = vmatmul.f32.gmra.mxu0 %v4044
        %v4081 = vpop.f32.mrf.mxu0
        %v4082 = vadd.f32 0.0, %v4081
        %4083 = vmatmul.f32.gmra.mxu0 %v4046
        %v4084 = vpop.f32.mrf.mxu0
        %v4085 = vadd.f32 0.0, %v4084
        %4086 = vmatmul.f32.gmra.mxu0 %v4048
        %v4087 = vpop.f32.mrf.mxu0
        %v4088 = vadd.f32 0.0, %v4087
        %4089 = vmatmul.f32.gmra.mxu0 %v4050
        %v4090 = vpop.f32.mrf.mxu0
        %v4091 = vadd.f32 0.0, %v4090
        %4092 = vdwg.mxu0
        %4093 = vmatpush.msra.mxu0 %v3936
        %4094 = vmatpush.msra.mxu0 %v3935
        %4095 = vmatpush.msra.mxu0 %v3934
        %4096 = vmatpush.msra.mxu0 %v3933
        %4097 = vmatpush.msra.mxu0 %v3932
        %4098 = vmatpush.msra.mxu0 %v3931
        %4099 = vmatpush.msra.mxu0 %v3930
        %4100 = vmatpush.msra.mxu0 %v3929
        %4101 = vmatpush.msra.mxu0 %v3928
        %4102 = vmatpush.msra.mxu0 %v3927
        %4103 = vmatpush.msra.mxu0 %v3926
        %4104 = vmatpush.msra.mxu0 %v3925
        %4105 = vmatpush.msra.mxu0 %v3924
        %4106 = vmatpush.msra.mxu0 %v3923
        %4107 = vmatpush.msra.mxu0 %v3922
        %4108 = vmatpush.msra.mxu0 %v3921
        %4109 = vmatmul.f32.gmra.mxu0 %v4037
        %v4110 = vpop.f32.mrf.mxu0
        %v4111 = vadd.f32 %v4070, %v4110
        %4112 = vmatmul.f32.gmra.mxu0 %v4039
        %v4113 = vpop.f32.mrf.mxu0
        %v4114 = vadd.f32 %v4073, %v4113
        %4115 = vmatmul.f32.gmra.mxu0 %v4041
        %v4116 = vpop.f32.mrf.mxu0
        %v4117 = vadd.f32 %v4076, %v4116
        %4118 = vmatmul.f32.gmra.mxu0 %v4043
        %v4119 = vpop.f32.mrf.mxu0
        %v4120 = vadd.f32 %v4079, %v4119
        %4121 = vmatmul.f32.gmra.mxu0 %v4045
        %v4122 = vpop.f32.mrf.mxu0
        %v4123 = vadd.f32 %v4082, %v4122
        %4124 = vmatmul.f32.gmra.mxu0 %v4047
        %v4125 = vpop.f32.mrf.mxu0
        %v4126 = vadd.f32 %v4085, %v4125
        %4127 = vmatmul.f32.gmra.mxu0 %v4049
        %v4128 = vpop.f32.mrf.mxu0
        %v4129 = vadd.f32 %v4088, %v4128
        %4130 = vmatmul.f32.gmra.mxu0 %v4051
        %v4131 = vpop.f32.mrf.mxu0
        %v4132 = vadd.f32 %v4091, %v4131
        %4133 = vdwg.mxu0
        %v4134 = vmax.f32 %v4012, %v4111
        %v4135 = vmax.f32 %v4015, %v4114
        %v4136 = vmax.f32 %v4018, %v4117
        %v4137 = vmax.f32 %v4021, %v4120
        %v4138 = vmax.f32 %v4024, %v4123
        %v4139 = vmax.f32 %v4027, %v4126
        %v4140 = vmax.f32 %v4030, %v4129
        %v4141 = vmax.f32 %v4033, %v4132
        %s4142 = scalar_lea.vmem %s3, 256
        %v4143 = vld [vmem:[%s4142] sm:$0xff]
        %v4144 = vld [vmem:[%s4142 + $0x8] sm:$0xff]
        %v4145 = vld [vmem:[%s4142 + $0x10] sm:$0xff]
        %v4146 = vld [vmem:[%s4142 + $0x18] sm:$0xff]
        %v4147 = vld [vmem:[%s4142 + $0x20] sm:$0xff]
        %v4148 = vld [vmem:[%s4142 + $0x28] sm:$0xff]
        %v4149 = vld [vmem:[%s4142 + $0x30] sm:$0xff]
        %v4150 = vld [vmem:[%s4142 + $0x38] sm:$0xff]
        %v4151 = vld [vmem:[%s4142 + $0x40] sm:$0xff]
        %v4152 = vld [vmem:[%s4142 + $0x48] sm:$0xff]
        %v4153 = vld [vmem:[%s4142 + $0x50] sm:$0xff]
        %v4154 = vld [vmem:[%s4142 + $0x58] sm:$0xff]
        %v4155 = vld [vmem:[%s4142 + $0x60] sm:$0xff]
        %v4156 = vld [vmem:[%s4142 + $0x68] sm:$0xff]
        %v4157 = vld [vmem:[%s4142 + $0x70] sm:$0xff]
        %v4158 = vld [vmem:[%s4142 + $0x78] sm:$0xff]
        %4159 = vmatpush.msra.mxu0 %v3920
        %4160 = vmatpush.msra.mxu0 %v3919
        %4161 = vmatpush.msra.mxu0 %v3918
        %4162 = vmatpush.msra.mxu0 %v3917
        %4163 = vmatpush.msra.mxu0 %v3916
        %4164 = vmatpush.msra.mxu0 %v3915
        %4165 = vmatpush.msra.mxu0 %v3914
        %4166 = vmatpush.msra.mxu0 %v3913
        %4167 = vmatpush.msra.mxu0 %v3912
        %4168 = vmatpush.msra.mxu0 %v3911
        %4169 = vmatpush.msra.mxu0 %v3910
        %4170 = vmatpush.msra.mxu0 %v3909
        %4171 = vmatpush.msra.mxu0 %v3908
        %4172 = vmatpush.msra.mxu0 %v3907
        %4173 = vmatpush.msra.mxu0 %v3906
        %4174 = vmatpush.msra.mxu0 %v3905
        %4175 = vmatmul.f32.gmra.mxu0 %v4143
        %v4176 = vpop.f32.mrf.mxu0
        %v4177 = vadd.f32 0.0, %v4176
        %4178 = vmatmul.f32.gmra.mxu0 %v4145
        %v4179 = vpop.f32.mrf.mxu0
        %v4180 = vadd.f32 0.0, %v4179
        %4181 = vmatmul.f32.gmra.mxu0 %v4147
        %v4182 = vpop.f32.mrf.mxu0
        %v4183 = vadd.f32 0.0, %v4182
        %4184 = vmatmul.f32.gmra.mxu0 %v4149
        %v4185 = vpop.f32.mrf.mxu0
        %v4186 = vadd.f32 0.0, %v4185
        %4187 = vmatmul.f32.gmra.mxu0 %v4151
        %v4188 = vpop.f32.mrf.mxu0
        %v4189 = vadd.f32 0.0, %v4188
        %4190 = vmatmul.f32.gmra.mxu0 %v4153
        %v4191 = vpop.f32.mrf.mxu0
        %v4192 = vadd.f32 0.0, %v4191
        %4193 = vmatmul.f32.gmra.mxu0 %v4155
        %v4194 = vpop.f32.mrf.mxu0
        %v4195 = vadd.f32 0.0, %v4194
        %4196 = vmatmul.f32.gmra.mxu0 %v4157
        %v4197 = vpop.f32.mrf.mxu0
        %v4198 = vadd.f32 0.0, %v4197
        %4199 = vdwg.mxu0
        %4200 = vmatpush.msra.mxu0 %v3936
        %4201 = vmatpush.msra.mxu0 %v3935
        %4202 = vmatpush.msra.mxu0 %v3934
        %4203 = vmatpush.msra.mxu0 %v3933
        %4204 = vmatpush.msra.mxu0 %v3932
        %4205 = vmatpush.msra.mxu0 %v3931
        %4206 = vmatpush.msra.mxu0 %v3930
        %4207 = vmatpush.msra.mxu0 %v3929
        %4208 = vmatpush.msra.mxu0 %v3928
        %4209 = vmatpush.msra.mxu0 %v3927
        %4210 = vmatpush.msra.mxu0 %v3926
        %4211 = vmatpush.msra.mxu0 %v3925
        %4212 = vmatpush.msra.mxu0 %v3924
        %4213 = vmatpush.msra.mxu0 %v3923
        %4214 = vmatpush.msra.mxu0 %v3922
        %4215 = vmatpush.msra.mxu0 %v3921
        %4216 = vmatmul.f32.gmra.mxu0 %v4144
        %v4217 = vpop.f32.mrf.mxu0
        %v4218 = vadd.f32 %v4177, %v4217
        %4219 = vmatmul.f32.gmra.mxu0 %v4146
        %v4220 = vpop.f32.mrf.mxu0
        %v4221 = vadd.f32 %v4180, %v4220
        %4222 = vmatmul.f32.gmra.mxu0 %v4148
        %v4223 = vpop.f32.mrf.mxu0
        %v4224 = vadd.f32 %v4183, %v4223
        %4225 = vmatmul.f32.gmra.mxu0 %v4150
        %v4226 = vpop.f32.mrf.mxu0
        %v4227 = vadd.f32 %v4186, %v4226
        %4228 = vmatmul.f32.gmra.mxu0 %v4152
        %v4229 = vpop.f32.mrf.mxu0
        %v4230 = vadd.f32 %v4189, %v4229
        %4231 = vmatmul.f32.gmra.mxu0 %v4154
        %v4232 = vpop.f32.mrf.mxu0
        %v4233 = vadd.f32 %v4192, %v4232
        %4234 = vmatmul.f32.gmra.mxu0 %v4156
        %v4235 = vpop.f32.mrf.mxu0
        %v4236 = vadd.f32 %v4195, %v4235
        %4237 = vmatmul.f32.gmra.mxu0 %v4158
        %v4238 = vpop.f32.mrf.mxu0
        %v4239 = vadd.f32 %v4198, %v4238
        %4240 = vdwg.mxu0
        %v4241 = vmax.f32 %v4134, %v4218
        %v4242 = vmax.f32 %v4135, %v4221
        %v4243 = vmax.f32 %v4136, %v4224
        %v4244 = vmax.f32 %v4137, %v4227
        %v4245 = vmax.f32 %v4138, %v4230
        %v4246 = vmax.f32 %v4139, %v4233
        %v4247 = vmax.f32 %v4140, %v4236
        %v4248 = vmax.f32 %v4141, %v4239
        %s4249 = scalar_lea.vmem %s3, 384
        %v4250 = vld [vmem:[%s4249] sm:$0xff]
        %v4251 = vld [vmem:[%s4249 + $0x8] sm:$0xff]
        %v4252 = vld [vmem:[%s4249 + $0x10] sm:$0xff]
        %v4253 = vld [vmem:[%s4249 + $0x18] sm:$0xff]
        %v4254 = vld [vmem:[%s4249 + $0x20] sm:$0xff]
        %v4255 = vld [vmem:[%s4249 + $0x28] sm:$0xff]
        %v4256 = vld [vmem:[%s4249 + $0x30] sm:$0xff]
        %v4257 = vld [vmem:[%s4249 + $0x38] sm:$0xff]
        %v4258 = vld [vmem:[%s4249 + $0x40] sm:$0xff]
        %v4259 = vld [vmem:[%s4249 + $0x48] sm:$0xff]
        %v4260 = vld [vmem:[%s4249 + $0x50] sm:$0xff]
        %v4261 = vld [vmem:[%s4249 + $0x58] sm:$0xff]
        %v4262 = vld [vmem:[%s4249 + $0x60] sm:$0xff]
        %v4263 = vld [vmem:[%s4249 + $0x68] sm:$0xff]
        %v4264 = vld [vmem:[%s4249 + $0x70] sm:$0xff]
        %v4265 = vld [vmem:[%s4249 + $0x78] sm:$0xff]
        %4266 = vmatpush.msra.mxu0 %v3920
        %4267 = vmatpush.msra.mxu0 %v3919
        %4268 = vmatpush.msra.mxu0 %v3918
        %4269 = vmatpush.msra.mxu0 %v3917
        %4270 = vmatpush.msra.mxu0 %v3916
        %4271 = vmatpush.msra.mxu0 %v3915
        %4272 = vmatpush.msra.mxu0 %v3914
        %4273 = vmatpush.msra.mxu0 %v3913
        %4274 = vmatpush.msra.mxu0 %v3912
        %4275 = vmatpush.msra.mxu0 %v3911
        %4276 = vmatpush.msra.mxu0 %v3910
        %4277 = vmatpush.msra.mxu0 %v3909
        %4278 = vmatpush.msra.mxu0 %v3908
        %4279 = vmatpush.msra.mxu0 %v3907
        %4280 = vmatpush.msra.mxu0 %v3906
        %4281 = vmatpush.msra.mxu0 %v3905
        %4282 = vmatmul.f32.gmra.mxu0 %v4250
        %v4283 = vpop.f32.mrf.mxu0
        %v4284 = vadd.f32 0.0, %v4283
        %4285 = vmatmul.f32.gmra.mxu0 %v4252
        %v4286 = vpop.f32.mrf.mxu0
        %v4287 = vadd.f32 0.0, %v4286
        %4288 = vmatmul.f32.gmra.mxu0 %v4254
        %v4289 = vpop.f32.mrf.mxu0
        %v4290 = vadd.f32 0.0, %v4289
        %4291 = vmatmul.f32.gmra.mxu0 %v4256
        %v4292 = vpop.f32.mrf.mxu0
        %v4293 = vadd.f32 0.0, %v4292
        %4294 = vmatmul.f32.gmra.mxu0 %v4258
        %v4295 = vpop.f32.mrf.mxu0
        %v4296 = vadd.f32 0.0, %v4295
        %4297 = vmatmul.f32.gmra.mxu0 %v4260
        %v4298 = vpop.f32.mrf.mxu0
        %v4299 = vadd.f32 0.0, %v4298
        %4300 = vmatmul.f32.gmra.mxu0 %v4262
        %v4301 = vpop.f32.mrf.mxu0
        %v4302 = vadd.f32 0.0, %v4301
        %4303 = vmatmul.f32.gmra.mxu0 %v4264
        %v4304 = vpop.f32.mrf.mxu0
        %v4305 = vadd.f32 0.0, %v4304
        %4306 = vdwg.mxu0
        %4307 = vmatpush.msra.mxu0 %v3936
        %4308 = vmatpush.msra.mxu0 %v3935
        %4309 = vmatpush.msra.mxu0 %v3934
        %4310 = vmatpush.msra.mxu0 %v3933
        %4311 = vmatpush.msra.mxu0 %v3932
        %4312 = vmatpush.msra.mxu0 %v3931
        %4313 = vmatpush.msra.mxu0 %v3930
        %4314 = vmatpush.msra.mxu0 %v3929
        %4315 = vmatpush.msra.mxu0 %v3928
        %4316 = vmatpush.msra.mxu0 %v3927
        %4317 = vmatpush.msra.mxu0 %v3926
        %4318 = vmatpush.msra.mxu0 %v3925
        %4319 = vmatpush.msra.mxu0 %v3924
        %4320 = vmatpush.msra.mxu0 %v3923
        %4321 = vmatpush.msra.mxu0 %v3922
        %4322 = vmatpush.msra.mxu0 %v3921
        %4323 = vmatmul.f32.gmra.mxu0 %v4251
        %v4324 = vpop.f32.mrf.mxu0
        %v4325 = vadd.f32 %v4284, %v4324
        %4326 = vmatmul.f32.gmra.mxu0 %v4253
        %v4327 = vpop.f32.mrf.mxu0
        %v4328 = vadd.f32 %v4287, %v4327
        %4329 = vmatmul.f32.gmra.mxu0 %v4255
        %v4330 = vpop.f32.mrf.mxu0
        %v4331 = vadd.f32 %v4290, %v4330
        %4332 = vmatmul.f32.gmra.mxu0 %v4257
        %v4333 = vpop.f32.mrf.mxu0
        %v4334 = vadd.f32 %v4293, %v4333
        %4335 = vmatmul.f32.gmra.mxu0 %v4259
        %v4336 = vpop.f32.mrf.mxu0
        %v4337 = vadd.f32 %v4296, %v4336
        %4338 = vmatmul.f32.gmra.mxu0 %v4261
        %v4339 = vpop.f32.mrf.mxu0
        %v4340 = vadd.f32 %v4299, %v4339
        %4341 = vmatmul.f32.gmra.mxu0 %v4263
        %v4342 = vpop.f32.mrf.mxu0
        %v4343 = vadd.f32 %v4302, %v4342
        %4344 = vmatmul.f32.gmra.mxu0 %v4265
        %v4345 = vpop.f32.mrf.mxu0
        %v4346 = vadd.f32 %v4305, %v4345
        %4347 = vdwg.mxu0
        %v4348 = vmax.f32 %v4241, %v4325
        %v4349 = vmax.f32 %v4242, %v4328
        %v4350 = vmax.f32 %v4243, %v4331
        %v4351 = vmax.f32 %v4244, %v4334
        %v4352 = vmax.f32 %v4245, %v4337
        %v4353 = vmax.f32 %v4246, %v4340
        %v4354 = vmax.f32 %v4247, %v4343
        %v4355 = vmax.f32 %v4248, %v4346
        %v4356 = vmul.f32 %v4348, 0.01
        %v4357 = vmul.f32 %v4349, 0.01
        %v4358 = vmul.f32 %v4350, 0.01
        %v4359 = vmul.f32 %v4351, 0.01
        %v4360 = vmul.f32 %v4352, 0.01
        %v4361 = vmul.f32 %v4353, 0.01
        %v4362 = vmul.f32 %v4354, 0.01
        %v4363 = vmul.f32 %v4355, 0.01
        %v4364 = vmax.f32 %v4348, %v4356
        %v4365 = vmax.f32 %v4349, %v4357
        %v4366 = vmax.f32 %v4350, %v4358
        %v4367 = vmax.f32 %v4351, %v4359
        %v4368 = vmax.f32 %v4352, %v4360
        %v4369 = vmax.f32 %v4353, %v4361
        %v4370 = vmax.f32 %v4354, %v4362
        %v4371 = vmax.f32 %v4355, %v4363
        %vm4372 = vcmask 130048
        %4373 = vst.msk [vmem:[#allocation3] sm:$0xff] %vm4372, 0.0
        %4374 = vst.msk [vmem:[#allocation3 + $0x8] sm:$0xff] %vm4372, 0.0
        %4375 = vst.msk [vmem:[#allocation3 + $0x10] sm:$0xff] %vm4372, 0.0
        %4376 = vst.msk [vmem:[#allocation3 + $0x18] sm:$0xff] %vm4372, 0.0
        %4377 = vst.msk [vmem:[#allocation3 + $0x20] sm:$0xff] %vm4372, 0.0
        %4378 = vst.msk [vmem:[#allocation3 + $0x28] sm:$0xff] %vm4372, 0.0
        %4379 = vst.msk [vmem:[#allocation3 + $0x30] sm:$0xff] %vm4372, 0.0
        %4380 = vst.msk [vmem:[#allocation3 + $0x38] sm:$0xff] %vm4372, 0.0
        %4381 = vst.msk [vmem:[#allocation3 + $0x40] sm:$0xff] %vm4372, 0.0
        %4382 = vst.msk [vmem:[#allocation3 + $0x48] sm:$0xff] %vm4372, 0.0
        %4383 = vst.msk [vmem:[#allocation3 + $0x50] sm:$0xff] %vm4372, 0.0
        %4384 = vst.msk [vmem:[#allocation3 + $0x58] sm:$0xff] %vm4372, 0.0
        %4385 = vst.msk [vmem:[#allocation3 + $0x10] sm:$0xff] %vm4372, %v4364
        %4386 = vst.msk [vmem:[#allocation3 + $0x18] sm:$0xff] %vm4372, %v4365
        %4387 = vst.msk [vmem:[#allocation3 + $0x20] sm:$0xff] %vm4372, %v4366
        %4388 = vst.msk [vmem:[#allocation3 + $0x28] sm:$0xff] %vm4372, %v4367
        %4389 = vst.msk [vmem:[#allocation3 + $0x30] sm:$0xff] %vm4372, %v4368
        %4390 = vst.msk [vmem:[#allocation3 + $0x38] sm:$0xff] %vm4372, %v4369
        %4391 = vst.msk [vmem:[#allocation3 + $0x40] sm:$0xff] %vm4372, %v4370
        %4392 = vst.msk [vmem:[#allocation3 + $0x48] sm:$0xff] %vm4372, %v4371
        %vm4393 = vcmp.lt.s32.totalorder %v694, 0
        %v4394 = vsub.s32 0, %v694
        %v4395 = vsel %vm4393, %v4394, %v694
        %v4396 = vshrl.u32 %v4395, 3
        %v4397 = vand.u32 %v4395, 7
        %v4398 = vsub.s32 0, %v4397
        %v4399 = vsel %vm4393, %v4398, %v4397
        %vm4400 = vcmp.lt.s32.totalorder %v695, 0
        %v4401 = vsub.s32 0, %v695
        %v4402 = vsel %vm4400, %v4401, %v695
        %v4403 = vshrl.u32 %v4402, 3
        %v4404 = vand.u32 %v4402, 7
        %v4405 = vsub.s32 0, %v4404
        %v4406 = vsel %vm4400, %v4405, %v4404
        %vm4407 = vcmp.lt.s32.totalorder %v696, 0
        %v4408 = vsub.s32 0, %v696
        %v4409 = vsel %vm4407, %v4408, %v696
        %v4410 = vshrl.u32 %v4409, 3
        %v4411 = vand.u32 %v4409, 7
        %v4412 = vsub.s32 0, %v4411
        %v4413 = vsel %vm4407, %v4412, %v4411
        %vm4414 = vcmp.lt.s32.totalorder %v697, 0
        %v4415 = vsub.s32 0, %v697
        %v4416 = vsel %vm4414, %v4415, %v697
        %v4417 = vshrl.u32 %v4416, 3
        %v4418 = vand.u32 %v4416, 7
        %v4419 = vsub.s32 0, %v4418
        %v4420 = vsel %vm4414, %v4419, %v4418
        %vm4421 = vcmp.lt.s32.totalorder %v698, 0
        %v4422 = vsub.s32 0, %v698
        %v4423 = vsel %vm4421, %v4422, %v698
        %v4424 = vshrl.u32 %v4423, 3
        %v4425 = vand.u32 %v4423, 7
        %v4426 = vsub.s32 0, %v4425
        %v4427 = vsel %vm4421, %v4426, %v4425
        %vm4428 = vcmp.lt.s32.totalorder %v699, 0
        %v4429 = vsub.s32 0, %v699
        %v4430 = vsel %vm4428, %v4429, %v699
        %v4431 = vshrl.u32 %v4430, 3
        %v4432 = vand.u32 %v4430, 7
        %v4433 = vsub.s32 0, %v4432
        %v4434 = vsel %vm4428, %v4433, %v4432
        %vm4435 = vcmp.lt.s32.totalorder %v700, 0
        %v4436 = vsub.s32 0, %v700
        %v4437 = vsel %vm4435, %v4436, %v700
        %v4438 = vshrl.u32 %v4437, 3
        %v4439 = vand.u32 %v4437, 7
        %v4440 = vsub.s32 0, %v4439
        %v4441 = vsel %vm4435, %v4440, %v4439
        %vm4442 = vcmp.lt.s32.totalorder %v701, 0
        %v4443 = vsub.s32 0, %v701
        %v4444 = vsel %vm4442, %v4443, %v701
        %v4445 = vshrl.u32 %v4444, 3
        %v4446 = vand.u32 %v4444, 7
        %v4447 = vsub.s32 0, %v4446
        %v4448 = vsel %vm4442, %v4447, %v4446
        %vm4449 = vcmp.ne.s32.totalorder %v4399, 0
        %vm4450 = vcmp.ne.s32.totalorder %v4406, 0
        %vm4451 = vcmp.ne.s32.totalorder %v4413, 0
        %vm4452 = vcmp.ne.s32.totalorder %v4420, 0
        %vm4453 = vcmp.ne.s32.totalorder %v4427, 0
        %vm4454 = vcmp.ne.s32.totalorder %v4434, 0
        %vm4455 = vcmp.ne.s32.totalorder %v4441, 0
        %vm4456 = vcmp.ne.s32.totalorder %v4448, 0
        %vm4457 = vcmp.lt.s32.totalorder %v4399, 0
        %vm4458 = vcmp.lt.s32.totalorder %v4406, 0
        %vm4459 = vcmp.lt.s32.totalorder %v4413, 0
        %vm4460 = vcmp.lt.s32.totalorder %v4420, 0
        %vm4461 = vcmp.lt.s32.totalorder %v4427, 0
        %vm4462 = vcmp.lt.s32.totalorder %v4434, 0
        %vm4463 = vcmp.lt.s32.totalorder %v4441, 0
        %vm4464 = vcmp.lt.s32.totalorder %v4448, 0
        %vm4465 = vmand %vm4457, %vm4449
        %vm4466 = vmand %vm4458, %vm4450
        %vm4467 = vmand %vm4459, %vm4451
        %vm4468 = vmand %vm4460, %vm4452
        %vm4469 = vmand %vm4461, %vm4453
        %vm4470 = vmand %vm4462, %vm4454
        %vm4471 = vmand %vm4463, %vm4455
        %vm4472 = vmand %vm4464, %vm4456
        %v4473 = vadd.s32 %v4399, 8
        %v4474 = vadd.s32 %v4406, 8
        %v4475 = vadd.s32 %v4413, 8
        %v4476 = vadd.s32 %v4420, 8
        %v4477 = vadd.s32 %v4427, 8
        %v4478 = vadd.s32 %v4434, 8
        %v4479 = vadd.s32 %v4441, 8
        %v4480 = vadd.s32 %v4448, 8
        %v4481 = vsel %vm4465, %v4473, %v4399
        %v4482 = vsel %vm4466, %v4474, %v4406
        %v4483 = vsel %vm4467, %v4475, %v4413
        %v4484 = vsel %vm4468, %v4476, %v4420
        %v4485 = vsel %vm4469, %v4477, %v4427
        %v4486 = vsel %vm4470, %v4478, %v4434
        %v4487 = vsel %vm4471, %v4479, %v4441
        %v4488 = vsel %vm4472, %v4480, %v4448
        %vm4489 = vcmp.ge.s32.totalorder %v4481, 1
        %vm4490 = vcmp.ge.s32.totalorder %v4482, 1
        %vm4491 = vcmp.ge.s32.totalorder %v4483, 1
        %vm4492 = vcmp.ge.s32.totalorder %v4484, 1
        %vm4493 = vcmp.ge.s32.totalorder %v4485, 1
        %vm4494 = vcmp.ge.s32.totalorder %v4486, 1
        %vm4495 = vcmp.ge.s32.totalorder %v4487, 1
        %vm4496 = vcmp.ge.s32.totalorder %v4488, 1
        %v4497 = vsel %vm4489, 1.0, 0.0
        %v4498 = vsel %vm4490, 1.0, 0.0
        %v4499 = vsel %vm4491, 1.0, 0.0
        %v4500 = vsel %vm4492, 1.0, 0.0
        %v4501 = vsel %vm4493, 1.0, 0.0
        %v4502 = vsel %vm4494, 1.0, 0.0
        %v4503 = vsel %vm4495, 1.0, 0.0
        %v4504 = vsel %vm4496, 1.0, 0.0
        %vm4505 = vcmp.lt.s32.totalorder %v4481, 7
        %vm4506 = vcmp.lt.s32.totalorder %v4482, 7
        %vm4507 = vcmp.lt.s32.totalorder %v4483, 7
        %vm4508 = vcmp.lt.s32.totalorder %v4484, 7
        %vm4509 = vcmp.lt.s32.totalorder %v4485, 7
        %vm4510 = vcmp.lt.s32.totalorder %v4486, 7
        %vm4511 = vcmp.lt.s32.totalorder %v4487, 7
        %vm4512 = vcmp.lt.s32.totalorder %v4488, 7
        %v4513 = vsel %vm4505, 1.0, 0.0
        %v4514 = vsel %vm4506, 1.0, 0.0
        %v4515 = vsel %vm4507, 1.0, 0.0
        %v4516 = vsel %vm4508, 1.0, 0.0
        %v4517 = vsel %vm4509, 1.0, 0.0
        %v4518 = vsel %vm4510, 1.0, 0.0
        %v4519 = vsel %vm4511, 1.0, 0.0
        %v4520 = vsel %vm4512, 1.0, 0.0
        %v4521 = vld [vmem:[#allocation12] sm:$0x1]
        %v4523 = vperm.slane %v4521, 0
        %v4525 = vadd.f32 %v4523, 0.0
        %v4526 = vld [vmem:[#allocation3 + $0x7] sm:$0xff]
        %v4527 = vld [vmem:[#allocation3 + $0xf] sm:$0xff]
        %v4528 = vld [vmem:[#allocation3 + $0x17] sm:$0xff]
        %v4529 = vld [vmem:[#allocation3 + $0x1f] sm:$0xff]
        %v4530 = vld [vmem:[#allocation3 + $0x27] sm:$0xff]
        %v4531 = vld [vmem:[#allocation3 + $0x2f] sm:$0xff]
        %v4532 = vld [vmem:[#allocation3 + $0x37] sm:$0xff]
        %v4533 = vld [vmem:[#allocation3 + $0x3f] sm:$0xff]
        %v4534 = vmul.f32 %v4526, %v4497
        %v4535 = vmul.f32 %v4527, %v4498
        %v4536 = vmul.f32 %v4528, %v4499
        %v4537 = vmul.f32 %v4529, %v4500
        %v4538 = vmul.f32 %v4530, %v4501
        %v4539 = vmul.f32 %v4531, %v4502
        %v4540 = vmul.f32 %v4532, %v4503
        %v4541 = vmul.f32 %v4533, %v4504
        %v4542 = vld [vmem:[#allocation11] sm:$0xff]
        %v4543 = vld [vmem:[#allocation11 + $0x8] sm:$0xff]
        %v4545 = vsel %vm4372, %v4534, 0
        %v4548 = vsel %vm4372, %v4535, 0
        %v4551 = vsel %vm4372, %v4536, 0
        %v4554 = vsel %vm4372, %v4537, 0
        %v4557 = vsel %vm4372, %v4538, 0
        %v4560 = vsel %vm4372, %v4539, 0
        %v4563 = vsel %vm4372, %v4540, 0
        %v4566 = vsel %vm4372, %v4541, 0
        %4568 = vmatpush.msra.mxu0 0.0
        %4569 = vmatpush.msra.mxu0 0.0
        %4570 = vmatpush.msra.mxu0 0.0
        %4571 = vmatpush.msra.mxu0 0.0
        %4572 = vmatpush.msra.mxu0 0.0
        %4573 = vmatpush.msra.mxu0 0.0
        %4574 = vmatpush.msra.mxu0 0.0
        %4575 = vmatpush.msra.mxu0 0.0
        %4576 = vmatpush.msra.mxu0 0.0
        %4577 = vmatpush.msra.mxu0 0.0
        %4578 = vmatpush.msra.mxu0 0.0
        %4579 = vmatpush.msra.mxu0 0.0
        %4580 = vmatpush.msra.mxu0 0.0
        %4581 = vmatpush.msra.mxu0 0.0
        %4582 = vmatpush.msra.mxu0 %v4543
        %4583 = vmatpush.msra.mxu0 %v4542
        %4584 = vmatmul.f32.gmra.mxu0 %v4545
        %v4585 = vpop.f32.mrf.mxu0
        %v4586 = vadd.f32 0.0, %v4585
        %4587 = vmatmul.f32.gmra.mxu0 %v4548
        %v4588 = vpop.f32.mrf.mxu0
        %v4589 = vadd.f32 0.0, %v4588
        %4590 = vmatmul.f32.gmra.mxu0 %v4551
        %v4591 = vpop.f32.mrf.mxu0
        %v4592 = vadd.f32 0.0, %v4591
        %4593 = vmatmul.f32.gmra.mxu0 %v4554
        %v4594 = vpop.f32.mrf.mxu0
        %v4595 = vadd.f32 0.0, %v4594
        %4596 = vmatmul.f32.gmra.mxu0 %v4557
        %v4597 = vpop.f32.mrf.mxu0
        %v4598 = vadd.f32 0.0, %v4597
        %4599 = vmatmul.f32.gmra.mxu0 %v4560
        %v4600 = vpop.f32.mrf.mxu0
        %v4601 = vadd.f32 0.0, %v4600
        %4602 = vmatmul.f32.gmra.mxu0 %v4563
        %v4603 = vpop.f32.mrf.mxu0
        %v4604 = vadd.f32 0.0, %v4603
        %4605 = vmatmul.f32.gmra.mxu0 %v4566
        %v4606 = vpop.f32.mrf.mxu0
        %v4607 = vadd.f32 0.0, %v4606
        %4608 = vdwg.mxu0
        %v4609 = vadd.f32 %v4525, %v4586
        %v4610 = vadd.f32 %v4525, %v4589
        %v4611 = vadd.f32 %v4525, %v4592
        %v4612 = vadd.f32 %v4525, %v4595
        %v4613 = vadd.f32 %v4525, %v4598
        %v4614 = vadd.f32 %v4525, %v4601
        %v4615 = vadd.f32 %v4525, %v4604
        %v4616 = vadd.f32 %v4525, %v4607
        %v4617 = vld [vmem:[#allocation3 + $0x8] sm:$0xff]
        %v4618 = vld [vmem:[#allocation3 + $0x10] sm:$0xff]
        %v4619 = vld [vmem:[#allocation3 + $0x18] sm:$0xff]
        %v4620 = vld [vmem:[#allocation3 + $0x20] sm:$0xff]
        %v4621 = vld [vmem:[#allocation3 + $0x28] sm:$0xff]
        %v4622 = vld [vmem:[#allocation3 + $0x30] sm:$0xff]
        %v4623 = vld [vmem:[#allocation3 + $0x38] sm:$0xff]
        %v4624 = vld [vmem:[#allocation3 + $0x40] sm:$0xff]
        %s4625 = scalar_lea.vmem [#allocation11], 16
        %v4626 = vld [vmem:[%s4625] sm:$0xff]
        %v4627 = vld [vmem:[%s4625 + $0x8] sm:$0xff]
        %v4629 = vsel %vm4372, %v4617, 0
        %v4632 = vsel %vm4372, %v4618, 0
        %v4635 = vsel %vm4372, %v4619, 0
        %v4638 = vsel %vm4372, %v4620, 0
        %v4641 = vsel %vm4372, %v4621, 0
        %v4644 = vsel %vm4372, %v4622, 0
        %v4647 = vsel %vm4372, %v4623, 0
        %v4650 = vsel %vm4372, %v4624, 0
        %4652 = vmatpush.msra.mxu0 0.0
        %4653 = vmatpush.msra.mxu0 0.0
        %4654 = vmatpush.msra.mxu0 0.0
        %4655 = vmatpush.msra.mxu0 0.0
        %4656 = vmatpush.msra.mxu0 0.0
        %4657 = vmatpush.msra.mxu0 0.0
        %4658 = vmatpush.msra.mxu0 0.0
        %4659 = vmatpush.msra.mxu0 0.0
        %4660 = vmatpush.msra.mxu0 0.0
        %4661 = vmatpush.msra.mxu0 0.0
        %4662 = vmatpush.msra.mxu0 0.0
        %4663 = vmatpush.msra.mxu0 0.0
        %4664 = vmatpush.msra.mxu0 0.0
        %4665 = vmatpush.msra.mxu0 0.0
        %4666 = vmatpush.msra.mxu0 %v4627
        %4667 = vmatpush.msra.mxu0 %v4626
        %4668 = vmatmul.f32.gmra.mxu0 %v4629
        %v4669 = vpop.f32.mrf.mxu0
        %v4670 = vadd.f32 0.0, %v4669
        %4671 = vmatmul.f32.gmra.mxu0 %v4632
        %v4672 = vpop.f32.mrf.mxu0
        %v4673 = vadd.f32 0.0, %v4672
        %4674 = vmatmul.f32.gmra.mxu0 %v4635
        %v4675 = vpop.f32.mrf.mxu0
        %v4676 = vadd.f32 0.0, %v4675
        %4677 = vmatmul.f32.gmra.mxu0 %v4638
        %v4678 = vpop.f32.mrf.mxu0
        %v4679 = vadd.f32 0.0, %v4678
        %4680 = vmatmul.f32.gmra.mxu0 %v4641
        %v4681 = vpop.f32.mrf.mxu0
        %v4682 = vadd.f32 0.0, %v4681
        %4683 = vmatmul.f32.gmra.mxu0 %v4644
        %v4684 = vpop.f32.mrf.mxu0
        %v4685 = vadd.f32 0.0, %v4684
        %4686 = vmatmul.f32.gmra.mxu0 %v4647
        %v4687 = vpop.f32.mrf.mxu0
        %v4688 = vadd.f32 0.0, %v4687
        %4689 = vmatmul.f32.gmra.mxu0 %v4650
        %v4690 = vpop.f32.mrf.mxu0
        %v4691 = vadd.f32 0.0, %v4690
        %4692 = vdwg.mxu0
        %v4693 = vadd.f32 %v4609, %v4670
        %v4694 = vadd.f32 %v4610, %v4673
        %v4695 = vadd.f32 %v4611, %v4676
        %v4696 = vadd.f32 %v4612, %v4679
        %v4697 = vadd.f32 %v4613, %v4682
        %v4698 = vadd.f32 %v4614, %v4685
        %v4699 = vadd.f32 %v4615, %v4688
        %v4700 = vadd.f32 %v4616, %v4691
        %v4701 = vld [vmem:[#allocation3 + $0x9] sm:$0xff]
        %v4702 = vld [vmem:[#allocation3 + $0x11] sm:$0xff]
        %v4703 = vld [vmem:[#allocation3 + $0x19] sm:$0xff]
        %v4704 = vld [vmem:[#allocation3 + $0x21] sm:$0xff]
        %v4705 = vld [vmem:[#allocation3 + $0x29] sm:$0xff]
        %v4706 = vld [vmem:[#allocation3 + $0x31] sm:$0xff]
        %v4707 = vld [vmem:[#allocation3 + $0x39] sm:$0xff]
        %v4708 = vld [vmem:[#allocation3 + $0x41] sm:$0xff]
        %v4709 = vmul.f32 %v4701, %v4513
        %v4710 = vmul.f32 %v4702, %v4514
        %v4711 = vmul.f32 %v4703, %v4515
        %v4712 = vmul.f32 %v4704, %v4516
        %v4713 = vmul.f32 %v4705, %v4517
        %v4714 = vmul.f32 %v4706, %v4518
        %v4715 = vmul.f32 %v4707, %v4519
        %v4716 = vmul.f32 %v4708, %v4520
        %s4717 = scalar_lea.vmem [#allocation11], 32
        %v4718 = vld [vmem:[%s4717] sm:$0xff]
        %v4719 = vld [vmem:[%s4717 + $0x8] sm:$0xff]
        %v4721 = vsel %vm4372, %v4709, 0
        %v4724 = vsel %vm4372, %v4710, 0
        %v4727 = vsel %vm4372, %v4711, 0
        %v4730 = vsel %vm4372, %v4712, 0
        %v4733 = vsel %vm4372, %v4713, 0
        %v4736 = vsel %vm4372, %v4714, 0
        %v4739 = vsel %vm4372, %v4715, 0
        %v4742 = vsel %vm4372, %v4716, 0
        %4744 = vmatpush.msra.mxu0 0.0
        %4745 = vmatpush.msra.mxu0 0.0
        %4746 = vmatpush.msra.mxu0 0.0
        %4747 = vmatpush.msra.mxu0 0.0
        %4748 = vmatpush.msra.mxu0 0.0
        %4749 = vmatpush.msra.mxu0 0.0
        %4750 = vmatpush.msra.mxu0 0.0
        %4751 = vmatpush.msra.mxu0 0.0
        %4752 = vmatpush.msra.mxu0 0.0
        %4753 = vmatpush.msra.mxu0 0.0
        %4754 = vmatpush.msra.mxu0 0.0
        %4755 = vmatpush.msra.mxu0 0.0
        %4756 = vmatpush.msra.mxu0 0.0
        %4757 = vmatpush.msra.mxu0 0.0
        %4758 = vmatpush.msra.mxu0 %v4719
        %4759 = vmatpush.msra.mxu0 %v4718
        %4760 = vmatmul.f32.gmra.mxu0 %v4721
        %v4761 = vpop.f32.mrf.mxu0
        %v4762 = vadd.f32 0.0, %v4761
        %4763 = vmatmul.f32.gmra.mxu0 %v4724
        %v4764 = vpop.f32.mrf.mxu0
        %v4765 = vadd.f32 0.0, %v4764
        %4766 = vmatmul.f32.gmra.mxu0 %v4727
        %v4767 = vpop.f32.mrf.mxu0
        %v4768 = vadd.f32 0.0, %v4767
        %4769 = vmatmul.f32.gmra.mxu0 %v4730
        %v4770 = vpop.f32.mrf.mxu0
        %v4771 = vadd.f32 0.0, %v4770
        %4772 = vmatmul.f32.gmra.mxu0 %v4733
        %v4773 = vpop.f32.mrf.mxu0
        %v4774 = vadd.f32 0.0, %v4773
        %4775 = vmatmul.f32.gmra.mxu0 %v4736
        %v4776 = vpop.f32.mrf.mxu0
        %v4777 = vadd.f32 0.0, %v4776
        %4778 = vmatmul.f32.gmra.mxu0 %v4739
        %v4779 = vpop.f32.mrf.mxu0
        %v4780 = vadd.f32 0.0, %v4779
        %4781 = vmatmul.f32.gmra.mxu0 %v4742
        %v4782 = vpop.f32.mrf.mxu0
        %v4783 = vadd.f32 0.0, %v4782
        %4784 = vdwg.mxu0
        %v4785 = vadd.f32 %v4693, %v4762
        %v4786 = vadd.f32 %v4694, %v4765
        %v4787 = vadd.f32 %v4695, %v4768
        %v4788 = vadd.f32 %v4696, %v4771
        %v4789 = vadd.f32 %v4697, %v4774
        %v4790 = vadd.f32 %v4698, %v4777
        %v4791 = vadd.f32 %v4699, %v4780
        %v4792 = vadd.f32 %v4700, %v4783
        %v4793 = vld [vmem:[#allocation3 + $0xf] sm:$0xff]
        %v4794 = vld [vmem:[#allocation3 + $0x17] sm:$0xff]
        %v4795 = vld [vmem:[#allocation3 + $0x1f] sm:$0xff]
        %v4796 = vld [vmem:[#allocation3 + $0x27] sm:$0xff]
        %v4797 = vld [vmem:[#allocation3 + $0x2f] sm:$0xff]
        %v4798 = vld [vmem:[#allocation3 + $0x37] sm:$0xff]
        %v4799 = vld [vmem:[#allocation3 + $0x3f] sm:$0xff]
        %v4800 = vld [vmem:[#allocation3 + $0x47] sm:$0xff]
        %v4801 = vmul.f32 %v4793, %v4497
        %v4802 = vmul.f32 %v4794, %v4498
        %v4803 = vmul.f32 %v4795, %v4499
        %v4804 = vmul.f32 %v4796, %v4500
        %v4805 = vmul.f32 %v4797, %v4501
        %v4806 = vmul.f32 %v4798, %v4502
        %v4807 = vmul.f32 %v4799, %v4503
        %v4808 = vmul.f32 %v4800, %v4504
        %s4809 = scalar_lea.vmem [#allocation11], 48
        %v4810 = vld [vmem:[%s4809] sm:$0xff]
        %v4811 = vld [vmem:[%s4809 + $0x8] sm:$0xff]
        %v4813 = vsel %vm4372, %v4801, 0
        %v4816 = vsel %vm4372, %v4802, 0
        %v4819 = vsel %vm4372, %v4803, 0
        %v4822 = vsel %vm4372, %v4804, 0
        %v4825 = vsel %vm4372, %v4805, 0
        %v4828 = vsel %vm4372, %v4806, 0
        %v4831 = vsel %vm4372, %v4807, 0
        %v4834 = vsel %vm4372, %v4808, 0
        %4836 = vmatpush.msra.mxu0 0.0
        %4837 = vmatpush.msra.mxu0 0.0
        %4838 = vmatpush.msra.mxu0 0.0
        %4839 = vmatpush.msra.mxu0 0.0
        %4840 = vmatpush.msra.mxu0 0.0
        %4841 = vmatpush.msra.mxu0 0.0
        %4842 = vmatpush.msra.mxu0 0.0
        %4843 = vmatpush.msra.mxu0 0.0
        %4844 = vmatpush.msra.mxu0 0.0
        %4845 = vmatpush.msra.mxu0 0.0
        %4846 = vmatpush.msra.mxu0 0.0
        %4847 = vmatpush.msra.mxu0 0.0
        %4848 = vmatpush.msra.mxu0 0.0
        %4849 = vmatpush.msra.mxu0 0.0
        %4850 = vmatpush.msra.mxu0 %v4811
        %4851 = vmatpush.msra.mxu0 %v4810
        %4852 = vmatmul.f32.gmra.mxu0 %v4813
        %v4853 = vpop.f32.mrf.mxu0
        %v4854 = vadd.f32 0.0, %v4853
        %4855 = vmatmul.f32.gmra.mxu0 %v4816
        %v4856 = vpop.f32.mrf.mxu0
        %v4857 = vadd.f32 0.0, %v4856
        %4858 = vmatmul.f32.gmra.mxu0 %v4819
        %v4859 = vpop.f32.mrf.mxu0
        %v4860 = vadd.f32 0.0, %v4859
        %4861 = vmatmul.f32.gmra.mxu0 %v4822
        %v4862 = vpop.f32.mrf.mxu0
        %v4863 = vadd.f32 0.0, %v4862
        %4864 = vmatmul.f32.gmra.mxu0 %v4825
        %v4865 = vpop.f32.mrf.mxu0
        %v4866 = vadd.f32 0.0, %v4865
        %4867 = vmatmul.f32.gmra.mxu0 %v4828
        %v4868 = vpop.f32.mrf.mxu0
        %v4869 = vadd.f32 0.0, %v4868
        %4870 = vmatmul.f32.gmra.mxu0 %v4831
        %v4871 = vpop.f32.mrf.mxu0
        %v4872 = vadd.f32 0.0, %v4871
        %4873 = vmatmul.f32.gmra.mxu0 %v4834
        %v4874 = vpop.f32.mrf.mxu0
        %v4875 = vadd.f32 0.0, %v4874
        %4876 = vdwg.mxu0
        %v4877 = vadd.f32 %v4785, %v4854
        %v4878 = vadd.f32 %v4786, %v4857
        %v4879 = vadd.f32 %v4787, %v4860
        %v4880 = vadd.f32 %v4788, %v4863
        %v4881 = vadd.f32 %v4789, %v4866
        %v4882 = vadd.f32 %v4790, %v4869
        %v4883 = vadd.f32 %v4791, %v4872
        %v4884 = vadd.f32 %v4792, %v4875
        %v4885 = vld [vmem:[#allocation3 + $0x10] sm:$0xff]
        %v4886 = vld [vmem:[#allocation3 + $0x18] sm:$0xff]
        %v4887 = vld [vmem:[#allocation3 + $0x20] sm:$0xff]
        %v4888 = vld [vmem:[#allocation3 + $0x28] sm:$0xff]
        %v4889 = vld [vmem:[#allocation3 + $0x30] sm:$0xff]
        %v4890 = vld [vmem:[#allocation3 + $0x38] sm:$0xff]
        %v4891 = vld [vmem:[#allocation3 + $0x40] sm:$0xff]
        %v4892 = vld [vmem:[#allocation3 + $0x48] sm:$0xff]
        %s4893 = scalar_lea.vmem [#allocation11], 64
        %v4894 = vld [vmem:[%s4893] sm:$0xff]
        %v4895 = vld [vmem:[%s4893 + $0x8] sm:$0xff]
        %v4897 = vsel %vm4372, %v4885, 0
        %v4900 = vsel %vm4372, %v4886, 0
        %v4903 = vsel %vm4372, %v4887, 0
        %v4906 = vsel %vm4372, %v4888, 0
        %v4909 = vsel %vm4372, %v4889, 0
        %v4912 = vsel %vm4372, %v4890, 0
        %v4915 = vsel %vm4372, %v4891, 0
        %v4918 = vsel %vm4372, %v4892, 0
        %4920 = vmatpush.msra.mxu0 0.0
        %4921 = vmatpush.msra.mxu0 0.0
        %4922 = vmatpush.msra.mxu0 0.0
        %4923 = vmatpush.msra.mxu0 0.0
        %4924 = vmatpush.msra.mxu0 0.0
        %4925 = vmatpush.msra.mxu0 0.0
        %4926 = vmatpush.msra.mxu0 0.0
        %4927 = vmatpush.msra.mxu0 0.0
        %4928 = vmatpush.msra.mxu0 0.0
        %4929 = vmatpush.msra.mxu0 0.0
        %4930 = vmatpush.msra.mxu0 0.0
        %4931 = vmatpush.msra.mxu0 0.0
        %4932 = vmatpush.msra.mxu0 0.0
        %4933 = vmatpush.msra.mxu0 0.0
        %4934 = vmatpush.msra.mxu0 %v4895
        %4935 = vmatpush.msra.mxu0 %v4894
        %4936 = vmatmul.f32.gmra.mxu0 %v4897
        %v4937 = vpop.f32.mrf.mxu0
        %v4938 = vadd.f32 0.0, %v4937
        %4939 = vmatmul.f32.gmra.mxu0 %v4900
        %v4940 = vpop.f32.mrf.mxu0
        %v4941 = vadd.f32 0.0, %v4940
        %4942 = vmatmul.f32.gmra.mxu0 %v4903
        %v4943 = vpop.f32.mrf.mxu0
        %v4944 = vadd.f32 0.0, %v4943
        %4945 = vmatmul.f32.gmra.mxu0 %v4906
        %v4946 = vpop.f32.mrf.mxu0
        %v4947 = vadd.f32 0.0, %v4946
        %4948 = vmatmul.f32.gmra.mxu0 %v4909
        %v4949 = vpop.f32.mrf.mxu0
        %v4950 = vadd.f32 0.0, %v4949
        %4951 = vmatmul.f32.gmra.mxu0 %v4912
        %v4952 = vpop.f32.mrf.mxu0
        %v4953 = vadd.f32 0.0, %v4952
        %4954 = vmatmul.f32.gmra.mxu0 %v4915
        %v4955 = vpop.f32.mrf.mxu0
        %v4956 = vadd.f32 0.0, %v4955
        %4957 = vmatmul.f32.gmra.mxu0 %v4918
        %v4958 = vpop.f32.mrf.mxu0
        %v4959 = vadd.f32 0.0, %v4958
        %4960 = vdwg.mxu0
        %v4961 = vadd.f32 %v4877, %v4938
        %v4962 = vadd.f32 %v4878, %v4941
        %v4963 = vadd.f32 %v4879, %v4944
        %v4964 = vadd.f32 %v4880, %v4947
        %v4965 = vadd.f32 %v4881, %v4950
        %v4966 = vadd.f32 %v4882, %v4953
        %v4967 = vadd.f32 %v4883, %v4956
        %v4968 = vadd.f32 %v4884, %v4959
        %v4969 = vld [vmem:[#allocation3 + $0x11] sm:$0xff]
        %v4970 = vld [vmem:[#allocation3 + $0x19] sm:$0xff]
        %v4971 = vld [vmem:[#allocation3 + $0x21] sm:$0xff]
        %v4972 = vld [vmem:[#allocation3 + $0x29] sm:$0xff]
        %v4973 = vld [vmem:[#allocation3 + $0x31] sm:$0xff]
        %v4974 = vld [vmem:[#allocation3 + $0x39] sm:$0xff]
        %v4975 = vld [vmem:[#allocation3 + $0x41] sm:$0xff]
        %v4976 = vld [vmem:[#allocation3 + $0x49] sm:$0xff]
        %v4977 = vmul.f32 %v4969, %v4513
        %v4978 = vmul.f32 %v4970, %v4514
        %v4979 = vmul.f32 %v4971, %v4515
        %v4980 = vmul.f32 %v4972, %v4516
        %v4981 = vmul.f32 %v4973, %v4517
        %v4982 = vmul.f32 %v4974, %v4518
        %v4983 = vmul.f32 %v4975, %v4519
        %v4984 = vmul.f32 %v4976, %v4520
        %s4985 = scalar_lea.vmem [#allocation11], 80
        %v4986 = vld [vmem:[%s4985] sm:$0xff]
        %v4987 = vld [vmem:[%s4985 + $0x8] sm:$0xff]
        %v4989 = vsel %vm4372, %v4977, 0
        %v4992 = vsel %vm4372, %v4978, 0
        %v4995 = vsel %vm4372, %v4979, 0
        %v4998 = vsel %vm4372, %v4980, 0
        %v5001 = vsel %vm4372, %v4981, 0
        %v5004 = vsel %vm4372, %v4982, 0
        %v5007 = vsel %vm4372, %v4983, 0
        %v5010 = vsel %vm4372, %v4984, 0
        %5012 = vmatpush.msra.mxu0 0.0
        %5013 = vmatpush.msra.mxu0 0.0
        %5014 = vmatpush.msra.mxu0 0.0
        %5015 = vmatpush.msra.mxu0 0.0
        %5016 = vmatpush.msra.mxu0 0.0
        %5017 = vmatpush.msra.mxu0 0.0
        %5018 = vmatpush.msra.mxu0 0.0
        %5019 = vmatpush.msra.mxu0 0.0
        %5020 = vmatpush.msra.mxu0 0.0
        %5021 = vmatpush.msra.mxu0 0.0
        %5022 = vmatpush.msra.mxu0 0.0
        %5023 = vmatpush.msra.mxu0 0.0
        %5024 = vmatpush.msra.mxu0 0.0
        %5025 = vmatpush.msra.mxu0 0.0
        %5026 = vmatpush.msra.mxu0 %v4987
        %5027 = vmatpush.msra.mxu0 %v4986
        %5028 = vmatmul.f32.gmra.mxu0 %v4989
        %v5029 = vpop.f32.mrf.mxu0
        %v5030 = vadd.f32 0.0, %v5029
        %5031 = vmatmul.f32.gmra.mxu0 %v4992
        %v5032 = vpop.f32.mrf.mxu0
        %v5033 = vadd.f32 0.0, %v5032
        %5034 = vmatmul.f32.gmra.mxu0 %v4995
        %v5035 = vpop.f32.mrf.mxu0
        %v5036 = vadd.f32 0.0, %v5035
        %5037 = vmatmul.f32.gmra.mxu0 %v4998
        %v5038 = vpop.f32.mrf.mxu0
        %v5039 = vadd.f32 0.0, %v5038
        %5040 = vmatmul.f32.gmra.mxu0 %v5001
        %v5041 = vpop.f32.mrf.mxu0
        %v5042 = vadd.f32 0.0, %v5041
        %5043 = vmatmul.f32.gmra.mxu0 %v5004
        %v5044 = vpop.f32.mrf.mxu0
        %v5045 = vadd.f32 0.0, %v5044
        %5046 = vmatmul.f32.gmra.mxu0 %v5007
        %v5047 = vpop.f32.mrf.mxu0
        %v5048 = vadd.f32 0.0, %v5047
        %5049 = vmatmul.f32.gmra.mxu0 %v5010
        %v5050 = vpop.f32.mrf.mxu0
        %v5051 = vadd.f32 0.0, %v5050
        %5052 = vdwg.mxu0
        %v5053 = vadd.f32 %v4961, %v5030
        %v5054 = vadd.f32 %v4962, %v5033
        %v5055 = vadd.f32 %v4963, %v5036
        %v5056 = vadd.f32 %v4964, %v5039
        %v5057 = vadd.f32 %v4965, %v5042
        %v5058 = vadd.f32 %v4966, %v5045
        %v5059 = vadd.f32 %v4967, %v5048
        %v5060 = vadd.f32 %v4968, %v5051
        %v5061 = vld [vmem:[#allocation3 + $0x17] sm:$0xff]
        %v5062 = vld [vmem:[#allocation3 + $0x1f] sm:$0xff]
        %v5063 = vld [vmem:[#allocation3 + $0x27] sm:$0xff]
        %v5064 = vld [vmem:[#allocation3 + $0x2f] sm:$0xff]
        %v5065 = vld [vmem:[#allocation3 + $0x37] sm:$0xff]
        %v5066 = vld [vmem:[#allocation3 + $0x3f] sm:$0xff]
        %v5067 = vld [vmem:[#allocation3 + $0x47] sm:$0xff]
        %v5068 = vld [vmem:[#allocation3 + $0x4f] sm:$0xff]
        %v5069 = vmul.f32 %v5061, %v4497
        %v5070 = vmul.f32 %v5062, %v4498
        %v5071 = vmul.f32 %v5063, %v4499
        %v5072 = vmul.f32 %v5064, %v4500
        %v5073 = vmul.f32 %v5065, %v4501
        %v5074 = vmul.f32 %v5066, %v4502
        %v5075 = vmul.f32 %v5067, %v4503
        %v5076 = vmul.f32 %v5068, %v4504
        %s5077 = scalar_lea.vmem [#allocation11], 96
        %v5078 = vld [vmem:[%s5077] sm:$0xff]
        %v5079 = vld [vmem:[%s5077 + $0x8] sm:$0xff]
        %v5081 = vsel %vm4372, %v5069, 0
        %v5084 = vsel %vm4372, %v5070, 0
        %v5087 = vsel %vm4372, %v5071, 0
        %v5090 = vsel %vm4372, %v5072, 0
        %v5093 = vsel %vm4372, %v5073, 0
        %v5096 = vsel %vm4372, %v5074, 0
        %v5099 = vsel %vm4372, %v5075, 0
        %v5102 = vsel %vm4372, %v5076, 0
        %5104 = vmatpush.msra.mxu0 0.0
        %5105 = vmatpush.msra.mxu0 0.0
        %5106 = vmatpush.msra.mxu0 0.0
        %5107 = vmatpush.msra.mxu0 0.0
        %5108 = vmatpush.msra.mxu0 0.0
        %5109 = vmatpush.msra.mxu0 0.0
        %5110 = vmatpush.msra.mxu0 0.0
        %5111 = vmatpush.msra.mxu0 0.0
        %5112 = vmatpush.msra.mxu0 0.0
        %5113 = vmatpush.msra.mxu0 0.0
        %5114 = vmatpush.msra.mxu0 0.0
        %5115 = vmatpush.msra.mxu0 0.0
        %5116 = vmatpush.msra.mxu0 0.0
        %5117 = vmatpush.msra.mxu0 0.0
        %5118 = vmatpush.msra.mxu0 %v5079
        %5119 = vmatpush.msra.mxu0 %v5078
        %5120 = vmatmul.f32.gmra.mxu0 %v5081
        %v5121 = vpop.f32.mrf.mxu0
        %v5122 = vadd.f32 0.0, %v5121
        %5123 = vmatmul.f32.gmra.mxu0 %v5084
        %v5124 = vpop.f32.mrf.mxu0
        %v5125 = vadd.f32 0.0, %v5124
        %5126 = vmatmul.f32.gmra.mxu0 %v5087
        %v5127 = vpop.f32.mrf.mxu0
        %v5128 = vadd.f32 0.0, %v5127
        %5129 = vmatmul.f32.gmra.mxu0 %v5090
        %v5130 = vpop.f32.mrf.mxu0
        %v5131 = vadd.f32 0.0, %v5130
        %5132 = vmatmul.f32.gmra.mxu0 %v5093
        %v5133 = vpop.f32.mrf.mxu0
        %v5134 = vadd.f32 0.0, %v5133
        %5135 = vmatmul.f32.gmra.mxu0 %v5096
        %v5136 = vpop.f32.mrf.mxu0
        %v5137 = vadd.f32 0.0, %v5136
        %5138 = vmatmul.f32.gmra.mxu0 %v5099
        %v5139 = vpop.f32.mrf.mxu0
        %v5140 = vadd.f32 0.0, %v5139
        %5141 = vmatmul.f32.gmra.mxu0 %v5102
        %v5142 = vpop.f32.mrf.mxu0
        %v5143 = vadd.f32 0.0, %v5142
        %5144 = vdwg.mxu0
        %v5145 = vadd.f32 %v5053, %v5122
        %v5146 = vadd.f32 %v5054, %v5125
        %v5147 = vadd.f32 %v5055, %v5128
        %v5148 = vadd.f32 %v5056, %v5131
        %v5149 = vadd.f32 %v5057, %v5134
        %v5150 = vadd.f32 %v5058, %v5137
        %v5151 = vadd.f32 %v5059, %v5140
        %v5152 = vadd.f32 %v5060, %v5143
        %v5153 = vld [vmem:[#allocation3 + $0x18] sm:$0xff]
        %v5154 = vld [vmem:[#allocation3 + $0x20] sm:$0xff]
        %v5155 = vld [vmem:[#allocation3 + $0x28] sm:$0xff]
        %v5156 = vld [vmem:[#allocation3 + $0x30] sm:$0xff]
        %v5157 = vld [vmem:[#allocation3 + $0x38] sm:$0xff]
        %v5158 = vld [vmem:[#allocation3 + $0x40] sm:$0xff]
        %v5159 = vld [vmem:[#allocation3 + $0x48] sm:$0xff]
        %v5160 = vld [vmem:[#allocation3 + $0x50] sm:$0xff]
        %s5161 = scalar_lea.vmem [#allocation11], 112
        %v5162 = vld [vmem:[%s5161] sm:$0xff]
        %v5163 = vld [vmem:[%s5161 + $0x8] sm:$0xff]
        %v5165 = vsel %vm4372, %v5153, 0
        %v5168 = vsel %vm4372, %v5154, 0
        %v5171 = vsel %vm4372, %v5155, 0
        %v5174 = vsel %vm4372, %v5156, 0
        %v5177 = vsel %vm4372, %v5157, 0
        %v5180 = vsel %vm4372, %v5158, 0
        %v5183 = vsel %vm4372, %v5159, 0
        %v5186 = vsel %vm4372, %v5160, 0
        %5188 = vmatpush.msra.mxu0 0.0
        %5189 = vmatpush.msra.mxu0 0.0
        %5190 = vmatpush.msra.mxu0 0.0
        %5191 = vmatpush.msra.mxu0 0.0
        %5192 = vmatpush.msra.mxu0 0.0
        %5193 = vmatpush.msra.mxu0 0.0
        %5194 = vmatpush.msra.mxu0 0.0
        %5195 = vmatpush.msra.mxu0 0.0
        %5196 = vmatpush.msra.mxu0 0.0
        %5197 = vmatpush.msra.mxu0 0.0
        %5198 = vmatpush.msra.mxu0 0.0
        %5199 = vmatpush.msra.mxu0 0.0
        %5200 = vmatpush.msra.mxu0 0.0
        %5201 = vmatpush.msra.mxu0 0.0
        %5202 = vmatpush.msra.mxu0 %v5163
        %5203 = vmatpush.msra.mxu0 %v5162
        %5204 = vmatmul.f32.gmra.mxu0 %v5165
        %v5205 = vpop.f32.mrf.mxu0
        %v5206 = vadd.f32 0.0, %v5205
        %5207 = vmatmul.f32.gmra.mxu0 %v5168
        %v5208 = vpop.f32.mrf.mxu0
        %v5209 = vadd.f32 0.0, %v5208
        %5210 = vmatmul.f32.gmra.mxu0 %v5171
        %v5211 = vpop.f32.mrf.mxu0
        %v5212 = vadd.f32 0.0, %v5211
        %5213 = vmatmul.f32.gmra.mxu0 %v5174
        %v5214 = vpop.f32.mrf.mxu0
        %v5215 = vadd.f32 0.0, %v5214
        %5216 = vmatmul.f32.gmra.mxu0 %v5177
        %v5217 = vpop.f32.mrf.mxu0
        %v5218 = vadd.f32 0.0, %v5217
        %5219 = vmatmul.f32.gmra.mxu0 %v5180
        %v5220 = vpop.f32.mrf.mxu0
        %v5221 = vadd.f32 0.0, %v5220
        %5222 = vmatmul.f32.gmra.mxu0 %v5183
        %v5223 = vpop.f32.mrf.mxu0
        %v5224 = vadd.f32 0.0, %v5223
        %5225 = vmatmul.f32.gmra.mxu0 %v5186
        %v5226 = vpop.f32.mrf.mxu0
        %v5227 = vadd.f32 0.0, %v5226
        %5228 = vdwg.mxu0
        %v5229 = vadd.f32 %v5145, %v5206
        %v5230 = vadd.f32 %v5146, %v5209
        %v5231 = vadd.f32 %v5147, %v5212
        %v5232 = vadd.f32 %v5148, %v5215
        %v5233 = vadd.f32 %v5149, %v5218
        %v5234 = vadd.f32 %v5150, %v5221
        %v5235 = vadd.f32 %v5151, %v5224
        %v5236 = vadd.f32 %v5152, %v5227
        %v5237 = vld [vmem:[#allocation3 + $0x19] sm:$0xff]
        %v5238 = vld [vmem:[#allocation3 + $0x21] sm:$0xff]
        %v5239 = vld [vmem:[#allocation3 + $0x29] sm:$0xff]
        %v5240 = vld [vmem:[#allocation3 + $0x31] sm:$0xff]
        %v5241 = vld [vmem:[#allocation3 + $0x39] sm:$0xff]
        %v5242 = vld [vmem:[#allocation3 + $0x41] sm:$0xff]
        %v5243 = vld [vmem:[#allocation3 + $0x49] sm:$0xff]
        %v5244 = vld [vmem:[#allocation3 + $0x51] sm:$0xff]
        %v5245 = vmul.f32 %v5237, %v4513
        %v5246 = vmul.f32 %v5238, %v4514
        %v5247 = vmul.f32 %v5239, %v4515
        %v5248 = vmul.f32 %v5240, %v4516
        %v5249 = vmul.f32 %v5241, %v4517
        %v5250 = vmul.f32 %v5242, %v4518
        %v5251 = vmul.f32 %v5243, %v4519
        %v5252 = vmul.f32 %v5244, %v4520
        %s5253 = scalar_lea.vmem [#allocation11], 128
        %v5254 = vld [vmem:[%s5253] sm:$0xff]
        %v5255 = vld [vmem:[%s5253 + $0x8] sm:$0xff]
        %v5257 = vsel %vm4372, %v5245, 0
        %v5260 = vsel %vm4372, %v5246, 0
        %v5263 = vsel %vm4372, %v5247, 0
        %v5266 = vsel %vm4372, %v5248, 0
        %v5269 = vsel %vm4372, %v5249, 0
        %v5272 = vsel %vm4372, %v5250, 0
        %v5275 = vsel %vm4372, %v5251, 0
        %v5278 = vsel %vm4372, %v5252, 0
        %5280 = vmatpush.msra.mxu0 0.0
        %5281 = vmatpush.msra.mxu0 0.0
        %5282 = vmatpush.msra.mxu0 0.0
        %5283 = vmatpush.msra.mxu0 0.0
        %5284 = vmatpush.msra.mxu0 0.0
        %5285 = vmatpush.msra.mxu0 0.0
        %5286 = vmatpush.msra.mxu0 0.0
        %5287 = vmatpush.msra.mxu0 0.0
        %5288 = vmatpush.msra.mxu0 0.0
        %5289 = vmatpush.msra.mxu0 0.0
        %5290 = vmatpush.msra.mxu0 0.0
        %5291 = vmatpush.msra.mxu0 0.0
        %5292 = vmatpush.msra.mxu0 0.0
        %5293 = vmatpush.msra.mxu0 0.0
        %5294 = vmatpush.msra.mxu0 %v5255
        %5295 = vmatpush.msra.mxu0 %v5254
        %5296 = vmatmul.f32.gmra.mxu0 %v5257
        %v5297 = vpop.f32.mrf.mxu0
        %v5298 = vadd.f32 0.0, %v5297
        %5299 = vmatmul.f32.gmra.mxu0 %v5260
        %v5300 = vpop.f32.mrf.mxu0
        %v5301 = vadd.f32 0.0, %v5300
        %5302 = vmatmul.f32.gmra.mxu0 %v5263
        %v5303 = vpop.f32.mrf.mxu0
        %v5304 = vadd.f32 0.0, %v5303
        %5305 = vmatmul.f32.gmra.mxu0 %v5266
        %v5306 = vpop.f32.mrf.mxu0
        %v5307 = vadd.f32 0.0, %v5306
        %5308 = vmatmul.f32.gmra.mxu0 %v5269
        %v5309 = vpop.f32.mrf.mxu0
        %v5310 = vadd.f32 0.0, %v5309
        %5311 = vmatmul.f32.gmra.mxu0 %v5272
        %v5312 = vpop.f32.mrf.mxu0
        %v5313 = vadd.f32 0.0, %v5312
        %5314 = vmatmul.f32.gmra.mxu0 %v5275
        %v5315 = vpop.f32.mrf.mxu0
        %v5316 = vadd.f32 0.0, %v5315
        %5317 = vmatmul.f32.gmra.mxu0 %v5278
        %v5318 = vpop.f32.mrf.mxu0
        %v5319 = vadd.f32 0.0, %v5318
        %5320 = vdwg.mxu0
        %v5321 = vadd.f32 %v5229, %v5298
        %v5322 = vadd.f32 %v5230, %v5301
        %v5323 = vadd.f32 %v5231, %v5304
        %v5324 = vadd.f32 %v5232, %v5307
        %v5325 = vadd.f32 %v5233, %v5310
        %v5326 = vadd.f32 %v5234, %v5313
        %v5327 = vadd.f32 %v5235, %v5316
        %v5328 = vadd.f32 %v5236, %v5319
        %v5329 = vld [vmem:[%s6] sm:$0xff]
        %v5330 = vld [vmem:[%s6 + $0x8] sm:$0xff]
        %vm5331 = vcmask 523264
        %v5333 = vsel %vm5331, %v5329, 0
        %v5336 = vsel %vm5331, %v5330, 0
        %5338 = vmatpush.msra.mxu0 0.0
        %5339 = vmatpush.msra.mxu0 0.0
        %5340 = vmatpush.msra.mxu0 0.0
        %5341 = vmatpush.msra.mxu0 0.0
        %5342 = vmatpush.msra.mxu0 0.0
        %5343 = vmatpush.msra.mxu0 0.0
        %5344 = vmatpush.msra.mxu0 0.0
        %5345 = vmatpush.msra.mxu0 0.0
        %5346 = vmatpush.msra.mxu0 %v5328
        %5347 = vmatpush.msra.mxu0 %v5327
        %5348 = vmatpush.msra.mxu0 %v5326
        %5349 = vmatpush.msra.mxu0 %v5325
        %5350 = vmatpush.msra.mxu0 %v5324
        %5351 = vmatpush.msra.mxu0 %v5323
        %5352 = vmatpush.msra.mxu0 %v5322
        %5353 = vmatpush.msra.mxu0 %v5321
        %5354 = vmatmul.f32.gmra.mxu0 %v5333
        %v5355 = vpop.f32.mrf.mxu0
        %v5356 = vadd.f32 0.0, %v5355
        %5357 = vmatmul.f32.gmra.mxu0 %v5336
        %v5358 = vpop.f32.mrf.mxu0
        %v5359 = vadd.f32 0.0, %v5358
        %5360 = vdwg.mxu0
        %s5361 = scalar_lea.vmem %s6, 16
        %v5362 = vld [vmem:[%s5361] sm:$0xff]
        %v5363 = vld [vmem:[%s5361 + $0x8] sm:$0xff]
        %v5365 = vsel %vm5331, %v5362, 0
        %v5368 = vsel %vm5331, %v5363, 0
        %5370 = vmatpush.msra.mxu0 0.0
        %5371 = vmatpush.msra.mxu0 0.0
        %5372 = vmatpush.msra.mxu0 0.0
        %5373 = vmatpush.msra.mxu0 0.0
        %5374 = vmatpush.msra.mxu0 0.0
        %5375 = vmatpush.msra.mxu0 0.0
        %5376 = vmatpush.msra.mxu0 0.0
        %5377 = vmatpush.msra.mxu0 0.0
        %5378 = vmatpush.msra.mxu0 %v5328
        %5379 = vmatpush.msra.mxu0 %v5327
        %5380 = vmatpush.msra.mxu0 %v5326
        %5381 = vmatpush.msra.mxu0 %v5325
        %5382 = vmatpush.msra.mxu0 %v5324
        %5383 = vmatpush.msra.mxu0 %v5323
        %5384 = vmatpush.msra.mxu0 %v5322
        %5385 = vmatpush.msra.mxu0 %v5321
        %5386 = vmatmul.f32.gmra.mxu0 %v5365
        %v5387 = vpop.f32.mrf.mxu0
        %v5388 = vadd.f32 0.0, %v5387
        %5389 = vmatmul.f32.gmra.mxu0 %v5368
        %v5390 = vpop.f32.mrf.mxu0
        %v5391 = vadd.f32 0.0, %v5390
        %5392 = vdwg.mxu0
        %v5393 = vmax.f32 %v5356, %v5388
        %v5394 = vmax.f32 %v5359, %v5391
        %s5395 = scalar_lea.vmem %s6, 32
        %v5396 = vld [vmem:[%s5395] sm:$0xff]
        %v5397 = vld [vmem:[%s5395 + $0x8] sm:$0xff]
        %v5399 = vsel %vm5331, %v5396, 0
        %v5402 = vsel %vm5331, %v5397, 0
        %5404 = vmatpush.msra.mxu0 0.0
        %5405 = vmatpush.msra.mxu0 0.0
        %5406 = vmatpush.msra.mxu0 0.0
        %5407 = vmatpush.msra.mxu0 0.0
        %5408 = vmatpush.msra.mxu0 0.0
        %5409 = vmatpush.msra.mxu0 0.0
        %5410 = vmatpush.msra.mxu0 0.0
        %5411 = vmatpush.msra.mxu0 0.0
        %5412 = vmatpush.msra.mxu0 %v5328
        %5413 = vmatpush.msra.mxu0 %v5327
        %5414 = vmatpush.msra.mxu0 %v5326
        %5415 = vmatpush.msra.mxu0 %v5325
        %5416 = vmatpush.msra.mxu0 %v5324
        %5417 = vmatpush.msra.mxu0 %v5323
        %5418 = vmatpush.msra.mxu0 %v5322
        %5419 = vmatpush.msra.mxu0 %v5321
        %5420 = vmatmul.f32.gmra.mxu0 %v5399
        %v5421 = vpop.f32.mrf.mxu0
        %v5422 = vadd.f32 0.0, %v5421
        %5423 = vmatmul.f32.gmra.mxu0 %v5402
        %v5424 = vpop.f32.mrf.mxu0
        %v5425 = vadd.f32 0.0, %v5424
        %5426 = vdwg.mxu0
        %v5427 = vmax.f32 %v5393, %v5422
        %v5428 = vmax.f32 %v5394, %v5425
        %s5429 = scalar_lea.vmem %s6, 48
        %v5430 = vld [vmem:[%s5429] sm:$0xff]
        %v5431 = vld [vmem:[%s5429 + $0x8] sm:$0xff]
        %v5433 = vsel %vm5331, %v5430, 0
        %v5436 = vsel %vm5331, %v5431, 0
        %5438 = vmatpush.msra.mxu0 0.0
        %5439 = vmatpush.msra.mxu0 0.0
        %5440 = vmatpush.msra.mxu0 0.0
        %5441 = vmatpush.msra.mxu0 0.0
        %5442 = vmatpush.msra.mxu0 0.0
        %5443 = vmatpush.msra.mxu0 0.0
        %5444 = vmatpush.msra.mxu0 0.0
        %5445 = vmatpush.msra.mxu0 0.0
        %5446 = vmatpush.msra.mxu0 %v5328
        %5447 = vmatpush.msra.mxu0 %v5327
        %5448 = vmatpush.msra.mxu0 %v5326
        %5449 = vmatpush.msra.mxu0 %v5325
        %5450 = vmatpush.msra.mxu0 %v5324
        %5451 = vmatpush.msra.mxu0 %v5323
        %5452 = vmatpush.msra.mxu0 %v5322
        %5453 = vmatpush.msra.mxu0 %v5321
        %5454 = vmatmul.f32.gmra.mxu0 %v5433
        %v5455 = vpop.f32.mrf.mxu0
        %v5456 = vadd.f32 0.0, %v5455
        %5457 = vmatmul.f32.gmra.mxu0 %v5436
        %v5458 = vpop.f32.mrf.mxu0
        %v5459 = vadd.f32 0.0, %v5458
        %5460 = vdwg.mxu0
        %v5461 = vmax.f32 %v5427, %v5456
        %v5462 = vmax.f32 %v5428, %v5459
        %v5463 = vmul.f32 %v5461, 0.01
        %v5464 = vmul.f32 %v5462, 0.01
        %v5465 = vmax.f32 %v5461, %v5463
        %v5466 = vmax.f32 %v5462, %v5464
        %vm5467 = vcmask 261120
        %5468 = vst.msk [vmem:[#allocation4] sm:$0xff] %vm5467, 0.0
        %5469 = vst.msk [vmem:[#allocation4 + $0x8] sm:$0xff] %vm5467, 0.0
        %5470 = vst.msk [vmem:[#allocation4 + $0x10] sm:$0xff] %vm5467, 0.0
        %5471 = vst.msk [vmem:[#allocation4 + $0x18] sm:$0xff] %vm5467, 0.0
        %5472 = vst.msk [vmem:[#allocation4 + $0x8] sm:$0xff] %vm5467, %v5465
        %5473 = vst.msk [vmem:[#allocation4 + $0x10] sm:$0xff] %vm5467, %v5466
        %vm5474 = vcmp.lt.s32.totalorder %v694, 0
        %v5475 = vsub.s32 0, %v694
        %v5476 = vsel %vm5474, %v5475, %v694
        %v5477 = vshrl.u32 %v5476, 2
        %v5478 = vand.u32 %v5476, 3
        %v5479 = vsub.s32 0, %v5478
        %v5480 = vsel %vm5474, %v5479, %v5478
        %vm5481 = vcmp.lt.s32.totalorder %v695, 0
        %v5482 = vsub.s32 0, %v695
        %v5483 = vsel %vm5481, %v5482, %v695
        %v5484 = vshrl.u32 %v5483, 2
        %v5485 = vand.u32 %v5483, 3
        %v5486 = vsub.s32 0, %v5485
        %v5487 = vsel %vm5481, %v5486, %v5485
        %vm5488 = vcmp.ne.s32.totalorder %v5480, 0
        %vm5489 = vcmp.ne.s32.totalorder %v5487, 0
        %vm5490 = vcmp.lt.s32.totalorder %v5480, 0
        %vm5491 = vcmp.lt.s32.totalorder %v5487, 0
        %vm5492 = vmand %vm5490, %vm5488
        %vm5493 = vmand %vm5491, %vm5489
        %v5494 = vadd.s32 %v5480, 4
        %v5495 = vadd.s32 %v5487, 4
        %v5496 = vsel %vm5492, %v5494, %v5480
        %v5497 = vsel %vm5493, %v5495, %v5487
        %vm5498 = vcmp.ge.s32.totalorder %v5496, 1
        %vm5499 = vcmp.ge.s32.totalorder %v5497, 1
        %v5500 = vsel %vm5498, 1.0, 0.0
        %v5501 = vsel %vm5499, 1.0, 0.0
        %vm5502 = vcmp.lt.s32.totalorder %v5496, 3
        %vm5503 = vcmp.lt.s32.totalorder %v5497, 3
        %v5504 = vsel %vm5502, 1.0, 0.0
        %v5505 = vsel %vm5503, 1.0, 0.0
        %v5506 = vld [vmem:[#allocation15] sm:$0x1]
        %v5508 = vperm.slane %v5506, 0
        %v5510 = vadd.f32 %v5508, 0.0
        %v5511 = vld [vmem:[#allocation4 + $0x3] sm:$0xff]
        %v5512 = vld [vmem:[#allocation4 + $0xb] sm:$0xff]
        %v5513 = vmul.f32 %v5511, %v5500
        %v5514 = vmul.f32 %v5512, %v5501
        %v5515 = vld [vmem:[#allocation14] sm:$0xff]
        %v5516 = vld [vmem:[#allocation14 + $0x8] sm:$0xff]
        %v5517 = vld [vmem:[#allocation14 + $0x10] sm:$0xff]
        %v5518 = vld [vmem:[#allocation14 + $0x18] sm:$0xff]
        %v5520 = vsel %vm5467, %v5513, 0
        %v5523 = vsel %vm5467, %v5514, 0
        %5525 = vmatpush.msra.mxu0 0.0
        %5526 = vmatpush.msra.mxu0 0.0
        %5527 = vmatpush.msra.mxu0 0.0
        %5528 = vmatpush.msra.mxu0 0.0
        %5529 = vmatpush.msra.mxu0 0.0
        %5530 = vmatpush.msra.mxu0 0.0
        %5531 = vmatpush.msra.mxu0 0.0
        %5532 = vmatpush.msra.mxu0 0.0
        %5533 = vmatpush.msra.mxu0 0.0
        %5534 = vmatpush.msra.mxu0 0.0
        %5535 = vmatpush.msra.mxu0 0.0
        %5536 = vmatpush.msra.mxu0 0.0
        %5537 = vmatpush.msra.mxu0 %v5518
        %5538 = vmatpush.msra.mxu0 %v5517
        %5539 = vmatpush.msra.mxu0 %v5516
        %5540 = vmatpush.msra.mxu0 %v5515
        %5541 = vmatmul.f32.gmra.mxu0 %v5520
        %v5542 = vpop.f32.mrf.mxu0
        %v5543 = vadd.f32 0.0, %v5542
        %5544 = vmatmul.f32.gmra.mxu0 %v5523
        %v5545 = vpop.f32.mrf.mxu0
        %v5546 = vadd.f32 0.0, %v5545
        %5547 = vdwg.mxu0
        %v5548 = vadd.f32 %v5510, %v5543
        %v5549 = vadd.f32 %v5510, %v5546
        %v5550 = vld [vmem:[#allocation4 + $0x4] sm:$0xff]
        %v5551 = vld [vmem:[#allocation4 + $0xc] sm:$0xff]
        %s5552 = scalar_lea.vmem [#allocation14], 32
        %v5553 = vld [vmem:[%s5552] sm:$0xff]
        %v5554 = vld [vmem:[%s5552 + $0x8] sm:$0xff]
        %v5555 = vld [vmem:[%s5552 + $0x10] sm:$0xff]
        %v5556 = vld [vmem:[%s5552 + $0x18] sm:$0xff]
        %v5558 = vsel %vm5467, %v5550, 0
        %v5561 = vsel %vm5467, %v5551, 0
        %5563 = vmatpush.msra.mxu0 0.0
        %5564 = vmatpush.msra.mxu0 0.0
        %5565 = vmatpush.msra.mxu0 0.0
        %5566 = vmatpush.msra.mxu0 0.0
        %5567 = vmatpush.msra.mxu0 0.0
        %5568 = vmatpush.msra.mxu0 0.0
        %5569 = vmatpush.msra.mxu0 0.0
        %5570 = vmatpush.msra.mxu0 0.0
        %5571 = vmatpush.msra.mxu0 0.0
        %5572 = vmatpush.msra.mxu0 0.0
        %5573 = vmatpush.msra.mxu0 0.0
        %5574 = vmatpush.msra.mxu0 0.0
        %5575 = vmatpush.msra.mxu0 %v5556
        %5576 = vmatpush.msra.mxu0 %v5555
        %5577 = vmatpush.msra.mxu0 %v5554
        %5578 = vmatpush.msra.mxu0 %v5553
        %5579 = vmatmul.f32.gmra.mxu0 %v5558
        %v5580 = vpop.f32.mrf.mxu0
        %v5581 = vadd.f32 0.0, %v5580
        %5582 = vmatmul.f32.gmra.mxu0 %v5561
        %v5583 = vpop.f32.mrf.mxu0
        %v5584 = vadd.f32 0.0, %v5583
        %5585 = vdwg.mxu0
        %v5586 = vadd.f32 %v5548, %v5581
        %v5587 = vadd.f32 %v5549, %v5584
        %v5588 = vld [vmem:[#allocation4 + $0x5] sm:$0xff]
        %v5589 = vld [vmem:[#allocation4 + $0xd] sm:$0xff]
        %v5590 = vmul.f32 %v5588, %v5504
        %v5591 = vmul.f32 %v5589, %v5505
        %s5592 = scalar_lea.vmem [#allocation14], 64
        %v5593 = vld [vmem:[%s5592] sm:$0xff]
        %v5594 = vld [vmem:[%s5592 + $0x8] sm:$0xff]
        %v5595 = vld [vmem:[%s5592 + $0x10] sm:$0xff]
        %v5596 = vld [vmem:[%s5592 + $0x18] sm:$0xff]
        %v5598 = vsel %vm5467, %v5590, 0
        %v5601 = vsel %vm5467, %v5591, 0
        %5603 = vmatpush.msra.mxu0 0.0
        %5604 = vmatpush.msra.mxu0 0.0
        %5605 = vmatpush.msra.mxu0 0.0
        %5606 = vmatpush.msra.mxu0 0.0
        %5607 = vmatpush.msra.mxu0 0.0
        %5608 = vmatpush.msra.mxu0 0.0
        %5609 = vmatpush.msra.mxu0 0.0
        %5610 = vmatpush.msra.mxu0 0.0
        %5611 = vmatpush.msra.mxu0 0.0
        %5612 = vmatpush.msra.mxu0 0.0
        %5613 = vmatpush.msra.mxu0 0.0
        %5614 = vmatpush.msra.mxu0 0.0
        %5615 = vmatpush.msra.mxu0 %v5596
        %5616 = vmatpush.msra.mxu0 %v5595
        %5617 = vmatpush.msra.mxu0 %v5594
        %5618 = vmatpush.msra.mxu0 %v5593
        %5619 = vmatmul.f32.gmra.mxu0 %v5598
        %v5620 = vpop.f32.mrf.mxu0
        %v5621 = vadd.f32 0.0, %v5620
        %5622 = vmatmul.f32.gmra.mxu0 %v5601
        %v5623 = vpop.f32.mrf.mxu0
        %v5624 = vadd.f32 0.0, %v5623
        %5625 = vdwg.mxu0
        %v5626 = vadd.f32 %v5586, %v5621
        %v5627 = vadd.f32 %v5587, %v5624
        %v5628 = vld [vmem:[#allocation4 + $0x7] sm:$0xff]
        %v5629 = vld [vmem:[#allocation4 + $0xf] sm:$0xff]
        %v5630 = vmul.f32 %v5628, %v5500
        %v5631 = vmul.f32 %v5629, %v5501
        %s5632 = scalar_lea.vmem [#allocation14], 96
        %v5633 = vld [vmem:[%s5632] sm:$0xff]
        %v5634 = vld [vmem:[%s5632 + $0x8] sm:$0xff]
        %v5635 = vld [vmem:[%s5632 + $0x10] sm:$0xff]
        %v5636 = vld [vmem:[%s5632 + $0x18] sm:$0xff]
        %v5638 = vsel %vm5467, %v5630, 0
        %v5641 = vsel %vm5467, %v5631, 0
        %5643 = vmatpush.msra.mxu0 0.0
        %5644 = vmatpush.msra.mxu0 0.0
        %5645 = vmatpush.msra.mxu0 0.0
        %5646 = vmatpush.msra.mxu0 0.0
        %5647 = vmatpush.msra.mxu0 0.0
        %5648 = vmatpush.msra.mxu0 0.0
        %5649 = vmatpush.msra.mxu0 0.0
        %5650 = vmatpush.msra.mxu0 0.0
        %5651 = vmatpush.msra.mxu0 0.0
        %5652 = vmatpush.msra.mxu0 0.0
        %5653 = vmatpush.msra.mxu0 0.0
        %5654 = vmatpush.msra.mxu0 0.0
        %5655 = vmatpush.msra.mxu0 %v5636
        %5656 = vmatpush.msra.mxu0 %v5635
        %5657 = vmatpush.msra.mxu0 %v5634
        %5658 = vmatpush.msra.mxu0 %v5633
        %5659 = vmatmul.f32.gmra.mxu0 %v5638
        %v5660 = vpop.f32.mrf.mxu0
        %v5661 = vadd.f32 0.0, %v5660
        %5662 = vmatmul.f32.gmra.mxu0 %v5641
        %v5663 = vpop.f32.mrf.mxu0
        %v5664 = vadd.f32 0.0, %v5663
        %5665 = vdwg.mxu0
        %v5666 = vadd.f32 %v5626, %v5661
        %v5667 = vadd.f32 %v5627, %v5664
        %v5668 = vld [vmem:[#allocation4 + $0x8] sm:$0xff]
        %v5669 = vld [vmem:[#allocation4 + $0x10] sm:$0xff]
        %s5670 = scalar_lea.vmem [#allocation14], 128
        %v5671 = vld [vmem:[%s5670] sm:$0xff]
        %v5672 = vld [vmem:[%s5670 + $0x8] sm:$0xff]
        %v5673 = vld [vmem:[%s5670 + $0x10] sm:$0xff]
        %v5674 = vld [vmem:[%s5670 + $0x18] sm:$0xff]
        %v5676 = vsel %vm5467, %v5668, 0
        %v5679 = vsel %vm5467, %v5669, 0
        %5681 = vmatpush.msra.mxu0 0.0
        %5682 = vmatpush.msra.mxu0 0.0
        %5683 = vmatpush.msra.mxu0 0.0
        %5684 = vmatpush.msra.mxu0 0.0
        %5685 = vmatpush.msra.mxu0 0.0
        %5686 = vmatpush.msra.mxu0 0.0
        %5687 = vmatpush.msra.mxu0 0.0
        %5688 = vmatpush.msra.mxu0 0.0
        %5689 = vmatpush.msra.mxu0 0.0
        %5690 = vmatpush.msra.mxu0 0.0
        %5691 = vmatpush.msra.mxu0 0.0
        %5692 = vmatpush.msra.mxu0 0.0
        %5693 = vmatpush.msra.mxu0 %v5674
        %5694 = vmatpush.msra.mxu0 %v5673
        %5695 = vmatpush.msra.mxu0 %v5672
        %5696 = vmatpush.msra.mxu0 %v5671
        %5697 = vmatmul.f32.gmra.mxu0 %v5676
        %v5698 = vpop.f32.mrf.mxu0
        %v5699 = vadd.f32 0.0, %v5698
        %5700 = vmatmul.f32.gmra.mxu0 %v5679
        %v5701 = vpop.f32.mrf.mxu0
        %v5702 = vadd.f32 0.0, %v5701
        %5703 = vdwg.mxu0
        %v5704 = vadd.f32 %v5666, %v5699
        %v5705 = vadd.f32 %v5667, %v5702
        %v5706 = vld [vmem:[#allocation4 + $0x9] sm:$0xff]
        %v5707 = vld [vmem:[#allocation4 + $0x11] sm:$0xff]
        %v5708 = vmul.f32 %v5706, %v5504
        %v5709 = vmul.f32 %v5707, %v5505
        %s5710 = scalar_lea.vmem [#allocation14], 160
        %v5711 = vld [vmem:[%s5710] sm:$0xff]
        %v5712 = vld [vmem:[%s5710 + $0x8] sm:$0xff]
        %v5713 = vld [vmem:[%s5710 + $0x10] sm:$0xff]
        %v5714 = vld [vmem:[%s5710 + $0x18] sm:$0xff]
        %v5716 = vsel %vm5467, %v5708, 0
        %v5719 = vsel %vm5467, %v5709, 0
        %5721 = vmatpush.msra.mxu0 0.0
        %5722 = vmatpush.msra.mxu0 0.0
        %5723 = vmatpush.msra.mxu0 0.0
        %5724 = vmatpush.msra.mxu0 0.0
        %5725 = vmatpush.msra.mxu0 0.0
        %5726 = vmatpush.msra.mxu0 0.0
        %5727 = vmatpush.msra.mxu0 0.0
        %5728 = vmatpush.msra.mxu0 0.0
        %5729 = vmatpush.msra.mxu0 0.0
        %5730 = vmatpush.msra.mxu0 0.0
        %5731 = vmatpush.msra.mxu0 0.0
        %5732 = vmatpush.msra.mxu0 0.0
        %5733 = vmatpush.msra.mxu0 %v5714
        %5734 = vmatpush.msra.mxu0 %v5713
        %5735 = vmatpush.msra.mxu0 %v5712
        %5736 = vmatpush.msra.mxu0 %v5711
        %5737 = vmatmul.f32.gmra.mxu0 %v5716
        %v5738 = vpop.f32.mrf.mxu0
        %v5739 = vadd.f32 0.0, %v5738
        %5740 = vmatmul.f32.gmra.mxu0 %v5719
        %v5741 = vpop.f32.mrf.mxu0
        %v5742 = vadd.f32 0.0, %v5741
        %5743 = vdwg.mxu0
        %v5744 = vadd.f32 %v5704, %v5739
        %v5745 = vadd.f32 %v5705, %v5742
        %v5746 = vld [vmem:[#allocation4 + $0xb] sm:$0xff]
        %v5747 = vld [vmem:[#allocation4 + $0x13] sm:$0xff]
        %v5748 = vmul.f32 %v5746, %v5500
        %v5749 = vmul.f32 %v5747, %v5501
        %s5750 = scalar_lea.vmem [#allocation14], 192
        %v5751 = vld [vmem:[%s5750] sm:$0xff]
        %v5752 = vld [vmem:[%s5750 + $0x8] sm:$0xff]
        %v5753 = vld [vmem:[%s5750 + $0x10] sm:$0xff]
        %v5754 = vld [vmem:[%s5750 + $0x18] sm:$0xff]
        %v5756 = vsel %vm5467, %v5748, 0
        %v5759 = vsel %vm5467, %v5749, 0
        %5761 = vmatpush.msra.mxu0 0.0
        %5762 = vmatpush.msra.mxu0 0.0
        %5763 = vmatpush.msra.mxu0 0.0
        %5764 = vmatpush.msra.mxu0 0.0
        %5765 = vmatpush.msra.mxu0 0.0
        %5766 = vmatpush.msra.mxu0 0.0
        %5767 = vmatpush.msra.mxu0 0.0
        %5768 = vmatpush.msra.mxu0 0.0
        %5769 = vmatpush.msra.mxu0 0.0
        %5770 = vmatpush.msra.mxu0 0.0
        %5771 = vmatpush.msra.mxu0 0.0
        %5772 = vmatpush.msra.mxu0 0.0
        %5773 = vmatpush.msra.mxu0 %v5754
        %5774 = vmatpush.msra.mxu0 %v5753
        %5775 = vmatpush.msra.mxu0 %v5752
        %5776 = vmatpush.msra.mxu0 %v5751
        %5777 = vmatmul.f32.gmra.mxu0 %v5756
        %v5778 = vpop.f32.mrf.mxu0
        %v5779 = vadd.f32 0.0, %v5778
        %5780 = vmatmul.f32.gmra.mxu0 %v5759
        %v5781 = vpop.f32.mrf.mxu0
        %v5782 = vadd.f32 0.0, %v5781
        %5783 = vdwg.mxu0
        %v5784 = vadd.f32 %v5744, %v5779
        %v5785 = vadd.f32 %v5745, %v5782
        %v5786 = vld [vmem:[#allocation4 + $0xc] sm:$0xff]
        %v5787 = vld [vmem:[#allocation4 + $0x14] sm:$0xff]
        %s5788 = scalar_lea.vmem [#allocation14], 224
        %v5789 = vld [vmem:[%s5788] sm:$0xff]
        %v5790 = vld [vmem:[%s5788 + $0x8] sm:$0xff]
        %v5791 = vld [vmem:[%s5788 + $0x10] sm:$0xff]
        %v5792 = vld [vmem:[%s5788 + $0x18] sm:$0xff]
        %v5794 = vsel %vm5467, %v5786, 0
        %v5797 = vsel %vm5467, %v5787, 0
        %5799 = vmatpush.msra.mxu0 0.0
        %5800 = vmatpush.msra.mxu0 0.0
        %5801 = vmatpush.msra.mxu0 0.0
        %5802 = vmatpush.msra.mxu0 0.0
        %5803 = vmatpush.msra.mxu0 0.0
        %5804 = vmatpush.msra.mxu0 0.0
        %5805 = vmatpush.msra.mxu0 0.0
        %5806 = vmatpush.msra.mxu0 0.0
        %5807 = vmatpush.msra.mxu0 0.0
        %5808 = vmatpush.msra.mxu0 0.0
        %5809 = vmatpush.msra.mxu0 0.0
        %5810 = vmatpush.msra.mxu0 0.0
        %5811 = vmatpush.msra.mxu0 %v5792
        %5812 = vmatpush.msra.mxu0 %v5791
        %5813 = vmatpush.msra.mxu0 %v5790
        %5814 = vmatpush.msra.mxu0 %v5789
        %5815 = vmatmul.f32.gmra.mxu0 %v5794
        %v5816 = vpop.f32.mrf.mxu0
        %v5817 = vadd.f32 0.0, %v5816
        %5818 = vmatmul.f32.gmra.mxu0 %v5797
        %v5819 = vpop.f32.mrf.mxu0
        %v5820 = vadd.f32 0.0, %v5819
        %5821 = vdwg.mxu0
        %v5822 = vadd.f32 %v5784, %v5817
        %v5823 = vadd.f32 %v5785, %v5820
        %v5824 = vld [vmem:[#allocation4 + $0xd] sm:$0xff]
        %v5825 = vld [vmem:[#allocation4 + $0x15] sm:$0xff]
        %v5826 = vmul.f32 %v5824, %v5504
        %v5827 = vmul.f32 %v5825, %v5505
        %s5828 = scalar_lea.vmem [#allocation14], 256
        %v5829 = vld [vmem:[%s5828] sm:$0xff]
        %v5830 = vld [vmem:[%s5828 + $0x8] sm:$0xff]
        %v5831 = vld [vmem:[%s5828 + $0x10] sm:$0xff]
        %v5832 = vld [vmem:[%s5828 + $0x18] sm:$0xff]
        %v5834 = vsel %vm5467, %v5826, 0
        %v5837 = vsel %vm5467, %v5827, 0
        %5839 = vmatpush.msra.mxu0 0.0
        %5840 = vmatpush.msra.mxu0 0.0
        %5841 = vmatpush.msra.mxu0 0.0
        %5842 = vmatpush.msra.mxu0 0.0
        %5843 = vmatpush.msra.mxu0 0.0
        %5844 = vmatpush.msra.mxu0 0.0
        %5845 = vmatpush.msra.mxu0 0.0
        %5846 = vmatpush.msra.mxu0 0.0
        %5847 = vmatpush.msra.mxu0 0.0
        %5848 = vmatpush.msra.mxu0 0.0
        %5849 = vmatpush.msra.mxu0 0.0
        %5850 = vmatpush.msra.mxu0 0.0
        %5851 = vmatpush.msra.mxu0 %v5832
        %5852 = vmatpush.msra.mxu0 %v5831
        %5853 = vmatpush.msra.mxu0 %v5830
        %5854 = vmatpush.msra.mxu0 %v5829
        %5855 = vmatmul.f32.gmra.mxu0 %v5834
        %v5856 = vpop.f32.mrf.mxu0
        %v5857 = vadd.f32 0.0, %v5856
        %5858 = vmatmul.f32.gmra.mxu0 %v5837
        %v5859 = vpop.f32.mrf.mxu0
        %v5860 = vadd.f32 0.0, %v5859
        %5861 = vdwg.mxu0
        %v5862 = vadd.f32 %v5822, %v5857
        %v5863 = vadd.f32 %v5823, %v5860
        %v5864 = vld [vmem:[#allocation17] sm:$0xf]
        %v5866 = vsel %vm4372, %v5864, 0
        %5868 = vmatpush.msra.mxu0 0.0
        %5869 = vmatpush.msra.mxu0 0.0
        %5870 = vmatpush.msra.mxu0 0.0
        %5871 = vmatpush.msra.mxu0 0.0
        %5872 = vmatpush.msra.mxu0 0.0
        %5873 = vmatpush.msra.mxu0 0.0
        %5874 = vmatpush.msra.mxu0 0.0
        %5875 = vmatpush.msra.mxu0 0.0
        %5876 = vmatpush.msra.mxu0 0.0
        %5877 = vmatpush.msra.mxu0 0.0
        %5878 = vmatpush.msra.mxu0 0.0
        %5879 = vmatpush.msra.mxu0 0.0
        %5880 = vmatpush.msra.mxu0 0.0
        %5881 = vmatpush.msra.mxu0 0.0
        %5882 = vmatpush.msra.mxu0 %v5863
        %5883 = vmatpush.msra.mxu0 %v5862
        %5884 = vmatmul.f32.gmra.mxu0 %v5866
        %v5885 = vpop.f32.mrf.mxu0
        %v5886 = vadd.f32 0.0, %v5885
        %5887 = vdwg.mxu0
        %s5888 = scalar_lea.vmem [#allocation17], 4
        %v5889 = vld [vmem:[%s5888] sm:$0xf]
        %v5891 = vsel %vm4372, %v5889, 0
        %5893 = vmatpush.msra.mxu0 0.0
        %5894 = vmatpush.msra.mxu0 0.0
        %5895 = vmatpush.msra.mxu0 0.0
        %5896 = vmatpush.msra.mxu0 0.0
        %5897 = vmatpush.msra.mxu0 0.0
        %5898 = vmatpush.msra.mxu0 0.0
        %5899 = vmatpush.msra.mxu0 0.0
        %5900 = vmatpush.msra.mxu0 0.0
        %5901 = vmatpush.msra.mxu0 0.0
        %5902 = vmatpush.msra.mxu0 0.0
        %5903 = vmatpush.msra.mxu0 0.0
        %5904 = vmatpush.msra.mxu0 0.0
        %5905 = vmatpush.msra.mxu0 0.0
        %5906 = vmatpush.msra.mxu0 0.0
        %5907 = vmatpush.msra.mxu0 %v5863
        %5908 = vmatpush.msra.mxu0 %v5862
        %5909 = vmatmul.f32.gmra.mxu0 %v5891
        %v5910 = vpop.f32.mrf.mxu0
        %v5911 = vadd.f32 0.0, %v5910
        %5912 = vdwg.mxu0
        %v5913 = vmax.f32 %v5886, %v5911
        %s5914 = scalar_lea.vmem [#allocation17], 8
        %v5915 = vld [vmem:[%s5914] sm:$0xf]
        %v5917 = vsel %vm4372, %v5915, 0
        %5919 = vmatpush.msra.mxu0 0.0
        %5920 = vmatpush.msra.mxu0 0.0
        %5921 = vmatpush.msra.mxu0 0.0
        %5922 = vmatpush.msra.mxu0 0.0
        %5923 = vmatpush.msra.mxu0 0.0
        %5924 = vmatpush.msra.mxu0 0.0
        %5925 = vmatpush.msra.mxu0 0.0
        %5926 = vmatpush.msra.mxu0 0.0
        %5927 = vmatpush.msra.mxu0 0.0
        %5928 = vmatpush.msra.mxu0 0.0
        %5929 = vmatpush.msra.mxu0 0.0
        %5930 = vmatpush.msra.mxu0 0.0
        %5931 = vmatpush.msra.mxu0 0.0
        %5932 = vmatpush.msra.mxu0 0.0
        %5933 = vmatpush.msra.mxu0 %v5863
        %5934 = vmatpush.msra.mxu0 %v5862
        %5935 = vmatmul.f32.gmra.mxu0 %v5917
        %v5936 = vpop.f32.mrf.mxu0
        %v5937 = vadd.f32 0.0, %v5936
        %5938 = vdwg.mxu0
        %v5939 = vmax.f32 %v5913, %v5937
        %s5940 = scalar_lea.vmem [#allocation17], 12
        %v5941 = vld [vmem:[%s5940] sm:$0xf]
        %v5943 = vsel %vm4372, %v5941, 0
        %5945 = vmatpush.msra.mxu0 0.0
        %5946 = vmatpush.msra.mxu0 0.0
        %5947 = vmatpush.msra.mxu0 0.0
        %5948 = vmatpush.msra.mxu0 0.0
        %5949 = vmatpush.msra.mxu0 0.0
        %5950 = vmatpush.msra.mxu0 0.0
        %5951 = vmatpush.msra.mxu0 0.0
        %5952 = vmatpush.msra.mxu0 0.0
        %5953 = vmatpush.msra.mxu0 0.0
        %5954 = vmatpush.msra.mxu0 0.0
        %5955 = vmatpush.msra.mxu0 0.0
        %5956 = vmatpush.msra.mxu0 0.0
        %5957 = vmatpush.msra.mxu0 0.0
        %5958 = vmatpush.msra.mxu0 0.0
        %5959 = vmatpush.msra.mxu0 %v5863
        %5960 = vmatpush.msra.mxu0 %v5862
        %5961 = vmatmul.f32.gmra.mxu0 %v5943
        %v5962 = vpop.f32.mrf.mxu0
        %v5963 = vadd.f32 0.0, %v5962
        %5964 = vdwg.mxu0
        %v5965 = vmax.f32 %v5939, %v5963
        %v5966 = vmul.f32 %v5965, 0.01
        %v5967 = vmax.f32 %v5965, %v5966
        %5968 = vst.msk [vmem:[#allocation5] sm:$0xff] %vm5331, 0.0
        %5969 = vst.msk [vmem:[#allocation5 + $0x8] sm:$0xff] %vm5331, 0.0
        %vm5970 = vcmask 519168
        %5971 = vst.msk [vmem:[#allocation5 + $0x10] sm:$0xf] %vm5970, 0.0
        %5972 = vst.msk [vmem:[#allocation5 + $0x8] sm:$0xf] %vm5970, %v5967
        %vm5973 = vcmp.lt.s32.totalorder %v694, 0
        %v5974 = vsub.s32 0, %v694
        %v5975 = vsel %vm5973, %v5974, %v694
        %v5976 = vshrl.u32 %v5975, 1
        %v5977 = vand.u32 %v5975, 1
        %v5978 = vsub.s32 0, %v5977
        %v5979 = vsel %vm5973, %v5978, %v5977
        %vm5980 = vcmp.ne.s32.totalorder %v5979, 0
        %vm5981 = vcmp.lt.s32.totalorder %v5979, 0
        %vm5982 = vmand %vm5981, %vm5980
        %v5983 = vadd.s32 %v5979, 2
        %v5984 = vsel %vm5982, %v5983, %v5979
        %vm5985 = vcmp.ge.s32.totalorder %v5984, 1
        %v5986 = vsel %vm5985, 1.0, 0.0
        %vm5987 = vcmp.lt.s32.totalorder %v5984, 1
        %v5988 = vsel %vm5987, 1.0, 0.0
        %v5989 = vld [vmem:[#allocation18] sm:$0x1]
        %v5991 = vperm.slane %v5989, 0
        %v5993 = vadd.f32 %v5991, 0.0
        %v5994 = vld [vmem:[#allocation5 + $0x5] sm:$0xf]
        %v5995 = vmul.f32 %v5994, %v5986
        %v5996 = vld [vmem:[%s10] sm:$0xff]
        %v5997 = vld [vmem:[%s10 + $0x8] sm:$0xff]
        %v5998 = vld [vmem:[%s10 + $0x10] sm:$0xff]
        %v5999 = vld [vmem:[%s10 + $0x18] sm:$0xff]
        %v6000 = vld [vmem:[%s10 + $0x20] sm:$0xff]
        %v6001 = vld [vmem:[%s10 + $0x28] sm:$0xff]
        %v6002 = vld [vmem:[%s10 + $0x30] sm:$0xff]
        %v6003 = vld [vmem:[%s10 + $0x38] sm:$0xff]
        %v6005 = vsel %vm5331, %v5995, 0
        %6007 = vmatpush.msra.mxu0 0.0
        %6008 = vmatpush.msra.mxu0 0.0
        %6009 = vmatpush.msra.mxu0 0.0
        %6010 = vmatpush.msra.mxu0 0.0
        %6011 = vmatpush.msra.mxu0 0.0
        %6012 = vmatpush.msra.mxu0 0.0
        %6013 = vmatpush.msra.mxu0 0.0
        %6014 = vmatpush.msra.mxu0 0.0
        %6015 = vmatpush.msra.mxu0 %v6003
        %6016 = vmatpush.msra.mxu0 %v6002
        %6017 = vmatpush.msra.mxu0 %v6001
        %6018 = vmatpush.msra.mxu0 %v6000
        %6019 = vmatpush.msra.mxu0 %v5999
        %6020 = vmatpush.msra.mxu0 %v5998
        %6021 = vmatpush.msra.mxu0 %v5997
        %6022 = vmatpush.msra.mxu0 %v5996
        %6023 = vmatmul.f32.gmra.mxu0 %v6005
        %v6024 = vpop.f32.mrf.mxu0
        %v6025 = vadd.f32 0.0, %v6024
        %6026 = vdwg.mxu0
        %v6027 = vadd.f32 %v5993, %v6025
        %v6028 = vld [vmem:[#allocation5 + $0x6] sm:$0xf]
        %s6029 = scalar_lea.vmem %s10, 64
        %v6030 = vld [vmem:[%s6029] sm:$0xff]
        %v6031 = vld [vmem:[%s6029 + $0x8] sm:$0xff]
        %v6032 = vld [vmem:[%s6029 + $0x10] sm:$0xff]
        %v6033 = vld [vmem:[%s6029 + $0x18] sm:$0xff]
        %v6034 = vld [vmem:[%s6029 + $0x20] sm:$0xff]
        %v6035 = vld [vmem:[%s6029 + $0x28] sm:$0xff]
        %v6036 = vld [vmem:[%s6029 + $0x30] sm:$0xff]
        %v6037 = vld [vmem:[%s6029 + $0x38] sm:$0xff]
        %v6039 = vsel %vm5331, %v6028, 0
        %6041 = vmatpush.msra.mxu0 0.0
        %6042 = vmatpush.msra.mxu0 0.0
        %6043 = vmatpush.msra.mxu0 0.0
        %6044 = vmatpush.msra.mxu0 0.0
        %6045 = vmatpush.msra.mxu0 0.0
        %6046 = vmatpush.msra.mxu0 0.0
        %6047 = vmatpush.msra.mxu0 0.0
        %6048 = vmatpush.msra.mxu0 0.0
        %6049 = vmatpush.msra.mxu0 %v6037
        %6050 = vmatpush.msra.mxu0 %v6036
        %6051 = vmatpush.msra.mxu0 %v6035
        %6052 = vmatpush.msra.mxu0 %v6034
        %6053 = vmatpush.msra.mxu0 %v6033
        %6054 = vmatpush.msra.mxu0 %v6032
        %6055 = vmatpush.msra.mxu0 %v6031
        %6056 = vmatpush.msra.mxu0 %v6030
        %6057 = vmatmul.f32.gmra.mxu0 %v6039
        %v6058 = vpop.f32.mrf.mxu0
        %v6059 = vadd.f32 0.0, %v6058
        %6060 = vdwg.mxu0
        %v6061 = vadd.f32 %v6027, %v6059
        %v6062 = vld [vmem:[#allocation5 + $0x7] sm:$0xf]
        %v6063 = vmul.f32 %v6062, %v5988
        %s6064 = scalar_lea.vmem %s10, 128
        %v6065 = vld [vmem:[%s6064] sm:$0xff]
        %v6066 = vld [vmem:[%s6064 + $0x8] sm:$0xff]
        %v6067 = vld [vmem:[%s6064 + $0x10] sm:$0xff]
        %v6068 = vld [vmem:[%s6064 + $0x18] sm:$0xff]
        %v6069 = vld [vmem:[%s6064 + $0x20] sm:$0xff]
        %v6070 = vld [vmem:[%s6064 + $0x28] sm:$0xff]
        %v6071 = vld [vmem:[%s6064 + $0x30] sm:$0xff]
        %v6072 = vld [vmem:[%s6064 + $0x38] sm:$0xff]
        %v6074 = vsel %vm5331, %v6063, 0
        %6076 = vmatpush.msra.mxu0 0.0
        %6077 = vmatpush.msra.mxu0 0.0
        %6078 = vmatpush.msra.mxu0 0.0
        %6079 = vmatpush.msra.mxu0 0.0
        %6080 = vmatpush.msra.mxu0 0.0
        %6081 = vmatpush.msra.mxu0 0.0
        %6082 = vmatpush.msra.mxu0 0.0
        %6083 = vmatpush.msra.mxu0 0.0
        %6084 = vmatpush.msra.mxu0 %v6072
        %6085 = vmatpush.msra.mxu0 %v6071
        %6086 = vmatpush.msra.mxu0 %v6070
        %6087 = vmatpush.msra.mxu0 %v6069
        %6088 = vmatpush.msra.mxu0 %v6068
        %6089 = vmatpush.msra.mxu0 %v6067
        %6090 = vmatpush.msra.mxu0 %v6066
        %6091 = vmatpush.msra.mxu0 %v6065
        %6092 = vmatmul.f32.gmra.mxu0 %v6074
        %v6093 = vpop.f32.mrf.mxu0
        %v6094 = vadd.f32 0.0, %v6093
        %6095 = vdwg.mxu0
        %v6096 = vadd.f32 %v6061, %v6094
        %v6097 = vmul.f32 %v6062, %v5986
        %s6098 = scalar_lea.vmem %s10, 192
        %v6099 = vld [vmem:[%s6098] sm:$0xff]
        %v6100 = vld [vmem:[%s6098 + $0x8] sm:$0xff]
        %v6101 = vld [vmem:[%s6098 + $0x10] sm:$0xff]
        %v6102 = vld [vmem:[%s6098 + $0x18] sm:$0xff]
        %v6103 = vld [vmem:[%s6098 + $0x20] sm:$0xff]
        %v6104 = vld [vmem:[%s6098 + $0x28] sm:$0xff]
        %v6105 = vld [vmem:[%s6098 + $0x30] sm:$0xff]
        %v6106 = vld [vmem:[%s6098 + $0x38] sm:$0xff]
        %v6108 = vsel %vm5331, %v6097, 0
        %6110 = vmatpush.msra.mxu0 0.0
        %6111 = vmatpush.msra.mxu0 0.0
        %6112 = vmatpush.msra.mxu0 0.0
        %6113 = vmatpush.msra.mxu0 0.0
        %6114 = vmatpush.msra.mxu0 0.0
        %6115 = vmatpush.msra.mxu0 0.0
        %6116 = vmatpush.msra.mxu0 0.0
        %6117 = vmatpush.msra.mxu0 0.0
        %6118 = vmatpush.msra.mxu0 %v6106
        %6119 = vmatpush.msra.mxu0 %v6105
        %6120 = vmatpush.msra.mxu0 %v6104
        %6121 = vmatpush.msra.mxu0 %v6103
        %6122 = vmatpush.msra.mxu0 %v6102
        %6123 = vmatpush.msra.mxu0 %v6101
        %6124 = vmatpush.msra.mxu0 %v6100
        %6125 = vmatpush.msra.mxu0 %v6099
        %6126 = vmatmul.f32.gmra.mxu0 %v6108
        %v6127 = vpop.f32.mrf.mxu0
        %v6128 = vadd.f32 0.0, %v6127
        %6129 = vdwg.mxu0
        %v6130 = vadd.f32 %v6096, %v6128
        %v6131 = vld [vmem:[#allocation5 + $0x8] sm:$0xf]
        %s6132 = scalar_lea.vmem %s10, 256
        %v6133 = vld [vmem:[%s6132] sm:$0xff]
        %v6134 = vld [vmem:[%s6132 + $0x8] sm:$0xff]
        %v6135 = vld [vmem:[%s6132 + $0x10] sm:$0xff]
        %v6136 = vld [vmem:[%s6132 + $0x18] sm:$0xff]
        %v6137 = vld [vmem:[%s6132 + $0x20] sm:$0xff]
        %v6138 = vld [vmem:[%s6132 + $0x28] sm:$0xff]
        %v6139 = vld [vmem:[%s6132 + $0x30] sm:$0xff]
        %v6140 = vld [vmem:[%s6132 + $0x38] sm:$0xff]
        %v6142 = vsel %vm5331, %v6131, 0
        %6144 = vmatpush.msra.mxu0 0.0
        %6145 = vmatpush.msra.mxu0 0.0
        %6146 = vmatpush.msra.mxu0 0.0
        %6147 = vmatpush.msra.mxu0 0.0
        %6148 = vmatpush.msra.mxu0 0.0
        %6149 = vmatpush.msra.mxu0 0.0
        %6150 = vmatpush.msra.mxu0 0.0
        %6151 = vmatpush.msra.mxu0 0.0
        %6152 = vmatpush.msra.mxu0 %v6140
        %6153 = vmatpush.msra.mxu0 %v6139
        %6154 = vmatpush.msra.mxu0 %v6138
        %6155 = vmatpush.msra.mxu0 %v6137
        %6156 = vmatpush.msra.mxu0 %v6136
        %6157 = vmatpush.msra.mxu0 %v6135
        %6158 = vmatpush.msra.mxu0 %v6134
        %6159 = vmatpush.msra.mxu0 %v6133
        %6160 = vmatmul.f32.gmra.mxu0 %v6142
        %v6161 = vpop.f32.mrf.mxu0
        %v6162 = vadd.f32 0.0, %v6161
        %6163 = vdwg.mxu0
        %v6164 = vadd.f32 %v6130, %v6162
        %v6165 = vld [vmem:[#allocation5 + $0x9] sm:$0xf]
        %v6166 = vmul.f32 %v6165, %v5988
        %s6167 = scalar_lea.vmem %s10, 320
        %v6168 = vld [vmem:[%s6167] sm:$0xff]
        %v6169 = vld [vmem:[%s6167 + $0x8] sm:$0xff]
        %v6170 = vld [vmem:[%s6167 + $0x10] sm:$0xff]
        %v6171 = vld [vmem:[%s6167 + $0x18] sm:$0xff]
        %v6172 = vld [vmem:[%s6167 + $0x20] sm:$0xff]
        %v6173 = vld [vmem:[%s6167 + $0x28] sm:$0xff]
        %v6174 = vld [vmem:[%s6167 + $0x30] sm:$0xff]
        %v6175 = vld [vmem:[%s6167 + $0x38] sm:$0xff]
        %v6177 = vsel %vm5331, %v6166, 0
        %6179 = vmatpush.msra.mxu0 0.0
        %6180 = vmatpush.msra.mxu0 0.0
        %6181 = vmatpush.msra.mxu0 0.0
        %6182 = vmatpush.msra.mxu0 0.0
        %6183 = vmatpush.msra.mxu0 0.0
        %6184 = vmatpush.msra.mxu0 0.0
        %6185 = vmatpush.msra.mxu0 0.0
        %6186 = vmatpush.msra.mxu0 0.0
        %6187 = vmatpush.msra.mxu0 %v6175
        %6188 = vmatpush.msra.mxu0 %v6174
        %6189 = vmatpush.msra.mxu0 %v6173
        %6190 = vmatpush.msra.mxu0 %v6172
        %6191 = vmatpush.msra.mxu0 %v6171
        %6192 = vmatpush.msra.mxu0 %v6170
        %6193 = vmatpush.msra.mxu0 %v6169
        %6194 = vmatpush.msra.mxu0 %v6168
        %6195 = vmatmul.f32.gmra.mxu0 %v6177
        %v6196 = vpop.f32.mrf.mxu0
        %v6197 = vadd.f32 0.0, %v6196
        %6198 = vdwg.mxu0
        %v6199 = vadd.f32 %v6164, %v6197
        %v6200 = vmul.f32 %v6165, %v5986
        %s6201 = scalar_lea.vmem %s10, 384
        %v6202 = vld [vmem:[%s6201] sm:$0xff]
        %v6203 = vld [vmem:[%s6201 + $0x8] sm:$0xff]
        %v6204 = vld [vmem:[%s6201 + $0x10] sm:$0xff]
        %v6205 = vld [vmem:[%s6201 + $0x18] sm:$0xff]
        %v6206 = vld [vmem:[%s6201 + $0x20] sm:$0xff]
        %v6207 = vld [vmem:[%s6201 + $0x28] sm:$0xff]
        %v6208 = vld [vmem:[%s6201 + $0x30] sm:$0xff]
        %v6209 = vld [vmem:[%s6201 + $0x38] sm:$0xff]
        %v6211 = vsel %vm5331, %v6200, 0
        %6213 = vmatpush.msra.mxu0 0.0
        %6214 = vmatpush.msra.mxu0 0.0
        %6215 = vmatpush.msra.mxu0 0.0
        %6216 = vmatpush.msra.mxu0 0.0
        %6217 = vmatpush.msra.mxu0 0.0
        %6218 = vmatpush.msra.mxu0 0.0
        %6219 = vmatpush.msra.mxu0 0.0
        %6220 = vmatpush.msra.mxu0 0.0
        %6221 = vmatpush.msra.mxu0 %v6209
        %6222 = vmatpush.msra.mxu0 %v6208
        %6223 = vmatpush.msra.mxu0 %v6207
        %6224 = vmatpush.msra.mxu0 %v6206
        %6225 = vmatpush.msra.mxu0 %v6205
        %6226 = vmatpush.msra.mxu0 %v6204
        %6227 = vmatpush.msra.mxu0 %v6203
        %6228 = vmatpush.msra.mxu0 %v6202
        %6229 = vmatmul.f32.gmra.mxu0 %v6211
        %v6230 = vpop.f32.mrf.mxu0
        %v6231 = vadd.f32 0.0, %v6230
        %6232 = vdwg.mxu0
        %v6233 = vadd.f32 %v6199, %v6231
        %v6234 = vld [vmem:[#allocation5 + $0xa] sm:$0xf]
        %s6235 = scalar_lea.vmem %s10, 448
        %v6236 = vld [vmem:[%s6235] sm:$0xff]
        %v6237 = vld [vmem:[%s6235 + $0x8] sm:$0xff]
        %v6238 = vld [vmem:[%s6235 + $0x10] sm:$0xff]
        %v6239 = vld [vmem:[%s6235 + $0x18] sm:$0xff]
        %v6240 = vld [vmem:[%s6235 + $0x20] sm:$0xff]
        %v6241 = vld [vmem:[%s6235 + $0x28] sm:$0xff]
        %v6242 = vld [vmem:[%s6235 + $0x30] sm:$0xff]
        %v6243 = vld [vmem:[%s6235 + $0x38] sm:$0xff]
        %v6245 = vsel %vm5331, %v6234, 0
        %6247 = vmatpush.msra.mxu0 0.0
        %6248 = vmatpush.msra.mxu0 0.0
        %6249 = vmatpush.msra.mxu0 0.0
        %6250 = vmatpush.msra.mxu0 0.0
        %6251 = vmatpush.msra.mxu0 0.0
        %6252 = vmatpush.msra.mxu0 0.0
        %6253 = vmatpush.msra.mxu0 0.0
        %6254 = vmatpush.msra.mxu0 0.0
        %6255 = vmatpush.msra.mxu0 %v6243
        %6256 = vmatpush.msra.mxu0 %v6242
        %6257 = vmatpush.msra.mxu0 %v6241
        %6258 = vmatpush.msra.mxu0 %v6240
        %6259 = vmatpush.msra.mxu0 %v6239
        %6260 = vmatpush.msra.mxu0 %v6238
        %6261 = vmatpush.msra.mxu0 %v6237
        %6262 = vmatpush.msra.mxu0 %v6236
        %6263 = vmatmul.f32.gmra.mxu0 %v6245
        %v6264 = vpop.f32.mrf.mxu0
        %v6265 = vadd.f32 0.0, %v6264
        %6266 = vdwg.mxu0
        %v6267 = vadd.f32 %v6233, %v6265
        %v6268 = vld [vmem:[#allocation5 + $0xb] sm:$0xf]
        %v6269 = vmul.f32 %v6268, %v5988
        %s6270 = scalar_lea.vmem %s10, 512
        %v6271 = vld [vmem:[%s6270] sm:$0xff]
        %v6272 = vld [vmem:[%s6270 + $0x8] sm:$0xff]
        %v6273 = vld [vmem:[%s6270 + $0x10] sm:$0xff]
        %v6274 = vld [vmem:[%s6270 + $0x18] sm:$0xff]
        %v6275 = vld [vmem:[%s6270 + $0x20] sm:$0xff]
        %v6276 = vld [vmem:[%s6270 + $0x28] sm:$0xff]
        %v6277 = vld [vmem:[%s6270 + $0x30] sm:$0xff]
        %v6278 = vld [vmem:[%s6270 + $0x38] sm:$0xff]
        %v6280 = vsel %vm5331, %v6269, 0
        %6282 = vmatpush.msra.mxu0 0.0
        %6283 = vmatpush.msra.mxu0 0.0
        %6284 = vmatpush.msra.mxu0 0.0
        %6285 = vmatpush.msra.mxu0 0.0
        %6286 = vmatpush.msra.mxu0 0.0
        %6287 = vmatpush.msra.mxu0 0.0
        %6288 = vmatpush.msra.mxu0 0.0
        %6289 = vmatpush.msra.mxu0 0.0
        %6290 = vmatpush.msra.mxu0 %v6278
        %6291 = vmatpush.msra.mxu0 %v6277
        %6292 = vmatpush.msra.mxu0 %v6276
        %6293 = vmatpush.msra.mxu0 %v6275
        %6294 = vmatpush.msra.mxu0 %v6274
        %6295 = vmatpush.msra.mxu0 %v6273
        %6296 = vmatpush.msra.mxu0 %v6272
        %6297 = vmatpush.msra.mxu0 %v6271
        %6298 = vmatmul.f32.gmra.mxu0 %v6280
        %v6299 = vpop.f32.mrf.mxu0
        %v6300 = vadd.f32 0.0, %v6299
        %6301 = vdwg.mxu0
        %v6302 = vadd.f32 %v6267, %v6300
        %v6303 = vmul.f32 %v6302, 0.01
        %v6304 = vmax.f32 %v6302, %v6303
        %v6305 = vld [vmem:[%s13] sm:$0x1]
        %v6306 = vld [vmem:[%s12] sm:$0xff]
        %v6307 = vld [vmem:[%s12 + $0x8] sm:$0xff]
        %v6308 = vld [vmem:[%s12 + $0x10] sm:$0xff]
        %v6309 = vld [vmem:[%s12 + $0x18] sm:$0xff]
        %v6310 = vld [vmem:[%s12 + $0x20] sm:$0xff]
        %v6311 = vld [vmem:[%s12 + $0x28] sm:$0xff]
        %v6312 = vld [vmem:[%s12 + $0x30] sm:$0xff]
        %v6313 = vld [vmem:[%s12 + $0x38] sm:$0xff]
        %v6314 = vld [vmem:[%s12 + $0x40] sm:$0xff]
        %v6315 = vld [vmem:[%s12 + $0x48] sm:$0xff]
        %v6316 = vld [vmem:[%s12 + $0x50] sm:$0xff]
        %v6317 = vld [vmem:[%s12 + $0x58] sm:$0xff]
        %v6318 = vld [vmem:[%s12 + $0x60] sm:$0xff]
        %v6319 = vld [vmem:[%s12 + $0x68] sm:$0xff]
        %v6320 = vld [vmem:[%s12 + $0x70] sm:$0xff]
        %v6321 = vld [vmem:[%s12 + $0x78] sm:$0xff]
        %6322 = vmatpush.msra.mxu0 %v6321
        %6323 = vmatpush.msra.mxu0 %v6320
        %6324 = vmatpush.msra.mxu0 %v6319
        %6325 = vmatpush.msra.mxu0 %v6318
        %6326 = vmatpush.msra.mxu0 %v6317
        %6327 = vmatpush.msra.mxu0 %v6316
        %6328 = vmatpush.msra.mxu0 %v6315
        %6329 = vmatpush.msra.mxu0 %v6314
        %6330 = vmatpush.msra.mxu0 %v6313
        %6331 = vmatpush.msra.mxu0 %v6312
        %6332 = vmatpush.msra.mxu0 %v6311
        %6333 = vmatpush.msra.mxu0 %v6310
        %6334 = vmatpush.msra.mxu0 %v6309
        %6335 = vmatpush.msra.mxu0 %v6308
        %6336 = vmatpush.msra.mxu0 %v6307
        %6337 = vmatpush.msra.mxu0 %v6306
        %6338 = vmatmul.f32.gmra.mxu0 %v6304
        %v6339 = vpop.f32.mrf.mxu0
        %v6340 = vadd.f32 0.0, %v6339
        %6341 = vdwg.mxu0
        %v6342 = vadd.f32 %v6305, %v6340
        %s6343 = scalar_lea.vmem %s12, 128
        %v6344 = vld [vmem:[%s6343] sm:$0xff]
        %v6345 = vld [vmem:[%s6343 + $0x8] sm:$0xff]
        %v6346 = vld [vmem:[%s6343 + $0x10] sm:$0xff]
        %v6347 = vld [vmem:[%s6343 + $0x18] sm:$0xff]
        %v6348 = vld [vmem:[%s6343 + $0x20] sm:$0xff]
        %v6349 = vld [vmem:[%s6343 + $0x28] sm:$0xff]
        %v6350 = vld [vmem:[%s6343 + $0x30] sm:$0xff]
        %v6351 = vld [vmem:[%s6343 + $0x38] sm:$0xff]
        %v6352 = vld [vmem:[%s6343 + $0x40] sm:$0xff]
        %v6353 = vld [vmem:[%s6343 + $0x48] sm:$0xff]
        %v6354 = vld [vmem:[%s6343 + $0x50] sm:$0xff]
        %v6355 = vld [vmem:[%s6343 + $0x58] sm:$0xff]
        %v6356 = vld [vmem:[%s6343 + $0x60] sm:$0xff]
        %v6357 = vld [vmem:[%s6343 + $0x68] sm:$0xff]
        %v6358 = vld [vmem:[%s6343 + $0x70] sm:$0xff]
        %v6359 = vld [vmem:[%s6343 + $0x78] sm:$0xff]
        %v6361 = vrot.slane %v6304, 1
        %6363 = vmatpush.msra.mxu0 %v6359
        %6364 = vmatpush.msra.mxu0 %v6358
        %6365 = vmatpush.msra.mxu0 %v6357
        %6366 = vmatpush.msra.mxu0 %v6356
        %6367 = vmatpush.msra.mxu0 %v6355
        %6368 = vmatpush.msra.mxu0 %v6354
        %6369 = vmatpush.msra.mxu0 %v6353
        %6370 = vmatpush.msra.mxu0 %v6352
        %6371 = vmatpush.msra.mxu0 %v6351
        %6372 = vmatpush.msra.mxu0 %v6350
        %6373 = vmatpush.msra.mxu0 %v6349
        %6374 = vmatpush.msra.mxu0 %v6348
        %6375 = vmatpush.msra.mxu0 %v6347
        %6376 = vmatpush.msra.mxu0 %v6346
        %6377 = vmatpush.msra.mxu0 %v6345
        %6378 = vmatpush.msra.mxu0 %v6344
        %6379 = vmatmul.f32.gmra.mxu0 %v6361
        %v6380 = vpop.f32.mrf.mxu0
        %v6381 = vadd.f32 0.0, %v6380
        %6382 = vdwg.mxu0
        %v6383 = vadd.f32 %v6342, %v6381
        %s6384 = scalar_lea.vmem %s12, 256
        %v6385 = vld [vmem:[%s6384] sm:$0xff]
        %v6386 = vld [vmem:[%s6384 + $0x8] sm:$0xff]
        %v6387 = vld [vmem:[%s6384 + $0x10] sm:$0xff]
        %v6388 = vld [vmem:[%s6384 + $0x18] sm:$0xff]
        %v6389 = vld [vmem:[%s6384 + $0x20] sm:$0xff]
        %v6390 = vld [vmem:[%s6384 + $0x28] sm:$0xff]
        %v6391 = vld [vmem:[%s6384 + $0x30] sm:$0xff]
        %v6392 = vld [vmem:[%s6384 + $0x38] sm:$0xff]
        %v6393 = vld [vmem:[%s6384 + $0x40] sm:$0xff]
        %v6394 = vld [vmem:[%s6384 + $0x48] sm:$0xff]
        %v6395 = vld [vmem:[%s6384 + $0x50] sm:$0xff]
        %v6396 = vld [vmem:[%s6384 + $0x58] sm:$0xff]
        %v6397 = vld [vmem:[%s6384 + $0x60] sm:$0xff]
        %v6398 = vld [vmem:[%s6384 + $0x68] sm:$0xff]
        %v6399 = vld [vmem:[%s6384 + $0x70] sm:$0xff]
        %v6400 = vld [vmem:[%s6384 + $0x78] sm:$0xff]
        %v6401 = vrot.slane %v6304, 2
        %6403 = vmatpush.msra.mxu0 %v6400
        %6404 = vmatpush.msra.mxu0 %v6399
        %6405 = vmatpush.msra.mxu0 %v6398
        %6406 = vmatpush.msra.mxu0 %v6397
        %6407 = vmatpush.msra.mxu0 %v6396
        %6408 = vmatpush.msra.mxu0 %v6395
        %6409 = vmatpush.msra.mxu0 %v6394
        %6410 = vmatpush.msra.mxu0 %v6393
        %6411 = vmatpush.msra.mxu0 %v6392
        %6412 = vmatpush.msra.mxu0 %v6391
        %6413 = vmatpush.msra.mxu0 %v6390
        %6414 = vmatpush.msra.mxu0 %v6389
        %6415 = vmatpush.msra.mxu0 %v6388
        %6416 = vmatpush.msra.mxu0 %v6387
        %6417 = vmatpush.msra.mxu0 %v6386
        %6418 = vmatpush.msra.mxu0 %v6385
        %6419 = vmatmul.f32.gmra.mxu0 %v6401
        %v6420 = vpop.f32.mrf.mxu0
        %v6421 = vadd.f32 0.0, %v6420
        %6422 = vdwg.mxu0
        %v6423 = vadd.f32 %v6383, %v6421
        %s6424 = scalar_lea.vmem %s12, 384
        %v6425 = vld [vmem:[%s6424] sm:$0xff]
        %v6426 = vld [vmem:[%s6424 + $0x8] sm:$0xff]
        %v6427 = vld [vmem:[%s6424 + $0x10] sm:$0xff]
        %v6428 = vld [vmem:[%s6424 + $0x18] sm:$0xff]
        %v6429 = vld [vmem:[%s6424 + $0x20] sm:$0xff]
        %v6430 = vld [vmem:[%s6424 + $0x28] sm:$0xff]
        %v6431 = vld [vmem:[%s6424 + $0x30] sm:$0xff]
        %v6432 = vld [vmem:[%s6424 + $0x38] sm:$0xff]
        %v6433 = vld [vmem:[%s6424 + $0x40] sm:$0xff]
        %v6434 = vld [vmem:[%s6424 + $0x48] sm:$0xff]
        %v6435 = vld [vmem:[%s6424 + $0x50] sm:$0xff]
        %v6436 = vld [vmem:[%s6424 + $0x58] sm:$0xff]
        %v6437 = vld [vmem:[%s6424 + $0x60] sm:$0xff]
        %v6438 = vld [vmem:[%s6424 + $0x68] sm:$0xff]
        %v6439 = vld [vmem:[%s6424 + $0x70] sm:$0xff]
        %v6440 = vld [vmem:[%s6424 + $0x78] sm:$0xff]
        %v6441 = vrot.slane %v6304, 3
        %6443 = vmatpush.msra.mxu0 %v6440
        %6444 = vmatpush.msra.mxu0 %v6439
        %6445 = vmatpush.msra.mxu0 %v6438
        %6446 = vmatpush.msra.mxu0 %v6437
        %6447 = vmatpush.msra.mxu0 %v6436
        %6448 = vmatpush.msra.mxu0 %v6435
        %6449 = vmatpush.msra.mxu0 %v6434
        %6450 = vmatpush.msra.mxu0 %v6433
        %6451 = vmatpush.msra.mxu0 %v6432
        %6452 = vmatpush.msra.mxu0 %v6431
        %6453 = vmatpush.msra.mxu0 %v6430
        %6454 = vmatpush.msra.mxu0 %v6429
        %6455 = vmatpush.msra.mxu0 %v6428
        %6456 = vmatpush.msra.mxu0 %v6427
        %6457 = vmatpush.msra.mxu0 %v6426
        %6458 = vmatpush.msra.mxu0 %v6425
        %6459 = vmatmul.f32.gmra.mxu0 %v6441
        %v6460 = vpop.f32.mrf.mxu0
        %v6461 = vadd.f32 0.0, %v6460
        %6462 = vdwg.mxu0
        %v6463 = vadd.f32 %v6423, %v6461
        %vm6464 = vcmask 24576
        %6465 = vst.msk [vmem:[%s584] sm:$0x1] %vm6464, %v6463
        %s6466 = sand.u32 %s340, 1
        %s6467 = scalar_lea.sflag [#allocation8], %s6466
        %s6468 = sand.u32 %s340, 1
        %s6469 = scalar_lea.vmem [#allocation20], %s6468
        // Predicated region
        $region109: #{forward.1} parent=75 // pred_check
          %p6470 = pneg %p350
        $region110: #{forward.1} parent=75 // pred_check_branch
          %6472 = sbr.rel (%p6470) target = $region112
        $region111: #{forward.1} parent=75 // pred_region
          %6474 = vsyncadd %s6467, 0
          %s6475 = scalar_lea.hbm %s14, %s33
          %s6477 = sshll.u32 %s6469, 4
          %s6478 = int_to_ptr.vmem [resolvable:$true] %s6477
          %s6479 = sshll.u32 %s6475, 4
          %s6480 = int_to_ptr.hbm [resolvable:$true] %s6479
          %6482 = dma.vmem_to_hbm [thread:$0]  %s6478, 16, %s6480, %s6467
        $region112: #{forward.1} parent=75 // pred_fallthru
          _
      $region76: #{forward.1} parent=5 // pred_fallthru
        _
      %p6483 = scmp.le.s32.totalorder 2, %s28
      // Predicated region
      $region113: #{forward.1} parent=5 // pred_check
        %p6484 = pneg %p6483
      $region114: #{forward.1} parent=5 // pred_check_branch
        %6486 = sbr.rel (%p6484) target = $region116
      $region115: #{forward.1} parent=5 // pred_region
        %s6487 = ssub.s32 %s28, 2
        // Predicated region
        $region117: #{forward.1} parent=115 // pred_check
          %p6488 = pneg %p356
        $region118: #{forward.1} parent=115 // pred_check_branch
          %6490 = sbr.rel (%p6488) target = $region120
        $region119: #{forward.1} parent=115 // pred_region
          %s6491 = sand.u32 %s341, 1
          %s6492 = scalar_lea.sflag [#allocation8], %s6491
          %s6493 = sand.u32 %s341, 1
          %s6494 = scalar_lea.vmem [#allocation20], %s6493
          %6496 = dma.done %s6492, 16
        $region120: #{forward.1} parent=115 // pred_fallthru
          _
      $region116: #{forward.1} parent=5 // pred_fallthru
        _
    $region6: #{forward.1} parent=1 // loop_footer
      %s32 = sadd.s32 1, %s28
    $region7: #{forward.1} parent=1 // loop_footer_branch
      %27 = sbr.rel target = $region3
    $region8: #{forward.1} parent=1 // loop_exit
      _
    %6497 = vsyncpa [#allocation7], 1
    %s6498 = scalar_lea.sflag [#allocation7], 1
    %6499 = vsyncpa %s6498, 1
    %6500 = vsyncpa [#allocation10], 1
    %6501 = vsyncpa [#allocation13], 1
    %6502 = vsyncpa [#allocation16], 1
    %6503 = vsyncpa [#allocation19], 1
    %6504 = vsyncpa [#allocation8], 1
    %s6505 = scalar_lea.sflag [#allocation8], 1
    %6506 = vsyncpa %s6505, 1

</llo_original>
